<compile_context>
chip_gen: v5e
topology: v5e:2x2
jax: 0.10.0
libtpu: 0.0.40
codegen_flags: <defaults>
</compile_context>

<pallas_src>
import jax
import jax.numpy as jnp
from jax import lax
from jax.experimental import pallas as pl
from jax.experimental.pallas import tpu as pltpu

CIN, COUT, K, H, W = 3, 6, 5, 28, 28     # 28x28 input implied by fc3 = 14*14*6
PH, PW = H // 2, W // 2                  # 14 x 14 after 2x2 maxpool
Q = PH * PW                              # 196 pooled positions per image
PATCH = CIN * K * K                      # 75 im2col columns (c, kh, kw)
C_PAD = 128                              # conv GEMM N padded to full lane width
C_OUT8 = 8                               # channels per lane-group (6 real + 2 zero)
FC_OUT = 2
DUPW = FC_OUT * C_OUT8                   # 16: channel block duplicated per fc output


# ---------------- fused Pallas kernel ----------------

def lenet_fused_kernel(p_ref, wc_ref, bc_ref, wrep_ref, sel_ref, lmap_ref,
                       bfc_ref, o_ref):
    # p_ref   : (4, TQ, 75)  bf16  4 pooling-window slabs of im2col rows (b,ph,pw)
    # wc_ref  : (75, 128)    bf16  conv weight, channel c at lanes c and 8+c
    # bc_ref  : (1, 128)     f32   conv bias (same duplication)
    # wrep_ref: (TQ, 128)    f32   fc3 weight per pooled position, lane 8*o+c
    # sel_ref : (TB, TQ)     f32   row -> image selector (per-image row sum)
    # lmap_ref: (128, 128)   f32   lane-group -> logit column map
    # bfc_ref : (1, 128)     f32   fc3 bias (cols 0..1)
    # o_ref   : (TB, 128)    f32   logits (lane-dense; cols 0..1 real)
    wc = wc_ref[...]
    # conv GEMM per 2x2-pool slab; running max over slabs == MaxPool2d(2, 2)
    pooled = jnp.dot(p_ref[0], wc, preferred_element_type=jnp.float32)
    for s in range(1, 4):
        pooled = jnp.maximum(
            pooled, jnp.dot(p_ref[s], wc, preferred_element_type=jnp.float32))
    # bias + ReLU applied once, after the max (exact by monotonicity)
    pooled = jnp.maximum(pooled + bc_ref[...], 0.0)
    # fused fc3: position-dependent weight multiply, then per-image sums on MXU
    prod = pooled * wrep_ref[...]                                  # (TQ, 128)
    z = jnp.dot(sel_ref[...], prod, preferred_element_type=jnp.float32)   # (TB,128)
    o_ref[...] = (jnp.dot(z, lmap_ref[...], preferred_element_type=jnp.float32)
                  + bfc_ref[...])


# ---------------- host-side glue ----------------

def _pick_tb(batch):
    # batch tile per grid step: big enough to amortize per-step overhead,
    # small enough to keep >=2 grid steps (v7x megacore) at moderate batch.
    if batch >= 32:
        return 16
    if batch >= 8:
        return 8
    return ((batch + 1) // 2) * 2        # keep TB even so TB*196 % 8 == 0


def _im2col_pool_grouped(x):
    # x: (BP, 3, 28, 28) f32 -> (4, BP*196, 75) bf16
    # slab = 2x2-pool window offset (sh, sw); rows ordered (b, ph, pw);
    # cols ordered (c, kh, kw).  Stride-2 slices avoid the big 6-D transpose.
    BP = x.shape[0]
    xp = jnp.pad(x.astype(jnp.bfloat16), ((0, 0), (0, 0), (2, 2), (2, 2)))
    slabs = []
    for sh in range(2):
        for sw in range(2):
            cols = [xp[:, :, sh + kh: sh + kh + 2 * PH: 2,
                            sw + kw: sw + kw + 2 * PW: 2]
                    for kh in range(K) for kw in range(K)]     # 25 x (BP,3,14,14)
            pat = jnp.stack(cols, axis=2)                      # (BP, 3, 25, 14, 14)
            pat = pat.transpose(0, 3, 4, 1, 2)                 # (BP, 14, 14, 3, 25)
            slabs.append(pat.reshape(BP * Q, PATCH))
    return jnp.stack(slabs, axis=0)                            # (4, BP*196, 75) bf16


def prepare_params(params):
    # hoist all weight reorders / pads out of the per-call path (run once)
    w_conv, b_conv, w_fc, b_fc = params
    # conv weight (75, 128) bf16: channel c duplicated at lanes o*8 + c (o=0,1)
    wc = w_conv.reshape(COUT, PATCH).T                                   # (75, 6)
    wc2 = jnp.pad(jnp.tile(wc[:, None, :], (1, FC_OUT, 1)),
                  ((0, 0), (0, 0), (0, C_OUT8 - COUT)))                  # (75, 2, 8)
    w_conv_mat = jnp.pad(wc2.reshape(PATCH, DUPW),
                         ((0, 0), (0, C_PAD - DUPW))).astype(jnp.bfloat16)
    bc2 = jnp.pad(jnp.tile(b_conv[None, :], (FC_OUT, 1)),
                  ((0, 0), (0, C_OUT8 - COUT))).reshape(1, DUPW)
    b_conv_mat = jnp.pad(bc2, ((0, 0), (0, C_PAD - DUPW)))               # (1,128) f32
    # fc3 weight per pooled position q: lane 8*o + c holds w_fc[o, c*196 + q]
    wf = w_fc.reshape(FC_OUT, COUT, Q).transpose(2, 0, 1)                # (196, 2, 6)
    wf = jnp.pad(wf, ((0, 0), (0, 0), (0, C_OUT8 - COUT)))               # (196, 2, 8)
    wq = jnp.pad(wf.reshape(Q, DUPW), ((0, 0), (0, C_PAD - DUPW)))       # (196,128) f32
    # lane-group -> logit map: lanes 8*o .. 8*o+7 sum into output column o
    lane = jnp.arange(C_PAD)[:, None]
    col = jnp.arange(C_PAD)[None, :]
    lmap = (((lane // C_OUT8) == col) & (col < FC_OUT)).astype(jnp.float32)
    b_fc_row = jnp.pad(b_fc.reshape(1, FC_OUT), ((0, 0), (0, C_PAD - FC_OUT)))
    return w_conv_mat, b_conv_mat, wq, lmap, b_fc_row


def lenet_forward(x, prep):
    w_conv_mat, b_conv_mat, wq, lmap, b_fc_row = prep
    B = x.shape[0]
    TB = _pick_tb(B)
    BP = ((B + TB - 1) // TB) * TB
    if BP != B:
        x = jnp.pad(x, ((0, BP - B), (0, 0), (0, 0), (0, 0)))

    patches = _im2col_pool_grouped(x)                     # (4, BP*196, 75) bf16
    TQ = TB * Q                                           # rows per grid step

    # per-tile constants (resident in VMEM; built once per jit trace)
    wrep = jnp.tile(wq, (TB, 1))                          # (TQ, 128) f32
    sel = (lax.broadcasted_iota(jnp.int32, (TB, TQ), 0) ==
           lax.broadcasted_iota(jnp.int32, (TB, TQ), 1) // Q).astype(jnp.float32)

    logits = pl.pallas_call(
        lenet_fused_kernel,
        out_shape=jax.ShapeDtypeStruct((BP, C_PAD), jnp.float32),
        grid=(BP // TB,),
        in_specs=[
            pl.BlockSpec((4, TQ, PATCH), lambda i: (0, i, 0)),
            pl.BlockSpec((PATCH, C_PAD), lambda i: (0, 0)),
            pl.BlockSpec((1, C_PAD), lambda i: (0, 0)),
            pl.BlockSpec((TQ, C_PAD), lambda i: (0, 0)),
            pl.BlockSpec((TB, TQ), lambda i: (0, 0)),
            pl.BlockSpec((C_PAD, C_PAD), lambda i: (0, 0)),
            pl.BlockSpec((1, C_PAD), lambda i: (0, 0)),
        ],
        out_specs=pl.BlockSpec((TB, C_PAD), lambda i: (i, 0)),
        compiler_params=pltpu.CompilerParams(
            dimension_semantics=("parallel",),
            vmem_limit_bytes=40 * 1024 * 1024),
    )(patches, w_conv_mat, b_conv_mat, wrep, sel, lmap, b_fc_row)

    return logits[:B, :FC_OUT]


def lenet_reference(x, params):
    # pure-JAX f32 reference for correctness checking
    w_conv, b_conv, w_fc, b_fc = params
    conv = lax.conv_general_dilated(
        x, w_conv, window_strides=(1, 1), padding=((2, 2), (2, 2)),
        dimension_numbers=("NCHW", "OIHW", "NCHW"))
    conv = jnp.maximum(conv + b_conv.reshape(1, COUT, 1, 1), 0.0)
    pooled = lax.reduce_window(conv, -jnp.inf, lax.max,
                               (1, 1, 2, 2), (1, 1, 2, 2), "VALID")
    flat = pooled.reshape(x.shape[0], -1)
    return flat @ w_fc.T + b_fc


if __name__ == "__main__":
    key = jax.random.PRNGKey(0)
    k1, k2, k3, k4, k5 = jax.random.split(key, 5)
    B = 8
    x = jax.random.normal(k1, (B, CIN, H, W), dtype=jnp.float32)
    # deterministic synthetic parameters (shapes from nn.Conv2d / nn.Linear)
    w_conv = jax.random.normal(k2, (COUT, CIN, K, K), dtype=jnp.float32) * 0.1
    b_conv = jax.random.normal(k3, (COUT,), dtype=jnp.float32) * 0.1
    w_fc = jax.random.normal(k4, (FC_OUT, PH * PW * COUT), dtype=jnp.float32) * 0.05
    b_fc = jax.random.normal(k5, (FC_OUT,), dtype=jnp.float32) * 0.05
    params = (w_conv, b_conv, w_fc, b_fc)

    prep = prepare_params(params)                      # one-time weight prep
    fwd = jax.jit(lenet_forward)
    out = jax.block_until_ready(fwd(x, prep))
    ref = jax.block_until_ready(lenet_reference(x, params))

    assert out.shape == (B, FC_OUT), out.shape
    # tolerance reflects bf16 im2col patches / conv-GEMM operands
    assert jnp.allclose(out, ref, atol=3e-2, rtol=3e-2), (out, ref)
    print("KERNEL_OK")
</pallas_src>

<mosaic_0001>
module attributes {stable_mosaic.version = 11 : i64} {
  func.func @lenet_fused_kernel(%arg0: i32, %arg1: memref<4x1568x75xbf16, #tpu.memory_space<vmem>>, %arg2: memref<75x128xbf16, #tpu.memory_space<vmem>>, %arg3: memref<1x128xf32, #tpu.memory_space<vmem>>, %arg4: memref<1568x128xf32, #tpu.memory_space<vmem>>, %arg5: memref<8x1568xf32, #tpu.memory_space<vmem>>, %arg6: memref<128x128xf32, #tpu.memory_space<vmem>>, %arg7: memref<1x128xf32, #tpu.memory_space<vmem>>, %arg8: memref<8x128xf32, #tpu.memory_space<vmem>>) attributes {dimension_semantics = [#tpu.dimension_semantics<parallel>], iteration_bounds = array<i64: 1>, scalar_prefetch = 0 : i64, scratch_operands = 0 : i64, tpu.core_type = #tpu.core_type<tc>, window_params = [{transform_indices = @transform_0, window_bounds = array<i64: 4, 1568, 75>}, {pipeline_mode = #tpu.pipeline_mode<synchronous>, transform_indices = @transform_1, window_bounds = array<i64: 75, 128>}, {pipeline_mode = #tpu.pipeline_mode<synchronous>, transform_indices = @transform_2, window_bounds = array<i64: 1, 128>}, {pipeline_mode = #tpu.pipeline_mode<synchronous>, transform_indices = @transform_3, window_bounds = array<i64: 1568, 128>}, {pipeline_mode = #tpu.pipeline_mode<synchronous>, transform_indices = @transform_4, window_bounds = array<i64: 8, 1568>}, {pipeline_mode = #tpu.pipeline_mode<synchronous>, transform_indices = @transform_5, window_bounds = array<i64: 128, 128>}, {pipeline_mode = #tpu.pipeline_mode<synchronous>, transform_indices = @transform_6, window_bounds = array<i64: 1, 128>}, {transform_indices = @transform_7, window_bounds = array<i64: 8, 128>}]} {
    %c0 = arith.constant 0 : index
    %c0_0 = arith.constant 0 : index
    %0 = vector.load %arg2[%c0, %c0_0] : memref<75x128xbf16, #tpu.memory_space<vmem>>, vector<75x128xbf16>
    %c0_1 = arith.constant 0 : index
    %c0_2 = arith.constant 0 : index
    %c0_3 = arith.constant 0 : index
    %1 = vector.load %arg1[%c0_1, %c0_2, %c0_3] : memref<4x1568x75xbf16, #tpu.memory_space<vmem>>, vector<1x1568x75xbf16>
    %2 = vector.shape_cast %1 : vector<1x1568x75xbf16> to vector<1568x75xbf16>
    %cst = arith.constant dense<0.000000e+00> : vector<1568x128xf32>
    %3 = tpu.matmul %2, %0, %cst {dimension_numbers = #tpu.dot_dimension_numbers<[1], [0], [0], [1], [0, 0, 1, 1], [], []>} : vector<1568x75xbf16>, vector<75x128xbf16>, vector<1568x128xf32> -> vector<1568x128xf32>
    %c1 = arith.constant 1 : index
    %c0_4 = arith.constant 0 : index
    %c0_5 = arith.constant 0 : index
    %4 = vector.load %arg1[%c1, %c0_4, %c0_5] : memref<4x1568x75xbf16, #tpu.memory_space<vmem>>, vector<1x1568x75xbf16>
    %5 = vector.shape_cast %4 : vector<1x1568x75xbf16> to vector<1568x75xbf16>
    %cst_6 = arith.constant dense<0.000000e+00> : vector<1568x128xf32>
    %6 = tpu.matmul %5, %0, %cst_6 {dimension_numbers = #tpu.dot_dimension_numbers<[1], [0], [0], [1], [0, 0, 1, 1], [], []>} : vector<1568x75xbf16>, vector<75x128xbf16>, vector<1568x128xf32> -> vector<1568x128xf32>
    %7 = arith.maximumf %3, %6 : vector<1568x128xf32>
    %c2 = arith.constant 2 : index
    %c0_7 = arith.constant 0 : index
    %c0_8 = arith.constant 0 : index
    %8 = vector.load %arg1[%c2, %c0_7, %c0_8] : memref<4x1568x75xbf16, #tpu.memory_space<vmem>>, vector<1x1568x75xbf16>
    %9 = vector.shape_cast %8 : vector<1x1568x75xbf16> to vector<1568x75xbf16>
    %cst_9 = arith.constant dense<0.000000e+00> : vector<1568x128xf32>
    %10 = tpu.matmul %9, %0, %cst_9 {dimension_numbers = #tpu.dot_dimension_numbers<[1], [0], [0], [1], [0, 0, 1, 1], [], []>} : vector<1568x75xbf16>, vector<75x128xbf16>, vector<1568x128xf32> -> vector<1568x128xf32>
    %11 = arith.maximumf %7, %10 : vector<1568x128xf32>
    %c3 = arith.constant 3 : index
    %c0_10 = arith.constant 0 : index
    %c0_11 = arith.constant 0 : index
    %12 = vector.load %arg1[%c3, %c0_10, %c0_11] : memref<4x1568x75xbf16, #tpu.memory_space<vmem>>, vector<1x1568x75xbf16>
    %13 = vector.shape_cast %12 : vector<1x1568x75xbf16> to vector<1568x75xbf16>
    %cst_12 = arith.constant dense<0.000000e+00> : vector<1568x128xf32>
    %14 = tpu.matmul %13, %0, %cst_12 {dimension_numbers = #tpu.dot_dimension_numbers<[1], [0], [0], [1], [0, 0, 1, 1], [], []>} : vector<1568x75xbf16>, vector<75x128xbf16>, vector<1568x128xf32> -> vector<1568x128xf32>
    %15 = arith.maximumf %11, %14 : vector<1568x128xf32>
    %c0_13 = arith.constant 0 : index
    %c0_14 = arith.constant 0 : index
    %16 = vector.load %arg3[%c0_13, %c0_14] : memref<1x128xf32, #tpu.memory_space<vmem>>, vector<1x128xf32>
    %17 = vector.broadcast %16 : vector<1x128xf32> to vector<1568x128xf32>
    %18 = arith.addf %15, %17 : vector<1568x128xf32>
    %cst_15 = arith.constant 0.000000e+00 : f32
    %19 = vector.broadcast %cst_15 : f32 to vector<1568x128xf32>
    %20 = arith.maximumf %18, %19 : vector<1568x128xf32>
    %c0_16 = arith.constant 0 : index
    %c0_17 = arith.constant 0 : index
    %21 = vector.load %arg4[%c0_16, %c0_17] : memref<1568x128xf32, #tpu.memory_space<vmem>>, vector<1568x128xf32>
    %22 = arith.mulf %20, %21 : vector<1568x128xf32>
    %c0_18 = arith.constant 0 : index
    %c0_19 = arith.constant 0 : index
    %23 = vector.load %arg5[%c0_18, %c0_19] : memref<8x1568xf32, #tpu.memory_space<vmem>>, vector<8x1568xf32>
    %cst_20 = arith.constant dense<0.000000e+00> : vector<8x128xf32>
    %24 = tpu.matmul %23, %22, %cst_20 {dimension_numbers = #tpu.dot_dimension_numbers<[1], [0], [0], [1], [0, 0, 1, 1], [], []>} : vector<8x1568xf32>, vector<1568x128xf32>, vector<8x128xf32> -> vector<8x128xf32>
    %c0_21 = arith.constant 0 : index
    %c0_22 = arith.constant 0 : index
    %25 = vector.load %arg6[%c0_21, %c0_22] : memref<128x128xf32, #tpu.memory_space<vmem>>, vector<128x128xf32>
    %cst_23 = arith.constant dense<0.000000e+00> : vector<8x128xf32>
    %26 = tpu.matmul %24, %25, %cst_23 {dimension_numbers = #tpu.dot_dimension_numbers<[1], [0], [0], [1], [0, 0, 1, 1], [], []>} : vector<8x128xf32>, vector<128x128xf32>, vector<8x128xf32> -> vector<8x128xf32>
    %c0_24 = arith.constant 0 : index
    %c0_25 = arith.constant 0 : index
    %27 = vector.load %arg7[%c0_24, %c0_25] : memref<1x128xf32, #tpu.memory_space<vmem>>, vector<1x128xf32>
    %28 = vector.broadcast %27 : vector<1x128xf32> to vector<8x128xf32>
    %29 = arith.addf %26, %28 : vector<8x128xf32>
    %c0_26 = arith.constant 0 : index
    %c0_27 = arith.constant 0 : index
    %30 = vector.load %arg8[%c0_26, %c0_27] : memref<8x128xf32, #tpu.memory_space<vmem>>, vector<8x128xf32>
    tpu.vector_store %arg8[%c0_26, %c0_27], %29 {strides = array<i32>} : memref<8x128xf32, #tpu.memory_space<vmem>>, vector<8x128xf32>,
    return
  }
  func.func @transform_0(%arg0: i32) -> (i32, i32, i32) {
    %c0_i32 = arith.constant 0 : i32
    %c0_i32_0 = arith.constant 0 : i32
    %c0_i32_1 = arith.constant 0 : i32
    return %c0_i32, %arg0, %c0_i32_0 : i32, i32, i32
  }
  func.func @transform_1(%arg0: i32) -> (i32, i32) {
    %c0_i32 = arith.constant 0 : i32
    %c0_i32_0 = arith.constant 0 : i32
    %c0_i32_1 = arith.constant 0 : i32
    return %c0_i32, %c0_i32_0 : i32, i32
  }
  func.func @transform_2(%arg0: i32) -> (i32, i32) {
    %c0_i32 = arith.constant 0 : i32
    %c0_i32_0 = arith.constant 0 : i32
    %c0_i32_1 = arith.constant 0 : i32
    return %c0_i32, %c0_i32_0 : i32, i32
  }
  func.func @transform_3(%arg0: i32) -> (i32, i32) {
    %c0_i32 = arith.constant 0 : i32
    %c0_i32_0 = arith.constant 0 : i32
    %c0_i32_1 = arith.constant 0 : i32
    return %c0_i32, %c0_i32_0 : i32, i32
  }
  func.func @transform_4(%arg0: i32) -> (i32, i32) {
    %c0_i32 = arith.constant 0 : i32
    %c0_i32_0 = arith.constant 0 : i32
    %c0_i32_1 = arith.constant 0 : i32
    return %c0_i32, %c0_i32_0 : i32, i32
  }
  func.func @transform_5(%arg0: i32) -> (i32, i32) {
    %c0_i32 = arith.constant 0 : i32
    %c0_i32_0 = arith.constant 0 : i32
    %c0_i32_1 = arith.constant 0 : i32
    return %c0_i32, %c0_i32_0 : i32, i32
  }
  func.func @transform_6(%arg0: i32) -> (i32, i32) {
    %c0_i32 = arith.constant 0 : i32
    %c0_i32_0 = arith.constant 0 : i32
    %c0_i32_1 = arith.constant 0 : i32
    return %c0_i32, %c0_i32_0 : i32, i32
  }
  func.func @transform_7(%arg0: i32) -> (i32, i32) {
    %c0_i32 = arith.constant 0 : i32
    %c0_i32_0 = arith.constant 0 : i32
    return %arg0, %c0_i32 : i32, i32
  }
}

</mosaic_0001>

<llo_original>
// kernel: tile.9
$region0: #{tile.9}
  %s0 = inlined_call_operand.vmem [shape: f32[8,196,128], index: 0, kind: input, shape index: {}]
  %s1 = inlined_call_operand.vmem [shape: f32[1568,128], index: 1, kind: output, shape index: {}]
  %v2 = vld [vmem:[%s0] sm:$0xff]
  %3 = vst [vmem:[%s1] sm:$0xff] %v2
  %s4 = scalar_lea.vmem %s0, 8
  %v5 = vld [vmem:[%s4] sm:$0xff]
  %s6 = scalar_lea.vmem %s1, 8
  %7 = vst [vmem:[%s6] sm:$0xff] %v5
  %s8 = scalar_lea.vmem %s0, 16
  %v9 = vld [vmem:[%s8] sm:$0xff]
  %s10 = scalar_lea.vmem %s1, 16
  %11 = vst [vmem:[%s10] sm:$0xff] %v9
  %s12 = scalar_lea.vmem %s0, 24
  %v13 = vld [vmem:[%s12] sm:$0xff]
  %s14 = scalar_lea.vmem %s1, 24
  %15 = vst [vmem:[%s14] sm:$0xff] %v13
  %s16 = scalar_lea.vmem %s0, 32
  %v17 = vld [vmem:[%s16] sm:$0xff]
  %s18 = scalar_lea.vmem %s1, 32
  %19 = vst [vmem:[%s18] sm:$0xff] %v17
  %s20 = scalar_lea.vmem %s0, 40
  %v21 = vld [vmem:[%s20] sm:$0xff]
  %s22 = scalar_lea.vmem %s1, 40
  %23 = vst [vmem:[%s22] sm:$0xff] %v21
  %s24 = scalar_lea.vmem %s0, 48
  %v25 = vld [vmem:[%s24] sm:$0xff]
  %s26 = scalar_lea.vmem %s1, 48
  %27 = vst [vmem:[%s26] sm:$0xff] %v25
  %s28 = scalar_lea.vmem %s0, 56
  %v29 = vld [vmem:[%s28] sm:$0xff]
  %s30 = scalar_lea.vmem %s1, 56
  %31 = vst [vmem:[%s30] sm:$0xff] %v29
  %s32 = scalar_lea.vmem %s0, 64
  %v33 = vld [vmem:[%s32] sm:$0xff]
  %s34 = scalar_lea.vmem %s1, 64
  %35 = vst [vmem:[%s34] sm:$0xff] %v33
  %s36 = scalar_lea.vmem %s0, 72
  %v37 = vld [vmem:[%s36] sm:$0xff]
  %s38 = scalar_lea.vmem %s1, 72
  %39 = vst [vmem:[%s38] sm:$0xff] %v37
  %s40 = scalar_lea.vmem %s0, 80
  %v41 = vld [vmem:[%s40] sm:$0xff]
  %s42 = scalar_lea.vmem %s1, 80
  %43 = vst [vmem:[%s42] sm:$0xff] %v41
  %s44 = scalar_lea.vmem %s0, 88
  %v45 = vld [vmem:[%s44] sm:$0xff]
  %s46 = scalar_lea.vmem %s1, 88
  %47 = vst [vmem:[%s46] sm:$0xff] %v45
  %s48 = scalar_lea.vmem %s0, 96
  %v49 = vld [vmem:[%s48] sm:$0xff]
  %s50 = scalar_lea.vmem %s1, 96
  %51 = vst [vmem:[%s50] sm:$0xff] %v49
  %s52 = scalar_lea.vmem %s0, 104
  %v53 = vld [vmem:[%s52] sm:$0xff]
  %s54 = scalar_lea.vmem %s1, 104
  %55 = vst [vmem:[%s54] sm:$0xff] %v53
  %s56 = scalar_lea.vmem %s0, 112
  %v57 = vld [vmem:[%s56] sm:$0xff]
  %s58 = scalar_lea.vmem %s1, 112
  %59 = vst [vmem:[%s58] sm:$0xff] %v57
  %s60 = scalar_lea.vmem %s0, 120
  %v61 = vld [vmem:[%s60] sm:$0xff]
  %s62 = scalar_lea.vmem %s1, 120
  %63 = vst [vmem:[%s62] sm:$0xff] %v61
  %s64 = scalar_lea.vmem %s0, 128
  %v65 = vld [vmem:[%s64] sm:$0xff]
  %s66 = scalar_lea.vmem %s1, 128
  %67 = vst [vmem:[%s66] sm:$0xff] %v65
  %s68 = scalar_lea.vmem %s0, 136
  %v69 = vld [vmem:[%s68] sm:$0xff]
  %s70 = scalar_lea.vmem %s1, 136
  %71 = vst [vmem:[%s70] sm:$0xff] %v69
  %s72 = scalar_lea.vmem %s0, 144
  %v73 = vld [vmem:[%s72] sm:$0xff]
  %s74 = scalar_lea.vmem %s1, 144
  %75 = vst [vmem:[%s74] sm:$0xff] %v73
  %s76 = scalar_lea.vmem %s0, 152
  %v77 = vld [vmem:[%s76] sm:$0xff]
  %s78 = scalar_lea.vmem %s1, 152
  %79 = vst [vmem:[%s78] sm:$0xff] %v77
  %s80 = scalar_lea.vmem %s0, 160
  %v81 = vld [vmem:[%s80] sm:$0xff]
  %s82 = scalar_lea.vmem %s1, 160
  %83 = vst [vmem:[%s82] sm:$0xff] %v81
  %s84 = scalar_lea.vmem %s0, 168
  %v85 = vld [vmem:[%s84] sm:$0xff]
  %s86 = scalar_lea.vmem %s1, 168
  %87 = vst [vmem:[%s86] sm:$0xff] %v85
  %s88 = scalar_lea.vmem %s0, 176
  %v89 = vld [vmem:[%s88] sm:$0xff]
  %s90 = scalar_lea.vmem %s1, 176
  %91 = vst [vmem:[%s90] sm:$0xff] %v89
  %s92 = scalar_lea.vmem %s0, 184
  %v93 = vld [vmem:[%s92] sm:$0xff]
  %s94 = scalar_lea.vmem %s1, 184
  %95 = vst [vmem:[%s94] sm:$0xff] %v93
  %s96 = scalar_lea.vmem %s0, 192
  %v97 = vld [vmem:[%s96] sm:$0xf]
  %s98 = scalar_lea.vmem %s1, 192
  %99 = vst [vmem:[%s98] sm:$0xf] %v97
  %s100 = scalar_lea.vmem %s0, 200
  %v101 = vld [vmem:[%s100] sm:$0xff]
  %s102 = scalar_lea.vmem %s1, 196
  %103 = vst [vmem:[%s102] sm:$0xff] %v101
  %s104 = scalar_lea.vmem %s0, 208
  %v105 = vld [vmem:[%s104] sm:$0xff]
  %s106 = scalar_lea.vmem %s1, 204
  %107 = vst [vmem:[%s106] sm:$0xff] %v105
  %s108 = scalar_lea.vmem %s0, 216
  %v109 = vld [vmem:[%s108] sm:$0xff]
  %s110 = scalar_lea.vmem %s1, 212
  %111 = vst [vmem:[%s110] sm:$0xff] %v109
  %s112 = scalar_lea.vmem %s0, 224
  %v113 = vld [vmem:[%s112] sm:$0xff]
  %s114 = scalar_lea.vmem %s1, 220
  %115 = vst [vmem:[%s114] sm:$0xff] %v113
  %s116 = scalar_lea.vmem %s0, 232
  %v117 = vld [vmem:[%s116] sm:$0xff]
  %s118 = scalar_lea.vmem %s1, 228
  %119 = vst [vmem:[%s118] sm:$0xff] %v117
  %s120 = scalar_lea.vmem %s0, 240
  %v121 = vld [vmem:[%s120] sm:$0xff]
  %s122 = scalar_lea.vmem %s1, 236
  %123 = vst [vmem:[%s122] sm:$0xff] %v121
  %s124 = scalar_lea.vmem %s0, 248
  %v125 = vld [vmem:[%s124] sm:$0xff]
  %s126 = scalar_lea.vmem %s1, 244
  %127 = vst [vmem:[%s126] sm:$0xff] %v125
  %s128 = scalar_lea.vmem %s0, 256
  %v129 = vld [vmem:[%s128] sm:$0xff]
  %s130 = scalar_lea.vmem %s1, 252
  %131 = vst [vmem:[%s130] sm:$0xff] %v129
  %s132 = scalar_lea.vmem %s0, 264
  %v133 = vld [vmem:[%s132] sm:$0xff]
  %s134 = scalar_lea.vmem %s1, 260
  %135 = vst [vmem:[%s134] sm:$0xff] %v133
  %s136 = scalar_lea.vmem %s0, 272
  %v137 = vld [vmem:[%s136] sm:$0xff]
  %s138 = scalar_lea.vmem %s1, 268
  %139 = vst [vmem:[%s138] sm:$0xff] %v137
  %s140 = scalar_lea.vmem %s0, 280
  %v141 = vld [vmem:[%s140] sm:$0xff]
  %s142 = scalar_lea.vmem %s1, 276
  %143 = vst [vmem:[%s142] sm:$0xff] %v141
  %s144 = scalar_lea.vmem %s0, 288
  %v145 = vld [vmem:[%s144] sm:$0xff]
  %s146 = scalar_lea.vmem %s1, 284
  %147 = vst [vmem:[%s146] sm:$0xff] %v145
  %s148 = scalar_lea.vmem %s0, 296
  %v149 = vld [vmem:[%s148] sm:$0xff]
  %s150 = scalar_lea.vmem %s1, 292
  %151 = vst [vmem:[%s150] sm:$0xff] %v149
  %s152 = scalar_lea.vmem %s0, 304
  %v153 = vld [vmem:[%s152] sm:$0xff]
  %s154 = scalar_lea.vmem %s1, 300
  %155 = vst [vmem:[%s154] sm:$0xff] %v153
  %s156 = scalar_lea.vmem %s0, 312
  %v157 = vld [vmem:[%s156] sm:$0xff]
  %s158 = scalar_lea.vmem %s1, 308
  %159 = vst [vmem:[%s158] sm:$0xff] %v157
  %s160 = scalar_lea.vmem %s0, 320
  %v161 = vld [vmem:[%s160] sm:$0xff]
  %s162 = scalar_lea.vmem %s1, 316
  %163 = vst [vmem:[%s162] sm:$0xff] %v161
  %s164 = scalar_lea.vmem %s0, 328
  %v165 = vld [vmem:[%s164] sm:$0xff]
  %s166 = scalar_lea.vmem %s1, 324
  %167 = vst [vmem:[%s166] sm:$0xff] %v165
  %s168 = scalar_lea.vmem %s0, 336
  %v169 = vld [vmem:[%s168] sm:$0xff]
  %s170 = scalar_lea.vmem %s1, 332
  %171 = vst [vmem:[%s170] sm:$0xff] %v169
  %s172 = scalar_lea.vmem %s0, 344
  %v173 = vld [vmem:[%s172] sm:$0xff]
  %s174 = scalar_lea.vmem %s1, 340
  %175 = vst [vmem:[%s174] sm:$0xff] %v173
  %s176 = scalar_lea.vmem %s0, 352
  %v177 = vld [vmem:[%s176] sm:$0xff]
  %s178 = scalar_lea.vmem %s1, 348
  %179 = vst [vmem:[%s178] sm:$0xff] %v177
  %s180 = scalar_lea.vmem %s0, 360
  %v181 = vld [vmem:[%s180] sm:$0xff]
  %s182 = scalar_lea.vmem %s1, 356
  %183 = vst [vmem:[%s182] sm:$0xff] %v181
  %s184 = scalar_lea.vmem %s0, 368
  %v185 = vld [vmem:[%s184] sm:$0xff]
  %s186 = scalar_lea.vmem %s1, 364
  %187 = vst [vmem:[%s186] sm:$0xff] %v185
  %s188 = scalar_lea.vmem %s0, 376
  %v189 = vld [vmem:[%s188] sm:$0xff]
  %s190 = scalar_lea.vmem %s1, 372
  %191 = vst [vmem:[%s190] sm:$0xff] %v189
  %s192 = scalar_lea.vmem %s0, 384
  %v193 = vld [vmem:[%s192] sm:$0xff]
  %s194 = scalar_lea.vmem %s1, 380
  %195 = vst [vmem:[%s194] sm:$0xff] %v193
  %s196 = scalar_lea.vmem %s0, 392
  %v197 = vld [vmem:[%s196] sm:$0xf]
  %s198 = scalar_lea.vmem %s1, 388
  %199 = vst [vmem:[%s198] sm:$0xf] %v197
  %s200 = scalar_lea.vmem %s0, 400
  %v201 = vld [vmem:[%s200] sm:$0xff]
  %s202 = scalar_lea.vmem %s1, 392
  %203 = vst [vmem:[%s202] sm:$0xff] %v201
  %s204 = scalar_lea.vmem %s0, 408
  %v205 = vld [vmem:[%s204] sm:$0xff]
  %s206 = scalar_lea.vmem %s1, 400
  %207 = vst [vmem:[%s206] sm:$0xff] %v205
  %s208 = scalar_lea.vmem %s0, 416
  %v209 = vld [vmem:[%s208] sm:$0xff]
  %s210 = scalar_lea.vmem %s1, 408
  %211 = vst [vmem:[%s210] sm:$0xff] %v209
  %s212 = scalar_lea.vmem %s0, 424
  %v213 = vld [vmem:[%s212] sm:$0xff]
  %s214 = scalar_lea.vmem %s1, 416
  %215 = vst [vmem:[%s214] sm:$0xff] %v213
  %s216 = scalar_lea.vmem %s0, 432
  %v217 = vld [vmem:[%s216] sm:$0xff]
  %s218 = scalar_lea.vmem %s1, 424
  %219 = vst [vmem:[%s218] sm:$0xff] %v217
  %s220 = scalar_lea.vmem %s0, 440
  %v221 = vld [vmem:[%s220] sm:$0xff]
  %s222 = scalar_lea.vmem %s1, 432
  %223 = vst [vmem:[%s222] sm:$0xff] %v221
  %s224 = scalar_lea.vmem %s0, 448
  %v225 = vld [vmem:[%s224] sm:$0xff]
  %s226 = scalar_lea.vmem %s1, 440
  %227 = vst [vmem:[%s226] sm:$0xff] %v225
  %s228 = scalar_lea.vmem %s0, 456
  %v229 = vld [vmem:[%s228] sm:$0xff]
  %s230 = scalar_lea.vmem %s1, 448
  %231 = vst [vmem:[%s230] sm:$0xff] %v229
  %s232 = scalar_lea.vmem %s0, 464
  %v233 = vld [vmem:[%s232] sm:$0xff]
  %s234 = scalar_lea.vmem %s1, 456
  %235 = vst [vmem:[%s234] sm:$0xff] %v233
  %s236 = scalar_lea.vmem %s0, 472
  %v237 = vld [vmem:[%s236] sm:$0xff]
  %s238 = scalar_lea.vmem %s1, 464
  %239 = vst [vmem:[%s238] sm:$0xff] %v237
  %s240 = scalar_lea.vmem %s0, 480
  %v241 = vld [vmem:[%s240] sm:$0xff]
  %s242 = scalar_lea.vmem %s1, 472
  %243 = vst [vmem:[%s242] sm:$0xff] %v241
  %s244 = scalar_lea.vmem %s0, 488
  %v245 = vld [vmem:[%s244] sm:$0xff]
  %s246 = scalar_lea.vmem %s1, 480
  %247 = vst [vmem:[%s246] sm:$0xff] %v245
  %s248 = scalar_lea.vmem %s0, 496
  %v249 = vld [vmem:[%s248] sm:$0xff]
  %s250 = scalar_lea.vmem %s1, 488
  %251 = vst [vmem:[%s250] sm:$0xff] %v249
  %s252 = scalar_lea.vmem %s0, 504
  %v253 = vld [vmem:[%s252] sm:$0xff]
  %s254 = scalar_lea.vmem %s1, 496
  %255 = vst [vmem:[%s254] sm:$0xff] %v253
  %s256 = scalar_lea.vmem %s0, 512
  %v257 = vld [vmem:[%s256] sm:$0xff]
  %s258 = scalar_lea.vmem %s1, 504
  %259 = vst [vmem:[%s258] sm:$0xff] %v257
  %s260 = scalar_lea.vmem %s0, 520
  %v261 = vld [vmem:[%s260] sm:$0xff]
  %s262 = scalar_lea.vmem %s1, 512
  %263 = vst [vmem:[%s262] sm:$0xff] %v261
  %s264 = scalar_lea.vmem %s0, 528
  %v265 = vld [vmem:[%s264] sm:$0xff]
  %s266 = scalar_lea.vmem %s1, 520
  %267 = vst [vmem:[%s266] sm:$0xff] %v265
  %s268 = scalar_lea.vmem %s0, 536
  %v269 = vld [vmem:[%s268] sm:$0xff]
  %s270 = scalar_lea.vmem %s1, 528
  %271 = vst [vmem:[%s270] sm:$0xff] %v269
  %s272 = scalar_lea.vmem %s0, 544
  %v273 = vld [vmem:[%s272] sm:$0xff]
  %s274 = scalar_lea.vmem %s1, 536
  %275 = vst [vmem:[%s274] sm:$0xff] %v273
  %s276 = scalar_lea.vmem %s0, 552
  %v277 = vld [vmem:[%s276] sm:$0xff]
  %s278 = scalar_lea.vmem %s1, 544
  %279 = vst [vmem:[%s278] sm:$0xff] %v277
  %s280 = scalar_lea.vmem %s0, 560
  %v281 = vld [vmem:[%s280] sm:$0xff]
  %s282 = scalar_lea.vmem %s1, 552
  %283 = vst [vmem:[%s282] sm:$0xff] %v281
  %s284 = scalar_lea.vmem %s0, 568
  %v285 = vld [vmem:[%s284] sm:$0xff]
  %s286 = scalar_lea.vmem %s1, 560
  %287 = vst [vmem:[%s286] sm:$0xff] %v285
  %s288 = scalar_lea.vmem %s0, 576
  %v289 = vld [vmem:[%s288] sm:$0xff]
  %s290 = scalar_lea.vmem %s1, 568
  %291 = vst [vmem:[%s290] sm:$0xff] %v289
  %s292 = scalar_lea.vmem %s0, 584
  %v293 = vld [vmem:[%s292] sm:$0xff]
  %s294 = scalar_lea.vmem %s1, 576
  %295 = vst [vmem:[%s294] sm:$0xff] %v293
  %s296 = scalar_lea.vmem %s0, 592
  %v297 = vld [vmem:[%s296] sm:$0xf]
  %s298 = scalar_lea.vmem %s1, 584
  %299 = vst [vmem:[%s298] sm:$0xf] %v297
  %s300 = scalar_lea.vmem %s0, 600
  %v301 = vld [vmem:[%s300] sm:$0xff]
  %s302 = scalar_lea.vmem %s1, 588
  %303 = vst [vmem:[%s302] sm:$0xff] %v301
  %s304 = scalar_lea.vmem %s0, 608
  %v305 = vld [vmem:[%s304] sm:$0xff]
  %s306 = scalar_lea.vmem %s1, 596
  %307 = vst [vmem:[%s306] sm:$0xff] %v305
  %s308 = scalar_lea.vmem %s0, 616
  %v309 = vld [vmem:[%s308] sm:$0xff]
  %s310 = scalar_lea.vmem %s1, 604
  %311 = vst [vmem:[%s310] sm:$0xff] %v309
  %s312 = scalar_lea.vmem %s0, 624
  %v313 = vld [vmem:[%s312] sm:$0xff]
  %s314 = scalar_lea.vmem %s1, 612
  %315 = vst [vmem:[%s314] sm:$0xff] %v313
  %s316 = scalar_lea.vmem %s0, 632
  %v317 = vld [vmem:[%s316] sm:$0xff]
  %s318 = scalar_lea.vmem %s1, 620
  %319 = vst [vmem:[%s318] sm:$0xff] %v317
  %s320 = scalar_lea.vmem %s0, 640
  %v321 = vld [vmem:[%s320] sm:$0xff]
  %s322 = scalar_lea.vmem %s1, 628
  %323 = vst [vmem:[%s322] sm:$0xff] %v321
  %s324 = scalar_lea.vmem %s0, 648
  %v325 = vld [vmem:[%s324] sm:$0xff]
  %s326 = scalar_lea.vmem %s1, 636
  %327 = vst [vmem:[%s326] sm:$0xff] %v325
  %s328 = scalar_lea.vmem %s0, 656
  %v329 = vld [vmem:[%s328] sm:$0xff]
  %s330 = scalar_lea.vmem %s1, 644
  %331 = vst [vmem:[%s330] sm:$0xff] %v329
  %s332 = scalar_lea.vmem %s0, 664
  %v333 = vld [vmem:[%s332] sm:$0xff]
  %s334 = scalar_lea.vmem %s1, 652
  %335 = vst [vmem:[%s334] sm:$0xff] %v333
  %s336 = scalar_lea.vmem %s0, 672
  %v337 = vld [vmem:[%s336] sm:$0xff]
  %s338 = scalar_lea.vmem %s1, 660
  %339 = vst [vmem:[%s338] sm:$0xff] %v337
  %s340 = scalar_lea.vmem %s0, 680
  %v341 = vld [vmem:[%s340] sm:$0xff]
  %s342 = scalar_lea.vmem %s1, 668
  %343 = vst [vmem:[%s342] sm:$0xff] %v341
  %s344 = scalar_lea.vmem %s0, 688
  %v345 = vld [vmem:[%s344] sm:$0xff]
  %s346 = scalar_lea.vmem %s1, 676
  %347 = vst [vmem:[%s346] sm:$0xff] %v345
  %s348 = scalar_lea.vmem %s0, 696
  %v349 = vld [vmem:[%s348] sm:$0xff]
  %s350 = scalar_lea.vmem %s1, 684
  %351 = vst [vmem:[%s350] sm:$0xff] %v349
  %s352 = scalar_lea.vmem %s0, 704
  %v353 = vld [vmem:[%s352] sm:$0xff]
  %s354 = scalar_lea.vmem %s1, 692
  %355 = vst [vmem:[%s354] sm:$0xff] %v353
  %s356 = scalar_lea.vmem %s0, 712
  %v357 = vld [vmem:[%s356] sm:$0xff]
  %s358 = scalar_lea.vmem %s1, 700
  %359 = vst [vmem:[%s358] sm:$0xff] %v357
  %s360 = scalar_lea.vmem %s0, 720
  %v361 = vld [vmem:[%s360] sm:$0xff]
  %s362 = scalar_lea.vmem %s1, 708
  %363 = vst [vmem:[%s362] sm:$0xff] %v361
  %s364 = scalar_lea.vmem %s0, 728
  %v365 = vld [vmem:[%s364] sm:$0xff]
  %s366 = scalar_lea.vmem %s1, 716
  %367 = vst [vmem:[%s366] sm:$0xff] %v365
  %s368 = scalar_lea.vmem %s0, 736
  %v369 = vld [vmem:[%s368] sm:$0xff]
  %s370 = scalar_lea.vmem %s1, 724
  %371 = vst [vmem:[%s370] sm:$0xff] %v369
  %s372 = scalar_lea.vmem %s0, 744
  %v373 = vld [vmem:[%s372] sm:$0xff]
  %s374 = scalar_lea.vmem %s1, 732
  %375 = vst [vmem:[%s374] sm:$0xff] %v373
  %s376 = scalar_lea.vmem %s0, 752
  %v377 = vld [vmem:[%s376] sm:$0xff]
  %s378 = scalar_lea.vmem %s1, 740
  %379 = vst [vmem:[%s378] sm:$0xff] %v377
  %s380 = scalar_lea.vmem %s0, 760
  %v381 = vld [vmem:[%s380] sm:$0xff]
  %s382 = scalar_lea.vmem %s1, 748
  %383 = vst [vmem:[%s382] sm:$0xff] %v381
  %s384 = scalar_lea.vmem %s0, 768
  %v385 = vld [vmem:[%s384] sm:$0xff]
  %s386 = scalar_lea.vmem %s1, 756
  %387 = vst [vmem:[%s386] sm:$0xff] %v385
  %s388 = scalar_lea.vmem %s0, 776
  %v389 = vld [vmem:[%s388] sm:$0xff]
  %s390 = scalar_lea.vmem %s1, 764
  %391 = vst [vmem:[%s390] sm:$0xff] %v389
  %s392 = scalar_lea.vmem %s0, 784
  %v393 = vld [vmem:[%s392] sm:$0xff]
  %s394 = scalar_lea.vmem %s1, 772
  %395 = vst [vmem:[%s394] sm:$0xff] %v393
  %s396 = scalar_lea.vmem %s0, 792
  %v397 = vld [vmem:[%s396] sm:$0xf]
  %s398 = scalar_lea.vmem %s1, 780
  %399 = vst [vmem:[%s398] sm:$0xf] %v397
  %s400 = scalar_lea.vmem %s0, 800
  %v401 = vld [vmem:[%s400] sm:$0xff]
  %s402 = scalar_lea.vmem %s1, 784
  %403 = vst [vmem:[%s402] sm:$0xff] %v401
  %s404 = scalar_lea.vmem %s0, 808
  %v405 = vld [vmem:[%s404] sm:$0xff]
  %s406 = scalar_lea.vmem %s1, 792
  %407 = vst [vmem:[%s406] sm:$0xff] %v405
  %s408 = scalar_lea.vmem %s0, 816
  %v409 = vld [vmem:[%s408] sm:$0xff]
  %s410 = scalar_lea.vmem %s1, 800
  %411 = vst [vmem:[%s410] sm:$0xff] %v409
  %s412 = scalar_lea.vmem %s0, 824
  %v413 = vld [vmem:[%s412] sm:$0xff]
  %s414 = scalar_lea.vmem %s1, 808
  %415 = vst [vmem:[%s414] sm:$0xff] %v413
  %s416 = scalar_lea.vmem %s0, 832
  %v417 = vld [vmem:[%s416] sm:$0xff]
  %s418 = scalar_lea.vmem %s1, 816
  %419 = vst [vmem:[%s418] sm:$0xff] %v417
  %s420 = scalar_lea.vmem %s0, 840
  %v421 = vld [vmem:[%s420] sm:$0xff]
  %s422 = scalar_lea.vmem %s1, 824
  %423 = vst [vmem:[%s422] sm:$0xff] %v421
  %s424 = scalar_lea.vmem %s0, 848
  %v425 = vld [vmem:[%s424] sm:$0xff]
  %s426 = scalar_lea.vmem %s1, 832
  %427 = vst [vmem:[%s426] sm:$0xff] %v425
  %s428 = scalar_lea.vmem %s0, 856
  %v429 = vld [vmem:[%s428] sm:$0xff]
  %s430 = scalar_lea.vmem %s1, 840
  %431 = vst [vmem:[%s430] sm:$0xff] %v429
  %s432 = scalar_lea.vmem %s0, 864
  %v433 = vld [vmem:[%s432] sm:$0xff]
  %s434 = scalar_lea.vmem %s1, 848
  %435 = vst [vmem:[%s434] sm:$0xff] %v433
  %s436 = scalar_lea.vmem %s0, 872
  %v437 = vld [vmem:[%s436] sm:$0xff]
  %s438 = scalar_lea.vmem %s1, 856
  %439 = vst [vmem:[%s438] sm:$0xff] %v437
  %s440 = scalar_lea.vmem %s0, 880
  %v441 = vld [vmem:[%s440] sm:$0xff]
  %s442 = scalar_lea.vmem %s1, 864
  %443 = vst [vmem:[%s442] sm:$0xff] %v441
  %s444 = scalar_lea.vmem %s0, 888
  %v445 = vld [vmem:[%s444] sm:$0xff]
  %s446 = scalar_lea.vmem %s1, 872
  %447 = vst [vmem:[%s446] sm:$0xff] %v445
  %s448 = scalar_lea.vmem %s0, 896
  %v449 = vld [vmem:[%s448] sm:$0xff]
  %s450 = scalar_lea.vmem %s1, 880
  %451 = vst [vmem:[%s450] sm:$0xff] %v449
  %s452 = scalar_lea.vmem %s0, 904
  %v453 = vld [vmem:[%s452] sm:$0xff]
  %s454 = scalar_lea.vmem %s1, 888
  %455 = vst [vmem:[%s454] sm:$0xff] %v453
  %s456 = scalar_lea.vmem %s0, 912
  %v457 = vld [vmem:[%s456] sm:$0xff]
  %s458 = scalar_lea.vmem %s1, 896
  %459 = vst [vmem:[%s458] sm:$0xff] %v457
  %s460 = scalar_lea.vmem %s0, 920
  %v461 = vld [vmem:[%s460] sm:$0xff]
  %s462 = scalar_lea.vmem %s1, 904
  %463 = vst [vmem:[%s462] sm:$0xff] %v461
  %s464 = scalar_lea.vmem %s0, 928
  %v465 = vld [vmem:[%s464] sm:$0xff]
  %s466 = scalar_lea.vmem %s1, 912
  %467 = vst [vmem:[%s466] sm:$0xff] %v465
  %s468 = scalar_lea.vmem %s0, 936
  %v469 = vld [vmem:[%s468] sm:$0xff]
  %s470 = scalar_lea.vmem %s1, 920
  %471 = vst [vmem:[%s470] sm:$0xff] %v469
  %s472 = scalar_lea.vmem %s0, 944
  %v473 = vld [vmem:[%s472] sm:$0xff]
  %s474 = scalar_lea.vmem %s1, 928
  %475 = vst [vmem:[%s474] sm:$0xff] %v473
  %s476 = scalar_lea.vmem %s0, 952
  %v477 = vld [vmem:[%s476] sm:$0xff]
  %s478 = scalar_lea.vmem %s1, 936
  %479 = vst [vmem:[%s478] sm:$0xff] %v477
  %s480 = scalar_lea.vmem %s0, 960
  %v481 = vld [vmem:[%s480] sm:$0xff]
  %s482 = scalar_lea.vmem %s1, 944
  %483 = vst [vmem:[%s482] sm:$0xff] %v481
  %s484 = scalar_lea.vmem %s0, 968
  %v485 = vld [vmem:[%s484] sm:$0xff]
  %s486 = scalar_lea.vmem %s1, 952
  %487 = vst [vmem:[%s486] sm:$0xff] %v485
  %s488 = scalar_lea.vmem %s0, 976
  %v489 = vld [vmem:[%s488] sm:$0xff]
  %s490 = scalar_lea.vmem %s1, 960
  %491 = vst [vmem:[%s490] sm:$0xff] %v489
  %s492 = scalar_lea.vmem %s0, 984
  %v493 = vld [vmem:[%s492] sm:$0xff]
  %s494 = scalar_lea.vmem %s1, 968
  %495 = vst [vmem:[%s494] sm:$0xff] %v493
  %s496 = scalar_lea.vmem %s0, 992
  %v497 = vld [vmem:[%s496] sm:$0xf]
  %s498 = scalar_lea.vmem %s1, 976
  %499 = vst [vmem:[%s498] sm:$0xf] %v497
  %s500 = scalar_lea.vmem %s0, 1000
  %v501 = vld [vmem:[%s500] sm:$0xff]
  %s502 = scalar_lea.vmem %s1, 980
  %503 = vst [vmem:[%s502] sm:$0xff] %v501
  %s504 = scalar_lea.vmem %s0, 1008
  %v505 = vld [vmem:[%s504] sm:$0xff]
  %s506 = scalar_lea.vmem %s1, 988
  %507 = vst [vmem:[%s506] sm:$0xff] %v505
  %s508 = scalar_lea.vmem %s0, 1016
  %v509 = vld [vmem:[%s508] sm:$0xff]
  %s510 = scalar_lea.vmem %s1, 996
  %511 = vst [vmem:[%s510] sm:$0xff] %v509
  %s512 = scalar_lea.vmem %s0, 1024
  %v513 = vld [vmem:[%s512] sm:$0xff]
  %s514 = scalar_lea.vmem %s1, 1004
  %515 = vst [vmem:[%s514] sm:$0xff] %v513
  %s516 = scalar_lea.vmem %s0, 1032
  %v517 = vld [vmem:[%s516] sm:$0xff]
  %s518 = scalar_lea.vmem %s1, 1012
  %519 = vst [vmem:[%s518] sm:$0xff] %v517
  %s520 = scalar_lea.vmem %s0, 1040
  %v521 = vld [vmem:[%s520] sm:$0xff]
  %s522 = scalar_lea.vmem %s1, 1020
  %523 = vst [vmem:[%s522] sm:$0xff] %v521
  %s524 = scalar_lea.vmem %s0, 1048
  %v525 = vld [vmem:[%s524] sm:$0xff]
  %s526 = scalar_lea.vmem %s1, 1028
  %527 = vst [vmem:[%s526] sm:$0xff] %v525
  %s528 = scalar_lea.vmem %s0, 1056
  %v529 = vld [vmem:[%s528] sm:$0xff]
  %s530 = scalar_lea.vmem %s1, 1036
  %531 = vst [vmem:[%s530] sm:$0xff] %v529
  %s532 = scalar_lea.vmem %s0, 1064
  %v533 = vld [vmem:[%s532] sm:$0xff]
  %s534 = scalar_lea.vmem %s1, 1044
  %535 = vst [vmem:[%s534] sm:$0xff] %v533
  %s536 = scalar_lea.vmem %s0, 1072
  %v537 = vld [vmem:[%s536] sm:$0xff]
  %s538 = scalar_lea.vmem %s1, 1052
  %539 = vst [vmem:[%s538] sm:$0xff] %v537
  %s540 = scalar_lea.vmem %s0, 1080
  %v541 = vld [vmem:[%s540] sm:$0xff]
  %s542 = scalar_lea.vmem %s1, 1060
  %543 = vst [vmem:[%s542] sm:$0xff] %v541
  %s544 = scalar_lea.vmem %s0, 1088
  %v545 = vld [vmem:[%s544] sm:$0xff]
  %s546 = scalar_lea.vmem %s1, 1068
  %547 = vst [vmem:[%s546] sm:$0xff] %v545
  %s548 = scalar_lea.vmem %s0, 1096
  %v549 = vld [vmem:[%s548] sm:$0xff]
  %s550 = scalar_lea.vmem %s1, 1076
  %551 = vst [vmem:[%s550] sm:$0xff] %v549
  %s552 = scalar_lea.vmem %s0, 1104
  %v553 = vld [vmem:[%s552] sm:$0xff]
  %s554 = scalar_lea.vmem %s1, 1084
  %555 = vst [vmem:[%s554] sm:$0xff] %v553
  %s556 = scalar_lea.vmem %s0, 1112
  %v557 = vld [vmem:[%s556] sm:$0xff]
  %s558 = scalar_lea.vmem %s1, 1092
  %559 = vst [vmem:[%s558] sm:$0xff] %v557
  %s560 = scalar_lea.vmem %s0, 1120
  %v561 = vld [vmem:[%s560] sm:$0xff]
  %s562 = scalar_lea.vmem %s1, 1100
  %563 = vst [vmem:[%s562] sm:$0xff] %v561
  %s564 = scalar_lea.vmem %s0, 1128
  %v565 = vld [vmem:[%s564] sm:$0xff]
  %s566 = scalar_lea.vmem %s1, 1108
  %567 = vst [vmem:[%s566] sm:$0xff] %v565
  %s568 = scalar_lea.vmem %s0, 1136
  %v569 = vld [vmem:[%s568] sm:$0xff]
  %s570 = scalar_lea.vmem %s1, 1116
  %571 = vst [vmem:[%s570] sm:$0xff] %v569
  %s572 = scalar_lea.vmem %s0, 1144
  %v573 = vld [vmem:[%s572] sm:$0xff]
  %s574 = scalar_lea.vmem %s1, 1124
  %575 = vst [vmem:[%s574] sm:$0xff] %v573
  %s576 = scalar_lea.vmem %s0, 1152
  %v577 = vld [vmem:[%s576] sm:$0xff]
  %s578 = scalar_lea.vmem %s1, 1132
  %579 = vst [vmem:[%s578] sm:$0xff] %v577
  %s580 = scalar_lea.vmem %s0, 1160
  %v581 = vld [vmem:[%s580] sm:$0xff]
  %s582 = scalar_lea.vmem %s1, 1140
  %583 = vst [vmem:[%s582] sm:$0xff] %v581
  %s584 = scalar_lea.vmem %s0, 1168
  %v585 = vld [vmem:[%s584] sm:$0xff]
  %s586 = scalar_lea.vmem %s1, 1148
  %587 = vst [vmem:[%s586] sm:$0xff] %v585
  %s588 = scalar_lea.vmem %s0, 1176
  %v589 = vld [vmem:[%s588] sm:$0xff]
  %s590 = scalar_lea.vmem %s1, 1156
  %591 = vst [vmem:[%s590] sm:$0xff] %v589
  %s592 = scalar_lea.vmem %s0, 1184
  %v593 = vld [vmem:[%s592] sm:$0xff]
  %s594 = scalar_lea.vmem %s1, 1164
  %595 = vst [vmem:[%s594] sm:$0xff] %v593
  %s596 = scalar_lea.vmem %s0, 1192
  %v597 = vld [vmem:[%s596] sm:$0xf]
  %s598 = scalar_lea.vmem %s1, 1172
  %599 = vst [vmem:[%s598] sm:$0xf] %v597
  %s600 = scalar_lea.vmem %s0, 1200
  %v601 = vld [vmem:[%s600] sm:$0xff]
  %s602 = scalar_lea.vmem %s1, 1176
  %603 = vst [vmem:[%s602] sm:$0xff] %v601
  %s604 = scalar_lea.vmem %s0, 1208
  %v605 = vld [vmem:[%s604] sm:$0xff]
  %s606 = scalar_lea.vmem %s1, 1184
  %607 = vst [vmem:[%s606] sm:$0xff] %v605
  %s608 = scalar_lea.vmem %s0, 1216
  %v609 = vld [vmem:[%s608] sm:$0xff]
  %s610 = scalar_lea.vmem %s1, 1192
  %611 = vst [vmem:[%s610] sm:$0xff] %v609
  %s612 = scalar_lea.vmem %s0, 1224
  %v613 = vld [vmem:[%s612] sm:$0xff]
  %s614 = scalar_lea.vmem %s1, 1200
  %615 = vst [vmem:[%s614] sm:$0xff] %v613
  %s616 = scalar_lea.vmem %s0, 1232
  %v617 = vld [vmem:[%s616] sm:$0xff]
  %s618 = scalar_lea.vmem %s1, 1208
  %619 = vst [vmem:[%s618] sm:$0xff] %v617
  %s620 = scalar_lea.vmem %s0, 1240
  %v621 = vld [vmem:[%s620] sm:$0xff]
  %s622 = scalar_lea.vmem %s1, 1216
  %623 = vst [vmem:[%s622] sm:$0xff] %v621
  %s624 = scalar_lea.vmem %s0, 1248
  %v625 = vld [vmem:[%s624] sm:$0xff]
  %s626 = scalar_lea.vmem %s1, 1224
  %627 = vst [vmem:[%s626] sm:$0xff] %v625
  %s628 = scalar_lea.vmem %s0, 1256
  %v629 = vld [vmem:[%s628] sm:$0xff]
  %s630 = scalar_lea.vmem %s1, 1232
  %631 = vst [vmem:[%s630] sm:$0xff] %v629
  %s632 = scalar_lea.vmem %s0, 1264
  %v633 = vld [vmem:[%s632] sm:$0xff]
  %s634 = scalar_lea.vmem %s1, 1240
  %635 = vst [vmem:[%s634] sm:$0xff] %v633
  %s636 = scalar_lea.vmem %s0, 1272
  %v637 = vld [vmem:[%s636] sm:$0xff]
  %s638 = scalar_lea.vmem %s1, 1248
  %639 = vst [vmem:[%s638] sm:$0xff] %v637
  %s640 = scalar_lea.vmem %s0, 1280
  %v641 = vld [vmem:[%s640] sm:$0xff]
  %s642 = scalar_lea.vmem %s1, 1256
  %643 = vst [vmem:[%s642] sm:$0xff] %v641
  %s644 = scalar_lea.vmem %s0, 1288
  %v645 = vld [vmem:[%s644] sm:$0xff]
  %s646 = scalar_lea.vmem %s1, 1264
  %647 = vst [vmem:[%s646] sm:$0xff] %v645
  %s648 = scalar_lea.vmem %s0, 1296
  %v649 = vld [vmem:[%s648] sm:$0xff]
  %s650 = scalar_lea.vmem %s1, 1272
  %651 = vst [vmem:[%s650] sm:$0xff] %v649
  %s652 = scalar_lea.vmem %s0, 1304
  %v653 = vld [vmem:[%s652] sm:$0xff]
  %s654 = scalar_lea.vmem %s1, 1280
  %655 = vst [vmem:[%s654] sm:$0xff] %v653
  %s656 = scalar_lea.vmem %s0, 1312
  %v657 = vld [vmem:[%s656] sm:$0xff]
  %s658 = scalar_lea.vmem %s1, 1288
  %659 = vst [vmem:[%s658] sm:$0xff] %v657
  %s660 = scalar_lea.vmem %s0, 1320
  %v661 = vld [vmem:[%s660] sm:$0xff]
  %s662 = scalar_lea.vmem %s1, 1296
  %663 = vst [vmem:[%s662] sm:$0xff] %v661
  %s664 = scalar_lea.vmem %s0, 1328
  %v665 = vld [vmem:[%s664] sm:$0xff]
  %s666 = scalar_lea.vmem %s1, 1304
  %667 = vst [vmem:[%s666] sm:$0xff] %v665
  %s668 = scalar_lea.vmem %s0, 1336
  %v669 = vld [vmem:[%s668] sm:$0xff]
  %s670 = scalar_lea.vmem %s1, 1312
  %671 = vst [vmem:[%s670] sm:$0xff] %v669
  %s672 = scalar_lea.vmem %s0, 1344
  %v673 = vld [vmem:[%s672] sm:$0xff]
  %s674 = scalar_lea.vmem %s1, 1320
  %675 = vst [vmem:[%s674] sm:$0xff] %v673
  %s676 = scalar_lea.vmem %s0, 1352
  %v677 = vld [vmem:[%s676] sm:$0xff]
  %s678 = scalar_lea.vmem %s1, 1328
  %679 = vst [vmem:[%s678] sm:$0xff] %v677
  %s680 = scalar_lea.vmem %s0, 1360
  %v681 = vld [vmem:[%s680] sm:$0xff]
  %s682 = scalar_lea.vmem %s1, 1336
  %683 = vst [vmem:[%s682] sm:$0xff] %v681
  %s684 = scalar_lea.vmem %s0, 1368
  %v685 = vld [vmem:[%s684] sm:$0xff]
  %s686 = scalar_lea.vmem %s1, 1344
  %687 = vst [vmem:[%s686] sm:$0xff] %v685
  %s688 = scalar_lea.vmem %s0, 1376
  %v689 = vld [vmem:[%s688] sm:$0xff]
  %s690 = scalar_lea.vmem %s1, 1352
  %691 = vst [vmem:[%s690] sm:$0xff] %v689
  %s692 = scalar_lea.vmem %s0, 1384
  %v693 = vld [vmem:[%s692] sm:$0xff]
  %s694 = scalar_lea.vmem %s1, 1360
  %695 = vst [vmem:[%s694] sm:$0xff] %v693
  %s696 = scalar_lea.vmem %s0, 1392
  %v697 = vld [vmem:[%s696] sm:$0xf]
  %s698 = scalar_lea.vmem %s1, 1368
  %699 = vst [vmem:[%s698] sm:$0xf] %v697
  %s700 = scalar_lea.vmem %s0, 1400
  %v701 = vld [vmem:[%s700] sm:$0xff]
  %s702 = scalar_lea.vmem %s1, 1372
  %703 = vst [vmem:[%s702] sm:$0xff] %v701
  %s704 = scalar_lea.vmem %s0, 1408
  %v705 = vld [vmem:[%s704] sm:$0xff]
  %s706 = scalar_lea.vmem %s1, 1380
  %707 = vst [vmem:[%s706] sm:$0xff] %v705
  %s708 = scalar_lea.vmem %s0, 1416
  %v709 = vld [vmem:[%s708] sm:$0xff]
  %s710 = scalar_lea.vmem %s1, 1388
  %711 = vst [vmem:[%s710] sm:$0xff] %v709
  %s712 = scalar_lea.vmem %s0, 1424
  %v713 = vld [vmem:[%s712] sm:$0xff]
  %s714 = scalar_lea.vmem %s1, 1396
  %715 = vst [vmem:[%s714] sm:$0xff] %v713
  %s716 = scalar_lea.vmem %s0, 1432
  %v717 = vld [vmem:[%s716] sm:$0xff]
  %s718 = scalar_lea.vmem %s1, 1404
  %719 = vst [vmem:[%s718] sm:$0xff] %v717
  %s720 = scalar_lea.vmem %s0, 1440
  %v721 = vld [vmem:[%s720] sm:$0xff]
  %s722 = scalar_lea.vmem %s1, 1412
  %723 = vst [vmem:[%s722] sm:$0xff] %v721
  %s724 = scalar_lea.vmem %s0, 1448
  %v725 = vld [vmem:[%s724] sm:$0xff]
  %s726 = scalar_lea.vmem %s1, 1420
  %727 = vst [vmem:[%s726] sm:$0xff] %v725
  %s728 = scalar_lea.vmem %s0, 1456
  %v729 = vld [vmem:[%s728] sm:$0xff]
  %s730 = scalar_lea.vmem %s1, 1428
  %731 = vst [vmem:[%s730] sm:$0xff] %v729
  %s732 = scalar_lea.vmem %s0, 1464
  %v733 = vld [vmem:[%s732] sm:$0xff]
  %s734 = scalar_lea.vmem %s1, 1436
  %735 = vst [vmem:[%s734] sm:$0xff] %v733
  %s736 = scalar_lea.vmem %s0, 1472
  %v737 = vld [vmem:[%s736] sm:$0xff]
  %s738 = scalar_lea.vmem %s1, 1444
  %739 = vst [vmem:[%s738] sm:$0xff] %v737
  %s740 = scalar_lea.vmem %s0, 1480
  %v741 = vld [vmem:[%s740] sm:$0xff]
  %s742 = scalar_lea.vmem %s1, 1452
  %743 = vst [vmem:[%s742] sm:$0xff] %v741
  %s744 = scalar_lea.vmem %s0, 1488
  %v745 = vld [vmem:[%s744] sm:$0xff]
  %s746 = scalar_lea.vmem %s1, 1460
  %747 = vst [vmem:[%s746] sm:$0xff] %v745
  %s748 = scalar_lea.vmem %s0, 1496
  %v749 = vld [vmem:[%s748] sm:$0xff]
  %s750 = scalar_lea.vmem %s1, 1468
  %751 = vst [vmem:[%s750] sm:$0xff] %v749
  %s752 = scalar_lea.vmem %s0, 1504
  %v753 = vld [vmem:[%s752] sm:$0xff]
  %s754 = scalar_lea.vmem %s1, 1476
  %755 = vst [vmem:[%s754] sm:$0xff] %v753
  %s756 = scalar_lea.vmem %s0, 1512
  %v757 = vld [vmem:[%s756] sm:$0xff]
  %s758 = scalar_lea.vmem %s1, 1484
  %759 = vst [vmem:[%s758] sm:$0xff] %v757
  %s760 = scalar_lea.vmem %s0, 1520
  %v761 = vld [vmem:[%s760] sm:$0xff]
  %s762 = scalar_lea.vmem %s1, 1492
  %763 = vst [vmem:[%s762] sm:$0xff] %v761
  %s764 = scalar_lea.vmem %s0, 1528
  %v765 = vld [vmem:[%s764] sm:$0xff]
  %s766 = scalar_lea.vmem %s1, 1500
  %767 = vst [vmem:[%s766] sm:$0xff] %v765
  %s768 = scalar_lea.vmem %s0, 1536
  %v769 = vld [vmem:[%s768] sm:$0xff]
  %s770 = scalar_lea.vmem %s1, 1508
  %771 = vst [vmem:[%s770] sm:$0xff] %v769
  %s772 = scalar_lea.vmem %s0, 1544
  %v773 = vld [vmem:[%s772] sm:$0xff]
  %s774 = scalar_lea.vmem %s1, 1516
  %775 = vst [vmem:[%s774] sm:$0xff] %v773
  %s776 = scalar_lea.vmem %s0, 1552
  %v777 = vld [vmem:[%s776] sm:$0xff]
  %s778 = scalar_lea.vmem %s1, 1524
  %779 = vst [vmem:[%s778] sm:$0xff] %v777
  %s780 = scalar_lea.vmem %s0, 1560
  %v781 = vld [vmem:[%s780] sm:$0xff]
  %s782 = scalar_lea.vmem %s1, 1532
  %783 = vst [vmem:[%s782] sm:$0xff] %v781
  %s784 = scalar_lea.vmem %s0, 1568
  %v785 = vld [vmem:[%s784] sm:$0xff]
  %s786 = scalar_lea.vmem %s1, 1540
  %787 = vst [vmem:[%s786] sm:$0xff] %v785
  %s788 = scalar_lea.vmem %s0, 1576
  %v789 = vld [vmem:[%s788] sm:$0xff]
  %s790 = scalar_lea.vmem %s1, 1548
  %791 = vst [vmem:[%s790] sm:$0xff] %v789
  %s792 = scalar_lea.vmem %s0, 1584
  %v793 = vld [vmem:[%s792] sm:$0xff]
  %s794 = scalar_lea.vmem %s1, 1556
  %795 = vst [vmem:[%s794] sm:$0xff] %v793
  %s796 = scalar_lea.vmem %s0, 1592
  %v797 = vld [vmem:[%s796] sm:$0xf]
  %s798 = scalar_lea.vmem %s1, 1564
  %799 = vst [vmem:[%s798] sm:$0xf] %v797

// kernel: lenet_forward.1
$region0: #{lenet_forward.1}
  #allocation0 [shape = 'u32[]', space=smem, size = 0x4, offset = 0x4, fixed_abs, tag = 'smem constant byte address 0x4 - core index']
  #allocation1 [shape = 'u32[72,128]{1,0:T(1,128)}', space=vmem, size = 0x9000, scoped, tag = 'internal scratch']
  %s0 = inlined_call_operand.vmem [shape: bf16[4,1568,75], index: 0, kind: input, shape index: {}]
  %s1 = inlined_call_operand.vmem [shape: bf16[75,128], index: 1, kind: input, shape index: {}]
  %s2 = inlined_call_operand.vmem [shape: f32[1,128], index: 2, kind: input, shape index: {}]
  %s3 = inlined_call_operand.vmem [shape: f32[1568,128], index: 3, kind: input, shape index: {}]
  %s4 = inlined_call_operand.vmem [shape: f32[8,1568], index: 4, kind: input, shape index: {}]
  %s5 = inlined_call_operand.vmem [shape: f32[128,128], index: 5, kind: input, shape index: {}]
  %s6 = inlined_call_operand.vmem [shape: f32[1,128], index: 6, kind: input, shape index: {}]
  %s7 = inlined_call_operand.vmem [shape: f32[8,128], index: 7, kind: output, shape index: {}]
  %s8 = sld [smem:[#allocation0]]
  $region38: #{lenet_forward.1} parent=0
    _
  %s10 = ssub.s32 1, %s8
  %s11 = scalar_select 0, %s10, %s8
  // Predicated region
  $region2: #{lenet_forward.1} parent=0 // pred_check
    _
  $region3: #{lenet_forward.1} parent=0 // pred_check_branch
    %13 = sbr.rel (0) target = $region5
  $region4: #{lenet_forward.1} parent=0 // pred_region
    _
  $region5: #{lenet_forward.1} parent=0 // pred_fallthru
    _
  // Predicated region
  $region6: #{lenet_forward.1} parent=0 // pred_check
    _
  $region7: #{lenet_forward.1} parent=0 // pred_check_branch
    %15 = sbr.rel (0) target = $region9
  $region8: #{lenet_forward.1} parent=0 // pred_region
    _
  $region9: #{lenet_forward.1} parent=0 // pred_fallthru
    _
  // Predicated region
  $region10: #{lenet_forward.1} parent=0 // pred_check
    _
  $region11: #{lenet_forward.1} parent=0 // pred_check_branch
    %17 = sbr.rel (0) target = $region13
  $region12: #{lenet_forward.1} parent=0 // pred_region
    _
  $region13: #{lenet_forward.1} parent=0 // pred_fallthru
    _
  // Predicated region
  $region14: #{lenet_forward.1} parent=0 // pred_check
    _
  $region15: #{lenet_forward.1} parent=0 // pred_check_branch
    %19 = sbr.rel (0) target = $region17
  $region16: #{lenet_forward.1} parent=0 // pred_region
    _
  $region17: #{lenet_forward.1} parent=0 // pred_fallthru
    _
  // Predicated region
  $region18: #{lenet_forward.1} parent=0 // pred_check
    _
  $region19: #{lenet_forward.1} parent=0 // pred_check_branch
    %21 = sbr.rel (0) target = $region21
  $region20: #{lenet_forward.1} parent=0 // pred_region
    _
  $region21: #{lenet_forward.1} parent=0 // pred_fallthru
    _
  // Predicated region
  $region22: #{lenet_forward.1} parent=0 // pred_check
    _
  $region23: #{lenet_forward.1} parent=0 // pred_check_branch
    %23 = sbr.rel (0) target = $region25
  $region24: #{lenet_forward.1} parent=0 // pred_region
    _
  $region25: #{lenet_forward.1} parent=0 // pred_fallthru
    _
  // Predicated region
  $region26: #{lenet_forward.1} parent=0 // pred_check
    _
  $region27: #{lenet_forward.1} parent=0 // pred_check_branch
    %25 = sbr.rel (0) target = $region29
  $region28: #{lenet_forward.1} parent=0 // pred_region
    _
  $region29: #{lenet_forward.1} parent=0 // pred_fallthru
    _
  %v27 = vld [vmem:[%s1] sm:$0xf]
  %v28 = vld [vmem:[%s1 + $0x4] sm:$0xf]
  %v29 = vld [vmem:[%s1 + $0x8] sm:$0xf]
  %v30 = vld [vmem:[%s1 + $0xc] sm:$0xf]
  %v31 = vld [vmem:[%s1 + $0x10] sm:$0xf]
  %v32 = vld [vmem:[%s1 + $0x14] sm:$0xf]
  %v33 = vld [vmem:[%s1 + $0x18] sm:$0xf]
  %v34 = vld [vmem:[%s1 + $0x1c] sm:$0xf]
  %v35 = vld [vmem:[%s1 + $0x20] sm:$0xf]
  %v36 = vld [vmem:[%s1 + $0x24] sm:$0x3]
  %v37 = vld [vmem:[%s0] sm:$0xf]
  %v38 = vld [vmem:[%s0 + $0x4] sm:$0xf]
  %v39 = vld [vmem:[%s0 + $0x8] sm:$0xf]
  %v40 = vld [vmem:[%s0 + $0xc] sm:$0xf]
  %v41 = vld [vmem:[%s0 + $0x10] sm:$0xf]
  %v42 = vld [vmem:[%s0 + $0x14] sm:$0xf]
  %v43 = vld [vmem:[%s0 + $0x18] sm:$0xf]
  %v44 = vld [vmem:[%s0 + $0x1c] sm:$0xf]
  %v45 = vld [vmem:[%s0 + $0x20] sm:$0xf]
  %v46 = vld [vmem:[%s0 + $0x24] sm:$0xf]
  %v47 = vld [vmem:[%s0 + $0x28] sm:$0xf]
  %v48 = vld [vmem:[%s0 + $0x2c] sm:$0xf]
  %v49 = vld [vmem:[%s0 + $0x30] sm:$0xf]
  %v50 = vld [vmem:[%s0 + $0x34] sm:$0xf]
  %v51 = vld [vmem:[%s0 + $0x38] sm:$0xf]
  %v52 = vld [vmem:[%s0 + $0x3c] sm:$0xf]
  %v53 = vld [vmem:[%s0 + $0x40] sm:$0xf]
  %v54 = vld [vmem:[%s0 + $0x44] sm:$0xf]
  %v55 = vld [vmem:[%s0 + $0x48] sm:$0xf]
  %v56 = vld [vmem:[%s0 + $0x4c] sm:$0xf]
  %v57 = vld [vmem:[%s0 + $0x50] sm:$0xf]
  %v58 = vld [vmem:[%s0 + $0x54] sm:$0xf]
  %v59 = vld [vmem:[%s0 + $0x58] sm:$0xf]
  %v60 = vld [vmem:[%s0 + $0x5c] sm:$0xf]
  %v61 = vld [vmem:[%s0 + $0x60] sm:$0xf]
  %v62 = vld [vmem:[%s0 + $0x64] sm:$0xf]
  %v63 = vld [vmem:[%s0 + $0x68] sm:$0xf]
  %v64 = vld [vmem:[%s0 + $0x6c] sm:$0xf]
  %v65 = vld [vmem:[%s0 + $0x70] sm:$0xf]
  %v66 = vld [vmem:[%s0 + $0x74] sm:$0xf]
  %v67 = vld [vmem:[%s0 + $0x78] sm:$0xf]
  %v68 = vld [vmem:[%s0 + $0x7c] sm:$0xf]
  %v69 = vld [vmem:[%s0 + $0x80] sm:$0xf]
  %v70 = vld [vmem:[%s0 + $0x84] sm:$0xf]
  %v71 = vld [vmem:[%s0 + $0x88] sm:$0xf]
  %v72 = vld [vmem:[%s0 + $0x8c] sm:$0xf]
  %v73 = vld [vmem:[%s0 + $0x90] sm:$0xf]
  %v74 = vld [vmem:[%s0 + $0x94] sm:$0xf]
  %v75 = vld [vmem:[%s0 + $0x98] sm:$0xf]
  %v76 = vld [vmem:[%s0 + $0x9c] sm:$0xf]
  %v77 = vld [vmem:[%s0 + $0xa0] sm:$0xf]
  %v78 = vld [vmem:[%s0 + $0xa4] sm:$0xf]
  %v79 = vld [vmem:[%s0 + $0xa8] sm:$0xf]
  %v80 = vld [vmem:[%s0 + $0xac] sm:$0xf]
  %v81 = vld [vmem:[%s0 + $0xb0] sm:$0xf]
  %v82 = vld [vmem:[%s0 + $0xb4] sm:$0xf]
  %v83 = vld [vmem:[%s0 + $0xb8] sm:$0xf]
  %v84 = vld [vmem:[%s0 + $0xbc] sm:$0xf]
  %v85 = vld [vmem:[%s0 + $0xc0] sm:$0xf]
  %v86 = vld [vmem:[%s0 + $0xc4] sm:$0xf]
  %v87 = vld [vmem:[%s0 + $0xc8] sm:$0xf]
  %v88 = vld [vmem:[%s0 + $0xcc] sm:$0xf]
  %v89 = vld [vmem:[%s0 + $0xd0] sm:$0xf]
  %v90 = vld [vmem:[%s0 + $0xd4] sm:$0xf]
  %v91 = vld [vmem:[%s0 + $0xd8] sm:$0xf]
  %v92 = vld [vmem:[%s0 + $0xdc] sm:$0xf]
  %v93 = vld [vmem:[%s0 + $0xe0] sm:$0xf]
  %v94 = vld [vmem:[%s0 + $0xe4] sm:$0xf]
  %v95 = vld [vmem:[%s0 + $0xe8] sm:$0xf]
  %v96 = vld [vmem:[%s0 + $0xec] sm:$0xf]
  %v97 = vld [vmem:[%s0 + $0xf0] sm:$0xf]
  %v98 = vld [vmem:[%s0 + $0xf4] sm:$0xf]
  %v99 = vld [vmem:[%s0 + $0xf8] sm:$0xf]
  %v100 = vld [vmem:[%s0 + $0xfc] sm:$0xf]
  %v101 = vld [vmem:[%s0 + $0x100] sm:$0xf]
  %v102 = vld [vmem:[%s0 + $0x104] sm:$0xf]
  %v103 = vld [vmem:[%s0 + $0x108] sm:$0xf]
  %v104 = vld [vmem:[%s0 + $0x10c] sm:$0xf]
  %v105 = vld [vmem:[%s0 + $0x110] sm:$0xf]
  %v106 = vld [vmem:[%s0 + $0x114] sm:$0xf]
  %v107 = vld [vmem:[%s0 + $0x118] sm:$0xf]
  %v108 = vld [vmem:[%s0 + $0x11c] sm:$0xf]
  %v109 = vld [vmem:[%s0 + $0x120] sm:$0xf]
  %v110 = vld [vmem:[%s0 + $0x124] sm:$0xf]
  %v111 = vld [vmem:[%s0 + $0x128] sm:$0xf]
  %v112 = vld [vmem:[%s0 + $0x12c] sm:$0xf]
  %v113 = vld [vmem:[%s0 + $0x130] sm:$0xf]
  %v114 = vld [vmem:[%s0 + $0x134] sm:$0xf]
  %v115 = vld [vmem:[%s0 + $0x138] sm:$0xf]
  %v116 = vld [vmem:[%s0 + $0x13c] sm:$0xf]
  %v117 = vld [vmem:[%s0 + $0x140] sm:$0xf]
  %v118 = vld [vmem:[%s0 + $0x144] sm:$0xf]
  %v119 = vld [vmem:[%s0 + $0x148] sm:$0xf]
  %v120 = vld [vmem:[%s0 + $0x14c] sm:$0xf]
  %v121 = vld [vmem:[%s0 + $0x150] sm:$0xf]
  %v122 = vld [vmem:[%s0 + $0x154] sm:$0xf]
  %v123 = vld [vmem:[%s0 + $0x158] sm:$0xf]
  %v124 = vld [vmem:[%s0 + $0x15c] sm:$0xf]
  %v125 = vld [vmem:[%s0 + $0x160] sm:$0xf]
  %v126 = vld [vmem:[%s0 + $0x164] sm:$0xf]
  %v127 = vld [vmem:[%s0 + $0x168] sm:$0xf]
  %v128 = vld [vmem:[%s0 + $0x16c] sm:$0xf]
  %v129 = vld [vmem:[%s0 + $0x170] sm:$0xf]
  %v130 = vld [vmem:[%s0 + $0x174] sm:$0xf]
  %v131 = vld [vmem:[%s0 + $0x178] sm:$0xf]
  %v132 = vld [vmem:[%s0 + $0x17c] sm:$0xf]
  %v133 = vld [vmem:[%s0 + $0x180] sm:$0xf]
  %v134 = vld [vmem:[%s0 + $0x184] sm:$0xf]
  %v135 = vld [vmem:[%s0 + $0x188] sm:$0xf]
  %v136 = vld [vmem:[%s0 + $0x18c] sm:$0xf]
  %v137 = vld [vmem:[%s0 + $0x190] sm:$0xf]
  %v138 = vld [vmem:[%s0 + $0x194] sm:$0xf]
  %v139 = vld [vmem:[%s0 + $0x198] sm:$0xf]
  %v140 = vld [vmem:[%s0 + $0x19c] sm:$0xf]
  %v141 = vld [vmem:[%s0 + $0x1a0] sm:$0xf]
  %v142 = vld [vmem:[%s0 + $0x1a4] sm:$0xf]
  %v143 = vld [vmem:[%s0 + $0x1a8] sm:$0xf]
  %v144 = vld [vmem:[%s0 + $0x1ac] sm:$0xf]
  %v145 = vld [vmem:[%s0 + $0x1b0] sm:$0xf]
  %v146 = vld [vmem:[%s0 + $0x1b4] sm:$0xf]
  %v147 = vld [vmem:[%s0 + $0x1b8] sm:$0xf]
  %v148 = vld [vmem:[%s0 + $0x1bc] sm:$0xf]
  %v149 = vld [vmem:[%s0 + $0x1c0] sm:$0xf]
  %v150 = vld [vmem:[%s0 + $0x1c4] sm:$0xf]
  %v151 = vld [vmem:[%s0 + $0x1c8] sm:$0xf]
  %v152 = vld [vmem:[%s0 + $0x1cc] sm:$0xf]
  %v153 = vld [vmem:[%s0 + $0x1d0] sm:$0xf]
  %v154 = vld [vmem:[%s0 + $0x1d4] sm:$0xf]
  %v155 = vld [vmem:[%s0 + $0x1d8] sm:$0xf]
  %v156 = vld [vmem:[%s0 + $0x1dc] sm:$0xf]
  %v157 = vld [vmem:[%s0 + $0x1e0] sm:$0xf]
  %v158 = vld [vmem:[%s0 + $0x1e4] sm:$0xf]
  %v159 = vld [vmem:[%s0 + $0x1e8] sm:$0xf]
  %v160 = vld [vmem:[%s0 + $0x1ec] sm:$0xf]
  %v161 = vld [vmem:[%s0 + $0x1f0] sm:$0xf]
  %v162 = vld [vmem:[%s0 + $0x1f4] sm:$0xf]
  %v163 = vld [vmem:[%s0 + $0x1f8] sm:$0xf]
  %v164 = vld [vmem:[%s0 + $0x1fc] sm:$0xf]
  %v165 = vld [vmem:[%s0 + $0x200] sm:$0xf]
  %v166 = vld [vmem:[%s0 + $0x204] sm:$0xf]
  %v167 = vld [vmem:[%s0 + $0x208] sm:$0xf]
  %v168 = vld [vmem:[%s0 + $0x20c] sm:$0xf]
  %v169 = vld [vmem:[%s0 + $0x210] sm:$0xf]
  %v170 = vld [vmem:[%s0 + $0x214] sm:$0xf]
  %v171 = vld [vmem:[%s0 + $0x218] sm:$0xf]
  %v172 = vld [vmem:[%s0 + $0x21c] sm:$0xf]
  %v173 = vld [vmem:[%s0 + $0x220] sm:$0xf]
  %v174 = vld [vmem:[%s0 + $0x224] sm:$0xf]
  %v175 = vld [vmem:[%s0 + $0x228] sm:$0xf]
  %v176 = vld [vmem:[%s0 + $0x22c] sm:$0xf]
  %v177 = vld [vmem:[%s0 + $0x230] sm:$0xf]
  %v178 = vld [vmem:[%s0 + $0x234] sm:$0xf]
  %v179 = vld [vmem:[%s0 + $0x238] sm:$0xf]
  %v180 = vld [vmem:[%s0 + $0x23c] sm:$0xf]
  %v181 = vld [vmem:[%s0 + $0x240] sm:$0xf]
  %v182 = vld [vmem:[%s0 + $0x244] sm:$0xf]
  %v183 = vld [vmem:[%s0 + $0x248] sm:$0xf]
  %v184 = vld [vmem:[%s0 + $0x24c] sm:$0xf]
  %v185 = vld [vmem:[%s0 + $0x250] sm:$0xf]
  %v186 = vld [vmem:[%s0 + $0x254] sm:$0xf]
  %v187 = vld [vmem:[%s0 + $0x258] sm:$0xf]
  %v188 = vld [vmem:[%s0 + $0x25c] sm:$0xf]
  %v189 = vld [vmem:[%s0 + $0x260] sm:$0xf]
  %v190 = vld [vmem:[%s0 + $0x264] sm:$0xf]
  %v191 = vld [vmem:[%s0 + $0x268] sm:$0xf]
  %v192 = vld [vmem:[%s0 + $0x26c] sm:$0xf]
  %v193 = vld [vmem:[%s0 + $0x270] sm:$0xf]
  %v194 = vld [vmem:[%s0 + $0x274] sm:$0xf]
  %v195 = vld [vmem:[%s0 + $0x278] sm:$0xf]
  %v196 = vld [vmem:[%s0 + $0x27c] sm:$0xf]
  %v197 = vld [vmem:[%s0 + $0x280] sm:$0xf]
  %v198 = vld [vmem:[%s0 + $0x284] sm:$0xf]
  %v199 = vld [vmem:[%s0 + $0x288] sm:$0xf]
  %v200 = vld [vmem:[%s0 + $0x28c] sm:$0xf]
  %v201 = vld [vmem:[%s0 + $0x290] sm:$0xf]
  %v202 = vld [vmem:[%s0 + $0x294] sm:$0xf]
  %v203 = vld [vmem:[%s0 + $0x298] sm:$0xf]
  %v204 = vld [vmem:[%s0 + $0x29c] sm:$0xf]
  %v205 = vld [vmem:[%s0 + $0x2a0] sm:$0xf]
  %v206 = vld [vmem:[%s0 + $0x2a4] sm:$0xf]
  %v207 = vld [vmem:[%s0 + $0x2a8] sm:$0xf]
  %v208 = vld [vmem:[%s0 + $0x2ac] sm:$0xf]
  %v209 = vld [vmem:[%s0 + $0x2b0] sm:$0xf]
  %v210 = vld [vmem:[%s0 + $0x2b4] sm:$0xf]
  %v211 = vld [vmem:[%s0 + $0x2b8] sm:$0xf]
  %v212 = vld [vmem:[%s0 + $0x2bc] sm:$0xf]
  %v213 = vld [vmem:[%s0 + $0x2c0] sm:$0xf]
  %v214 = vld [vmem:[%s0 + $0x2c4] sm:$0xf]
  %v215 = vld [vmem:[%s0 + $0x2c8] sm:$0xf]
  %v216 = vld [vmem:[%s0 + $0x2cc] sm:$0xf]
  %v217 = vld [vmem:[%s0 + $0x2d0] sm:$0xf]
  %v218 = vld [vmem:[%s0 + $0x2d4] sm:$0xf]
  %v219 = vld [vmem:[%s0 + $0x2d8] sm:$0xf]
  %v220 = vld [vmem:[%s0 + $0x2dc] sm:$0xf]
  %v221 = vld [vmem:[%s0 + $0x2e0] sm:$0xf]
  %v222 = vld [vmem:[%s0 + $0x2e4] sm:$0xf]
  %v223 = vld [vmem:[%s0 + $0x2e8] sm:$0xf]
  %v224 = vld [vmem:[%s0 + $0x2ec] sm:$0xf]
  %v225 = vld [vmem:[%s0 + $0x2f0] sm:$0xf]
  %v226 = vld [vmem:[%s0 + $0x2f4] sm:$0xf]
  %v227 = vld [vmem:[%s0 + $0x2f8] sm:$0xf]
  %v228 = vld [vmem:[%s0 + $0x2fc] sm:$0xf]
  %v229 = vld [vmem:[%s0 + $0x300] sm:$0xf]
  %v230 = vld [vmem:[%s0 + $0x304] sm:$0xf]
  %v231 = vld [vmem:[%s0 + $0x308] sm:$0xf]
  %v232 = vld [vmem:[%s0 + $0x30c] sm:$0xf]
  %v429 = vunpack.c.l.b16 %v37
  %v430 = vunpack.c.l.b16 %v38
  %v431 = vunpack.c.l.b16 %v39
  %v432 = vunpack.c.l.b16 %v40
  %v433 = vunpack.c.l.b16 %v41
  %v434 = vunpack.c.l.b16 %v42
  %v435 = vunpack.c.l.b16 %v43
  %v436 = vunpack.c.l.b16 %v44
  %v437 = vunpack.c.l.b16 %v45
  %v438 = vunpack.c.l.b16 %v46
  %v439 = vunpack.c.l.b16 %v47
  %v440 = vunpack.c.l.b16 %v48
  %v441 = vunpack.c.l.b16 %v49
  %v442 = vunpack.c.l.b16 %v50
  %v443 = vunpack.c.l.b16 %v51
  %v444 = vunpack.c.l.b16 %v52
  %v445 = vunpack.c.l.b16 %v53
  %v446 = vunpack.c.l.b16 %v54
  %v447 = vunpack.c.l.b16 %v55
  %v448 = vunpack.c.l.b16 %v56
  %v449 = vunpack.c.l.b16 %v57
  %v450 = vunpack.c.l.b16 %v58
  %v451 = vunpack.c.l.b16 %v59
  %v452 = vunpack.c.l.b16 %v60
  %v453 = vunpack.c.l.b16 %v61
  %v454 = vunpack.c.l.b16 %v62
  %v455 = vunpack.c.l.b16 %v63
  %v456 = vunpack.c.l.b16 %v64
  %v457 = vunpack.c.l.b16 %v65
  %v458 = vunpack.c.l.b16 %v66
  %v459 = vunpack.c.l.b16 %v67
  %v460 = vunpack.c.l.b16 %v68
  %v461 = vunpack.c.l.b16 %v69
  %v462 = vunpack.c.l.b16 %v70
  %v463 = vunpack.c.l.b16 %v71
  %v464 = vunpack.c.l.b16 %v72
  %v465 = vunpack.c.l.b16 %v73
  %v466 = vunpack.c.l.b16 %v74
  %v467 = vunpack.c.l.b16 %v75
  %v468 = vunpack.c.l.b16 %v76
  %v469 = vunpack.c.l.b16 %v77
  %v470 = vunpack.c.l.b16 %v78
  %v471 = vunpack.c.l.b16 %v79
  %v472 = vunpack.c.l.b16 %v80
  %v473 = vunpack.c.l.b16 %v81
  %v474 = vunpack.c.l.b16 %v82
  %v475 = vunpack.c.l.b16 %v83
  %v476 = vunpack.c.l.b16 %v84
  %v477 = vunpack.c.l.b16 %v85
  %v478 = vunpack.c.l.b16 %v86
  %v479 = vunpack.c.l.b16 %v87
  %v480 = vunpack.c.l.b16 %v88
  %v481 = vunpack.c.l.b16 %v89
  %v482 = vunpack.c.l.b16 %v90
  %v483 = vunpack.c.l.b16 %v91
  %v484 = vunpack.c.l.b16 %v92
  %v485 = vunpack.c.l.b16 %v93
  %v486 = vunpack.c.l.b16 %v94
  %v487 = vunpack.c.l.b16 %v95
  %v488 = vunpack.c.l.b16 %v96
  %v489 = vunpack.c.l.b16 %v97
  %v490 = vunpack.c.l.b16 %v98
  %v491 = vunpack.c.l.b16 %v99
  %v492 = vunpack.c.l.b16 %v100
  %v493 = vunpack.c.l.b16 %v101
  %v494 = vunpack.c.l.b16 %v102
  %v495 = vunpack.c.l.b16 %v103
  %v496 = vunpack.c.l.b16 %v104
  %v497 = vunpack.c.l.b16 %v105
  %v498 = vunpack.c.l.b16 %v106
  %v499 = vunpack.c.l.b16 %v107
  %v500 = vunpack.c.l.b16 %v108
  %v501 = vunpack.c.l.b16 %v109
  %v502 = vunpack.c.l.b16 %v110
  %v503 = vunpack.c.l.b16 %v111
  %v504 = vunpack.c.l.b16 %v112
  %v505 = vunpack.c.l.b16 %v113
  %v506 = vunpack.c.l.b16 %v114
  %v507 = vunpack.c.l.b16 %v115
  %v508 = vunpack.c.l.b16 %v116
  %v509 = vunpack.c.l.b16 %v117
  %v510 = vunpack.c.l.b16 %v118
  %v511 = vunpack.c.l.b16 %v119
  %v512 = vunpack.c.l.b16 %v120
  %v513 = vunpack.c.l.b16 %v121
  %v514 = vunpack.c.l.b16 %v122
  %v515 = vunpack.c.l.b16 %v123
  %v516 = vunpack.c.l.b16 %v124
  %v517 = vunpack.c.l.b16 %v125
  %v518 = vunpack.c.l.b16 %v126
  %v519 = vunpack.c.l.b16 %v127
  %v520 = vunpack.c.l.b16 %v128
  %v521 = vunpack.c.l.b16 %v129
  %v522 = vunpack.c.l.b16 %v130
  %v523 = vunpack.c.l.b16 %v131
  %v524 = vunpack.c.l.b16 %v132
  %v525 = vunpack.c.l.b16 %v133
  %v526 = vunpack.c.l.b16 %v134
  %v527 = vunpack.c.l.b16 %v135
  %v528 = vunpack.c.l.b16 %v136
  %v529 = vunpack.c.l.b16 %v137
  %v530 = vunpack.c.l.b16 %v138
  %v531 = vunpack.c.l.b16 %v139
  %v532 = vunpack.c.l.b16 %v140
  %v533 = vunpack.c.l.b16 %v141
  %v534 = vunpack.c.l.b16 %v142
  %v535 = vunpack.c.l.b16 %v143
  %v536 = vunpack.c.l.b16 %v144
  %v537 = vunpack.c.l.b16 %v145
  %v538 = vunpack.c.l.b16 %v146
  %v539 = vunpack.c.l.b16 %v147
  %v540 = vunpack.c.l.b16 %v148
  %v541 = vunpack.c.l.b16 %v149
  %v542 = vunpack.c.l.b16 %v150
  %v543 = vunpack.c.l.b16 %v151
  %v544 = vunpack.c.l.b16 %v152
  %v545 = vunpack.c.l.b16 %v153
  %v546 = vunpack.c.l.b16 %v154
  %v547 = vunpack.c.l.b16 %v155
  %v548 = vunpack.c.l.b16 %v156
  %v549 = vunpack.c.l.b16 %v157
  %v550 = vunpack.c.l.b16 %v158
  %v551 = vunpack.c.l.b16 %v159
  %v552 = vunpack.c.l.b16 %v160
  %v553 = vunpack.c.l.b16 %v161
  %v554 = vunpack.c.l.b16 %v162
  %v555 = vunpack.c.l.b16 %v163
  %v556 = vunpack.c.l.b16 %v164
  %v557 = vunpack.c.l.b16 %v165
  %v558 = vunpack.c.l.b16 %v166
  %v559 = vunpack.c.l.b16 %v167
  %v560 = vunpack.c.l.b16 %v168
  %v561 = vunpack.c.l.b16 %v169
  %v562 = vunpack.c.l.b16 %v170
  %v563 = vunpack.c.l.b16 %v171
  %v564 = vunpack.c.l.b16 %v172
  %v565 = vunpack.c.l.b16 %v173
  %v566 = vunpack.c.l.b16 %v174
  %v567 = vunpack.c.l.b16 %v175
  %v568 = vunpack.c.l.b16 %v176
  %v569 = vunpack.c.l.b16 %v177
  %v570 = vunpack.c.l.b16 %v178
  %v571 = vunpack.c.l.b16 %v179
  %v572 = vunpack.c.l.b16 %v180
  %v573 = vunpack.c.l.b16 %v181
  %v574 = vunpack.c.l.b16 %v182
  %v575 = vunpack.c.l.b16 %v183
  %v576 = vunpack.c.l.b16 %v184
  %v577 = vunpack.c.l.b16 %v185
  %v578 = vunpack.c.l.b16 %v186
  %v579 = vunpack.c.l.b16 %v187
  %v580 = vunpack.c.l.b16 %v188
  %v581 = vunpack.c.l.b16 %v189
  %v582 = vunpack.c.l.b16 %v190
  %v583 = vunpack.c.l.b16 %v191
  %v584 = vunpack.c.l.b16 %v192
  %v585 = vunpack.c.l.b16 %v193
  %v586 = vunpack.c.l.b16 %v194
  %v587 = vunpack.c.l.b16 %v195
  %v588 = vunpack.c.l.b16 %v196
  %v589 = vunpack.c.l.b16 %v197
  %v590 = vunpack.c.l.b16 %v198
  %v591 = vunpack.c.l.b16 %v199
  %v592 = vunpack.c.l.b16 %v200
  %v593 = vunpack.c.l.b16 %v201
  %v594 = vunpack.c.l.b16 %v202
  %v595 = vunpack.c.l.b16 %v203
  %v596 = vunpack.c.l.b16 %v204
  %v597 = vunpack.c.l.b16 %v205
  %v598 = vunpack.c.l.b16 %v206
  %v599 = vunpack.c.l.b16 %v207
  %v600 = vunpack.c.l.b16 %v208
  %v601 = vunpack.c.l.b16 %v209
  %v602 = vunpack.c.l.b16 %v210
  %v603 = vunpack.c.l.b16 %v211
  %v604 = vunpack.c.l.b16 %v212
  %v605 = vunpack.c.l.b16 %v213
  %v606 = vunpack.c.l.b16 %v214
  %v607 = vunpack.c.l.b16 %v215
  %v608 = vunpack.c.l.b16 %v216
  %v609 = vunpack.c.l.b16 %v217
  %v610 = vunpack.c.l.b16 %v218
  %v611 = vunpack.c.l.b16 %v219
  %v612 = vunpack.c.l.b16 %v220
  %v613 = vunpack.c.l.b16 %v221
  %v614 = vunpack.c.l.b16 %v222
  %v615 = vunpack.c.l.b16 %v223
  %v616 = vunpack.c.l.b16 %v224
  %v617 = vunpack.c.l.b16 %v225
  %v618 = vunpack.c.l.b16 %v226
  %v619 = vunpack.c.l.b16 %v227
  %v620 = vunpack.c.l.b16 %v228
  %v621 = vunpack.c.l.b16 %v229
  %v622 = vunpack.c.l.b16 %v230
  %v623 = vunpack.c.l.b16 %v231
  %v624 = vunpack.c.l.b16 %v232
  %v625 = vpack.c.b16 %v430, %v429
  %v626 = vpack.c.b16 %v432, %v431
  %v627 = vpack.c.b16 %v434, %v433
  %v628 = vpack.c.b16 %v436, %v435
  %v629 = vpack.c.b16 %v438, %v437
  %v630 = vpack.c.b16 %v440, %v439
  %v631 = vpack.c.b16 %v442, %v441
  %v632 = vpack.c.b16 %v444, %v443
  %v633 = vpack.c.b16 %v446, %v445
  %v634 = vpack.c.b16 %v448, %v447
  %v635 = vpack.c.b16 %v450, %v449
  %v636 = vpack.c.b16 %v452, %v451
  %v637 = vpack.c.b16 %v454, %v453
  %v638 = vpack.c.b16 %v456, %v455
  %v639 = vpack.c.b16 %v458, %v457
  %v640 = vpack.c.b16 %v460, %v459
  %v641 = vpack.c.b16 %v462, %v461
  %v642 = vpack.c.b16 %v464, %v463
  %v643 = vpack.c.b16 %v466, %v465
  %v644 = vpack.c.b16 %v468, %v467
  %v645 = vpack.c.b16 %v470, %v469
  %v646 = vpack.c.b16 %v472, %v471
  %v647 = vpack.c.b16 %v474, %v473
  %v648 = vpack.c.b16 %v476, %v475
  %v649 = vpack.c.b16 %v478, %v477
  %v650 = vpack.c.b16 %v480, %v479
  %v651 = vpack.c.b16 %v482, %v481
  %v652 = vpack.c.b16 %v484, %v483
  %v653 = vpack.c.b16 %v486, %v485
  %v654 = vpack.c.b16 %v488, %v487
  %v655 = vpack.c.b16 %v490, %v489
  %v656 = vpack.c.b16 %v492, %v491
  %v657 = vpack.c.b16 %v494, %v493
  %v658 = vpack.c.b16 %v496, %v495
  %v659 = vpack.c.b16 %v498, %v497
  %v660 = vpack.c.b16 %v500, %v499
  %v661 = vpack.c.b16 %v502, %v501
  %v662 = vpack.c.b16 %v504, %v503
  %v663 = vpack.c.b16 %v506, %v505
  %v664 = vpack.c.b16 %v508, %v507
  %v665 = vpack.c.b16 %v510, %v509
  %v666 = vpack.c.b16 %v512, %v511
  %v667 = vpack.c.b16 %v514, %v513
  %v668 = vpack.c.b16 %v516, %v515
  %v669 = vpack.c.b16 %v518, %v517
  %v670 = vpack.c.b16 %v520, %v519
  %v671 = vpack.c.b16 %v522, %v521
  %v672 = vpack.c.b16 %v524, %v523
  %v673 = vpack.c.b16 %v526, %v525
  %v674 = vpack.c.b16 %v528, %v527
  %v675 = vpack.c.b16 %v530, %v529
  %v676 = vpack.c.b16 %v532, %v531
  %v677 = vpack.c.b16 %v534, %v533
  %v678 = vpack.c.b16 %v536, %v535
  %v679 = vpack.c.b16 %v538, %v537
  %v680 = vpack.c.b16 %v540, %v539
  %v681 = vpack.c.b16 %v542, %v541
  %v682 = vpack.c.b16 %v544, %v543
  %v683 = vpack.c.b16 %v546, %v545
  %v684 = vpack.c.b16 %v548, %v547
  %v685 = vpack.c.b16 %v550, %v549
  %v686 = vpack.c.b16 %v552, %v551
  %v687 = vpack.c.b16 %v554, %v553
  %v688 = vpack.c.b16 %v556, %v555
  %v689 = vpack.c.b16 %v558, %v557
  %v690 = vpack.c.b16 %v560, %v559
  %v691 = vpack.c.b16 %v562, %v561
  %v692 = vpack.c.b16 %v564, %v563
  %v693 = vpack.c.b16 %v566, %v565
  %v694 = vpack.c.b16 %v568, %v567
  %v695 = vpack.c.b16 %v570, %v569
  %v696 = vpack.c.b16 %v572, %v571
  %v697 = vpack.c.b16 %v574, %v573
  %v698 = vpack.c.b16 %v576, %v575
  %v699 = vpack.c.b16 %v578, %v577
  %v700 = vpack.c.b16 %v580, %v579
  %v701 = vpack.c.b16 %v582, %v581
  %v702 = vpack.c.b16 %v584, %v583
  %v703 = vpack.c.b16 %v586, %v585
  %v704 = vpack.c.b16 %v588, %v587
  %v705 = vpack.c.b16 %v590, %v589
  %v706 = vpack.c.b16 %v592, %v591
  %v707 = vpack.c.b16 %v594, %v593
  %v708 = vpack.c.b16 %v596, %v595
  %v709 = vpack.c.b16 %v598, %v597
  %v710 = vpack.c.b16 %v600, %v599
  %v711 = vpack.c.b16 %v602, %v601
  %v712 = vpack.c.b16 %v604, %v603
  %v713 = vpack.c.b16 %v606, %v605
  %v714 = vpack.c.b16 %v608, %v607
  %v715 = vpack.c.b16 %v610, %v609
  %v716 = vpack.c.b16 %v612, %v611
  %v717 = vpack.c.b16 %v614, %v613
  %v718 = vpack.c.b16 %v616, %v615
  %v719 = vpack.c.b16 %v618, %v617
  %v720 = vpack.c.b16 %v620, %v619
  %v721 = vpack.c.b16 %v622, %v621
  %v722 = vpack.c.b16 %v624, %v623
  %v733 = vunpack.c.l.b16 %v27
  %v734 = vunpack.c.l.b16 %v28
  %v735 = vunpack.c.l.b16 %v29
  %v736 = vunpack.c.l.b16 %v30
  %v737 = vunpack.c.l.b16 %v31
  %v738 = vunpack.c.l.b16 %v32
  %v739 = vunpack.c.l.b16 %v33
  %v740 = vunpack.c.l.b16 %v34
  %v741 = vunpack.c.l.b16 %v35
  %v742 = vunpack.c.l.b16 %v36
  %v743 = vpack.c.b16 %v734, %v733
  %v744 = vpack.c.b16 %v736, %v735
  %v745 = vpack.c.b16 %v738, %v737
  %v746 = vpack.c.b16 %v740, %v739
  %v747 = vpack.c.b16 %v742, %v741
  %vm752 = vcmask 613376
  %v754 = vsel %vm752, %v625, 0
  %v757 = vsel %vm752, %v626, 0
  %v760 = vsel %vm752, %v627, 0
  %v763 = vsel %vm752, %v628, 0
  %v766 = vsel %vm752, %v629, 0
  %v769 = vsel %vm752, %v630, 0
  %v772 = vsel %vm752, %v631, 0
  %v775 = vsel %vm752, %v632, 0
  %v778 = vsel %vm752, %v633, 0
  %v781 = vsel %vm752, %v634, 0
  %v784 = vsel %vm752, %v635, 0
  %v787 = vsel %vm752, %v636, 0
  %v790 = vsel %vm752, %v637, 0
  %v793 = vsel %vm752, %v638, 0
  %v796 = vsel %vm752, %v639, 0
  %v799 = vsel %vm752, %v640, 0
  %v802 = vsel %vm752, %v641, 0
  %v805 = vsel %vm752, %v642, 0
  %v808 = vsel %vm752, %v643, 0
  %v811 = vsel %vm752, %v644, 0
  %v814 = vsel %vm752, %v645, 0
  %v817 = vsel %vm752, %v646, 0
  %v820 = vsel %vm752, %v647, 0
  %v823 = vsel %vm752, %v648, 0
  %v826 = vsel %vm752, %v649, 0
  %v829 = vsel %vm752, %v650, 0
  %v832 = vsel %vm752, %v651, 0
  %v835 = vsel %vm752, %v652, 0
  %v838 = vsel %vm752, %v653, 0
  %v841 = vsel %vm752, %v654, 0
  %v844 = vsel %vm752, %v655, 0
  %v847 = vsel %vm752, %v656, 0
  %v850 = vsel %vm752, %v657, 0
  %v853 = vsel %vm752, %v658, 0
  %v856 = vsel %vm752, %v659, 0
  %v859 = vsel %vm752, %v660, 0
  %v862 = vsel %vm752, %v661, 0
  %v865 = vsel %vm752, %v662, 0
  %v868 = vsel %vm752, %v663, 0
  %v871 = vsel %vm752, %v664, 0
  %v874 = vsel %vm752, %v665, 0
  %v877 = vsel %vm752, %v666, 0
  %v880 = vsel %vm752, %v667, 0
  %v883 = vsel %vm752, %v668, 0
  %v886 = vsel %vm752, %v669, 0
  %v889 = vsel %vm752, %v670, 0
  %v892 = vsel %vm752, %v671, 0
  %v895 = vsel %vm752, %v672, 0
  %v898 = vsel %vm752, %v673, 0
  %v901 = vsel %vm752, %v674, 0
  %v904 = vsel %vm752, %v675, 0
  %v907 = vsel %vm752, %v676, 0
  %v910 = vsel %vm752, %v677, 0
  %v913 = vsel %vm752, %v678, 0
  %v916 = vsel %vm752, %v679, 0
  %v919 = vsel %vm752, %v680, 0
  %v922 = vsel %vm752, %v681, 0
  %v925 = vsel %vm752, %v682, 0
  %v928 = vsel %vm752, %v683, 0
  %v931 = vsel %vm752, %v684, 0
  %v934 = vsel %vm752, %v685, 0
  %v937 = vsel %vm752, %v686, 0
  %v940 = vsel %vm752, %v687, 0
  %v943 = vsel %vm752, %v688, 0
  %v946 = vsel %vm752, %v689, 0
  %v949 = vsel %vm752, %v690, 0
  %v952 = vsel %vm752, %v691, 0
  %v955 = vsel %vm752, %v692, 0
  %v958 = vsel %vm752, %v693, 0
  %v961 = vsel %vm752, %v694, 0
  %v964 = vsel %vm752, %v695, 0
  %v967 = vsel %vm752, %v696, 0
  %v970 = vsel %vm752, %v697, 0
  %v973 = vsel %vm752, %v698, 0
  %v976 = vsel %vm752, %v699, 0
  %v979 = vsel %vm752, %v700, 0
  %v982 = vsel %vm752, %v701, 0
  %v985 = vsel %vm752, %v702, 0
  %v988 = vsel %vm752, %v703, 0
  %v991 = vsel %vm752, %v704, 0
  %v994 = vsel %vm752, %v705, 0
  %v997 = vsel %vm752, %v706, 0
  %v1000 = vsel %vm752, %v707, 0
  %v1003 = vsel %vm752, %v708, 0
  %v1006 = vsel %vm752, %v709, 0
  %v1009 = vsel %vm752, %v710, 0
  %v1012 = vsel %vm752, %v711, 0
  %v1015 = vsel %vm752, %v712, 0
  %v1018 = vsel %vm752, %v713, 0
  %v1021 = vsel %vm752, %v714, 0
  %v1024 = vsel %vm752, %v715, 0
  %v1027 = vsel %vm752, %v716, 0
  %v1030 = vsel %vm752, %v717, 0
  %v1033 = vsel %vm752, %v718, 0
  %v1036 = vsel %vm752, %v719, 0
  %v1039 = vsel %vm752, %v720, 0
  %v1042 = vsel %vm752, %v721, 0
  %v1045 = vsel %vm752, %v722, 0
  %vm1047 = vcmask 1044480
  %vm1048 = vcmask 1045504
  %v1049 = vsel %vm1047, 4294967295, 65535
  %v1050 = vsel %vm1048, %v1049, 0
  %v1052 = vand.u32 %v747, %v1050
  %1054 = vmatpush.bf16.msra.mxu0 0
  %1055 = vmatpush.bf16.msra.mxu0 0
  %1056 = vmatpush.bf16.msra.mxu0 0
  %1057 = vmatpush.bf16.msra.mxu0 %v1052
  %1058 = vmatpush.bf16.msra.mxu0 %v746
  %1059 = vmatpush.bf16.msra.mxu0 %v745
  %1060 = vmatpush.bf16.msra.mxu0 %v744
  %1061 = vmatpush.bf16.msra.mxu0 %v743
  %1062 = vmatmul.bf16.gmra.mxu0 %v754
  %v1063 = vpop.f32.mrf.mxu0
  %v1064 = vadd.f32 0.0, %v1063
  %v1065 = vpop.f32.mrf.mxu0
  %v1066 = vadd.f32 0.0, %v1065
  %1067 = vmatmul.bf16.gmra.mxu0 %v757
  %v1068 = vpop.f32.mrf.mxu0
  %v1069 = vadd.f32 0.0, %v1068
  %v1070 = vpop.f32.mrf.mxu0
  %v1071 = vadd.f32 0.0, %v1070
  %1072 = vmatmul.bf16.gmra.mxu0 %v760
  %v1073 = vpop.f32.mrf.mxu0
  %v1074 = vadd.f32 0.0, %v1073
  %v1075 = vpop.f32.mrf.mxu0
  %v1076 = vadd.f32 0.0, %v1075
  %1077 = vmatmul.bf16.gmra.mxu0 %v763
  %v1078 = vpop.f32.mrf.mxu0
  %v1079 = vadd.f32 0.0, %v1078
  %v1080 = vpop.f32.mrf.mxu0
  %v1081 = vadd.f32 0.0, %v1080
  %1082 = vmatmul.bf16.gmra.mxu0 %v766
  %v1083 = vpop.f32.mrf.mxu0
  %v1084 = vadd.f32 0.0, %v1083
  %v1085 = vpop.f32.mrf.mxu0
  %v1086 = vadd.f32 0.0, %v1085
  %1087 = vmatmul.bf16.gmra.mxu0 %v769
  %v1088 = vpop.f32.mrf.mxu0
  %v1089 = vadd.f32 0.0, %v1088
  %v1090 = vpop.f32.mrf.mxu0
  %v1091 = vadd.f32 0.0, %v1090
  %1092 = vmatmul.bf16.gmra.mxu0 %v772
  %v1093 = vpop.f32.mrf.mxu0
  %v1094 = vadd.f32 0.0, %v1093
  %v1095 = vpop.f32.mrf.mxu0
  %v1096 = vadd.f32 0.0, %v1095
  %1097 = vmatmul.bf16.gmra.mxu0 %v775
  %v1098 = vpop.f32.mrf.mxu0
  %v1099 = vadd.f32 0.0, %v1098
  %v1100 = vpop.f32.mrf.mxu0
  %v1101 = vadd.f32 0.0, %v1100
  %1102 = vmatmul.bf16.gmra.mxu0 %v778
  %v1103 = vpop.f32.mrf.mxu0
  %v1104 = vadd.f32 0.0, %v1103
  %v1105 = vpop.f32.mrf.mxu0
  %v1106 = vadd.f32 0.0, %v1105
  %1107 = vmatmul.bf16.gmra.mxu0 %v781
  %v1108 = vpop.f32.mrf.mxu0
  %v1109 = vadd.f32 0.0, %v1108
  %v1110 = vpop.f32.mrf.mxu0
  %v1111 = vadd.f32 0.0, %v1110
  %1112 = vmatmul.bf16.gmra.mxu0 %v784
  %v1113 = vpop.f32.mrf.mxu0
  %v1114 = vadd.f32 0.0, %v1113
  %v1115 = vpop.f32.mrf.mxu0
  %v1116 = vadd.f32 0.0, %v1115
  %1117 = vmatmul.bf16.gmra.mxu0 %v787
  %v1118 = vpop.f32.mrf.mxu0
  %v1119 = vadd.f32 0.0, %v1118
  %v1120 = vpop.f32.mrf.mxu0
  %v1121 = vadd.f32 0.0, %v1120
  %1122 = vmatmul.bf16.gmra.mxu0 %v790
  %v1123 = vpop.f32.mrf.mxu0
  %v1124 = vadd.f32 0.0, %v1123
  %v1125 = vpop.f32.mrf.mxu0
  %v1126 = vadd.f32 0.0, %v1125
  %1127 = vmatmul.bf16.gmra.mxu0 %v793
  %v1128 = vpop.f32.mrf.mxu0
  %v1129 = vadd.f32 0.0, %v1128
  %v1130 = vpop.f32.mrf.mxu0
  %v1131 = vadd.f32 0.0, %v1130
  %1132 = vmatmul.bf16.gmra.mxu0 %v796
  %v1133 = vpop.f32.mrf.mxu0
  %v1134 = vadd.f32 0.0, %v1133
  %v1135 = vpop.f32.mrf.mxu0
  %v1136 = vadd.f32 0.0, %v1135
  %1137 = vmatmul.bf16.gmra.mxu0 %v799
  %v1138 = vpop.f32.mrf.mxu0
  %v1139 = vadd.f32 0.0, %v1138
  %v1140 = vpop.f32.mrf.mxu0
  %v1141 = vadd.f32 0.0, %v1140
  %1142 = vmatmul.bf16.gmra.mxu0 %v802
  %v1143 = vpop.f32.mrf.mxu0
  %v1144 = vadd.f32 0.0, %v1143
  %v1145 = vpop.f32.mrf.mxu0
  %v1146 = vadd.f32 0.0, %v1145
  %1147 = vmatmul.bf16.gmra.mxu0 %v805
  %v1148 = vpop.f32.mrf.mxu0
  %v1149 = vadd.f32 0.0, %v1148
  %v1150 = vpop.f32.mrf.mxu0
  %v1151 = vadd.f32 0.0, %v1150
  %1152 = vmatmul.bf16.gmra.mxu0 %v808
  %v1153 = vpop.f32.mrf.mxu0
  %v1154 = vadd.f32 0.0, %v1153
  %v1155 = vpop.f32.mrf.mxu0
  %v1156 = vadd.f32 0.0, %v1155
  %1157 = vmatmul.bf16.gmra.mxu0 %v811
  %v1158 = vpop.f32.mrf.mxu0
  %v1159 = vadd.f32 0.0, %v1158
  %v1160 = vpop.f32.mrf.mxu0
  %v1161 = vadd.f32 0.0, %v1160
  %1162 = vmatmul.bf16.gmra.mxu0 %v814
  %v1163 = vpop.f32.mrf.mxu0
  %v1164 = vadd.f32 0.0, %v1163
  %v1165 = vpop.f32.mrf.mxu0
  %v1166 = vadd.f32 0.0, %v1165
  %1167 = vmatmul.bf16.gmra.mxu0 %v817
  %v1168 = vpop.f32.mrf.mxu0
  %v1169 = vadd.f32 0.0, %v1168
  %v1170 = vpop.f32.mrf.mxu0
  %v1171 = vadd.f32 0.0, %v1170
  %1172 = vmatmul.bf16.gmra.mxu0 %v820
  %v1173 = vpop.f32.mrf.mxu0
  %v1174 = vadd.f32 0.0, %v1173
  %v1175 = vpop.f32.mrf.mxu0
  %v1176 = vadd.f32 0.0, %v1175
  %1177 = vmatmul.bf16.gmra.mxu0 %v823
  %v1178 = vpop.f32.mrf.mxu0
  %v1179 = vadd.f32 0.0, %v1178
  %v1180 = vpop.f32.mrf.mxu0
  %v1181 = vadd.f32 0.0, %v1180
  %1182 = vmatmul.bf16.gmra.mxu0 %v826
  %v1183 = vpop.f32.mrf.mxu0
  %v1184 = vadd.f32 0.0, %v1183
  %v1185 = vpop.f32.mrf.mxu0
  %v1186 = vadd.f32 0.0, %v1185
  %1187 = vmatmul.bf16.gmra.mxu0 %v829
  %v1188 = vpop.f32.mrf.mxu0
  %v1189 = vadd.f32 0.0, %v1188
  %v1190 = vpop.f32.mrf.mxu0
  %v1191 = vadd.f32 0.0, %v1190
  %1192 = vmatmul.bf16.gmra.mxu0 %v832
  %v1193 = vpop.f32.mrf.mxu0
  %v1194 = vadd.f32 0.0, %v1193
  %v1195 = vpop.f32.mrf.mxu0
  %v1196 = vadd.f32 0.0, %v1195
  %1197 = vmatmul.bf16.gmra.mxu0 %v835
  %v1198 = vpop.f32.mrf.mxu0
  %v1199 = vadd.f32 0.0, %v1198
  %v1200 = vpop.f32.mrf.mxu0
  %v1201 = vadd.f32 0.0, %v1200
  %1202 = vmatmul.bf16.gmra.mxu0 %v838
  %v1203 = vpop.f32.mrf.mxu0
  %v1204 = vadd.f32 0.0, %v1203
  %v1205 = vpop.f32.mrf.mxu0
  %v1206 = vadd.f32 0.0, %v1205
  %1207 = vmatmul.bf16.gmra.mxu0 %v841
  %v1208 = vpop.f32.mrf.mxu0
  %v1209 = vadd.f32 0.0, %v1208
  %v1210 = vpop.f32.mrf.mxu0
  %v1211 = vadd.f32 0.0, %v1210
  %1212 = vmatmul.bf16.gmra.mxu0 %v844
  %v1213 = vpop.f32.mrf.mxu0
  %v1214 = vadd.f32 0.0, %v1213
  %v1215 = vpop.f32.mrf.mxu0
  %v1216 = vadd.f32 0.0, %v1215
  %1217 = vmatmul.bf16.gmra.mxu0 %v847
  %v1218 = vpop.f32.mrf.mxu0
  %v1219 = vadd.f32 0.0, %v1218
  %v1220 = vpop.f32.mrf.mxu0
  %v1221 = vadd.f32 0.0, %v1220
  %1222 = vmatmul.bf16.gmra.mxu0 %v850
  %v1223 = vpop.f32.mrf.mxu0
  %v1224 = vadd.f32 0.0, %v1223
  %v1225 = vpop.f32.mrf.mxu0
  %v1226 = vadd.f32 0.0, %v1225
  %1227 = vmatmul.bf16.gmra.mxu0 %v853
  %v1228 = vpop.f32.mrf.mxu0
  %v1229 = vadd.f32 0.0, %v1228
  %v1230 = vpop.f32.mrf.mxu0
  %v1231 = vadd.f32 0.0, %v1230
  %1232 = vmatmul.bf16.gmra.mxu0 %v856
  %v1233 = vpop.f32.mrf.mxu0
  %v1234 = vadd.f32 0.0, %v1233
  %v1235 = vpop.f32.mrf.mxu0
  %v1236 = vadd.f32 0.0, %v1235
  %1237 = vmatmul.bf16.gmra.mxu0 %v859
  %v1238 = vpop.f32.mrf.mxu0
  %v1239 = vadd.f32 0.0, %v1238
  %v1240 = vpop.f32.mrf.mxu0
  %v1241 = vadd.f32 0.0, %v1240
  %1242 = vmatmul.bf16.gmra.mxu0 %v862
  %v1243 = vpop.f32.mrf.mxu0
  %v1244 = vadd.f32 0.0, %v1243
  %v1245 = vpop.f32.mrf.mxu0
  %v1246 = vadd.f32 0.0, %v1245
  %1247 = vmatmul.bf16.gmra.mxu0 %v865
  %v1248 = vpop.f32.mrf.mxu0
  %v1249 = vadd.f32 0.0, %v1248
  %v1250 = vpop.f32.mrf.mxu0
  %v1251 = vadd.f32 0.0, %v1250
  %1252 = vmatmul.bf16.gmra.mxu0 %v868
  %v1253 = vpop.f32.mrf.mxu0
  %v1254 = vadd.f32 0.0, %v1253
  %v1255 = vpop.f32.mrf.mxu0
  %v1256 = vadd.f32 0.0, %v1255
  %1257 = vmatmul.bf16.gmra.mxu0 %v871
  %v1258 = vpop.f32.mrf.mxu0
  %v1259 = vadd.f32 0.0, %v1258
  %v1260 = vpop.f32.mrf.mxu0
  %v1261 = vadd.f32 0.0, %v1260
  %1262 = vmatmul.bf16.gmra.mxu0 %v874
  %v1263 = vpop.f32.mrf.mxu0
  %v1264 = vadd.f32 0.0, %v1263
  %v1265 = vpop.f32.mrf.mxu0
  %v1266 = vadd.f32 0.0, %v1265
  %1267 = vmatmul.bf16.gmra.mxu0 %v877
  %v1268 = vpop.f32.mrf.mxu0
  %v1269 = vadd.f32 0.0, %v1268
  %v1270 = vpop.f32.mrf.mxu0
  %v1271 = vadd.f32 0.0, %v1270
  %1272 = vmatmul.bf16.gmra.mxu0 %v880
  %v1273 = vpop.f32.mrf.mxu0
  %v1274 = vadd.f32 0.0, %v1273
  %v1275 = vpop.f32.mrf.mxu0
  %v1276 = vadd.f32 0.0, %v1275
  %1277 = vmatmul.bf16.gmra.mxu0 %v883
  %v1278 = vpop.f32.mrf.mxu0
  %v1279 = vadd.f32 0.0, %v1278
  %v1280 = vpop.f32.mrf.mxu0
  %v1281 = vadd.f32 0.0, %v1280
  %1282 = vmatmul.bf16.gmra.mxu0 %v886
  %v1283 = vpop.f32.mrf.mxu0
  %v1284 = vadd.f32 0.0, %v1283
  %v1285 = vpop.f32.mrf.mxu0
  %v1286 = vadd.f32 0.0, %v1285
  %1287 = vmatmul.bf16.gmra.mxu0 %v889
  %v1288 = vpop.f32.mrf.mxu0
  %v1289 = vadd.f32 0.0, %v1288
  %v1290 = vpop.f32.mrf.mxu0
  %v1291 = vadd.f32 0.0, %v1290
  %1292 = vmatmul.bf16.gmra.mxu0 %v892
  %v1293 = vpop.f32.mrf.mxu0
  %v1294 = vadd.f32 0.0, %v1293
  %v1295 = vpop.f32.mrf.mxu0
  %v1296 = vadd.f32 0.0, %v1295
  %1297 = vmatmul.bf16.gmra.mxu0 %v895
  %v1298 = vpop.f32.mrf.mxu0
  %v1299 = vadd.f32 0.0, %v1298
  %v1300 = vpop.f32.mrf.mxu0
  %v1301 = vadd.f32 0.0, %v1300
  %1302 = vmatmul.bf16.gmra.mxu0 %v898
  %v1303 = vpop.f32.mrf.mxu0
  %v1304 = vadd.f32 0.0, %v1303
  %v1305 = vpop.f32.mrf.mxu0
  %v1306 = vadd.f32 0.0, %v1305
  %1307 = vmatmul.bf16.gmra.mxu0 %v901
  %v1308 = vpop.f32.mrf.mxu0
  %v1309 = vadd.f32 0.0, %v1308
  %v1310 = vpop.f32.mrf.mxu0
  %v1311 = vadd.f32 0.0, %v1310
  %1312 = vmatmul.bf16.gmra.mxu0 %v904
  %v1313 = vpop.f32.mrf.mxu0
  %v1314 = vadd.f32 0.0, %v1313
  %v1315 = vpop.f32.mrf.mxu0
  %v1316 = vadd.f32 0.0, %v1315
  %1317 = vmatmul.bf16.gmra.mxu0 %v907
  %v1318 = vpop.f32.mrf.mxu0
  %v1319 = vadd.f32 0.0, %v1318
  %v1320 = vpop.f32.mrf.mxu0
  %v1321 = vadd.f32 0.0, %v1320
  %1322 = vmatmul.bf16.gmra.mxu0 %v910
  %v1323 = vpop.f32.mrf.mxu0
  %v1324 = vadd.f32 0.0, %v1323
  %v1325 = vpop.f32.mrf.mxu0
  %v1326 = vadd.f32 0.0, %v1325
  %1327 = vmatmul.bf16.gmra.mxu0 %v913
  %v1328 = vpop.f32.mrf.mxu0
  %v1329 = vadd.f32 0.0, %v1328
  %v1330 = vpop.f32.mrf.mxu0
  %v1331 = vadd.f32 0.0, %v1330
  %1332 = vmatmul.bf16.gmra.mxu0 %v916
  %v1333 = vpop.f32.mrf.mxu0
  %v1334 = vadd.f32 0.0, %v1333
  %v1335 = vpop.f32.mrf.mxu0
  %v1336 = vadd.f32 0.0, %v1335
  %1337 = vmatmul.bf16.gmra.mxu0 %v919
  %v1338 = vpop.f32.mrf.mxu0
  %v1339 = vadd.f32 0.0, %v1338
  %v1340 = vpop.f32.mrf.mxu0
  %v1341 = vadd.f32 0.0, %v1340
  %1342 = vmatmul.bf16.gmra.mxu0 %v922
  %v1343 = vpop.f32.mrf.mxu0
  %v1344 = vadd.f32 0.0, %v1343
  %v1345 = vpop.f32.mrf.mxu0
  %v1346 = vadd.f32 0.0, %v1345
  %1347 = vmatmul.bf16.gmra.mxu0 %v925
  %v1348 = vpop.f32.mrf.mxu0
  %v1349 = vadd.f32 0.0, %v1348
  %v1350 = vpop.f32.mrf.mxu0
  %v1351 = vadd.f32 0.0, %v1350
  %1352 = vmatmul.bf16.gmra.mxu0 %v928
  %v1353 = vpop.f32.mrf.mxu0
  %v1354 = vadd.f32 0.0, %v1353
  %v1355 = vpop.f32.mrf.mxu0
  %v1356 = vadd.f32 0.0, %v1355
  %1357 = vmatmul.bf16.gmra.mxu0 %v931
  %v1358 = vpop.f32.mrf.mxu0
  %v1359 = vadd.f32 0.0, %v1358
  %v1360 = vpop.f32.mrf.mxu0
  %v1361 = vadd.f32 0.0, %v1360
  %1362 = vmatmul.bf16.gmra.mxu0 %v934
  %v1363 = vpop.f32.mrf.mxu0
  %v1364 = vadd.f32 0.0, %v1363
  %v1365 = vpop.f32.mrf.mxu0
  %v1366 = vadd.f32 0.0, %v1365
  %1367 = vmatmul.bf16.gmra.mxu0 %v937
  %v1368 = vpop.f32.mrf.mxu0
  %v1369 = vadd.f32 0.0, %v1368
  %v1370 = vpop.f32.mrf.mxu0
  %v1371 = vadd.f32 0.0, %v1370
  %1372 = vmatmul.bf16.gmra.mxu0 %v940
  %v1373 = vpop.f32.mrf.mxu0
  %v1374 = vadd.f32 0.0, %v1373
  %v1375 = vpop.f32.mrf.mxu0
  %v1376 = vadd.f32 0.0, %v1375
  %1377 = vmatmul.bf16.gmra.mxu0 %v943
  %v1378 = vpop.f32.mrf.mxu0
  %v1379 = vadd.f32 0.0, %v1378
  %v1380 = vpop.f32.mrf.mxu0
  %v1381 = vadd.f32 0.0, %v1380
  %1382 = vmatmul.bf16.gmra.mxu0 %v946
  %v1383 = vpop.f32.mrf.mxu0
  %v1384 = vadd.f32 0.0, %v1383
  %v1385 = vpop.f32.mrf.mxu0
  %v1386 = vadd.f32 0.0, %v1385
  %1387 = vmatmul.bf16.gmra.mxu0 %v949
  %v1388 = vpop.f32.mrf.mxu0
  %v1389 = vadd.f32 0.0, %v1388
  %v1390 = vpop.f32.mrf.mxu0
  %v1391 = vadd.f32 0.0, %v1390
  %1392 = vmatmul.bf16.gmra.mxu0 %v952
  %v1393 = vpop.f32.mrf.mxu0
  %v1394 = vadd.f32 0.0, %v1393
  %v1395 = vpop.f32.mrf.mxu0
  %v1396 = vadd.f32 0.0, %v1395
  %1397 = vmatmul.bf16.gmra.mxu0 %v955
  %v1398 = vpop.f32.mrf.mxu0
  %v1399 = vadd.f32 0.0, %v1398
  %v1400 = vpop.f32.mrf.mxu0
  %v1401 = vadd.f32 0.0, %v1400
  %1402 = vmatmul.bf16.gmra.mxu0 %v958
  %v1403 = vpop.f32.mrf.mxu0
  %v1404 = vadd.f32 0.0, %v1403
  %v1405 = vpop.f32.mrf.mxu0
  %v1406 = vadd.f32 0.0, %v1405
  %1407 = vmatmul.bf16.gmra.mxu0 %v961
  %v1408 = vpop.f32.mrf.mxu0
  %v1409 = vadd.f32 0.0, %v1408
  %v1410 = vpop.f32.mrf.mxu0
  %v1411 = vadd.f32 0.0, %v1410
  %1412 = vmatmul.bf16.gmra.mxu0 %v964
  %v1413 = vpop.f32.mrf.mxu0
  %v1414 = vadd.f32 0.0, %v1413
  %v1415 = vpop.f32.mrf.mxu0
  %v1416 = vadd.f32 0.0, %v1415
  %1417 = vmatmul.bf16.gmra.mxu0 %v967
  %v1418 = vpop.f32.mrf.mxu0
  %v1419 = vadd.f32 0.0, %v1418
  %v1420 = vpop.f32.mrf.mxu0
  %v1421 = vadd.f32 0.0, %v1420
  %1422 = vmatmul.bf16.gmra.mxu0 %v970
  %v1423 = vpop.f32.mrf.mxu0
  %v1424 = vadd.f32 0.0, %v1423
  %v1425 = vpop.f32.mrf.mxu0
  %v1426 = vadd.f32 0.0, %v1425
  %1427 = vmatmul.bf16.gmra.mxu0 %v973
  %v1428 = vpop.f32.mrf.mxu0
  %v1429 = vadd.f32 0.0, %v1428
  %v1430 = vpop.f32.mrf.mxu0
  %v1431 = vadd.f32 0.0, %v1430
  %1432 = vmatmul.bf16.gmra.mxu0 %v976
  %v1433 = vpop.f32.mrf.mxu0
  %v1434 = vadd.f32 0.0, %v1433
  %v1435 = vpop.f32.mrf.mxu0
  %v1436 = vadd.f32 0.0, %v1435
  %1437 = vmatmul.bf16.gmra.mxu0 %v979
  %v1438 = vpop.f32.mrf.mxu0
  %v1439 = vadd.f32 0.0, %v1438
  %v1440 = vpop.f32.mrf.mxu0
  %v1441 = vadd.f32 0.0, %v1440
  %1442 = vmatmul.bf16.gmra.mxu0 %v982
  %v1443 = vpop.f32.mrf.mxu0
  %v1444 = vadd.f32 0.0, %v1443
  %v1445 = vpop.f32.mrf.mxu0
  %v1446 = vadd.f32 0.0, %v1445
  %1447 = vmatmul.bf16.gmra.mxu0 %v985
  %v1448 = vpop.f32.mrf.mxu0
  %v1449 = vadd.f32 0.0, %v1448
  %v1450 = vpop.f32.mrf.mxu0
  %v1451 = vadd.f32 0.0, %v1450
  %1452 = vmatmul.bf16.gmra.mxu0 %v988
  %v1453 = vpop.f32.mrf.mxu0
  %v1454 = vadd.f32 0.0, %v1453
  %v1455 = vpop.f32.mrf.mxu0
  %v1456 = vadd.f32 0.0, %v1455
  %1457 = vmatmul.bf16.gmra.mxu0 %v991
  %v1458 = vpop.f32.mrf.mxu0
  %v1459 = vadd.f32 0.0, %v1458
  %v1460 = vpop.f32.mrf.mxu0
  %v1461 = vadd.f32 0.0, %v1460
  %1462 = vmatmul.bf16.gmra.mxu0 %v994
  %v1463 = vpop.f32.mrf.mxu0
  %v1464 = vadd.f32 0.0, %v1463
  %v1465 = vpop.f32.mrf.mxu0
  %v1466 = vadd.f32 0.0, %v1465
  %1467 = vmatmul.bf16.gmra.mxu0 %v997
  %v1468 = vpop.f32.mrf.mxu0
  %v1469 = vadd.f32 0.0, %v1468
  %v1470 = vpop.f32.mrf.mxu0
  %v1471 = vadd.f32 0.0, %v1470
  %1472 = vmatmul.bf16.gmra.mxu0 %v1000
  %v1473 = vpop.f32.mrf.mxu0
  %v1474 = vadd.f32 0.0, %v1473
  %v1475 = vpop.f32.mrf.mxu0
  %v1476 = vadd.f32 0.0, %v1475
  %1477 = vmatmul.bf16.gmra.mxu0 %v1003
  %v1478 = vpop.f32.mrf.mxu0
  %v1479 = vadd.f32 0.0, %v1478
  %v1480 = vpop.f32.mrf.mxu0
  %v1481 = vadd.f32 0.0, %v1480
  %1482 = vmatmul.bf16.gmra.mxu0 %v1006
  %v1483 = vpop.f32.mrf.mxu0
  %v1484 = vadd.f32 0.0, %v1483
  %v1485 = vpop.f32.mrf.mxu0
  %v1486 = vadd.f32 0.0, %v1485
  %1487 = vmatmul.bf16.gmra.mxu0 %v1009
  %v1488 = vpop.f32.mrf.mxu0
  %v1489 = vadd.f32 0.0, %v1488
  %v1490 = vpop.f32.mrf.mxu0
  %v1491 = vadd.f32 0.0, %v1490
  %1492 = vmatmul.bf16.gmra.mxu0 %v1012
  %v1493 = vpop.f32.mrf.mxu0
  %v1494 = vadd.f32 0.0, %v1493
  %v1495 = vpop.f32.mrf.mxu0
  %v1496 = vadd.f32 0.0, %v1495
  %1497 = vmatmul.bf16.gmra.mxu0 %v1015
  %v1498 = vpop.f32.mrf.mxu0
  %v1499 = vadd.f32 0.0, %v1498
  %v1500 = vpop.f32.mrf.mxu0
  %v1501 = vadd.f32 0.0, %v1500
  %1502 = vmatmul.bf16.gmra.mxu0 %v1018
  %v1503 = vpop.f32.mrf.mxu0
  %v1504 = vadd.f32 0.0, %v1503
  %v1505 = vpop.f32.mrf.mxu0
  %v1506 = vadd.f32 0.0, %v1505
  %1507 = vmatmul.bf16.gmra.mxu0 %v1021
  %v1508 = vpop.f32.mrf.mxu0
  %v1509 = vadd.f32 0.0, %v1508
  %v1510 = vpop.f32.mrf.mxu0
  %v1511 = vadd.f32 0.0, %v1510
  %1512 = vmatmul.bf16.gmra.mxu0 %v1024
  %v1513 = vpop.f32.mrf.mxu0
  %v1514 = vadd.f32 0.0, %v1513
  %v1515 = vpop.f32.mrf.mxu0
  %v1516 = vadd.f32 0.0, %v1515
  %1517 = vmatmul.bf16.gmra.mxu0 %v1027
  %v1518 = vpop.f32.mrf.mxu0
  %v1519 = vadd.f32 0.0, %v1518
  %v1520 = vpop.f32.mrf.mxu0
  %v1521 = vadd.f32 0.0, %v1520
  %1522 = vmatmul.bf16.gmra.mxu0 %v1030
  %v1523 = vpop.f32.mrf.mxu0
  %v1524 = vadd.f32 0.0, %v1523
  %v1525 = vpop.f32.mrf.mxu0
  %v1526 = vadd.f32 0.0, %v1525
  %1527 = vmatmul.bf16.gmra.mxu0 %v1033
  %v1528 = vpop.f32.mrf.mxu0
  %v1529 = vadd.f32 0.0, %v1528
  %v1530 = vpop.f32.mrf.mxu0
  %v1531 = vadd.f32 0.0, %v1530
  %1532 = vmatmul.bf16.gmra.mxu0 %v1036
  %v1533 = vpop.f32.mrf.mxu0
  %v1534 = vadd.f32 0.0, %v1533
  %v1535 = vpop.f32.mrf.mxu0
  %v1536 = vadd.f32 0.0, %v1535
  %1537 = vmatmul.bf16.gmra.mxu0 %v1039
  %v1538 = vpop.f32.mrf.mxu0
  %v1539 = vadd.f32 0.0, %v1538
  %v1540 = vpop.f32.mrf.mxu0
  %v1541 = vadd.f32 0.0, %v1540
  %1542 = vmatmul.bf16.gmra.mxu0 %v1042
  %v1543 = vpop.f32.mrf.mxu0
  %v1544 = vadd.f32 0.0, %v1543
  %v1545 = vpop.f32.mrf.mxu0
  %v1546 = vadd.f32 0.0, %v1545
  %1547 = vmatmul.bf16.gmra.mxu0 %v1045
  %v1548 = vpop.f32.mrf.mxu0
  %v1549 = vadd.f32 0.0, %v1548
  %v1550 = vpop.f32.mrf.mxu0
  %v1551 = vadd.f32 0.0, %v1550
  %1552 = vdwg.mxu0
  %s1553 = scalar_lea.vmem %s0, 784
  %v1554 = vld [vmem:[%s1553] sm:$0xf]
  %v1555 = vld [vmem:[%s1553 + $0x4] sm:$0xf]
  %v1556 = vld [vmem:[%s1553 + $0x8] sm:$0xf]
  %v1557 = vld [vmem:[%s1553 + $0xc] sm:$0xf]
  %v1558 = vld [vmem:[%s1553 + $0x10] sm:$0xf]
  %v1559 = vld [vmem:[%s1553 + $0x14] sm:$0xf]
  %v1560 = vld [vmem:[%s1553 + $0x18] sm:$0xf]
  %v1561 = vld [vmem:[%s1553 + $0x1c] sm:$0xf]
  %v1562 = vld [vmem:[%s1553 + $0x20] sm:$0xf]
  %v1563 = vld [vmem:[%s1553 + $0x24] sm:$0xf]
  %v1564 = vld [vmem:[%s1553 + $0x28] sm:$0xf]
  %v1565 = vld [vmem:[%s1553 + $0x2c] sm:$0xf]
  %v1566 = vld [vmem:[%s1553 + $0x30] sm:$0xf]
  %v1567 = vld [vmem:[%s1553 + $0x34] sm:$0xf]
  %v1568 = vld [vmem:[%s1553 + $0x38] sm:$0xf]
  %v1569 = vld [vmem:[%s1553 + $0x3c] sm:$0xf]
  %v1570 = vld [vmem:[%s1553 + $0x40] sm:$0xf]
  %v1571 = vld [vmem:[%s1553 + $0x44] sm:$0xf]
  %v1572 = vld [vmem:[%s1553 + $0x48] sm:$0xf]
  %v1573 = vld [vmem:[%s1553 + $0x4c] sm:$0xf]
  %v1574 = vld [vmem:[%s1553 + $0x50] sm:$0xf]
  %v1575 = vld [vmem:[%s1553 + $0x54] sm:$0xf]
  %v1576 = vld [vmem:[%s1553 + $0x58] sm:$0xf]
  %v1577 = vld [vmem:[%s1553 + $0x5c] sm:$0xf]
  %v1578 = vld [vmem:[%s1553 + $0x60] sm:$0xf]
  %v1579 = vld [vmem:[%s1553 + $0x64] sm:$0xf]
  %v1580 = vld [vmem:[%s1553 + $0x68] sm:$0xf]
  %v1581 = vld [vmem:[%s1553 + $0x6c] sm:$0xf]
  %v1582 = vld [vmem:[%s1553 + $0x70] sm:$0xf]
  %v1583 = vld [vmem:[%s1553 + $0x74] sm:$0xf]
  %v1584 = vld [vmem:[%s1553 + $0x78] sm:$0xf]
  %v1585 = vld [vmem:[%s1553 + $0x7c] sm:$0xf]
  %v1586 = vld [vmem:[%s1553 + $0x80] sm:$0xf]
  %v1587 = vld [vmem:[%s1553 + $0x84] sm:$0xf]
  %v1588 = vld [vmem:[%s1553 + $0x88] sm:$0xf]
  %v1589 = vld [vmem:[%s1553 + $0x8c] sm:$0xf]
  %v1590 = vld [vmem:[%s1553 + $0x90] sm:$0xf]
  %v1591 = vld [vmem:[%s1553 + $0x94] sm:$0xf]
  %v1592 = vld [vmem:[%s1553 + $0x98] sm:$0xf]
  %v1593 = vld [vmem:[%s1553 + $0x9c] sm:$0xf]
  %v1594 = vld [vmem:[%s1553 + $0xa0] sm:$0xf]
  %v1595 = vld [vmem:[%s1553 + $0xa4] sm:$0xf]
  %v1596 = vld [vmem:[%s1553 + $0xa8] sm:$0xf]
  %v1597 = vld [vmem:[%s1553 + $0xac] sm:$0xf]
  %v1598 = vld [vmem:[%s1553 + $0xb0] sm:$0xf]
  %v1599 = vld [vmem:[%s1553 + $0xb4] sm:$0xf]
  %v1600 = vld [vmem:[%s1553 + $0xb8] sm:$0xf]
  %v1601 = vld [vmem:[%s1553 + $0xbc] sm:$0xf]
  %v1602 = vld [vmem:[%s1553 + $0xc0] sm:$0xf]
  %v1603 = vld [vmem:[%s1553 + $0xc4] sm:$0xf]
  %v1604 = vld [vmem:[%s1553 + $0xc8] sm:$0xf]
  %v1605 = vld [vmem:[%s1553 + $0xcc] sm:$0xf]
  %v1606 = vld [vmem:[%s1553 + $0xd0] sm:$0xf]
  %v1607 = vld [vmem:[%s1553 + $0xd4] sm:$0xf]
  %v1608 = vld [vmem:[%s1553 + $0xd8] sm:$0xf]
  %v1609 = vld [vmem:[%s1553 + $0xdc] sm:$0xf]
  %v1610 = vld [vmem:[%s1553 + $0xe0] sm:$0xf]
  %v1611 = vld [vmem:[%s1553 + $0xe4] sm:$0xf]
  %v1612 = vld [vmem:[%s1553 + $0xe8] sm:$0xf]
  %v1613 = vld [vmem:[%s1553 + $0xec] sm:$0xf]
  %v1614 = vld [vmem:[%s1553 + $0xf0] sm:$0xf]
  %v1615 = vld [vmem:[%s1553 + $0xf4] sm:$0xf]
  %v1616 = vld [vmem:[%s1553 + $0xf8] sm:$0xf]
  %v1617 = vld [vmem:[%s1553 + $0xfc] sm:$0xf]
  %v1618 = vld [vmem:[%s1553 + $0x100] sm:$0xf]
  %v1619 = vld [vmem:[%s1553 + $0x104] sm:$0xf]
  %v1620 = vld [vmem:[%s1553 + $0x108] sm:$0xf]
  %v1621 = vld [vmem:[%s1553 + $0x10c] sm:$0xf]
  %v1622 = vld [vmem:[%s1553 + $0x110] sm:$0xf]
  %v1623 = vld [vmem:[%s1553 + $0x114] sm:$0xf]
  %v1624 = vld [vmem:[%s1553 + $0x118] sm:$0xf]
  %v1625 = vld [vmem:[%s1553 + $0x11c] sm:$0xf]
  %v1626 = vld [vmem:[%s1553 + $0x120] sm:$0xf]
  %v1627 = vld [vmem:[%s1553 + $0x124] sm:$0xf]
  %v1628 = vld [vmem:[%s1553 + $0x128] sm:$0xf]
  %v1629 = vld [vmem:[%s1553 + $0x12c] sm:$0xf]
  %v1630 = vld [vmem:[%s1553 + $0x130] sm:$0xf]
  %v1631 = vld [vmem:[%s1553 + $0x134] sm:$0xf]
  %v1632 = vld [vmem:[%s1553 + $0x138] sm:$0xf]
  %v1633 = vld [vmem:[%s1553 + $0x13c] sm:$0xf]
  %v1634 = vld [vmem:[%s1553 + $0x140] sm:$0xf]
  %v1635 = vld [vmem:[%s1553 + $0x144] sm:$0xf]
  %v1636 = vld [vmem:[%s1553 + $0x148] sm:$0xf]
  %v1637 = vld [vmem:[%s1553 + $0x14c] sm:$0xf]
  %v1638 = vld [vmem:[%s1553 + $0x150] sm:$0xf]
  %v1639 = vld [vmem:[%s1553 + $0x154] sm:$0xf]
  %v1640 = vld [vmem:[%s1553 + $0x158] sm:$0xf]
  %v1641 = vld [vmem:[%s1553 + $0x15c] sm:$0xf]
  %v1642 = vld [vmem:[%s1553 + $0x160] sm:$0xf]
  %v1643 = vld [vmem:[%s1553 + $0x164] sm:$0xf]
  %v1644 = vld [vmem:[%s1553 + $0x168] sm:$0xf]
  %v1645 = vld [vmem:[%s1553 + $0x16c] sm:$0xf]
  %v1646 = vld [vmem:[%s1553 + $0x170] sm:$0xf]
  %v1647 = vld [vmem:[%s1553 + $0x174] sm:$0xf]
  %v1648 = vld [vmem:[%s1553 + $0x178] sm:$0xf]
  %v1649 = vld [vmem:[%s1553 + $0x17c] sm:$0xf]
  %v1650 = vld [vmem:[%s1553 + $0x180] sm:$0xf]
  %v1651 = vld [vmem:[%s1553 + $0x184] sm:$0xf]
  %v1652 = vld [vmem:[%s1553 + $0x188] sm:$0xf]
  %v1653 = vld [vmem:[%s1553 + $0x18c] sm:$0xf]
  %v1654 = vld [vmem:[%s1553 + $0x190] sm:$0xf]
  %v1655 = vld [vmem:[%s1553 + $0x194] sm:$0xf]
  %v1656 = vld [vmem:[%s1553 + $0x198] sm:$0xf]
  %v1657 = vld [vmem:[%s1553 + $0x19c] sm:$0xf]
  %v1658 = vld [vmem:[%s1553 + $0x1a0] sm:$0xf]
  %v1659 = vld [vmem:[%s1553 + $0x1a4] sm:$0xf]
  %v1660 = vld [vmem:[%s1553 + $0x1a8] sm:$0xf]
  %v1661 = vld [vmem:[%s1553 + $0x1ac] sm:$0xf]
  %v1662 = vld [vmem:[%s1553 + $0x1b0] sm:$0xf]
  %v1663 = vld [vmem:[%s1553 + $0x1b4] sm:$0xf]
  %v1664 = vld [vmem:[%s1553 + $0x1b8] sm:$0xf]
  %v1665 = vld [vmem:[%s1553 + $0x1bc] sm:$0xf]
  %v1666 = vld [vmem:[%s1553 + $0x1c0] sm:$0xf]
  %v1667 = vld [vmem:[%s1553 + $0x1c4] sm:$0xf]
  %v1668 = vld [vmem:[%s1553 + $0x1c8] sm:$0xf]
  %v1669 = vld [vmem:[%s1553 + $0x1cc] sm:$0xf]
  %v1670 = vld [vmem:[%s1553 + $0x1d0] sm:$0xf]
  %v1671 = vld [vmem:[%s1553 + $0x1d4] sm:$0xf]
  %v1672 = vld [vmem:[%s1553 + $0x1d8] sm:$0xf]
  %v1673 = vld [vmem:[%s1553 + $0x1dc] sm:$0xf]
  %v1674 = vld [vmem:[%s1553 + $0x1e0] sm:$0xf]
  %v1675 = vld [vmem:[%s1553 + $0x1e4] sm:$0xf]
  %v1676 = vld [vmem:[%s1553 + $0x1e8] sm:$0xf]
  %v1677 = vld [vmem:[%s1553 + $0x1ec] sm:$0xf]
  %v1678 = vld [vmem:[%s1553 + $0x1f0] sm:$0xf]
  %v1679 = vld [vmem:[%s1553 + $0x1f4] sm:$0xf]
  %v1680 = vld [vmem:[%s1553 + $0x1f8] sm:$0xf]
  %v1681 = vld [vmem:[%s1553 + $0x1fc] sm:$0xf]
  %v1682 = vld [vmem:[%s1553 + $0x200] sm:$0xf]
  %v1683 = vld [vmem:[%s1553 + $0x204] sm:$0xf]
  %v1684 = vld [vmem:[%s1553 + $0x208] sm:$0xf]
  %v1685 = vld [vmem:[%s1553 + $0x20c] sm:$0xf]
  %v1686 = vld [vmem:[%s1553 + $0x210] sm:$0xf]
  %v1687 = vld [vmem:[%s1553 + $0x214] sm:$0xf]
  %v1688 = vld [vmem:[%s1553 + $0x218] sm:$0xf]
  %v1689 = vld [vmem:[%s1553 + $0x21c] sm:$0xf]
  %v1690 = vld [vmem:[%s1553 + $0x220] sm:$0xf]
  %v1691 = vld [vmem:[%s1553 + $0x224] sm:$0xf]
  %v1692 = vld [vmem:[%s1553 + $0x228] sm:$0xf]
  %v1693 = vld [vmem:[%s1553 + $0x22c] sm:$0xf]
  %v1694 = vld [vmem:[%s1553 + $0x230] sm:$0xf]
  %v1695 = vld [vmem:[%s1553 + $0x234] sm:$0xf]
  %v1696 = vld [vmem:[%s1553 + $0x238] sm:$0xf]
  %v1697 = vld [vmem:[%s1553 + $0x23c] sm:$0xf]
  %v1698 = vld [vmem:[%s1553 + $0x240] sm:$0xf]
  %v1699 = vld [vmem:[%s1553 + $0x244] sm:$0xf]
  %v1700 = vld [vmem:[%s1553 + $0x248] sm:$0xf]
  %v1701 = vld [vmem:[%s1553 + $0x24c] sm:$0xf]
  %v1702 = vld [vmem:[%s1553 + $0x250] sm:$0xf]
  %v1703 = vld [vmem:[%s1553 + $0x254] sm:$0xf]
  %v1704 = vld [vmem:[%s1553 + $0x258] sm:$0xf]
  %v1705 = vld [vmem:[%s1553 + $0x25c] sm:$0xf]
  %v1706 = vld [vmem:[%s1553 + $0x260] sm:$0xf]
  %v1707 = vld [vmem:[%s1553 + $0x264] sm:$0xf]
  %v1708 = vld [vmem:[%s1553 + $0x268] sm:$0xf]
  %v1709 = vld [vmem:[%s1553 + $0x26c] sm:$0xf]
  %v1710 = vld [vmem:[%s1553 + $0x270] sm:$0xf]
  %v1711 = vld [vmem:[%s1553 + $0x274] sm:$0xf]
  %v1712 = vld [vmem:[%s1553 + $0x278] sm:$0xf]
  %v1713 = vld [vmem:[%s1553 + $0x27c] sm:$0xf]
  %v1714 = vld [vmem:[%s1553 + $0x280] sm:$0xf]
  %v1715 = vld [vmem:[%s1553 + $0x284] sm:$0xf]
  %v1716 = vld [vmem:[%s1553 + $0x288] sm:$0xf]
  %v1717 = vld [vmem:[%s1553 + $0x28c] sm:$0xf]
  %v1718 = vld [vmem:[%s1553 + $0x290] sm:$0xf]
  %v1719 = vld [vmem:[%s1553 + $0x294] sm:$0xf]
  %v1720 = vld [vmem:[%s1553 + $0x298] sm:$0xf]
  %v1721 = vld [vmem:[%s1553 + $0x29c] sm:$0xf]
  %v1722 = vld [vmem:[%s1553 + $0x2a0] sm:$0xf]
  %v1723 = vld [vmem:[%s1553 + $0x2a4] sm:$0xf]
  %v1724 = vld [vmem:[%s1553 + $0x2a8] sm:$0xf]
  %v1725 = vld [vmem:[%s1553 + $0x2ac] sm:$0xf]
  %v1726 = vld [vmem:[%s1553 + $0x2b0] sm:$0xf]
  %v1727 = vld [vmem:[%s1553 + $0x2b4] sm:$0xf]
  %v1728 = vld [vmem:[%s1553 + $0x2b8] sm:$0xf]
  %v1729 = vld [vmem:[%s1553 + $0x2bc] sm:$0xf]
  %v1730 = vld [vmem:[%s1553 + $0x2c0] sm:$0xf]
  %v1731 = vld [vmem:[%s1553 + $0x2c4] sm:$0xf]
  %v1732 = vld [vmem:[%s1553 + $0x2c8] sm:$0xf]
  %v1733 = vld [vmem:[%s1553 + $0x2cc] sm:$0xf]
  %v1734 = vld [vmem:[%s1553 + $0x2d0] sm:$0xf]
  %v1735 = vld [vmem:[%s1553 + $0x2d4] sm:$0xf]
  %v1736 = vld [vmem:[%s1553 + $0x2d8] sm:$0xf]
  %v1737 = vld [vmem:[%s1553 + $0x2dc] sm:$0xf]
  %v1738 = vld [vmem:[%s1553 + $0x2e0] sm:$0xf]
  %v1739 = vld [vmem:[%s1553 + $0x2e4] sm:$0xf]
  %v1740 = vld [vmem:[%s1553 + $0x2e8] sm:$0xf]
  %v1741 = vld [vmem:[%s1553 + $0x2ec] sm:$0xf]
  %v1742 = vld [vmem:[%s1553 + $0x2f0] sm:$0xf]
  %v1743 = vld [vmem:[%s1553 + $0x2f4] sm:$0xf]
  %v1744 = vld [vmem:[%s1553 + $0x2f8] sm:$0xf]
  %v1745 = vld [vmem:[%s1553 + $0x2fc] sm:$0xf]
  %v1746 = vld [vmem:[%s1553 + $0x300] sm:$0xf]
  %v1747 = vld [vmem:[%s1553 + $0x304] sm:$0xf]
  %v1748 = vld [vmem:[%s1553 + $0x308] sm:$0xf]
  %v1749 = vld [vmem:[%s1553 + $0x30c] sm:$0xf]
  %v1946 = vunpack.c.l.b16 %v1554
  %v1947 = vunpack.c.l.b16 %v1555
  %v1948 = vunpack.c.l.b16 %v1556
  %v1949 = vunpack.c.l.b16 %v1557
  %v1950 = vunpack.c.l.b16 %v1558
  %v1951 = vunpack.c.l.b16 %v1559
  %v1952 = vunpack.c.l.b16 %v1560
  %v1953 = vunpack.c.l.b16 %v1561
  %v1954 = vunpack.c.l.b16 %v1562
  %v1955 = vunpack.c.l.b16 %v1563
  %v1956 = vunpack.c.l.b16 %v1564
  %v1957 = vunpack.c.l.b16 %v1565
  %v1958 = vunpack.c.l.b16 %v1566
  %v1959 = vunpack.c.l.b16 %v1567
  %v1960 = vunpack.c.l.b16 %v1568
  %v1961 = vunpack.c.l.b16 %v1569
  %v1962 = vunpack.c.l.b16 %v1570
  %v1963 = vunpack.c.l.b16 %v1571
  %v1964 = vunpack.c.l.b16 %v1572
  %v1965 = vunpack.c.l.b16 %v1573
  %v1966 = vunpack.c.l.b16 %v1574
  %v1967 = vunpack.c.l.b16 %v1575
  %v1968 = vunpack.c.l.b16 %v1576
  %v1969 = vunpack.c.l.b16 %v1577
  %v1970 = vunpack.c.l.b16 %v1578
  %v1971 = vunpack.c.l.b16 %v1579
  %v1972 = vunpack.c.l.b16 %v1580
  %v1973 = vunpack.c.l.b16 %v1581
  %v1974 = vunpack.c.l.b16 %v1582
  %v1975 = vunpack.c.l.b16 %v1583
  %v1976 = vunpack.c.l.b16 %v1584
  %v1977 = vunpack.c.l.b16 %v1585
  %v1978 = vunpack.c.l.b16 %v1586
  %v1979 = vunpack.c.l.b16 %v1587
  %v1980 = vunpack.c.l.b16 %v1588
  %v1981 = vunpack.c.l.b16 %v1589
  %v1982 = vunpack.c.l.b16 %v1590
  %v1983 = vunpack.c.l.b16 %v1591
  %v1984 = vunpack.c.l.b16 %v1592
  %v1985 = vunpack.c.l.b16 %v1593
  %v1986 = vunpack.c.l.b16 %v1594
  %v1987 = vunpack.c.l.b16 %v1595
  %v1988 = vunpack.c.l.b16 %v1596
  %v1989 = vunpack.c.l.b16 %v1597
  %v1990 = vunpack.c.l.b16 %v1598
  %v1991 = vunpack.c.l.b16 %v1599
  %v1992 = vunpack.c.l.b16 %v1600
  %v1993 = vunpack.c.l.b16 %v1601
  %v1994 = vunpack.c.l.b16 %v1602
  %v1995 = vunpack.c.l.b16 %v1603
  %v1996 = vunpack.c.l.b16 %v1604
  %v1997 = vunpack.c.l.b16 %v1605
  %v1998 = vunpack.c.l.b16 %v1606
  %v1999 = vunpack.c.l.b16 %v1607
  %v2000 = vunpack.c.l.b16 %v1608
  %v2001 = vunpack.c.l.b16 %v1609
  %v2002 = vunpack.c.l.b16 %v1610
  %v2003 = vunpack.c.l.b16 %v1611
  %v2004 = vunpack.c.l.b16 %v1612
  %v2005 = vunpack.c.l.b16 %v1613
  %v2006 = vunpack.c.l.b16 %v1614
  %v2007 = vunpack.c.l.b16 %v1615
  %v2008 = vunpack.c.l.b16 %v1616
  %v2009 = vunpack.c.l.b16 %v1617
  %v2010 = vunpack.c.l.b16 %v1618
  %v2011 = vunpack.c.l.b16 %v1619
  %v2012 = vunpack.c.l.b16 %v1620
  %v2013 = vunpack.c.l.b16 %v1621
  %v2014 = vunpack.c.l.b16 %v1622
  %v2015 = vunpack.c.l.b16 %v1623
  %v2016 = vunpack.c.l.b16 %v1624
  %v2017 = vunpack.c.l.b16 %v1625
  %v2018 = vunpack.c.l.b16 %v1626
  %v2019 = vunpack.c.l.b16 %v1627
  %v2020 = vunpack.c.l.b16 %v1628
  %v2021 = vunpack.c.l.b16 %v1629
  %v2022 = vunpack.c.l.b16 %v1630
  %v2023 = vunpack.c.l.b16 %v1631
  %v2024 = vunpack.c.l.b16 %v1632
  %v2025 = vunpack.c.l.b16 %v1633
  %v2026 = vunpack.c.l.b16 %v1634
  %v2027 = vunpack.c.l.b16 %v1635
  %v2028 = vunpack.c.l.b16 %v1636
  %v2029 = vunpack.c.l.b16 %v1637
  %v2030 = vunpack.c.l.b16 %v1638
  %v2031 = vunpack.c.l.b16 %v1639
  %v2032 = vunpack.c.l.b16 %v1640
  %v2033 = vunpack.c.l.b16 %v1641
  %v2034 = vunpack.c.l.b16 %v1642
  %v2035 = vunpack.c.l.b16 %v1643
  %v2036 = vunpack.c.l.b16 %v1644
  %v2037 = vunpack.c.l.b16 %v1645
  %v2038 = vunpack.c.l.b16 %v1646
  %v2039 = vunpack.c.l.b16 %v1647
  %v2040 = vunpack.c.l.b16 %v1648
  %v2041 = vunpack.c.l.b16 %v1649
  %v2042 = vunpack.c.l.b16 %v1650
  %v2043 = vunpack.c.l.b16 %v1651
  %v2044 = vunpack.c.l.b16 %v1652
  %v2045 = vunpack.c.l.b16 %v1653
  %v2046 = vunpack.c.l.b16 %v1654
  %v2047 = vunpack.c.l.b16 %v1655
  %v2048 = vunpack.c.l.b16 %v1656
  %v2049 = vunpack.c.l.b16 %v1657
  %v2050 = vunpack.c.l.b16 %v1658
  %v2051 = vunpack.c.l.b16 %v1659
  %v2052 = vunpack.c.l.b16 %v1660
  %v2053 = vunpack.c.l.b16 %v1661
  %v2054 = vunpack.c.l.b16 %v1662
  %v2055 = vunpack.c.l.b16 %v1663
  %v2056 = vunpack.c.l.b16 %v1664
  %v2057 = vunpack.c.l.b16 %v1665
  %v2058 = vunpack.c.l.b16 %v1666
  %v2059 = vunpack.c.l.b16 %v1667
  %v2060 = vunpack.c.l.b16 %v1668
  %v2061 = vunpack.c.l.b16 %v1669
  %v2062 = vunpack.c.l.b16 %v1670
  %v2063 = vunpack.c.l.b16 %v1671
  %v2064 = vunpack.c.l.b16 %v1672
  %v2065 = vunpack.c.l.b16 %v1673
  %v2066 = vunpack.c.l.b16 %v1674
  %v2067 = vunpack.c.l.b16 %v1675
  %v2068 = vunpack.c.l.b16 %v1676
  %v2069 = vunpack.c.l.b16 %v1677
  %v2070 = vunpack.c.l.b16 %v1678
  %v2071 = vunpack.c.l.b16 %v1679
  %v2072 = vunpack.c.l.b16 %v1680
  %v2073 = vunpack.c.l.b16 %v1681
  %v2074 = vunpack.c.l.b16 %v1682
  %v2075 = vunpack.c.l.b16 %v1683
  %v2076 = vunpack.c.l.b16 %v1684
  %v2077 = vunpack.c.l.b16 %v1685
  %v2078 = vunpack.c.l.b16 %v1686
  %v2079 = vunpack.c.l.b16 %v1687
  %v2080 = vunpack.c.l.b16 %v1688
  %v2081 = vunpack.c.l.b16 %v1689
  %v2082 = vunpack.c.l.b16 %v1690
  %v2083 = vunpack.c.l.b16 %v1691
  %v2084 = vunpack.c.l.b16 %v1692
  %v2085 = vunpack.c.l.b16 %v1693
  %v2086 = vunpack.c.l.b16 %v1694
  %v2087 = vunpack.c.l.b16 %v1695
  %v2088 = vunpack.c.l.b16 %v1696
  %v2089 = vunpack.c.l.b16 %v1697
  %v2090 = vunpack.c.l.b16 %v1698
  %v2091 = vunpack.c.l.b16 %v1699
  %v2092 = vunpack.c.l.b16 %v1700
  %v2093 = vunpack.c.l.b16 %v1701
  %v2094 = vunpack.c.l.b16 %v1702
  %v2095 = vunpack.c.l.b16 %v1703
  %v2096 = vunpack.c.l.b16 %v1704
  %v2097 = vunpack.c.l.b16 %v1705
  %v2098 = vunpack.c.l.b16 %v1706
  %v2099 = vunpack.c.l.b16 %v1707
  %v2100 = vunpack.c.l.b16 %v1708
  %v2101 = vunpack.c.l.b16 %v1709
  %v2102 = vunpack.c.l.b16 %v1710
  %v2103 = vunpack.c.l.b16 %v1711
  %v2104 = vunpack.c.l.b16 %v1712
  %v2105 = vunpack.c.l.b16 %v1713
  %v2106 = vunpack.c.l.b16 %v1714
  %v2107 = vunpack.c.l.b16 %v1715
  %v2108 = vunpack.c.l.b16 %v1716
  %v2109 = vunpack.c.l.b16 %v1717
  %v2110 = vunpack.c.l.b16 %v1718
  %v2111 = vunpack.c.l.b16 %v1719
  %v2112 = vunpack.c.l.b16 %v1720
  %v2113 = vunpack.c.l.b16 %v1721
  %v2114 = vunpack.c.l.b16 %v1722
  %v2115 = vunpack.c.l.b16 %v1723
  %v2116 = vunpack.c.l.b16 %v1724
  %v2117 = vunpack.c.l.b16 %v1725
  %v2118 = vunpack.c.l.b16 %v1726
  %v2119 = vunpack.c.l.b16 %v1727
  %v2120 = vunpack.c.l.b16 %v1728
  %v2121 = vunpack.c.l.b16 %v1729
  %v2122 = vunpack.c.l.b16 %v1730
  %v2123 = vunpack.c.l.b16 %v1731
  %v2124 = vunpack.c.l.b16 %v1732
  %v2125 = vunpack.c.l.b16 %v1733
  %v2126 = vunpack.c.l.b16 %v1734
  %v2127 = vunpack.c.l.b16 %v1735
  %v2128 = vunpack.c.l.b16 %v1736
  %v2129 = vunpack.c.l.b16 %v1737
  %v2130 = vunpack.c.l.b16 %v1738
  %v2131 = vunpack.c.l.b16 %v1739
  %v2132 = vunpack.c.l.b16 %v1740
  %v2133 = vunpack.c.l.b16 %v1741
  %v2134 = vunpack.c.l.b16 %v1742
  %v2135 = vunpack.c.l.b16 %v1743
  %v2136 = vunpack.c.l.b16 %v1744
  %v2137 = vunpack.c.l.b16 %v1745
  %v2138 = vunpack.c.l.b16 %v1746
  %v2139 = vunpack.c.l.b16 %v1747
  %v2140 = vunpack.c.l.b16 %v1748
  %v2141 = vunpack.c.l.b16 %v1749
  %v2142 = vpack.c.b16 %v1947, %v1946
  %v2143 = vpack.c.b16 %v1949, %v1948
  %v2144 = vpack.c.b16 %v1951, %v1950
  %v2145 = vpack.c.b16 %v1953, %v1952
  %v2146 = vpack.c.b16 %v1955, %v1954
  %v2147 = vpack.c.b16 %v1957, %v1956
  %v2148 = vpack.c.b16 %v1959, %v1958
  %v2149 = vpack.c.b16 %v1961, %v1960
  %v2150 = vpack.c.b16 %v1963, %v1962
  %v2151 = vpack.c.b16 %v1965, %v1964
  %v2152 = vpack.c.b16 %v1967, %v1966
  %v2153 = vpack.c.b16 %v1969, %v1968
  %v2154 = vpack.c.b16 %v1971, %v1970
  %v2155 = vpack.c.b16 %v1973, %v1972
  %v2156 = vpack.c.b16 %v1975, %v1974
  %v2157 = vpack.c.b16 %v1977, %v1976
  %v2158 = vpack.c.b16 %v1979, %v1978
  %v2159 = vpack.c.b16 %v1981, %v1980
  %v2160 = vpack.c.b16 %v1983, %v1982
  %v2161 = vpack.c.b16 %v1985, %v1984
  %v2162 = vpack.c.b16 %v1987, %v1986
  %v2163 = vpack.c.b16 %v1989, %v1988
  %v2164 = vpack.c.b16 %v1991, %v1990
  %v2165 = vpack.c.b16 %v1993, %v1992
  %v2166 = vpack.c.b16 %v1995, %v1994
  %v2167 = vpack.c.b16 %v1997, %v1996
  %v2168 = vpack.c.b16 %v1999, %v1998
  %v2169 = vpack.c.b16 %v2001, %v2000
  %v2170 = vpack.c.b16 %v2003, %v2002
  %v2171 = vpack.c.b16 %v2005, %v2004
  %v2172 = vpack.c.b16 %v2007, %v2006
  %v2173 = vpack.c.b16 %v2009, %v2008
  %v2174 = vpack.c.b16 %v2011, %v2010
  %v2175 = vpack.c.b16 %v2013, %v2012
  %v2176 = vpack.c.b16 %v2015, %v2014
  %v2177 = vpack.c.b16 %v2017, %v2016
  %v2178 = vpack.c.b16 %v2019, %v2018
  %v2179 = vpack.c.b16 %v2021, %v2020
  %v2180 = vpack.c.b16 %v2023, %v2022
  %v2181 = vpack.c.b16 %v2025, %v2024
  %v2182 = vpack.c.b16 %v2027, %v2026
  %v2183 = vpack.c.b16 %v2029, %v2028
  %v2184 = vpack.c.b16 %v2031, %v2030
  %v2185 = vpack.c.b16 %v2033, %v2032
  %v2186 = vpack.c.b16 %v2035, %v2034
  %v2187 = vpack.c.b16 %v2037, %v2036
  %v2188 = vpack.c.b16 %v2039, %v2038
  %v2189 = vpack.c.b16 %v2041, %v2040
  %v2190 = vpack.c.b16 %v2043, %v2042
  %v2191 = vpack.c.b16 %v2045, %v2044
  %v2192 = vpack.c.b16 %v2047, %v2046
  %v2193 = vpack.c.b16 %v2049, %v2048
  %v2194 = vpack.c.b16 %v2051, %v2050
  %v2195 = vpack.c.b16 %v2053, %v2052
  %v2196 = vpack.c.b16 %v2055, %v2054
  %v2197 = vpack.c.b16 %v2057, %v2056
  %v2198 = vpack.c.b16 %v2059, %v2058
  %v2199 = vpack.c.b16 %v2061, %v2060
  %v2200 = vpack.c.b16 %v2063, %v2062
  %v2201 = vpack.c.b16 %v2065, %v2064
  %v2202 = vpack.c.b16 %v2067, %v2066
  %v2203 = vpack.c.b16 %v2069, %v2068
  %v2204 = vpack.c.b16 %v2071, %v2070
  %v2205 = vpack.c.b16 %v2073, %v2072
  %v2206 = vpack.c.b16 %v2075, %v2074
  %v2207 = vpack.c.b16 %v2077, %v2076
  %v2208 = vpack.c.b16 %v2079, %v2078
  %v2209 = vpack.c.b16 %v2081, %v2080
  %v2210 = vpack.c.b16 %v2083, %v2082
  %v2211 = vpack.c.b16 %v2085, %v2084
  %v2212 = vpack.c.b16 %v2087, %v2086
  %v2213 = vpack.c.b16 %v2089, %v2088
  %v2214 = vpack.c.b16 %v2091, %v2090
  %v2215 = vpack.c.b16 %v2093, %v2092
  %v2216 = vpack.c.b16 %v2095, %v2094
  %v2217 = vpack.c.b16 %v2097, %v2096
  %v2218 = vpack.c.b16 %v2099, %v2098
  %v2219 = vpack.c.b16 %v2101, %v2100
  %v2220 = vpack.c.b16 %v2103, %v2102
  %v2221 = vpack.c.b16 %v2105, %v2104
  %v2222 = vpack.c.b16 %v2107, %v2106
  %v2223 = vpack.c.b16 %v2109, %v2108
  %v2224 = vpack.c.b16 %v2111, %v2110
  %v2225 = vpack.c.b16 %v2113, %v2112
  %v2226 = vpack.c.b16 %v2115, %v2114
  %v2227 = vpack.c.b16 %v2117, %v2116
  %v2228 = vpack.c.b16 %v2119, %v2118
  %v2229 = vpack.c.b16 %v2121, %v2120
  %v2230 = vpack.c.b16 %v2123, %v2122
  %v2231 = vpack.c.b16 %v2125, %v2124
  %v2232 = vpack.c.b16 %v2127, %v2126
  %v2233 = vpack.c.b16 %v2129, %v2128
  %v2234 = vpack.c.b16 %v2131, %v2130
  %v2235 = vpack.c.b16 %v2133, %v2132
  %v2236 = vpack.c.b16 %v2135, %v2134
  %v2237 = vpack.c.b16 %v2137, %v2136
  %v2238 = vpack.c.b16 %v2139, %v2138
  %v2239 = vpack.c.b16 %v2141, %v2140
  %v2241 = vsel %vm752, %v2142, 0
  %v2244 = vsel %vm752, %v2143, 0
  %v2247 = vsel %vm752, %v2144, 0
  %v2250 = vsel %vm752, %v2145, 0
  %v2253 = vsel %vm752, %v2146, 0
  %v2256 = vsel %vm752, %v2147, 0
  %v2259 = vsel %vm752, %v2148, 0
  %v2262 = vsel %vm752, %v2149, 0
  %v2265 = vsel %vm752, %v2150, 0
  %v2268 = vsel %vm752, %v2151, 0
  %v2271 = vsel %vm752, %v2152, 0
  %v2274 = vsel %vm752, %v2153, 0
  %v2277 = vsel %vm752, %v2154, 0
  %v2280 = vsel %vm752, %v2155, 0
  %v2283 = vsel %vm752, %v2156, 0
  %v2286 = vsel %vm752, %v2157, 0
  %v2289 = vsel %vm752, %v2158, 0
  %v2292 = vsel %vm752, %v2159, 0
  %v2295 = vsel %vm752, %v2160, 0
  %v2298 = vsel %vm752, %v2161, 0
  %v2301 = vsel %vm752, %v2162, 0
  %v2304 = vsel %vm752, %v2163, 0
  %v2307 = vsel %vm752, %v2164, 0
  %v2310 = vsel %vm752, %v2165, 0
  %v2313 = vsel %vm752, %v2166, 0
  %v2316 = vsel %vm752, %v2167, 0
  %v2319 = vsel %vm752, %v2168, 0
  %v2322 = vsel %vm752, %v2169, 0
  %v2325 = vsel %vm752, %v2170, 0
  %v2328 = vsel %vm752, %v2171, 0
  %v2331 = vsel %vm752, %v2172, 0
  %v2334 = vsel %vm752, %v2173, 0
  %v2337 = vsel %vm752, %v2174, 0
  %v2340 = vsel %vm752, %v2175, 0
  %v2343 = vsel %vm752, %v2176, 0
  %v2346 = vsel %vm752, %v2177, 0
  %v2349 = vsel %vm752, %v2178, 0
  %v2352 = vsel %vm752, %v2179, 0
  %v2355 = vsel %vm752, %v2180, 0
  %v2358 = vsel %vm752, %v2181, 0
  %v2361 = vsel %vm752, %v2182, 0
  %v2364 = vsel %vm752, %v2183, 0
  %v2367 = vsel %vm752, %v2184, 0
  %v2370 = vsel %vm752, %v2185, 0
  %v2373 = vsel %vm752, %v2186, 0
  %v2376 = vsel %vm752, %v2187, 0
  %v2379 = vsel %vm752, %v2188, 0
  %v2382 = vsel %vm752, %v2189, 0
  %v2385 = vsel %vm752, %v2190, 0
  %v2388 = vsel %vm752, %v2191, 0
  %v2391 = vsel %vm752, %v2192, 0
  %v2394 = vsel %vm752, %v2193, 0
  %v2397 = vsel %vm752, %v2194, 0
  %v2400 = vsel %vm752, %v2195, 0
  %v2403 = vsel %vm752, %v2196, 0
  %v2406 = vsel %vm752, %v2197, 0
  %v2409 = vsel %vm752, %v2198, 0
  %v2412 = vsel %vm752, %v2199, 0
  %v2415 = vsel %vm752, %v2200, 0
  %v2418 = vsel %vm752, %v2201, 0
  %v2421 = vsel %vm752, %v2202, 0
  %v2424 = vsel %vm752, %v2203, 0
  %v2427 = vsel %vm752, %v2204, 0
  %v2430 = vsel %vm752, %v2205, 0
  %v2433 = vsel %vm752, %v2206, 0
  %v2436 = vsel %vm752, %v2207, 0
  %v2439 = vsel %vm752, %v2208, 0
  %v2442 = vsel %vm752, %v2209, 0
  %v2445 = vsel %vm752, %v2210, 0
  %v2448 = vsel %vm752, %v2211, 0
  %v2451 = vsel %vm752, %v2212, 0
  %v2454 = vsel %vm752, %v2213, 0
  %v2457 = vsel %vm752, %v2214, 0
  %v2460 = vsel %vm752, %v2215, 0
  %v2463 = vsel %vm752, %v2216, 0
  %v2466 = vsel %vm752, %v2217, 0
  %v2469 = vsel %vm752, %v2218, 0
  %v2472 = vsel %vm752, %v2219, 0
  %v2475 = vsel %vm752, %v2220, 0
  %v2478 = vsel %vm752, %v2221, 0
  %v2481 = vsel %vm752, %v2222, 0
  %v2484 = vsel %vm752, %v2223, 0
  %v2487 = vsel %vm752, %v2224, 0
  %v2490 = vsel %vm752, %v2225, 0
  %v2493 = vsel %vm752, %v2226, 0
  %v2496 = vsel %vm752, %v2227, 0
  %v2499 = vsel %vm752, %v2228, 0
  %v2502 = vsel %vm752, %v2229, 0
  %v2505 = vsel %vm752, %v2230, 0
  %v2508 = vsel %vm752, %v2231, 0
  %v2511 = vsel %vm752, %v2232, 0
  %v2514 = vsel %vm752, %v2233, 0
  %v2517 = vsel %vm752, %v2234, 0
  %v2520 = vsel %vm752, %v2235, 0
  %v2523 = vsel %vm752, %v2236, 0
  %v2526 = vsel %vm752, %v2237, 0
  %v2529 = vsel %vm752, %v2238, 0
  %v2532 = vsel %vm752, %v2239, 0
  %2534 = vmatpush.bf16.msra.mxu0 0
  %2535 = vmatpush.bf16.msra.mxu0 0
  %2536 = vmatpush.bf16.msra.mxu0 0
  %2537 = vmatpush.bf16.msra.mxu0 %v1052
  %2538 = vmatpush.bf16.msra.mxu0 %v746
  %2539 = vmatpush.bf16.msra.mxu0 %v745
  %2540 = vmatpush.bf16.msra.mxu0 %v744
  %2541 = vmatpush.bf16.msra.mxu0 %v743
  %2542 = vmatmul.bf16.gmra.mxu0 %v2241
  %v2543 = vpop.f32.mrf.mxu0
  %v2544 = vadd.f32 0.0, %v2543
  %v2545 = vpop.f32.mrf.mxu0
  %v2546 = vadd.f32 0.0, %v2545
  %2547 = vmatmul.bf16.gmra.mxu0 %v2244
  %v2548 = vpop.f32.mrf.mxu0
  %v2549 = vadd.f32 0.0, %v2548
  %v2550 = vpop.f32.mrf.mxu0
  %v2551 = vadd.f32 0.0, %v2550
  %2552 = vmatmul.bf16.gmra.mxu0 %v2247
  %v2553 = vpop.f32.mrf.mxu0
  %v2554 = vadd.f32 0.0, %v2553
  %v2555 = vpop.f32.mrf.mxu0
  %v2556 = vadd.f32 0.0, %v2555
  %2557 = vmatmul.bf16.gmra.mxu0 %v2250
  %v2558 = vpop.f32.mrf.mxu0
  %v2559 = vadd.f32 0.0, %v2558
  %v2560 = vpop.f32.mrf.mxu0
  %v2561 = vadd.f32 0.0, %v2560
  %2562 = vmatmul.bf16.gmra.mxu0 %v2253
  %v2563 = vpop.f32.mrf.mxu0
  %v2564 = vadd.f32 0.0, %v2563
  %v2565 = vpop.f32.mrf.mxu0
  %v2566 = vadd.f32 0.0, %v2565
  %2567 = vmatmul.bf16.gmra.mxu0 %v2256
  %v2568 = vpop.f32.mrf.mxu0
  %v2569 = vadd.f32 0.0, %v2568
  %v2570 = vpop.f32.mrf.mxu0
  %v2571 = vadd.f32 0.0, %v2570
  %2572 = vmatmul.bf16.gmra.mxu0 %v2259
  %v2573 = vpop.f32.mrf.mxu0
  %v2574 = vadd.f32 0.0, %v2573
  %v2575 = vpop.f32.mrf.mxu0
  %v2576 = vadd.f32 0.0, %v2575
  %2577 = vmatmul.bf16.gmra.mxu0 %v2262
  %v2578 = vpop.f32.mrf.mxu0
  %v2579 = vadd.f32 0.0, %v2578
  %v2580 = vpop.f32.mrf.mxu0
  %v2581 = vadd.f32 0.0, %v2580
  %2582 = vmatmul.bf16.gmra.mxu0 %v2265
  %v2583 = vpop.f32.mrf.mxu0
  %v2584 = vadd.f32 0.0, %v2583
  %v2585 = vpop.f32.mrf.mxu0
  %v2586 = vadd.f32 0.0, %v2585
  %2587 = vmatmul.bf16.gmra.mxu0 %v2268
  %v2588 = vpop.f32.mrf.mxu0
  %v2589 = vadd.f32 0.0, %v2588
  %v2590 = vpop.f32.mrf.mxu0
  %v2591 = vadd.f32 0.0, %v2590
  %2592 = vmatmul.bf16.gmra.mxu0 %v2271
  %v2593 = vpop.f32.mrf.mxu0
  %v2594 = vadd.f32 0.0, %v2593
  %v2595 = vpop.f32.mrf.mxu0
  %v2596 = vadd.f32 0.0, %v2595
  %2597 = vmatmul.bf16.gmra.mxu0 %v2274
  %v2598 = vpop.f32.mrf.mxu0
  %v2599 = vadd.f32 0.0, %v2598
  %v2600 = vpop.f32.mrf.mxu0
  %v2601 = vadd.f32 0.0, %v2600
  %2602 = vmatmul.bf16.gmra.mxu0 %v2277
  %v2603 = vpop.f32.mrf.mxu0
  %v2604 = vadd.f32 0.0, %v2603
  %v2605 = vpop.f32.mrf.mxu0
  %v2606 = vadd.f32 0.0, %v2605
  %2607 = vmatmul.bf16.gmra.mxu0 %v2280
  %v2608 = vpop.f32.mrf.mxu0
  %v2609 = vadd.f32 0.0, %v2608
  %v2610 = vpop.f32.mrf.mxu0
  %v2611 = vadd.f32 0.0, %v2610
  %2612 = vmatmul.bf16.gmra.mxu0 %v2283
  %v2613 = vpop.f32.mrf.mxu0
  %v2614 = vadd.f32 0.0, %v2613
  %v2615 = vpop.f32.mrf.mxu0
  %v2616 = vadd.f32 0.0, %v2615
  %2617 = vmatmul.bf16.gmra.mxu0 %v2286
  %v2618 = vpop.f32.mrf.mxu0
  %v2619 = vadd.f32 0.0, %v2618
  %v2620 = vpop.f32.mrf.mxu0
  %v2621 = vadd.f32 0.0, %v2620
  %2622 = vmatmul.bf16.gmra.mxu0 %v2289
  %v2623 = vpop.f32.mrf.mxu0
  %v2624 = vadd.f32 0.0, %v2623
  %v2625 = vpop.f32.mrf.mxu0
  %v2626 = vadd.f32 0.0, %v2625
  %2627 = vmatmul.bf16.gmra.mxu0 %v2292
  %v2628 = vpop.f32.mrf.mxu0
  %v2629 = vadd.f32 0.0, %v2628
  %v2630 = vpop.f32.mrf.mxu0
  %v2631 = vadd.f32 0.0, %v2630
  %2632 = vmatmul.bf16.gmra.mxu0 %v2295
  %v2633 = vpop.f32.mrf.mxu0
  %v2634 = vadd.f32 0.0, %v2633
  %v2635 = vpop.f32.mrf.mxu0
  %v2636 = vadd.f32 0.0, %v2635
  %2637 = vmatmul.bf16.gmra.mxu0 %v2298
  %v2638 = vpop.f32.mrf.mxu0
  %v2639 = vadd.f32 0.0, %v2638
  %v2640 = vpop.f32.mrf.mxu0
  %v2641 = vadd.f32 0.0, %v2640
  %2642 = vmatmul.bf16.gmra.mxu0 %v2301
  %v2643 = vpop.f32.mrf.mxu0
  %v2644 = vadd.f32 0.0, %v2643
  %v2645 = vpop.f32.mrf.mxu0
  %v2646 = vadd.f32 0.0, %v2645
  %2647 = vmatmul.bf16.gmra.mxu0 %v2304
  %v2648 = vpop.f32.mrf.mxu0
  %v2649 = vadd.f32 0.0, %v2648
  %v2650 = vpop.f32.mrf.mxu0
  %v2651 = vadd.f32 0.0, %v2650
  %2652 = vmatmul.bf16.gmra.mxu0 %v2307
  %v2653 = vpop.f32.mrf.mxu0
  %v2654 = vadd.f32 0.0, %v2653
  %v2655 = vpop.f32.mrf.mxu0
  %v2656 = vadd.f32 0.0, %v2655
  %2657 = vmatmul.bf16.gmra.mxu0 %v2310
  %v2658 = vpop.f32.mrf.mxu0
  %v2659 = vadd.f32 0.0, %v2658
  %v2660 = vpop.f32.mrf.mxu0
  %v2661 = vadd.f32 0.0, %v2660
  %2662 = vmatmul.bf16.gmra.mxu0 %v2313
  %v2663 = vpop.f32.mrf.mxu0
  %v2664 = vadd.f32 0.0, %v2663
  %v2665 = vpop.f32.mrf.mxu0
  %v2666 = vadd.f32 0.0, %v2665
  %2667 = vmatmul.bf16.gmra.mxu0 %v2316
  %v2668 = vpop.f32.mrf.mxu0
  %v2669 = vadd.f32 0.0, %v2668
  %v2670 = vpop.f32.mrf.mxu0
  %v2671 = vadd.f32 0.0, %v2670
  %2672 = vmatmul.bf16.gmra.mxu0 %v2319
  %v2673 = vpop.f32.mrf.mxu0
  %v2674 = vadd.f32 0.0, %v2673
  %v2675 = vpop.f32.mrf.mxu0
  %v2676 = vadd.f32 0.0, %v2675
  %2677 = vmatmul.bf16.gmra.mxu0 %v2322
  %v2678 = vpop.f32.mrf.mxu0
  %v2679 = vadd.f32 0.0, %v2678
  %v2680 = vpop.f32.mrf.mxu0
  %v2681 = vadd.f32 0.0, %v2680
  %2682 = vmatmul.bf16.gmra.mxu0 %v2325
  %v2683 = vpop.f32.mrf.mxu0
  %v2684 = vadd.f32 0.0, %v2683
  %v2685 = vpop.f32.mrf.mxu0
  %v2686 = vadd.f32 0.0, %v2685
  %2687 = vmatmul.bf16.gmra.mxu0 %v2328
  %v2688 = vpop.f32.mrf.mxu0
  %v2689 = vadd.f32 0.0, %v2688
  %v2690 = vpop.f32.mrf.mxu0
  %v2691 = vadd.f32 0.0, %v2690
  %2692 = vmatmul.bf16.gmra.mxu0 %v2331
  %v2693 = vpop.f32.mrf.mxu0
  %v2694 = vadd.f32 0.0, %v2693
  %v2695 = vpop.f32.mrf.mxu0
  %v2696 = vadd.f32 0.0, %v2695
  %2697 = vmatmul.bf16.gmra.mxu0 %v2334
  %v2698 = vpop.f32.mrf.mxu0
  %v2699 = vadd.f32 0.0, %v2698
  %v2700 = vpop.f32.mrf.mxu0
  %v2701 = vadd.f32 0.0, %v2700
  %2702 = vmatmul.bf16.gmra.mxu0 %v2337
  %v2703 = vpop.f32.mrf.mxu0
  %v2704 = vadd.f32 0.0, %v2703
  %v2705 = vpop.f32.mrf.mxu0
  %v2706 = vadd.f32 0.0, %v2705
  %2707 = vmatmul.bf16.gmra.mxu0 %v2340
  %v2708 = vpop.f32.mrf.mxu0
  %v2709 = vadd.f32 0.0, %v2708
  %v2710 = vpop.f32.mrf.mxu0
  %v2711 = vadd.f32 0.0, %v2710
  %2712 = vmatmul.bf16.gmra.mxu0 %v2343
  %v2713 = vpop.f32.mrf.mxu0
  %v2714 = vadd.f32 0.0, %v2713
  %v2715 = vpop.f32.mrf.mxu0
  %v2716 = vadd.f32 0.0, %v2715
  %2717 = vmatmul.bf16.gmra.mxu0 %v2346
  %v2718 = vpop.f32.mrf.mxu0
  %v2719 = vadd.f32 0.0, %v2718
  %v2720 = vpop.f32.mrf.mxu0
  %v2721 = vadd.f32 0.0, %v2720
  %2722 = vmatmul.bf16.gmra.mxu0 %v2349
  %v2723 = vpop.f32.mrf.mxu0
  %v2724 = vadd.f32 0.0, %v2723
  %v2725 = vpop.f32.mrf.mxu0
  %v2726 = vadd.f32 0.0, %v2725
  %2727 = vmatmul.bf16.gmra.mxu0 %v2352
  %v2728 = vpop.f32.mrf.mxu0
  %v2729 = vadd.f32 0.0, %v2728
  %v2730 = vpop.f32.mrf.mxu0
  %v2731 = vadd.f32 0.0, %v2730
  %2732 = vmatmul.bf16.gmra.mxu0 %v2355
  %v2733 = vpop.f32.mrf.mxu0
  %v2734 = vadd.f32 0.0, %v2733
  %v2735 = vpop.f32.mrf.mxu0
  %v2736 = vadd.f32 0.0, %v2735
  %2737 = vmatmul.bf16.gmra.mxu0 %v2358
  %v2738 = vpop.f32.mrf.mxu0
  %v2739 = vadd.f32 0.0, %v2738
  %v2740 = vpop.f32.mrf.mxu0
  %v2741 = vadd.f32 0.0, %v2740
  %2742 = vmatmul.bf16.gmra.mxu0 %v2361
  %v2743 = vpop.f32.mrf.mxu0
  %v2744 = vadd.f32 0.0, %v2743
  %v2745 = vpop.f32.mrf.mxu0
  %v2746 = vadd.f32 0.0, %v2745
  %2747 = vmatmul.bf16.gmra.mxu0 %v2364
  %v2748 = vpop.f32.mrf.mxu0
  %v2749 = vadd.f32 0.0, %v2748
  %v2750 = vpop.f32.mrf.mxu0
  %v2751 = vadd.f32 0.0, %v2750
  %2752 = vmatmul.bf16.gmra.mxu0 %v2367
  %v2753 = vpop.f32.mrf.mxu0
  %v2754 = vadd.f32 0.0, %v2753
  %v2755 = vpop.f32.mrf.mxu0
  %v2756 = vadd.f32 0.0, %v2755
  %2757 = vmatmul.bf16.gmra.mxu0 %v2370
  %v2758 = vpop.f32.mrf.mxu0
  %v2759 = vadd.f32 0.0, %v2758
  %v2760 = vpop.f32.mrf.mxu0
  %v2761 = vadd.f32 0.0, %v2760
  %2762 = vmatmul.bf16.gmra.mxu0 %v2373
  %v2763 = vpop.f32.mrf.mxu0
  %v2764 = vadd.f32 0.0, %v2763
  %v2765 = vpop.f32.mrf.mxu0
  %v2766 = vadd.f32 0.0, %v2765
  %2767 = vmatmul.bf16.gmra.mxu0 %v2376
  %v2768 = vpop.f32.mrf.mxu0
  %v2769 = vadd.f32 0.0, %v2768
  %v2770 = vpop.f32.mrf.mxu0
  %v2771 = vadd.f32 0.0, %v2770
  %2772 = vmatmul.bf16.gmra.mxu0 %v2379
  %v2773 = vpop.f32.mrf.mxu0
  %v2774 = vadd.f32 0.0, %v2773
  %v2775 = vpop.f32.mrf.mxu0
  %v2776 = vadd.f32 0.0, %v2775
  %2777 = vmatmul.bf16.gmra.mxu0 %v2382
  %v2778 = vpop.f32.mrf.mxu0
  %v2779 = vadd.f32 0.0, %v2778
  %v2780 = vpop.f32.mrf.mxu0
  %v2781 = vadd.f32 0.0, %v2780
  %2782 = vmatmul.bf16.gmra.mxu0 %v2385
  %v2783 = vpop.f32.mrf.mxu0
  %v2784 = vadd.f32 0.0, %v2783
  %v2785 = vpop.f32.mrf.mxu0
  %v2786 = vadd.f32 0.0, %v2785
  %2787 = vmatmul.bf16.gmra.mxu0 %v2388
  %v2788 = vpop.f32.mrf.mxu0
  %v2789 = vadd.f32 0.0, %v2788
  %v2790 = vpop.f32.mrf.mxu0
  %v2791 = vadd.f32 0.0, %v2790
  %2792 = vmatmul.bf16.gmra.mxu0 %v2391
  %v2793 = vpop.f32.mrf.mxu0
  %v2794 = vadd.f32 0.0, %v2793
  %v2795 = vpop.f32.mrf.mxu0
  %v2796 = vadd.f32 0.0, %v2795
  %2797 = vmatmul.bf16.gmra.mxu0 %v2394
  %v2798 = vpop.f32.mrf.mxu0
  %v2799 = vadd.f32 0.0, %v2798
  %v2800 = vpop.f32.mrf.mxu0
  %v2801 = vadd.f32 0.0, %v2800
  %2802 = vmatmul.bf16.gmra.mxu0 %v2397
  %v2803 = vpop.f32.mrf.mxu0
  %v2804 = vadd.f32 0.0, %v2803
  %v2805 = vpop.f32.mrf.mxu0
  %v2806 = vadd.f32 0.0, %v2805
  %2807 = vmatmul.bf16.gmra.mxu0 %v2400
  %v2808 = vpop.f32.mrf.mxu0
  %v2809 = vadd.f32 0.0, %v2808
  %v2810 = vpop.f32.mrf.mxu0
  %v2811 = vadd.f32 0.0, %v2810
  %2812 = vmatmul.bf16.gmra.mxu0 %v2403
  %v2813 = vpop.f32.mrf.mxu0
  %v2814 = vadd.f32 0.0, %v2813
  %v2815 = vpop.f32.mrf.mxu0
  %v2816 = vadd.f32 0.0, %v2815
  %2817 = vmatmul.bf16.gmra.mxu0 %v2406
  %v2818 = vpop.f32.mrf.mxu0
  %v2819 = vadd.f32 0.0, %v2818
  %v2820 = vpop.f32.mrf.mxu0
  %v2821 = vadd.f32 0.0, %v2820
  %2822 = vmatmul.bf16.gmra.mxu0 %v2409
  %v2823 = vpop.f32.mrf.mxu0
  %v2824 = vadd.f32 0.0, %v2823
  %v2825 = vpop.f32.mrf.mxu0
  %v2826 = vadd.f32 0.0, %v2825
  %2827 = vmatmul.bf16.gmra.mxu0 %v2412
  %v2828 = vpop.f32.mrf.mxu0
  %v2829 = vadd.f32 0.0, %v2828
  %v2830 = vpop.f32.mrf.mxu0
  %v2831 = vadd.f32 0.0, %v2830
  %2832 = vmatmul.bf16.gmra.mxu0 %v2415
  %v2833 = vpop.f32.mrf.mxu0
  %v2834 = vadd.f32 0.0, %v2833
  %v2835 = vpop.f32.mrf.mxu0
  %v2836 = vadd.f32 0.0, %v2835
  %2837 = vmatmul.bf16.gmra.mxu0 %v2418
  %v2838 = vpop.f32.mrf.mxu0
  %v2839 = vadd.f32 0.0, %v2838
  %v2840 = vpop.f32.mrf.mxu0
  %v2841 = vadd.f32 0.0, %v2840
  %2842 = vmatmul.bf16.gmra.mxu0 %v2421
  %v2843 = vpop.f32.mrf.mxu0
  %v2844 = vadd.f32 0.0, %v2843
  %v2845 = vpop.f32.mrf.mxu0
  %v2846 = vadd.f32 0.0, %v2845
  %2847 = vmatmul.bf16.gmra.mxu0 %v2424
  %v2848 = vpop.f32.mrf.mxu0
  %v2849 = vadd.f32 0.0, %v2848
  %v2850 = vpop.f32.mrf.mxu0
  %v2851 = vadd.f32 0.0, %v2850
  %2852 = vmatmul.bf16.gmra.mxu0 %v2427
  %v2853 = vpop.f32.mrf.mxu0
  %v2854 = vadd.f32 0.0, %v2853
  %v2855 = vpop.f32.mrf.mxu0
  %v2856 = vadd.f32 0.0, %v2855
  %2857 = vmatmul.bf16.gmra.mxu0 %v2430
  %v2858 = vpop.f32.mrf.mxu0
  %v2859 = vadd.f32 0.0, %v2858
  %v2860 = vpop.f32.mrf.mxu0
  %v2861 = vadd.f32 0.0, %v2860
  %2862 = vmatmul.bf16.gmra.mxu0 %v2433
  %v2863 = vpop.f32.mrf.mxu0
  %v2864 = vadd.f32 0.0, %v2863
  %v2865 = vpop.f32.mrf.mxu0
  %v2866 = vadd.f32 0.0, %v2865
  %2867 = vmatmul.bf16.gmra.mxu0 %v2436
  %v2868 = vpop.f32.mrf.mxu0
  %v2869 = vadd.f32 0.0, %v2868
  %v2870 = vpop.f32.mrf.mxu0
  %v2871 = vadd.f32 0.0, %v2870
  %2872 = vmatmul.bf16.gmra.mxu0 %v2439
  %v2873 = vpop.f32.mrf.mxu0
  %v2874 = vadd.f32 0.0, %v2873
  %v2875 = vpop.f32.mrf.mxu0
  %v2876 = vadd.f32 0.0, %v2875
  %2877 = vmatmul.bf16.gmra.mxu0 %v2442
  %v2878 = vpop.f32.mrf.mxu0
  %v2879 = vadd.f32 0.0, %v2878
  %v2880 = vpop.f32.mrf.mxu0
  %v2881 = vadd.f32 0.0, %v2880
  %2882 = vmatmul.bf16.gmra.mxu0 %v2445
  %v2883 = vpop.f32.mrf.mxu0
  %v2884 = vadd.f32 0.0, %v2883
  %v2885 = vpop.f32.mrf.mxu0
  %v2886 = vadd.f32 0.0, %v2885
  %2887 = vmatmul.bf16.gmra.mxu0 %v2448
  %v2888 = vpop.f32.mrf.mxu0
  %v2889 = vadd.f32 0.0, %v2888
  %v2890 = vpop.f32.mrf.mxu0
  %v2891 = vadd.f32 0.0, %v2890
  %2892 = vmatmul.bf16.gmra.mxu0 %v2451
  %v2893 = vpop.f32.mrf.mxu0
  %v2894 = vadd.f32 0.0, %v2893
  %v2895 = vpop.f32.mrf.mxu0
  %v2896 = vadd.f32 0.0, %v2895
  %2897 = vmatmul.bf16.gmra.mxu0 %v2454
  %v2898 = vpop.f32.mrf.mxu0
  %v2899 = vadd.f32 0.0, %v2898
  %v2900 = vpop.f32.mrf.mxu0
  %v2901 = vadd.f32 0.0, %v2900
  %2902 = vmatmul.bf16.gmra.mxu0 %v2457
  %v2903 = vpop.f32.mrf.mxu0
  %v2904 = vadd.f32 0.0, %v2903
  %v2905 = vpop.f32.mrf.mxu0
  %v2906 = vadd.f32 0.0, %v2905
  %2907 = vmatmul.bf16.gmra.mxu0 %v2460
  %v2908 = vpop.f32.mrf.mxu0
  %v2909 = vadd.f32 0.0, %v2908
  %v2910 = vpop.f32.mrf.mxu0
  %v2911 = vadd.f32 0.0, %v2910
  %2912 = vmatmul.bf16.gmra.mxu0 %v2463
  %v2913 = vpop.f32.mrf.mxu0
  %v2914 = vadd.f32 0.0, %v2913
  %v2915 = vpop.f32.mrf.mxu0
  %v2916 = vadd.f32 0.0, %v2915
  %2917 = vmatmul.bf16.gmra.mxu0 %v2466
  %v2918 = vpop.f32.mrf.mxu0
  %v2919 = vadd.f32 0.0, %v2918
  %v2920 = vpop.f32.mrf.mxu0
  %v2921 = vadd.f32 0.0, %v2920
  %2922 = vmatmul.bf16.gmra.mxu0 %v2469
  %v2923 = vpop.f32.mrf.mxu0
  %v2924 = vadd.f32 0.0, %v2923
  %v2925 = vpop.f32.mrf.mxu0
  %v2926 = vadd.f32 0.0, %v2925
  %2927 = vmatmul.bf16.gmra.mxu0 %v2472
  %v2928 = vpop.f32.mrf.mxu0
  %v2929 = vadd.f32 0.0, %v2928
  %v2930 = vpop.f32.mrf.mxu0
  %v2931 = vadd.f32 0.0, %v2930
  %2932 = vmatmul.bf16.gmra.mxu0 %v2475
  %v2933 = vpop.f32.mrf.mxu0
  %v2934 = vadd.f32 0.0, %v2933
  %v2935 = vpop.f32.mrf.mxu0
  %v2936 = vadd.f32 0.0, %v2935
  %2937 = vmatmul.bf16.gmra.mxu0 %v2478
  %v2938 = vpop.f32.mrf.mxu0
  %v2939 = vadd.f32 0.0, %v2938
  %v2940 = vpop.f32.mrf.mxu0
  %v2941 = vadd.f32 0.0, %v2940
  %2942 = vmatmul.bf16.gmra.mxu0 %v2481
  %v2943 = vpop.f32.mrf.mxu0
  %v2944 = vadd.f32 0.0, %v2943
  %v2945 = vpop.f32.mrf.mxu0
  %v2946 = vadd.f32 0.0, %v2945
  %2947 = vmatmul.bf16.gmra.mxu0 %v2484
  %v2948 = vpop.f32.mrf.mxu0
  %v2949 = vadd.f32 0.0, %v2948
  %v2950 = vpop.f32.mrf.mxu0
  %v2951 = vadd.f32 0.0, %v2950
  %2952 = vmatmul.bf16.gmra.mxu0 %v2487
  %v2953 = vpop.f32.mrf.mxu0
  %v2954 = vadd.f32 0.0, %v2953
  %v2955 = vpop.f32.mrf.mxu0
  %v2956 = vadd.f32 0.0, %v2955
  %2957 = vmatmul.bf16.gmra.mxu0 %v2490
  %v2958 = vpop.f32.mrf.mxu0
  %v2959 = vadd.f32 0.0, %v2958
  %v2960 = vpop.f32.mrf.mxu0
  %v2961 = vadd.f32 0.0, %v2960
  %2962 = vmatmul.bf16.gmra.mxu0 %v2493
  %v2963 = vpop.f32.mrf.mxu0
  %v2964 = vadd.f32 0.0, %v2963
  %v2965 = vpop.f32.mrf.mxu0
  %v2966 = vadd.f32 0.0, %v2965
  %2967 = vmatmul.bf16.gmra.mxu0 %v2496
  %v2968 = vpop.f32.mrf.mxu0
  %v2969 = vadd.f32 0.0, %v2968
  %v2970 = vpop.f32.mrf.mxu0
  %v2971 = vadd.f32 0.0, %v2970
  %2972 = vmatmul.bf16.gmra.mxu0 %v2499
  %v2973 = vpop.f32.mrf.mxu0
  %v2974 = vadd.f32 0.0, %v2973
  %v2975 = vpop.f32.mrf.mxu0
  %v2976 = vadd.f32 0.0, %v2975
  %2977 = vmatmul.bf16.gmra.mxu0 %v2502
  %v2978 = vpop.f32.mrf.mxu0
  %v2979 = vadd.f32 0.0, %v2978
  %v2980 = vpop.f32.mrf.mxu0
  %v2981 = vadd.f32 0.0, %v2980
  %2982 = vmatmul.bf16.gmra.mxu0 %v2505
  %v2983 = vpop.f32.mrf.mxu0
  %v2984 = vadd.f32 0.0, %v2983
  %v2985 = vpop.f32.mrf.mxu0
  %v2986 = vadd.f32 0.0, %v2985
  %2987 = vmatmul.bf16.gmra.mxu0 %v2508
  %v2988 = vpop.f32.mrf.mxu0
  %v2989 = vadd.f32 0.0, %v2988
  %v2990 = vpop.f32.mrf.mxu0
  %v2991 = vadd.f32 0.0, %v2990
  %2992 = vmatmul.bf16.gmra.mxu0 %v2511
  %v2993 = vpop.f32.mrf.mxu0
  %v2994 = vadd.f32 0.0, %v2993
  %v2995 = vpop.f32.mrf.mxu0
  %v2996 = vadd.f32 0.0, %v2995
  %2997 = vmatmul.bf16.gmra.mxu0 %v2514
  %v2998 = vpop.f32.mrf.mxu0
  %v2999 = vadd.f32 0.0, %v2998
  %v3000 = vpop.f32.mrf.mxu0
  %v3001 = vadd.f32 0.0, %v3000
  %3002 = vmatmul.bf16.gmra.mxu0 %v2517
  %v3003 = vpop.f32.mrf.mxu0
  %v3004 = vadd.f32 0.0, %v3003
  %v3005 = vpop.f32.mrf.mxu0
  %v3006 = vadd.f32 0.0, %v3005
  %3007 = vmatmul.bf16.gmra.mxu0 %v2520
  %v3008 = vpop.f32.mrf.mxu0
  %v3009 = vadd.f32 0.0, %v3008
  %v3010 = vpop.f32.mrf.mxu0
  %v3011 = vadd.f32 0.0, %v3010
  %3012 = vmatmul.bf16.gmra.mxu0 %v2523
  %v3013 = vpop.f32.mrf.mxu0
  %v3014 = vadd.f32 0.0, %v3013
  %v3015 = vpop.f32.mrf.mxu0
  %v3016 = vadd.f32 0.0, %v3015
  %3017 = vmatmul.bf16.gmra.mxu0 %v2526
  %v3018 = vpop.f32.mrf.mxu0
  %v3019 = vadd.f32 0.0, %v3018
  %v3020 = vpop.f32.mrf.mxu0
  %v3021 = vadd.f32 0.0, %v3020
  %3022 = vmatmul.bf16.gmra.mxu0 %v2529
  %v3023 = vpop.f32.mrf.mxu0
  %v3024 = vadd.f32 0.0, %v3023
  %v3025 = vpop.f32.mrf.mxu0
  %v3026 = vadd.f32 0.0, %v3025
  %3027 = vmatmul.bf16.gmra.mxu0 %v2532
  %v3028 = vpop.f32.mrf.mxu0
  %v3029 = vadd.f32 0.0, %v3028
  %v3030 = vpop.f32.mrf.mxu0
  %v3031 = vadd.f32 0.0, %v3030
  %3032 = vdwg.mxu0
  %v3033 = vmax.f32 %v1064, %v2544
  %v3034 = vmax.f32 %v1066, %v2546
  %v3035 = vmax.f32 %v1069, %v2549
  %v3036 = vmax.f32 %v1071, %v2551
  %v3037 = vmax.f32 %v1074, %v2554
  %v3038 = vmax.f32 %v1076, %v2556
  %v3039 = vmax.f32 %v1079, %v2559
  %v3040 = vmax.f32 %v1081, %v2561
  %v3041 = vmax.f32 %v1084, %v2564
  %v3042 = vmax.f32 %v1086, %v2566
  %v3043 = vmax.f32 %v1089, %v2569
  %v3044 = vmax.f32 %v1091, %v2571
  %v3045 = vmax.f32 %v1094, %v2574
  %v3046 = vmax.f32 %v1096, %v2576
  %v3047 = vmax.f32 %v1099, %v2579
  %v3048 = vmax.f32 %v1101, %v2581
  %v3049 = vmax.f32 %v1104, %v2584
  %v3050 = vmax.f32 %v1106, %v2586
  %v3051 = vmax.f32 %v1109, %v2589
  %v3052 = vmax.f32 %v1111, %v2591
  %v3053 = vmax.f32 %v1114, %v2594
  %v3054 = vmax.f32 %v1116, %v2596
  %v3055 = vmax.f32 %v1119, %v2599
  %v3056 = vmax.f32 %v1121, %v2601
  %v3057 = vmax.f32 %v1124, %v2604
  %v3058 = vmax.f32 %v1126, %v2606
  %v3059 = vmax.f32 %v1129, %v2609
  %v3060 = vmax.f32 %v1131, %v2611
  %v3061 = vmax.f32 %v1134, %v2614
  %v3062 = vmax.f32 %v1136, %v2616
  %v3063 = vmax.f32 %v1139, %v2619
  %v3064 = vmax.f32 %v1141, %v2621
  %v3065 = vmax.f32 %v1144, %v2624
  %v3066 = vmax.f32 %v1146, %v2626
  %v3067 = vmax.f32 %v1149, %v2629
  %v3068 = vmax.f32 %v1151, %v2631
  %v3069 = vmax.f32 %v1154, %v2634
  %v3070 = vmax.f32 %v1156, %v2636
  %v3071 = vmax.f32 %v1159, %v2639
  %v3072 = vmax.f32 %v1161, %v2641
  %v3073 = vmax.f32 %v1164, %v2644
  %v3074 = vmax.f32 %v1166, %v2646
  %v3075 = vmax.f32 %v1169, %v2649
  %v3076 = vmax.f32 %v1171, %v2651
  %v3077 = vmax.f32 %v1174, %v2654
  %v3078 = vmax.f32 %v1176, %v2656
  %v3079 = vmax.f32 %v1179, %v2659
  %v3080 = vmax.f32 %v1181, %v2661
  %v3081 = vmax.f32 %v1184, %v2664
  %v3082 = vmax.f32 %v1186, %v2666
  %v3083 = vmax.f32 %v1189, %v2669
  %v3084 = vmax.f32 %v1191, %v2671
  %v3085 = vmax.f32 %v1194, %v2674
  %v3086 = vmax.f32 %v1196, %v2676
  %v3087 = vmax.f32 %v1199, %v2679
  %v3088 = vmax.f32 %v1201, %v2681
  %v3089 = vmax.f32 %v1204, %v2684
  %v3090 = vmax.f32 %v1206, %v2686
  %v3091 = vmax.f32 %v1209, %v2689
  %v3092 = vmax.f32 %v1211, %v2691
  %v3093 = vmax.f32 %v1214, %v2694
  %v3094 = vmax.f32 %v1216, %v2696
  %v3095 = vmax.f32 %v1219, %v2699
  %v3096 = vmax.f32 %v1221, %v2701
  %v3097 = vmax.f32 %v1224, %v2704
  %v3098 = vmax.f32 %v1226, %v2706
  %v3099 = vmax.f32 %v1229, %v2709
  %v3100 = vmax.f32 %v1231, %v2711
  %v3101 = vmax.f32 %v1234, %v2714
  %v3102 = vmax.f32 %v1236, %v2716
  %v3103 = vmax.f32 %v1239, %v2719
  %v3104 = vmax.f32 %v1241, %v2721
  %v3105 = vmax.f32 %v1244, %v2724
  %v3106 = vmax.f32 %v1246, %v2726
  %v3107 = vmax.f32 %v1249, %v2729
  %v3108 = vmax.f32 %v1251, %v2731
  %v3109 = vmax.f32 %v1254, %v2734
  %v3110 = vmax.f32 %v1256, %v2736
  %v3111 = vmax.f32 %v1259, %v2739
  %v3112 = vmax.f32 %v1261, %v2741
  %v3113 = vmax.f32 %v1264, %v2744
  %v3114 = vmax.f32 %v1266, %v2746
  %v3115 = vmax.f32 %v1269, %v2749
  %v3116 = vmax.f32 %v1271, %v2751
  %v3117 = vmax.f32 %v1274, %v2754
  %v3118 = vmax.f32 %v1276, %v2756
  %v3119 = vmax.f32 %v1279, %v2759
  %v3120 = vmax.f32 %v1281, %v2761
  %v3121 = vmax.f32 %v1284, %v2764
  %v3122 = vmax.f32 %v1286, %v2766
  %v3123 = vmax.f32 %v1289, %v2769
  %v3124 = vmax.f32 %v1291, %v2771
  %v3125 = vmax.f32 %v1294, %v2774
  %v3126 = vmax.f32 %v1296, %v2776
  %v3127 = vmax.f32 %v1299, %v2779
  %v3128 = vmax.f32 %v1301, %v2781
  %v3129 = vmax.f32 %v1304, %v2784
  %v3130 = vmax.f32 %v1306, %v2786
  %v3131 = vmax.f32 %v1309, %v2789
  %v3132 = vmax.f32 %v1311, %v2791
  %v3133 = vmax.f32 %v1314, %v2794
  %v3134 = vmax.f32 %v1316, %v2796
  %v3135 = vmax.f32 %v1319, %v2799
  %v3136 = vmax.f32 %v1321, %v2801
  %v3137 = vmax.f32 %v1324, %v2804
  %v3138 = vmax.f32 %v1326, %v2806
  %v3139 = vmax.f32 %v1329, %v2809
  %v3140 = vmax.f32 %v1331, %v2811
  %v3141 = vmax.f32 %v1334, %v2814
  %v3142 = vmax.f32 %v1336, %v2816
  %v3143 = vmax.f32 %v1339, %v2819
  %v3144 = vmax.f32 %v1341, %v2821
  %v3145 = vmax.f32 %v1344, %v2824
  %v3146 = vmax.f32 %v1346, %v2826
  %v3147 = vmax.f32 %v1349, %v2829
  %v3148 = vmax.f32 %v1351, %v2831
  %v3149 = vmax.f32 %v1354, %v2834
  %v3150 = vmax.f32 %v1356, %v2836
  %v3151 = vmax.f32 %v1359, %v2839
  %v3152 = vmax.f32 %v1361, %v2841
  %v3153 = vmax.f32 %v1364, %v2844
  %v3154 = vmax.f32 %v1366, %v2846
  %v3155 = vmax.f32 %v1369, %v2849
  %v3156 = vmax.f32 %v1371, %v2851
  %v3157 = vmax.f32 %v1374, %v2854
  %v3158 = vmax.f32 %v1376, %v2856
  %v3159 = vmax.f32 %v1379, %v2859
  %v3160 = vmax.f32 %v1381, %v2861
  %v3161 = vmax.f32 %v1384, %v2864
  %v3162 = vmax.f32 %v1386, %v2866
  %v3163 = vmax.f32 %v1389, %v2869
  %v3164 = vmax.f32 %v1391, %v2871
  %v3165 = vmax.f32 %v1394, %v2874
  %v3166 = vmax.f32 %v1396, %v2876
  %v3167 = vmax.f32 %v1399, %v2879
  %v3168 = vmax.f32 %v1401, %v2881
  %v3169 = vmax.f32 %v1404, %v2884
  %v3170 = vmax.f32 %v1406, %v2886
  %v3171 = vmax.f32 %v1409, %v2889
  %v3172 = vmax.f32 %v1411, %v2891
  %v3173 = vmax.f32 %v1414, %v2894
  %v3174 = vmax.f32 %v1416, %v2896
  %v3175 = vmax.f32 %v1419, %v2899
  %v3176 = vmax.f32 %v1421, %v2901
  %v3177 = vmax.f32 %v1424, %v2904
  %v3178 = vmax.f32 %v1426, %v2906
  %v3179 = vmax.f32 %v1429, %v2909
  %v3180 = vmax.f32 %v1431, %v2911
  %v3181 = vmax.f32 %v1434, %v2914
  %v3182 = vmax.f32 %v1436, %v2916
  %v3183 = vmax.f32 %v1439, %v2919
  %v3184 = vmax.f32 %v1441, %v2921
  %v3185 = vmax.f32 %v1444, %v2924
  %v3186 = vmax.f32 %v1446, %v2926
  %v3187 = vmax.f32 %v1449, %v2929
  %v3188 = vmax.f32 %v1451, %v2931
  %v3189 = vmax.f32 %v1454, %v2934
  %v3190 = vmax.f32 %v1456, %v2936
  %v3191 = vmax.f32 %v1459, %v2939
  %v3192 = vmax.f32 %v1461, %v2941
  %v3193 = vmax.f32 %v1464, %v2944
  %v3194 = vmax.f32 %v1466, %v2946
  %v3195 = vmax.f32 %v1469, %v2949
  %v3196 = vmax.f32 %v1471, %v2951
  %v3197 = vmax.f32 %v1474, %v2954
  %v3198 = vmax.f32 %v1476, %v2956
  %v3199 = vmax.f32 %v1479, %v2959
  %v3200 = vmax.f32 %v1481, %v2961
  %v3201 = vmax.f32 %v1484, %v2964
  %v3202 = vmax.f32 %v1486, %v2966
  %v3203 = vmax.f32 %v1489, %v2969
  %v3204 = vmax.f32 %v1491, %v2971
  %v3205 = vmax.f32 %v1494, %v2974
  %v3206 = vmax.f32 %v1496, %v2976
  %v3207 = vmax.f32 %v1499, %v2979
  %v3208 = vmax.f32 %v1501, %v2981
  %v3209 = vmax.f32 %v1504, %v2984
  %v3210 = vmax.f32 %v1506, %v2986
  %v3211 = vmax.f32 %v1509, %v2989
  %v3212 = vmax.f32 %v1511, %v2991
  %v3213 = vmax.f32 %v1514, %v2994
  %v3214 = vmax.f32 %v1516, %v2996
  %v3215 = vmax.f32 %v1519, %v2999
  %v3216 = vmax.f32 %v1521, %v3001
  %v3217 = vmax.f32 %v1524, %v3004
  %v3218 = vmax.f32 %v1526, %v3006
  %v3219 = vmax.f32 %v1529, %v3009
  %v3220 = vmax.f32 %v1531, %v3011
  %v3221 = vmax.f32 %v1534, %v3014
  %v3222 = vmax.f32 %v1536, %v3016
  %v3223 = vmax.f32 %v1539, %v3019
  %v3224 = vmax.f32 %v1541, %v3021
  %v3225 = vmax.f32 %v1544, %v3024
  %v3226 = vmax.f32 %v1546, %v3026
  %v3227 = vmax.f32 %v1549, %v3029
  %v3228 = vmax.f32 %v1551, %v3031
  %s3229 = scalar_lea.vmem %s0, 1568
  %v3230 = vld [vmem:[%s3229] sm:$0xf]
  %v3231 = vld [vmem:[%s3229 + $0x4] sm:$0xf]
  %v3232 = vld [vmem:[%s3229 + $0x8] sm:$0xf]
  %v3233 = vld [vmem:[%s3229 + $0xc] sm:$0xf]
  %v3234 = vld [vmem:[%s3229 + $0x10] sm:$0xf]
  %v3235 = vld [vmem:[%s3229 + $0x14] sm:$0xf]
  %v3236 = vld [vmem:[%s3229 + $0x18] sm:$0xf]
  %v3237 = vld [vmem:[%s3229 + $0x1c] sm:$0xf]
  %v3238 = vld [vmem:[%s3229 + $0x20] sm:$0xf]
  %v3239 = vld [vmem:[%s3229 + $0x24] sm:$0xf]
  %v3240 = vld [vmem:[%s3229 + $0x28] sm:$0xf]
  %v3241 = vld [vmem:[%s3229 + $0x2c] sm:$0xf]
  %v3242 = vld [vmem:[%s3229 + $0x30] sm:$0xf]
  %v3243 = vld [vmem:[%s3229 + $0x34] sm:$0xf]
  %v3244 = vld [vmem:[%s3229 + $0x38] sm:$0xf]
  %v3245 = vld [vmem:[%s3229 + $0x3c] sm:$0xf]
  %v3246 = vld [vmem:[%s3229 + $0x40] sm:$0xf]
  %v3247 = vld [vmem:[%s3229 + $0x44] sm:$0xf]
  %v3248 = vld [vmem:[%s3229 + $0x48] sm:$0xf]
  %v3249 = vld [vmem:[%s3229 + $0x4c] sm:$0xf]
  %v3250 = vld [vmem:[%s3229 + $0x50] sm:$0xf]
  %v3251 = vld [vmem:[%s3229 + $0x54] sm:$0xf]
  %v3252 = vld [vmem:[%s3229 + $0x58] sm:$0xf]
  %v3253 = vld [vmem:[%s3229 + $0x5c] sm:$0xf]
  %v3254 = vld [vmem:[%s3229 + $0x60] sm:$0xf]
  %v3255 = vld [vmem:[%s3229 + $0x64] sm:$0xf]
  %v3256 = vld [vmem:[%s3229 + $0x68] sm:$0xf]
  %v3257 = vld [vmem:[%s3229 + $0x6c] sm:$0xf]
  %v3258 = vld [vmem:[%s3229 + $0x70] sm:$0xf]
  %v3259 = vld [vmem:[%s3229 + $0x74] sm:$0xf]
  %v3260 = vld [vmem:[%s3229 + $0x78] sm:$0xf]
  %v3261 = vld [vmem:[%s3229 + $0x7c] sm:$0xf]
  %v3262 = vld [vmem:[%s3229 + $0x80] sm:$0xf]
  %v3263 = vld [vmem:[%s3229 + $0x84] sm:$0xf]
  %v3264 = vld [vmem:[%s3229 + $0x88] sm:$0xf]
  %v3265 = vld [vmem:[%s3229 + $0x8c] sm:$0xf]
  %v3266 = vld [vmem:[%s3229 + $0x90] sm:$0xf]
  %v3267 = vld [vmem:[%s3229 + $0x94] sm:$0xf]
  %v3268 = vld [vmem:[%s3229 + $0x98] sm:$0xf]
  %v3269 = vld [vmem:[%s3229 + $0x9c] sm:$0xf]
  %v3270 = vld [vmem:[%s3229 + $0xa0] sm:$0xf]
  %v3271 = vld [vmem:[%s3229 + $0xa4] sm:$0xf]
  %v3272 = vld [vmem:[%s3229 + $0xa8] sm:$0xf]
  %v3273 = vld [vmem:[%s3229 + $0xac] sm:$0xf]
  %v3274 = vld [vmem:[%s3229 + $0xb0] sm:$0xf]
  %v3275 = vld [vmem:[%s3229 + $0xb4] sm:$0xf]
  %v3276 = vld [vmem:[%s3229 + $0xb8] sm:$0xf]
  %v3277 = vld [vmem:[%s3229 + $0xbc] sm:$0xf]
  %v3278 = vld [vmem:[%s3229 + $0xc0] sm:$0xf]
  %v3279 = vld [vmem:[%s3229 + $0xc4] sm:$0xf]
  %v3280 = vld [vmem:[%s3229 + $0xc8] sm:$0xf]
  %v3281 = vld [vmem:[%s3229 + $0xcc] sm:$0xf]
  %v3282 = vld [vmem:[%s3229 + $0xd0] sm:$0xf]
  %v3283 = vld [vmem:[%s3229 + $0xd4] sm:$0xf]
  %v3284 = vld [vmem:[%s3229 + $0xd8] sm:$0xf]
  %v3285 = vld [vmem:[%s3229 + $0xdc] sm:$0xf]
  %v3286 = vld [vmem:[%s3229 + $0xe0] sm:$0xf]
  %v3287 = vld [vmem:[%s3229 + $0xe4] sm:$0xf]
  %v3288 = vld [vmem:[%s3229 + $0xe8] sm:$0xf]
  %v3289 = vld [vmem:[%s3229 + $0xec] sm:$0xf]
  %v3290 = vld [vmem:[%s3229 + $0xf0] sm:$0xf]
  %v3291 = vld [vmem:[%s3229 + $0xf4] sm:$0xf]
  %v3292 = vld [vmem:[%s3229 + $0xf8] sm:$0xf]
  %v3293 = vld [vmem:[%s3229 + $0xfc] sm:$0xf]
  %v3294 = vld [vmem:[%s3229 + $0x100] sm:$0xf]
  %v3295 = vld [vmem:[%s3229 + $0x104] sm:$0xf]
  %v3296 = vld [vmem:[%s3229 + $0x108] sm:$0xf]
  %v3297 = vld [vmem:[%s3229 + $0x10c] sm:$0xf]
  %v3298 = vld [vmem:[%s3229 + $0x110] sm:$0xf]
  %v3299 = vld [vmem:[%s3229 + $0x114] sm:$0xf]
  %v3300 = vld [vmem:[%s3229 + $0x118] sm:$0xf]
  %v3301 = vld [vmem:[%s3229 + $0x11c] sm:$0xf]
  %v3302 = vld [vmem:[%s3229 + $0x120] sm:$0xf]
  %v3303 = vld [vmem:[%s3229 + $0x124] sm:$0xf]
  %v3304 = vld [vmem:[%s3229 + $0x128] sm:$0xf]
  %v3305 = vld [vmem:[%s3229 + $0x12c] sm:$0xf]
  %v3306 = vld [vmem:[%s3229 + $0x130] sm:$0xf]
  %v3307 = vld [vmem:[%s3229 + $0x134] sm:$0xf]
  %v3308 = vld [vmem:[%s3229 + $0x138] sm:$0xf]
  %v3309 = vld [vmem:[%s3229 + $0x13c] sm:$0xf]
  %v3310 = vld [vmem:[%s3229 + $0x140] sm:$0xf]
  %v3311 = vld [vmem:[%s3229 + $0x144] sm:$0xf]
  %v3312 = vld [vmem:[%s3229 + $0x148] sm:$0xf]
  %v3313 = vld [vmem:[%s3229 + $0x14c] sm:$0xf]
  %v3314 = vld [vmem:[%s3229 + $0x150] sm:$0xf]
  %v3315 = vld [vmem:[%s3229 + $0x154] sm:$0xf]
  %v3316 = vld [vmem:[%s3229 + $0x158] sm:$0xf]
  %v3317 = vld [vmem:[%s3229 + $0x15c] sm:$0xf]
  %v3318 = vld [vmem:[%s3229 + $0x160] sm:$0xf]
  %v3319 = vld [vmem:[%s3229 + $0x164] sm:$0xf]
  %v3320 = vld [vmem:[%s3229 + $0x168] sm:$0xf]
  %v3321 = vld [vmem:[%s3229 + $0x16c] sm:$0xf]
  %v3322 = vld [vmem:[%s3229 + $0x170] sm:$0xf]
  %v3323 = vld [vmem:[%s3229 + $0x174] sm:$0xf]
  %v3324 = vld [vmem:[%s3229 + $0x178] sm:$0xf]
  %v3325 = vld [vmem:[%s3229 + $0x17c] sm:$0xf]
  %v3326 = vld [vmem:[%s3229 + $0x180] sm:$0xf]
  %v3327 = vld [vmem:[%s3229 + $0x184] sm:$0xf]
  %v3328 = vld [vmem:[%s3229 + $0x188] sm:$0xf]
  %v3329 = vld [vmem:[%s3229 + $0x18c] sm:$0xf]
  %v3330 = vld [vmem:[%s3229 + $0x190] sm:$0xf]
  %v3331 = vld [vmem:[%s3229 + $0x194] sm:$0xf]
  %v3332 = vld [vmem:[%s3229 + $0x198] sm:$0xf]
  %v3333 = vld [vmem:[%s3229 + $0x19c] sm:$0xf]
  %v3334 = vld [vmem:[%s3229 + $0x1a0] sm:$0xf]
  %v3335 = vld [vmem:[%s3229 + $0x1a4] sm:$0xf]
  %v3336 = vld [vmem:[%s3229 + $0x1a8] sm:$0xf]
  %v3337 = vld [vmem:[%s3229 + $0x1ac] sm:$0xf]
  %v3338 = vld [vmem:[%s3229 + $0x1b0] sm:$0xf]
  %v3339 = vld [vmem:[%s3229 + $0x1b4] sm:$0xf]
  %v3340 = vld [vmem:[%s3229 + $0x1b8] sm:$0xf]
  %v3341 = vld [vmem:[%s3229 + $0x1bc] sm:$0xf]
  %v3342 = vld [vmem:[%s3229 + $0x1c0] sm:$0xf]
  %v3343 = vld [vmem:[%s3229 + $0x1c4] sm:$0xf]
  %v3344 = vld [vmem:[%s3229 + $0x1c8] sm:$0xf]
  %v3345 = vld [vmem:[%s3229 + $0x1cc] sm:$0xf]
  %v3346 = vld [vmem:[%s3229 + $0x1d0] sm:$0xf]
  %v3347 = vld [vmem:[%s3229 + $0x1d4] sm:$0xf]
  %v3348 = vld [vmem:[%s3229 + $0x1d8] sm:$0xf]
  %v3349 = vld [vmem:[%s3229 + $0x1dc] sm:$0xf]
  %v3350 = vld [vmem:[%s3229 + $0x1e0] sm:$0xf]
  %v3351 = vld [vmem:[%s3229 + $0x1e4] sm:$0xf]
  %v3352 = vld [vmem:[%s3229 + $0x1e8] sm:$0xf]
  %v3353 = vld [vmem:[%s3229 + $0x1ec] sm:$0xf]
  %v3354 = vld [vmem:[%s3229 + $0x1f0] sm:$0xf]
  %v3355 = vld [vmem:[%s3229 + $0x1f4] sm:$0xf]
  %v3356 = vld [vmem:[%s3229 + $0x1f8] sm:$0xf]
  %v3357 = vld [vmem:[%s3229 + $0x1fc] sm:$0xf]
  %v3358 = vld [vmem:[%s3229 + $0x200] sm:$0xf]
  %v3359 = vld [vmem:[%s3229 + $0x204] sm:$0xf]
  %v3360 = vld [vmem:[%s3229 + $0x208] sm:$0xf]
  %v3361 = vld [vmem:[%s3229 + $0x20c] sm:$0xf]
  %v3362 = vld [vmem:[%s3229 + $0x210] sm:$0xf]
  %v3363 = vld [vmem:[%s3229 + $0x214] sm:$0xf]
  %v3364 = vld [vmem:[%s3229 + $0x218] sm:$0xf]
  %v3365 = vld [vmem:[%s3229 + $0x21c] sm:$0xf]
  %v3366 = vld [vmem:[%s3229 + $0x220] sm:$0xf]
  %v3367 = vld [vmem:[%s3229 + $0x224] sm:$0xf]
  %v3368 = vld [vmem:[%s3229 + $0x228] sm:$0xf]
  %v3369 = vld [vmem:[%s3229 + $0x22c] sm:$0xf]
  %v3370 = vld [vmem:[%s3229 + $0x230] sm:$0xf]
  %v3371 = vld [vmem:[%s3229 + $0x234] sm:$0xf]
  %v3372 = vld [vmem:[%s3229 + $0x238] sm:$0xf]
  %v3373 = vld [vmem:[%s3229 + $0x23c] sm:$0xf]
  %v3374 = vld [vmem:[%s3229 + $0x240] sm:$0xf]
  %v3375 = vld [vmem:[%s3229 + $0x244] sm:$0xf]
  %v3376 = vld [vmem:[%s3229 + $0x248] sm:$0xf]
  %v3377 = vld [vmem:[%s3229 + $0x24c] sm:$0xf]
  %v3378 = vld [vmem:[%s3229 + $0x250] sm:$0xf]
  %v3379 = vld [vmem:[%s3229 + $0x254] sm:$0xf]
  %v3380 = vld [vmem:[%s3229 + $0x258] sm:$0xf]
  %v3381 = vld [vmem:[%s3229 + $0x25c] sm:$0xf]
  %v3382 = vld [vmem:[%s3229 + $0x260] sm:$0xf]
  %v3383 = vld [vmem:[%s3229 + $0x264] sm:$0xf]
  %v3384 = vld [vmem:[%s3229 + $0x268] sm:$0xf]
  %v3385 = vld [vmem:[%s3229 + $0x26c] sm:$0xf]
  %v3386 = vld [vmem:[%s3229 + $0x270] sm:$0xf]
  %v3387 = vld [vmem:[%s3229 + $0x274] sm:$0xf]
  %v3388 = vld [vmem:[%s3229 + $0x278] sm:$0xf]
  %v3389 = vld [vmem:[%s3229 + $0x27c] sm:$0xf]
  %v3390 = vld [vmem:[%s3229 + $0x280] sm:$0xf]
  %v3391 = vld [vmem:[%s3229 + $0x284] sm:$0xf]
  %v3392 = vld [vmem:[%s3229 + $0x288] sm:$0xf]
  %v3393 = vld [vmem:[%s3229 + $0x28c] sm:$0xf]
  %v3394 = vld [vmem:[%s3229 + $0x290] sm:$0xf]
  %v3395 = vld [vmem:[%s3229 + $0x294] sm:$0xf]
  %v3396 = vld [vmem:[%s3229 + $0x298] sm:$0xf]
  %v3397 = vld [vmem:[%s3229 + $0x29c] sm:$0xf]
  %v3398 = vld [vmem:[%s3229 + $0x2a0] sm:$0xf]
  %v3399 = vld [vmem:[%s3229 + $0x2a4] sm:$0xf]
  %v3400 = vld [vmem:[%s3229 + $0x2a8] sm:$0xf]
  %v3401 = vld [vmem:[%s3229 + $0x2ac] sm:$0xf]
  %v3402 = vld [vmem:[%s3229 + $0x2b0] sm:$0xf]
  %v3403 = vld [vmem:[%s3229 + $0x2b4] sm:$0xf]
  %v3404 = vld [vmem:[%s3229 + $0x2b8] sm:$0xf]
  %v3405 = vld [vmem:[%s3229 + $0x2bc] sm:$0xf]
  %v3406 = vld [vmem:[%s3229 + $0x2c0] sm:$0xf]
  %v3407 = vld [vmem:[%s3229 + $0x2c4] sm:$0xf]
  %v3408 = vld [vmem:[%s3229 + $0x2c8] sm:$0xf]
  %v3409 = vld [vmem:[%s3229 + $0x2cc] sm:$0xf]
  %v3410 = vld [vmem:[%s3229 + $0x2d0] sm:$0xf]
  %v3411 = vld [vmem:[%s3229 + $0x2d4] sm:$0xf]
  %v3412 = vld [vmem:[%s3229 + $0x2d8] sm:$0xf]
  %v3413 = vld [vmem:[%s3229 + $0x2dc] sm:$0xf]
  %v3414 = vld [vmem:[%s3229 + $0x2e0] sm:$0xf]
  %v3415 = vld [vmem:[%s3229 + $0x2e4] sm:$0xf]
  %v3416 = vld [vmem:[%s3229 + $0x2e8] sm:$0xf]
  %v3417 = vld [vmem:[%s3229 + $0x2ec] sm:$0xf]
  %v3418 = vld [vmem:[%s3229 + $0x2f0] sm:$0xf]
  %v3419 = vld [vmem:[%s3229 + $0x2f4] sm:$0xf]
  %v3420 = vld [vmem:[%s3229 + $0x2f8] sm:$0xf]
  %v3421 = vld [vmem:[%s3229 + $0x2fc] sm:$0xf]
  %v3422 = vld [vmem:[%s3229 + $0x300] sm:$0xf]
  %v3423 = vld [vmem:[%s3229 + $0x304] sm:$0xf]
  %v3424 = vld [vmem:[%s3229 + $0x308] sm:$0xf]
  %v3425 = vld [vmem:[%s3229 + $0x30c] sm:$0xf]
  %v3622 = vunpack.c.l.b16 %v3230
  %v3623 = vunpack.c.l.b16 %v3231
  %v3624 = vunpack.c.l.b16 %v3232
  %v3625 = vunpack.c.l.b16 %v3233
  %v3626 = vunpack.c.l.b16 %v3234
  %v3627 = vunpack.c.l.b16 %v3235
  %v3628 = vunpack.c.l.b16 %v3236
  %v3629 = vunpack.c.l.b16 %v3237
  %v3630 = vunpack.c.l.b16 %v3238
  %v3631 = vunpack.c.l.b16 %v3239
  %v3632 = vunpack.c.l.b16 %v3240
  %v3633 = vunpack.c.l.b16 %v3241
  %v3634 = vunpack.c.l.b16 %v3242
  %v3635 = vunpack.c.l.b16 %v3243
  %v3636 = vunpack.c.l.b16 %v3244
  %v3637 = vunpack.c.l.b16 %v3245
  %v3638 = vunpack.c.l.b16 %v3246
  %v3639 = vunpack.c.l.b16 %v3247
  %v3640 = vunpack.c.l.b16 %v3248
  %v3641 = vunpack.c.l.b16 %v3249
  %v3642 = vunpack.c.l.b16 %v3250
  %v3643 = vunpack.c.l.b16 %v3251
  %v3644 = vunpack.c.l.b16 %v3252
  %v3645 = vunpack.c.l.b16 %v3253
  %v3646 = vunpack.c.l.b16 %v3254
  %v3647 = vunpack.c.l.b16 %v3255
  %v3648 = vunpack.c.l.b16 %v3256
  %v3649 = vunpack.c.l.b16 %v3257
  %v3650 = vunpack.c.l.b16 %v3258
  %v3651 = vunpack.c.l.b16 %v3259
  %v3652 = vunpack.c.l.b16 %v3260
  %v3653 = vunpack.c.l.b16 %v3261
  %v3654 = vunpack.c.l.b16 %v3262
  %v3655 = vunpack.c.l.b16 %v3263
  %v3656 = vunpack.c.l.b16 %v3264
  %v3657 = vunpack.c.l.b16 %v3265
  %v3658 = vunpack.c.l.b16 %v3266
  %v3659 = vunpack.c.l.b16 %v3267
  %v3660 = vunpack.c.l.b16 %v3268
  %v3661 = vunpack.c.l.b16 %v3269
  %v3662 = vunpack.c.l.b16 %v3270
  %v3663 = vunpack.c.l.b16 %v3271
  %v3664 = vunpack.c.l.b16 %v3272
  %v3665 = vunpack.c.l.b16 %v3273
  %v3666 = vunpack.c.l.b16 %v3274
  %v3667 = vunpack.c.l.b16 %v3275
  %v3668 = vunpack.c.l.b16 %v3276
  %v3669 = vunpack.c.l.b16 %v3277
  %v3670 = vunpack.c.l.b16 %v3278
  %v3671 = vunpack.c.l.b16 %v3279
  %v3672 = vunpack.c.l.b16 %v3280
  %v3673 = vunpack.c.l.b16 %v3281
  %v3674 = vunpack.c.l.b16 %v3282
  %v3675 = vunpack.c.l.b16 %v3283
  %v3676 = vunpack.c.l.b16 %v3284
  %v3677 = vunpack.c.l.b16 %v3285
  %v3678 = vunpack.c.l.b16 %v3286
  %v3679 = vunpack.c.l.b16 %v3287
  %v3680 = vunpack.c.l.b16 %v3288
  %v3681 = vunpack.c.l.b16 %v3289
  %v3682 = vunpack.c.l.b16 %v3290
  %v3683 = vunpack.c.l.b16 %v3291
  %v3684 = vunpack.c.l.b16 %v3292
  %v3685 = vunpack.c.l.b16 %v3293
  %v3686 = vunpack.c.l.b16 %v3294
  %v3687 = vunpack.c.l.b16 %v3295
  %v3688 = vunpack.c.l.b16 %v3296
  %v3689 = vunpack.c.l.b16 %v3297
  %v3690 = vunpack.c.l.b16 %v3298
  %v3691 = vunpack.c.l.b16 %v3299
  %v3692 = vunpack.c.l.b16 %v3300
  %v3693 = vunpack.c.l.b16 %v3301
  %v3694 = vunpack.c.l.b16 %v3302
  %v3695 = vunpack.c.l.b16 %v3303
  %v3696 = vunpack.c.l.b16 %v3304
  %v3697 = vunpack.c.l.b16 %v3305
  %v3698 = vunpack.c.l.b16 %v3306
  %v3699 = vunpack.c.l.b16 %v3307
  %v3700 = vunpack.c.l.b16 %v3308
  %v3701 = vunpack.c.l.b16 %v3309
  %v3702 = vunpack.c.l.b16 %v3310
  %v3703 = vunpack.c.l.b16 %v3311
  %v3704 = vunpack.c.l.b16 %v3312
  %v3705 = vunpack.c.l.b16 %v3313
  %v3706 = vunpack.c.l.b16 %v3314
  %v3707 = vunpack.c.l.b16 %v3315
  %v3708 = vunpack.c.l.b16 %v3316
  %v3709 = vunpack.c.l.b16 %v3317
  %v3710 = vunpack.c.l.b16 %v3318
  %v3711 = vunpack.c.l.b16 %v3319
  %v3712 = vunpack.c.l.b16 %v3320
  %v3713 = vunpack.c.l.b16 %v3321
  %v3714 = vunpack.c.l.b16 %v3322
  %v3715 = vunpack.c.l.b16 %v3323
  %v3716 = vunpack.c.l.b16 %v3324
  %v3717 = vunpack.c.l.b16 %v3325
  %v3718 = vunpack.c.l.b16 %v3326
  %v3719 = vunpack.c.l.b16 %v3327
  %v3720 = vunpack.c.l.b16 %v3328
  %v3721 = vunpack.c.l.b16 %v3329
  %v3722 = vunpack.c.l.b16 %v3330
  %v3723 = vunpack.c.l.b16 %v3331
  %v3724 = vunpack.c.l.b16 %v3332
  %v3725 = vunpack.c.l.b16 %v3333
  %v3726 = vunpack.c.l.b16 %v3334
  %v3727 = vunpack.c.l.b16 %v3335
  %v3728 = vunpack.c.l.b16 %v3336
  %v3729 = vunpack.c.l.b16 %v3337
  %v3730 = vunpack.c.l.b16 %v3338
  %v3731 = vunpack.c.l.b16 %v3339
  %v3732 = vunpack.c.l.b16 %v3340
  %v3733 = vunpack.c.l.b16 %v3341
  %v3734 = vunpack.c.l.b16 %v3342
  %v3735 = vunpack.c.l.b16 %v3343
  %v3736 = vunpack.c.l.b16 %v3344
  %v3737 = vunpack.c.l.b16 %v3345
  %v3738 = vunpack.c.l.b16 %v3346
  %v3739 = vunpack.c.l.b16 %v3347
  %v3740 = vunpack.c.l.b16 %v3348
  %v3741 = vunpack.c.l.b16 %v3349
  %v3742 = vunpack.c.l.b16 %v3350
  %v3743 = vunpack.c.l.b16 %v3351
  %v3744 = vunpack.c.l.b16 %v3352
  %v3745 = vunpack.c.l.b16 %v3353
  %v3746 = vunpack.c.l.b16 %v3354
  %v3747 = vunpack.c.l.b16 %v3355
  %v3748 = vunpack.c.l.b16 %v3356
  %v3749 = vunpack.c.l.b16 %v3357
  %v3750 = vunpack.c.l.b16 %v3358
  %v3751 = vunpack.c.l.b16 %v3359
  %v3752 = vunpack.c.l.b16 %v3360
  %v3753 = vunpack.c.l.b16 %v3361
  %v3754 = vunpack.c.l.b16 %v3362
  %v3755 = vunpack.c.l.b16 %v3363
  %v3756 = vunpack.c.l.b16 %v3364
  %v3757 = vunpack.c.l.b16 %v3365
  %v3758 = vunpack.c.l.b16 %v3366
  %v3759 = vunpack.c.l.b16 %v3367
  %v3760 = vunpack.c.l.b16 %v3368
  %v3761 = vunpack.c.l.b16 %v3369
  %v3762 = vunpack.c.l.b16 %v3370
  %v3763 = vunpack.c.l.b16 %v3371
  %v3764 = vunpack.c.l.b16 %v3372
  %v3765 = vunpack.c.l.b16 %v3373
  %v3766 = vunpack.c.l.b16 %v3374
  %v3767 = vunpack.c.l.b16 %v3375
  %v3768 = vunpack.c.l.b16 %v3376
  %v3769 = vunpack.c.l.b16 %v3377
  %v3770 = vunpack.c.l.b16 %v3378
  %v3771 = vunpack.c.l.b16 %v3379
  %v3772 = vunpack.c.l.b16 %v3380
  %v3773 = vunpack.c.l.b16 %v3381
  %v3774 = vunpack.c.l.b16 %v3382
  %v3775 = vunpack.c.l.b16 %v3383
  %v3776 = vunpack.c.l.b16 %v3384
  %v3777 = vunpack.c.l.b16 %v3385
  %v3778 = vunpack.c.l.b16 %v3386
  %v3779 = vunpack.c.l.b16 %v3387
  %v3780 = vunpack.c.l.b16 %v3388
  %v3781 = vunpack.c.l.b16 %v3389
  %v3782 = vunpack.c.l.b16 %v3390
  %v3783 = vunpack.c.l.b16 %v3391
  %v3784 = vunpack.c.l.b16 %v3392
  %v3785 = vunpack.c.l.b16 %v3393
  %v3786 = vunpack.c.l.b16 %v3394
  %v3787 = vunpack.c.l.b16 %v3395
  %v3788 = vunpack.c.l.b16 %v3396
  %v3789 = vunpack.c.l.b16 %v3397
  %v3790 = vunpack.c.l.b16 %v3398
  %v3791 = vunpack.c.l.b16 %v3399
  %v3792 = vunpack.c.l.b16 %v3400
  %v3793 = vunpack.c.l.b16 %v3401
  %v3794 = vunpack.c.l.b16 %v3402
  %v3795 = vunpack.c.l.b16 %v3403
  %v3796 = vunpack.c.l.b16 %v3404
  %v3797 = vunpack.c.l.b16 %v3405
  %v3798 = vunpack.c.l.b16 %v3406
  %v3799 = vunpack.c.l.b16 %v3407
  %v3800 = vunpack.c.l.b16 %v3408
  %v3801 = vunpack.c.l.b16 %v3409
  %v3802 = vunpack.c.l.b16 %v3410
  %v3803 = vunpack.c.l.b16 %v3411
  %v3804 = vunpack.c.l.b16 %v3412
  %v3805 = vunpack.c.l.b16 %v3413
  %v3806 = vunpack.c.l.b16 %v3414
  %v3807 = vunpack.c.l.b16 %v3415
  %v3808 = vunpack.c.l.b16 %v3416
  %v3809 = vunpack.c.l.b16 %v3417
  %v3810 = vunpack.c.l.b16 %v3418
  %v3811 = vunpack.c.l.b16 %v3419
  %v3812 = vunpack.c.l.b16 %v3420
  %v3813 = vunpack.c.l.b16 %v3421
  %v3814 = vunpack.c.l.b16 %v3422
  %v3815 = vunpack.c.l.b16 %v3423
  %v3816 = vunpack.c.l.b16 %v3424
  %v3817 = vunpack.c.l.b16 %v3425
  %v3818 = vpack.c.b16 %v3623, %v3622
  %v3819 = vpack.c.b16 %v3625, %v3624
  %v3820 = vpack.c.b16 %v3627, %v3626
  %v3821 = vpack.c.b16 %v3629, %v3628
  %v3822 = vpack.c.b16 %v3631, %v3630
  %v3823 = vpack.c.b16 %v3633, %v3632
  %v3824 = vpack.c.b16 %v3635, %v3634
  %v3825 = vpack.c.b16 %v3637, %v3636
  %v3826 = vpack.c.b16 %v3639, %v3638
  %v3827 = vpack.c.b16 %v3641, %v3640
  %v3828 = vpack.c.b16 %v3643, %v3642
  %v3829 = vpack.c.b16 %v3645, %v3644
  %v3830 = vpack.c.b16 %v3647, %v3646
  %v3831 = vpack.c.b16 %v3649, %v3648
  %v3832 = vpack.c.b16 %v3651, %v3650
  %v3833 = vpack.c.b16 %v3653, %v3652
  %v3834 = vpack.c.b16 %v3655, %v3654
  %v3835 = vpack.c.b16 %v3657, %v3656
  %v3836 = vpack.c.b16 %v3659, %v3658
  %v3837 = vpack.c.b16 %v3661, %v3660
  %v3838 = vpack.c.b16 %v3663, %v3662
  %v3839 = vpack.c.b16 %v3665, %v3664
  %v3840 = vpack.c.b16 %v3667, %v3666
  %v3841 = vpack.c.b16 %v3669, %v3668
  %v3842 = vpack.c.b16 %v3671, %v3670
  %v3843 = vpack.c.b16 %v3673, %v3672
  %v3844 = vpack.c.b16 %v3675, %v3674
  %v3845 = vpack.c.b16 %v3677, %v3676
  %v3846 = vpack.c.b16 %v3679, %v3678
  %v3847 = vpack.c.b16 %v3681, %v3680
  %v3848 = vpack.c.b16 %v3683, %v3682
  %v3849 = vpack.c.b16 %v3685, %v3684
  %v3850 = vpack.c.b16 %v3687, %v3686
  %v3851 = vpack.c.b16 %v3689, %v3688
  %v3852 = vpack.c.b16 %v3691, %v3690
  %v3853 = vpack.c.b16 %v3693, %v3692
  %v3854 = vpack.c.b16 %v3695, %v3694
  %v3855 = vpack.c.b16 %v3697, %v3696
  %v3856 = vpack.c.b16 %v3699, %v3698
  %v3857 = vpack.c.b16 %v3701, %v3700
  %v3858 = vpack.c.b16 %v3703, %v3702
  %v3859 = vpack.c.b16 %v3705, %v3704
  %v3860 = vpack.c.b16 %v3707, %v3706
  %v3861 = vpack.c.b16 %v3709, %v3708
  %v3862 = vpack.c.b16 %v3711, %v3710
  %v3863 = vpack.c.b16 %v3713, %v3712
  %v3864 = vpack.c.b16 %v3715, %v3714
  %v3865 = vpack.c.b16 %v3717, %v3716
  %v3866 = vpack.c.b16 %v3719, %v3718
  %v3867 = vpack.c.b16 %v3721, %v3720
  %v3868 = vpack.c.b16 %v3723, %v3722
  %v3869 = vpack.c.b16 %v3725, %v3724
  %v3870 = vpack.c.b16 %v3727, %v3726
  %v3871 = vpack.c.b16 %v3729, %v3728
  %v3872 = vpack.c.b16 %v3731, %v3730
  %v3873 = vpack.c.b16 %v3733, %v3732
  %v3874 = vpack.c.b16 %v3735, %v3734
  %v3875 = vpack.c.b16 %v3737, %v3736
  %v3876 = vpack.c.b16 %v3739, %v3738
  %v3877 = vpack.c.b16 %v3741, %v3740
  %v3878 = vpack.c.b16 %v3743, %v3742
  %v3879 = vpack.c.b16 %v3745, %v3744
  %v3880 = vpack.c.b16 %v3747, %v3746
  %v3881 = vpack.c.b16 %v3749, %v3748
  %v3882 = vpack.c.b16 %v3751, %v3750
  %v3883 = vpack.c.b16 %v3753, %v3752
  %v3884 = vpack.c.b16 %v3755, %v3754
  %v3885 = vpack.c.b16 %v3757, %v3756
  %v3886 = vpack.c.b16 %v3759, %v3758
  %v3887 = vpack.c.b16 %v3761, %v3760
  %v3888 = vpack.c.b16 %v3763, %v3762
  %v3889 = vpack.c.b16 %v3765, %v3764
  %v3890 = vpack.c.b16 %v3767, %v3766
  %v3891 = vpack.c.b16 %v3769, %v3768
  %v3892 = vpack.c.b16 %v3771, %v3770
  %v3893 = vpack.c.b16 %v3773, %v3772
  %v3894 = vpack.c.b16 %v3775, %v3774
  %v3895 = vpack.c.b16 %v3777, %v3776
  %v3896 = vpack.c.b16 %v3779, %v3778
  %v3897 = vpack.c.b16 %v3781, %v3780
  %v3898 = vpack.c.b16 %v3783, %v3782
  %v3899 = vpack.c.b16 %v3785, %v3784
  %v3900 = vpack.c.b16 %v3787, %v3786
  %v3901 = vpack.c.b16 %v3789, %v3788
  %v3902 = vpack.c.b16 %v3791, %v3790
  %v3903 = vpack.c.b16 %v3793, %v3792
  %v3904 = vpack.c.b16 %v3795, %v3794
  %v3905 = vpack.c.b16 %v3797, %v3796
  %v3906 = vpack.c.b16 %v3799, %v3798
  %v3907 = vpack.c.b16 %v3801, %v3800
  %v3908 = vpack.c.b16 %v3803, %v3802
  %v3909 = vpack.c.b16 %v3805, %v3804
  %v3910 = vpack.c.b16 %v3807, %v3806
  %v3911 = vpack.c.b16 %v3809, %v3808
  %v3912 = vpack.c.b16 %v3811, %v3810
  %v3913 = vpack.c.b16 %v3813, %v3812
  %v3914 = vpack.c.b16 %v3815, %v3814
  %v3915 = vpack.c.b16 %v3817, %v3816
  %v3917 = vsel %vm752, %v3818, 0
  %v3920 = vsel %vm752, %v3819, 0
  %v3923 = vsel %vm752, %v3820, 0
  %v3926 = vsel %vm752, %v3821, 0
  %v3929 = vsel %vm752, %v3822, 0
  %v3932 = vsel %vm752, %v3823, 0
  %v3935 = vsel %vm752, %v3824, 0
  %v3938 = vsel %vm752, %v3825, 0
  %v3941 = vsel %vm752, %v3826, 0
  %v3944 = vsel %vm752, %v3827, 0
  %v3947 = vsel %vm752, %v3828, 0
  %v3950 = vsel %vm752, %v3829, 0
  %v3953 = vsel %vm752, %v3830, 0
  %v3956 = vsel %vm752, %v3831, 0
  %v3959 = vsel %vm752, %v3832, 0
  %v3962 = vsel %vm752, %v3833, 0
  %v3965 = vsel %vm752, %v3834, 0
  %v3968 = vsel %vm752, %v3835, 0
  %v3971 = vsel %vm752, %v3836, 0
  %v3974 = vsel %vm752, %v3837, 0
  %v3977 = vsel %vm752, %v3838, 0
  %v3980 = vsel %vm752, %v3839, 0
  %v3983 = vsel %vm752, %v3840, 0
  %v3986 = vsel %vm752, %v3841, 0
  %v3989 = vsel %vm752, %v3842, 0
  %v3992 = vsel %vm752, %v3843, 0
  %v3995 = vsel %vm752, %v3844, 0
  %v3998 = vsel %vm752, %v3845, 0
  %v4001 = vsel %vm752, %v3846, 0
  %v4004 = vsel %vm752, %v3847, 0
  %v4007 = vsel %vm752, %v3848, 0
  %v4010 = vsel %vm752, %v3849, 0
  %v4013 = vsel %vm752, %v3850, 0
  %v4016 = vsel %vm752, %v3851, 0
  %v4019 = vsel %vm752, %v3852, 0
  %v4022 = vsel %vm752, %v3853, 0
  %v4025 = vsel %vm752, %v3854, 0
  %v4028 = vsel %vm752, %v3855, 0
  %v4031 = vsel %vm752, %v3856, 0
  %v4034 = vsel %vm752, %v3857, 0
  %v4037 = vsel %vm752, %v3858, 0
  %v4040 = vsel %vm752, %v3859, 0
  %v4043 = vsel %vm752, %v3860, 0
  %v4046 = vsel %vm752, %v3861, 0
  %v4049 = vsel %vm752, %v3862, 0
  %v4052 = vsel %vm752, %v3863, 0
  %v4055 = vsel %vm752, %v3864, 0
  %v4058 = vsel %vm752, %v3865, 0
  %v4061 = vsel %vm752, %v3866, 0
  %v4064 = vsel %vm752, %v3867, 0
  %v4067 = vsel %vm752, %v3868, 0
  %v4070 = vsel %vm752, %v3869, 0
  %v4073 = vsel %vm752, %v3870, 0
  %v4076 = vsel %vm752, %v3871, 0
  %v4079 = vsel %vm752, %v3872, 0
  %v4082 = vsel %vm752, %v3873, 0
  %v4085 = vsel %vm752, %v3874, 0
  %v4088 = vsel %vm752, %v3875, 0
  %v4091 = vsel %vm752, %v3876, 0
  %v4094 = vsel %vm752, %v3877, 0
  %v4097 = vsel %vm752, %v3878, 0
  %v4100 = vsel %vm752, %v3879, 0
  %v4103 = vsel %vm752, %v3880, 0
  %v4106 = vsel %vm752, %v3881, 0
  %v4109 = vsel %vm752, %v3882, 0
  %v4112 = vsel %vm752, %v3883, 0
  %v4115 = vsel %vm752, %v3884, 0
  %v4118 = vsel %vm752, %v3885, 0
  %v4121 = vsel %vm752, %v3886, 0
  %v4124 = vsel %vm752, %v3887, 0
  %v4127 = vsel %vm752, %v3888, 0
  %v4130 = vsel %vm752, %v3889, 0
  %v4133 = vsel %vm752, %v3890, 0
  %v4136 = vsel %vm752, %v3891, 0
  %v4139 = vsel %vm752, %v3892, 0
  %v4142 = vsel %vm752, %v3893, 0
  %v4145 = vsel %vm752, %v3894, 0
  %v4148 = vsel %vm752, %v3895, 0
  %v4151 = vsel %vm752, %v3896, 0
  %v4154 = vsel %vm752, %v3897, 0
  %v4157 = vsel %vm752, %v3898, 0
  %v4160 = vsel %vm752, %v3899, 0
  %v4163 = vsel %vm752, %v3900, 0
  %v4166 = vsel %vm752, %v3901, 0
  %v4169 = vsel %vm752, %v3902, 0
  %v4172 = vsel %vm752, %v3903, 0
  %v4175 = vsel %vm752, %v3904, 0
  %v4178 = vsel %vm752, %v3905, 0
  %v4181 = vsel %vm752, %v3906, 0
  %v4184 = vsel %vm752, %v3907, 0
  %v4187 = vsel %vm752, %v3908, 0
  %v4190 = vsel %vm752, %v3909, 0
  %v4193 = vsel %vm752, %v3910, 0
  %v4196 = vsel %vm752, %v3911, 0
  %v4199 = vsel %vm752, %v3912, 0
  %v4202 = vsel %vm752, %v3913, 0
  %v4205 = vsel %vm752, %v3914, 0
  %v4208 = vsel %vm752, %v3915, 0
  %4210 = vmatpush.bf16.msra.mxu0 0
  %4211 = vmatpush.bf16.msra.mxu0 0
  %4212 = vmatpush.bf16.msra.mxu0 0
  %4213 = vmatpush.bf16.msra.mxu0 %v1052
  %4214 = vmatpush.bf16.msra.mxu0 %v746
  %4215 = vmatpush.bf16.msra.mxu0 %v745
  %4216 = vmatpush.bf16.msra.mxu0 %v744
  %4217 = vmatpush.bf16.msra.mxu0 %v743
  %4218 = vmatmul.bf16.gmra.mxu0 %v3917
  %v4219 = vpop.f32.mrf.mxu0
  %v4220 = vadd.f32 0.0, %v4219
  %v4221 = vpop.f32.mrf.mxu0
  %v4222 = vadd.f32 0.0, %v4221
  %4223 = vmatmul.bf16.gmra.mxu0 %v3920
  %v4224 = vpop.f32.mrf.mxu0
  %v4225 = vadd.f32 0.0, %v4224
  %v4226 = vpop.f32.mrf.mxu0
  %v4227 = vadd.f32 0.0, %v4226
  %4228 = vmatmul.bf16.gmra.mxu0 %v3923
  %v4229 = vpop.f32.mrf.mxu0
  %v4230 = vadd.f32 0.0, %v4229
  %v4231 = vpop.f32.mrf.mxu0
  %v4232 = vadd.f32 0.0, %v4231
  %4233 = vmatmul.bf16.gmra.mxu0 %v3926
  %v4234 = vpop.f32.mrf.mxu0
  %v4235 = vadd.f32 0.0, %v4234
  %v4236 = vpop.f32.mrf.mxu0
  %v4237 = vadd.f32 0.0, %v4236
  %4238 = vmatmul.bf16.gmra.mxu0 %v3929
  %v4239 = vpop.f32.mrf.mxu0
  %v4240 = vadd.f32 0.0, %v4239
  %v4241 = vpop.f32.mrf.mxu0
  %v4242 = vadd.f32 0.0, %v4241
  %4243 = vmatmul.bf16.gmra.mxu0 %v3932
  %v4244 = vpop.f32.mrf.mxu0
  %v4245 = vadd.f32 0.0, %v4244
  %v4246 = vpop.f32.mrf.mxu0
  %v4247 = vadd.f32 0.0, %v4246
  %4248 = vmatmul.bf16.gmra.mxu0 %v3935
  %v4249 = vpop.f32.mrf.mxu0
  %v4250 = vadd.f32 0.0, %v4249
  %v4251 = vpop.f32.mrf.mxu0
  %v4252 = vadd.f32 0.0, %v4251
  %4253 = vmatmul.bf16.gmra.mxu0 %v3938
  %v4254 = vpop.f32.mrf.mxu0
  %v4255 = vadd.f32 0.0, %v4254
  %v4256 = vpop.f32.mrf.mxu0
  %v4257 = vadd.f32 0.0, %v4256
  %4258 = vmatmul.bf16.gmra.mxu0 %v3941
  %v4259 = vpop.f32.mrf.mxu0
  %v4260 = vadd.f32 0.0, %v4259
  %v4261 = vpop.f32.mrf.mxu0
  %v4262 = vadd.f32 0.0, %v4261
  %4263 = vmatmul.bf16.gmra.mxu0 %v3944
  %v4264 = vpop.f32.mrf.mxu0
  %v4265 = vadd.f32 0.0, %v4264
  %v4266 = vpop.f32.mrf.mxu0
  %v4267 = vadd.f32 0.0, %v4266
  %4268 = vmatmul.bf16.gmra.mxu0 %v3947
  %v4269 = vpop.f32.mrf.mxu0
  %v4270 = vadd.f32 0.0, %v4269
  %v4271 = vpop.f32.mrf.mxu0
  %v4272 = vadd.f32 0.0, %v4271
  %4273 = vmatmul.bf16.gmra.mxu0 %v3950
  %v4274 = vpop.f32.mrf.mxu0
  %v4275 = vadd.f32 0.0, %v4274
  %v4276 = vpop.f32.mrf.mxu0
  %v4277 = vadd.f32 0.0, %v4276
  %4278 = vmatmul.bf16.gmra.mxu0 %v3953
  %v4279 = vpop.f32.mrf.mxu0
  %v4280 = vadd.f32 0.0, %v4279
  %v4281 = vpop.f32.mrf.mxu0
  %v4282 = vadd.f32 0.0, %v4281
  %4283 = vmatmul.bf16.gmra.mxu0 %v3956
  %v4284 = vpop.f32.mrf.mxu0
  %v4285 = vadd.f32 0.0, %v4284
  %v4286 = vpop.f32.mrf.mxu0
  %v4287 = vadd.f32 0.0, %v4286
  %4288 = vmatmul.bf16.gmra.mxu0 %v3959
  %v4289 = vpop.f32.mrf.mxu0
  %v4290 = vadd.f32 0.0, %v4289
  %v4291 = vpop.f32.mrf.mxu0
  %v4292 = vadd.f32 0.0, %v4291
  %4293 = vmatmul.bf16.gmra.mxu0 %v3962
  %v4294 = vpop.f32.mrf.mxu0
  %v4295 = vadd.f32 0.0, %v4294
  %v4296 = vpop.f32.mrf.mxu0
  %v4297 = vadd.f32 0.0, %v4296
  %4298 = vmatmul.bf16.gmra.mxu0 %v3965
  %v4299 = vpop.f32.mrf.mxu0
  %v4300 = vadd.f32 0.0, %v4299
  %v4301 = vpop.f32.mrf.mxu0
  %v4302 = vadd.f32 0.0, %v4301
  %4303 = vmatmul.bf16.gmra.mxu0 %v3968
  %v4304 = vpop.f32.mrf.mxu0
  %v4305 = vadd.f32 0.0, %v4304
  %v4306 = vpop.f32.mrf.mxu0
  %v4307 = vadd.f32 0.0, %v4306
  %4308 = vmatmul.bf16.gmra.mxu0 %v3971
  %v4309 = vpop.f32.mrf.mxu0
  %v4310 = vadd.f32 0.0, %v4309
  %v4311 = vpop.f32.mrf.mxu0
  %v4312 = vadd.f32 0.0, %v4311
  %4313 = vmatmul.bf16.gmra.mxu0 %v3974
  %v4314 = vpop.f32.mrf.mxu0
  %v4315 = vadd.f32 0.0, %v4314
  %v4316 = vpop.f32.mrf.mxu0
  %v4317 = vadd.f32 0.0, %v4316
  %4318 = vmatmul.bf16.gmra.mxu0 %v3977
  %v4319 = vpop.f32.mrf.mxu0
  %v4320 = vadd.f32 0.0, %v4319
  %v4321 = vpop.f32.mrf.mxu0
  %v4322 = vadd.f32 0.0, %v4321
  %4323 = vmatmul.bf16.gmra.mxu0 %v3980
  %v4324 = vpop.f32.mrf.mxu0
  %v4325 = vadd.f32 0.0, %v4324
  %v4326 = vpop.f32.mrf.mxu0
  %v4327 = vadd.f32 0.0, %v4326
  %4328 = vmatmul.bf16.gmra.mxu0 %v3983
  %v4329 = vpop.f32.mrf.mxu0
  %v4330 = vadd.f32 0.0, %v4329
  %v4331 = vpop.f32.mrf.mxu0
  %v4332 = vadd.f32 0.0, %v4331
  %4333 = vmatmul.bf16.gmra.mxu0 %v3986
  %v4334 = vpop.f32.mrf.mxu0
  %v4335 = vadd.f32 0.0, %v4334
  %v4336 = vpop.f32.mrf.mxu0
  %v4337 = vadd.f32 0.0, %v4336
  %4338 = vmatmul.bf16.gmra.mxu0 %v3989
  %v4339 = vpop.f32.mrf.mxu0
  %v4340 = vadd.f32 0.0, %v4339
  %v4341 = vpop.f32.mrf.mxu0
  %v4342 = vadd.f32 0.0, %v4341
  %4343 = vmatmul.bf16.gmra.mxu0 %v3992
  %v4344 = vpop.f32.mrf.mxu0
  %v4345 = vadd.f32 0.0, %v4344
  %v4346 = vpop.f32.mrf.mxu0
  %v4347 = vadd.f32 0.0, %v4346
  %4348 = vmatmul.bf16.gmra.mxu0 %v3995
  %v4349 = vpop.f32.mrf.mxu0
  %v4350 = vadd.f32 0.0, %v4349
  %v4351 = vpop.f32.mrf.mxu0
  %v4352 = vadd.f32 0.0, %v4351
  %4353 = vmatmul.bf16.gmra.mxu0 %v3998
  %v4354 = vpop.f32.mrf.mxu0
  %v4355 = vadd.f32 0.0, %v4354
  %v4356 = vpop.f32.mrf.mxu0
  %v4357 = vadd.f32 0.0, %v4356
  %4358 = vmatmul.bf16.gmra.mxu0 %v4001
  %v4359 = vpop.f32.mrf.mxu0
  %v4360 = vadd.f32 0.0, %v4359
  %v4361 = vpop.f32.mrf.mxu0
  %v4362 = vadd.f32 0.0, %v4361
  %4363 = vmatmul.bf16.gmra.mxu0 %v4004
  %v4364 = vpop.f32.mrf.mxu0
  %v4365 = vadd.f32 0.0, %v4364
  %v4366 = vpop.f32.mrf.mxu0
  %v4367 = vadd.f32 0.0, %v4366
  %4368 = vmatmul.bf16.gmra.mxu0 %v4007
  %v4369 = vpop.f32.mrf.mxu0
  %v4370 = vadd.f32 0.0, %v4369
  %v4371 = vpop.f32.mrf.mxu0
  %v4372 = vadd.f32 0.0, %v4371
  %4373 = vmatmul.bf16.gmra.mxu0 %v4010
  %v4374 = vpop.f32.mrf.mxu0
  %v4375 = vadd.f32 0.0, %v4374
  %v4376 = vpop.f32.mrf.mxu0
  %v4377 = vadd.f32 0.0, %v4376
  %4378 = vmatmul.bf16.gmra.mxu0 %v4013
  %v4379 = vpop.f32.mrf.mxu0
  %v4380 = vadd.f32 0.0, %v4379
  %v4381 = vpop.f32.mrf.mxu0
  %v4382 = vadd.f32 0.0, %v4381
  %4383 = vmatmul.bf16.gmra.mxu0 %v4016
  %v4384 = vpop.f32.mrf.mxu0
  %v4385 = vadd.f32 0.0, %v4384
  %v4386 = vpop.f32.mrf.mxu0
  %v4387 = vadd.f32 0.0, %v4386
  %4388 = vmatmul.bf16.gmra.mxu0 %v4019
  %v4389 = vpop.f32.mrf.mxu0
  %v4390 = vadd.f32 0.0, %v4389
  %v4391 = vpop.f32.mrf.mxu0
  %v4392 = vadd.f32 0.0, %v4391
  %4393 = vmatmul.bf16.gmra.mxu0 %v4022
  %v4394 = vpop.f32.mrf.mxu0
  %v4395 = vadd.f32 0.0, %v4394
  %v4396 = vpop.f32.mrf.mxu0
  %v4397 = vadd.f32 0.0, %v4396
  %4398 = vmatmul.bf16.gmra.mxu0 %v4025
  %v4399 = vpop.f32.mrf.mxu0
  %v4400 = vadd.f32 0.0, %v4399
  %v4401 = vpop.f32.mrf.mxu0
  %v4402 = vadd.f32 0.0, %v4401
  %4403 = vmatmul.bf16.gmra.mxu0 %v4028
  %v4404 = vpop.f32.mrf.mxu0
  %v4405 = vadd.f32 0.0, %v4404
  %v4406 = vpop.f32.mrf.mxu0
  %v4407 = vadd.f32 0.0, %v4406
  %4408 = vmatmul.bf16.gmra.mxu0 %v4031
  %v4409 = vpop.f32.mrf.mxu0
  %v4410 = vadd.f32 0.0, %v4409
  %v4411 = vpop.f32.mrf.mxu0
  %v4412 = vadd.f32 0.0, %v4411
  %4413 = vmatmul.bf16.gmra.mxu0 %v4034
  %v4414 = vpop.f32.mrf.mxu0
  %v4415 = vadd.f32 0.0, %v4414
  %v4416 = vpop.f32.mrf.mxu0
  %v4417 = vadd.f32 0.0, %v4416
  %4418 = vmatmul.bf16.gmra.mxu0 %v4037
  %v4419 = vpop.f32.mrf.mxu0
  %v4420 = vadd.f32 0.0, %v4419
  %v4421 = vpop.f32.mrf.mxu0
  %v4422 = vadd.f32 0.0, %v4421
  %4423 = vmatmul.bf16.gmra.mxu0 %v4040
  %v4424 = vpop.f32.mrf.mxu0
  %v4425 = vadd.f32 0.0, %v4424
  %v4426 = vpop.f32.mrf.mxu0
  %v4427 = vadd.f32 0.0, %v4426
  %4428 = vmatmul.bf16.gmra.mxu0 %v4043
  %v4429 = vpop.f32.mrf.mxu0
  %v4430 = vadd.f32 0.0, %v4429
  %v4431 = vpop.f32.mrf.mxu0
  %v4432 = vadd.f32 0.0, %v4431
  %4433 = vmatmul.bf16.gmra.mxu0 %v4046
  %v4434 = vpop.f32.mrf.mxu0
  %v4435 = vadd.f32 0.0, %v4434
  %v4436 = vpop.f32.mrf.mxu0
  %v4437 = vadd.f32 0.0, %v4436
  %4438 = vmatmul.bf16.gmra.mxu0 %v4049
  %v4439 = vpop.f32.mrf.mxu0
  %v4440 = vadd.f32 0.0, %v4439
  %v4441 = vpop.f32.mrf.mxu0
  %v4442 = vadd.f32 0.0, %v4441
  %4443 = vmatmul.bf16.gmra.mxu0 %v4052
  %v4444 = vpop.f32.mrf.mxu0
  %v4445 = vadd.f32 0.0, %v4444
  %v4446 = vpop.f32.mrf.mxu0
  %v4447 = vadd.f32 0.0, %v4446
  %4448 = vmatmul.bf16.gmra.mxu0 %v4055
  %v4449 = vpop.f32.mrf.mxu0
  %v4450 = vadd.f32 0.0, %v4449
  %v4451 = vpop.f32.mrf.mxu0
  %v4452 = vadd.f32 0.0, %v4451
  %4453 = vmatmul.bf16.gmra.mxu0 %v4058
  %v4454 = vpop.f32.mrf.mxu0
  %v4455 = vadd.f32 0.0, %v4454
  %v4456 = vpop.f32.mrf.mxu0
  %v4457 = vadd.f32 0.0, %v4456
  %4458 = vmatmul.bf16.gmra.mxu0 %v4061
  %v4459 = vpop.f32.mrf.mxu0
  %v4460 = vadd.f32 0.0, %v4459
  %v4461 = vpop.f32.mrf.mxu0
  %v4462 = vadd.f32 0.0, %v4461
  %4463 = vmatmul.bf16.gmra.mxu0 %v4064
  %v4464 = vpop.f32.mrf.mxu0
  %v4465 = vadd.f32 0.0, %v4464
  %v4466 = vpop.f32.mrf.mxu0
  %v4467 = vadd.f32 0.0, %v4466
  %4468 = vmatmul.bf16.gmra.mxu0 %v4067
  %v4469 = vpop.f32.mrf.mxu0
  %v4470 = vadd.f32 0.0, %v4469
  %v4471 = vpop.f32.mrf.mxu0
  %v4472 = vadd.f32 0.0, %v4471
  %4473 = vmatmul.bf16.gmra.mxu0 %v4070
  %v4474 = vpop.f32.mrf.mxu0
  %v4475 = vadd.f32 0.0, %v4474
  %v4476 = vpop.f32.mrf.mxu0
  %v4477 = vadd.f32 0.0, %v4476
  %4478 = vmatmul.bf16.gmra.mxu0 %v4073
  %v4479 = vpop.f32.mrf.mxu0
  %v4480 = vadd.f32 0.0, %v4479
  %v4481 = vpop.f32.mrf.mxu0
  %v4482 = vadd.f32 0.0, %v4481
  %4483 = vmatmul.bf16.gmra.mxu0 %v4076
  %v4484 = vpop.f32.mrf.mxu0
  %v4485 = vadd.f32 0.0, %v4484
  %v4486 = vpop.f32.mrf.mxu0
  %v4487 = vadd.f32 0.0, %v4486
  %4488 = vmatmul.bf16.gmra.mxu0 %v4079
  %v4489 = vpop.f32.mrf.mxu0
  %v4490 = vadd.f32 0.0, %v4489
  %v4491 = vpop.f32.mrf.mxu0
  %v4492 = vadd.f32 0.0, %v4491
  %4493 = vmatmul.bf16.gmra.mxu0 %v4082
  %v4494 = vpop.f32.mrf.mxu0
  %v4495 = vadd.f32 0.0, %v4494
  %v4496 = vpop.f32.mrf.mxu0
  %v4497 = vadd.f32 0.0, %v4496
  %4498 = vmatmul.bf16.gmra.mxu0 %v4085
  %v4499 = vpop.f32.mrf.mxu0
  %v4500 = vadd.f32 0.0, %v4499
  %v4501 = vpop.f32.mrf.mxu0
  %v4502 = vadd.f32 0.0, %v4501
  %4503 = vmatmul.bf16.gmra.mxu0 %v4088
  %v4504 = vpop.f32.mrf.mxu0
  %v4505 = vadd.f32 0.0, %v4504
  %v4506 = vpop.f32.mrf.mxu0
  %v4507 = vadd.f32 0.0, %v4506
  %4508 = vmatmul.bf16.gmra.mxu0 %v4091
  %v4509 = vpop.f32.mrf.mxu0
  %v4510 = vadd.f32 0.0, %v4509
  %v4511 = vpop.f32.mrf.mxu0
  %v4512 = vadd.f32 0.0, %v4511
  %4513 = vmatmul.bf16.gmra.mxu0 %v4094
  %v4514 = vpop.f32.mrf.mxu0
  %v4515 = vadd.f32 0.0, %v4514
  %v4516 = vpop.f32.mrf.mxu0
  %v4517 = vadd.f32 0.0, %v4516
  %4518 = vmatmul.bf16.gmra.mxu0 %v4097
  %v4519 = vpop.f32.mrf.mxu0
  %v4520 = vadd.f32 0.0, %v4519
  %v4521 = vpop.f32.mrf.mxu0
  %v4522 = vadd.f32 0.0, %v4521
  %4523 = vmatmul.bf16.gmra.mxu0 %v4100
  %v4524 = vpop.f32.mrf.mxu0
  %v4525 = vadd.f32 0.0, %v4524
  %v4526 = vpop.f32.mrf.mxu0
  %v4527 = vadd.f32 0.0, %v4526
  %4528 = vmatmul.bf16.gmra.mxu0 %v4103
  %v4529 = vpop.f32.mrf.mxu0
  %v4530 = vadd.f32 0.0, %v4529
  %v4531 = vpop.f32.mrf.mxu0
  %v4532 = vadd.f32 0.0, %v4531
  %4533 = vmatmul.bf16.gmra.mxu0 %v4106
  %v4534 = vpop.f32.mrf.mxu0
  %v4535 = vadd.f32 0.0, %v4534
  %v4536 = vpop.f32.mrf.mxu0
  %v4537 = vadd.f32 0.0, %v4536
  %4538 = vmatmul.bf16.gmra.mxu0 %v4109
  %v4539 = vpop.f32.mrf.mxu0
  %v4540 = vadd.f32 0.0, %v4539
  %v4541 = vpop.f32.mrf.mxu0
  %v4542 = vadd.f32 0.0, %v4541
  %4543 = vmatmul.bf16.gmra.mxu0 %v4112
  %v4544 = vpop.f32.mrf.mxu0
  %v4545 = vadd.f32 0.0, %v4544
  %v4546 = vpop.f32.mrf.mxu0
  %v4547 = vadd.f32 0.0, %v4546
  %4548 = vmatmul.bf16.gmra.mxu0 %v4115
  %v4549 = vpop.f32.mrf.mxu0
  %v4550 = vadd.f32 0.0, %v4549
  %v4551 = vpop.f32.mrf.mxu0
  %v4552 = vadd.f32 0.0, %v4551
  %4553 = vmatmul.bf16.gmra.mxu0 %v4118
  %v4554 = vpop.f32.mrf.mxu0
  %v4555 = vadd.f32 0.0, %v4554
  %v4556 = vpop.f32.mrf.mxu0
  %v4557 = vadd.f32 0.0, %v4556
  %4558 = vmatmul.bf16.gmra.mxu0 %v4121
  %v4559 = vpop.f32.mrf.mxu0
  %v4560 = vadd.f32 0.0, %v4559
  %v4561 = vpop.f32.mrf.mxu0
  %v4562 = vadd.f32 0.0, %v4561
  %4563 = vmatmul.bf16.gmra.mxu0 %v4124
  %v4564 = vpop.f32.mrf.mxu0
  %v4565 = vadd.f32 0.0, %v4564
  %v4566 = vpop.f32.mrf.mxu0
  %v4567 = vadd.f32 0.0, %v4566
  %4568 = vmatmul.bf16.gmra.mxu0 %v4127
  %v4569 = vpop.f32.mrf.mxu0
  %v4570 = vadd.f32 0.0, %v4569
  %v4571 = vpop.f32.mrf.mxu0
  %v4572 = vadd.f32 0.0, %v4571
  %4573 = vmatmul.bf16.gmra.mxu0 %v4130
  %v4574 = vpop.f32.mrf.mxu0
  %v4575 = vadd.f32 0.0, %v4574
  %v4576 = vpop.f32.mrf.mxu0
  %v4577 = vadd.f32 0.0, %v4576
  %4578 = vmatmul.bf16.gmra.mxu0 %v4133
  %v4579 = vpop.f32.mrf.mxu0
  %v4580 = vadd.f32 0.0, %v4579
  %v4581 = vpop.f32.mrf.mxu0
  %v4582 = vadd.f32 0.0, %v4581
  %4583 = vmatmul.bf16.gmra.mxu0 %v4136
  %v4584 = vpop.f32.mrf.mxu0
  %v4585 = vadd.f32 0.0, %v4584
  %v4586 = vpop.f32.mrf.mxu0
  %v4587 = vadd.f32 0.0, %v4586
  %4588 = vmatmul.bf16.gmra.mxu0 %v4139
  %v4589 = vpop.f32.mrf.mxu0
  %v4590 = vadd.f32 0.0, %v4589
  %v4591 = vpop.f32.mrf.mxu0
  %v4592 = vadd.f32 0.0, %v4591
  %4593 = vmatmul.bf16.gmra.mxu0 %v4142
  %v4594 = vpop.f32.mrf.mxu0
  %v4595 = vadd.f32 0.0, %v4594
  %v4596 = vpop.f32.mrf.mxu0
  %v4597 = vadd.f32 0.0, %v4596
  %4598 = vmatmul.bf16.gmra.mxu0 %v4145
  %v4599 = vpop.f32.mrf.mxu0
  %v4600 = vadd.f32 0.0, %v4599
  %v4601 = vpop.f32.mrf.mxu0
  %v4602 = vadd.f32 0.0, %v4601
  %4603 = vmatmul.bf16.gmra.mxu0 %v4148
  %v4604 = vpop.f32.mrf.mxu0
  %v4605 = vadd.f32 0.0, %v4604
  %v4606 = vpop.f32.mrf.mxu0
  %v4607 = vadd.f32 0.0, %v4606
  %4608 = vmatmul.bf16.gmra.mxu0 %v4151
  %v4609 = vpop.f32.mrf.mxu0
  %v4610 = vadd.f32 0.0, %v4609
  %v4611 = vpop.f32.mrf.mxu0
  %v4612 = vadd.f32 0.0, %v4611
  %4613 = vmatmul.bf16.gmra.mxu0 %v4154
  %v4614 = vpop.f32.mrf.mxu0
  %v4615 = vadd.f32 0.0, %v4614
  %v4616 = vpop.f32.mrf.mxu0
  %v4617 = vadd.f32 0.0, %v4616
  %4618 = vmatmul.bf16.gmra.mxu0 %v4157
  %v4619 = vpop.f32.mrf.mxu0
  %v4620 = vadd.f32 0.0, %v4619
  %v4621 = vpop.f32.mrf.mxu0
  %v4622 = vadd.f32 0.0, %v4621
  %4623 = vmatmul.bf16.gmra.mxu0 %v4160
  %v4624 = vpop.f32.mrf.mxu0
  %v4625 = vadd.f32 0.0, %v4624
  %v4626 = vpop.f32.mrf.mxu0
  %v4627 = vadd.f32 0.0, %v4626
  %4628 = vmatmul.bf16.gmra.mxu0 %v4163
  %v4629 = vpop.f32.mrf.mxu0
  %v4630 = vadd.f32 0.0, %v4629
  %v4631 = vpop.f32.mrf.mxu0
  %v4632 = vadd.f32 0.0, %v4631
  %4633 = vmatmul.bf16.gmra.mxu0 %v4166
  %v4634 = vpop.f32.mrf.mxu0
  %v4635 = vadd.f32 0.0, %v4634
  %v4636 = vpop.f32.mrf.mxu0
  %v4637 = vadd.f32 0.0, %v4636
  %4638 = vmatmul.bf16.gmra.mxu0 %v4169
  %v4639 = vpop.f32.mrf.mxu0
  %v4640 = vadd.f32 0.0, %v4639
  %v4641 = vpop.f32.mrf.mxu0
  %v4642 = vadd.f32 0.0, %v4641
  %4643 = vmatmul.bf16.gmra.mxu0 %v4172
  %v4644 = vpop.f32.mrf.mxu0
  %v4645 = vadd.f32 0.0, %v4644
  %v4646 = vpop.f32.mrf.mxu0
  %v4647 = vadd.f32 0.0, %v4646
  %4648 = vmatmul.bf16.gmra.mxu0 %v4175
  %v4649 = vpop.f32.mrf.mxu0
  %v4650 = vadd.f32 0.0, %v4649
  %v4651 = vpop.f32.mrf.mxu0
  %v4652 = vadd.f32 0.0, %v4651
  %4653 = vmatmul.bf16.gmra.mxu0 %v4178
  %v4654 = vpop.f32.mrf.mxu0
  %v4655 = vadd.f32 0.0, %v4654
  %v4656 = vpop.f32.mrf.mxu0
  %v4657 = vadd.f32 0.0, %v4656
  %4658 = vmatmul.bf16.gmra.mxu0 %v4181
  %v4659 = vpop.f32.mrf.mxu0
  %v4660 = vadd.f32 0.0, %v4659
  %v4661 = vpop.f32.mrf.mxu0
  %v4662 = vadd.f32 0.0, %v4661
  %4663 = vmatmul.bf16.gmra.mxu0 %v4184
  %v4664 = vpop.f32.mrf.mxu0
  %v4665 = vadd.f32 0.0, %v4664
  %v4666 = vpop.f32.mrf.mxu0
  %v4667 = vadd.f32 0.0, %v4666
  %4668 = vmatmul.bf16.gmra.mxu0 %v4187
  %v4669 = vpop.f32.mrf.mxu0
  %v4670 = vadd.f32 0.0, %v4669
  %v4671 = vpop.f32.mrf.mxu0
  %v4672 = vadd.f32 0.0, %v4671
  %4673 = vmatmul.bf16.gmra.mxu0 %v4190
  %v4674 = vpop.f32.mrf.mxu0
  %v4675 = vadd.f32 0.0, %v4674
  %v4676 = vpop.f32.mrf.mxu0
  %v4677 = vadd.f32 0.0, %v4676
  %4678 = vmatmul.bf16.gmra.mxu0 %v4193
  %v4679 = vpop.f32.mrf.mxu0
  %v4680 = vadd.f32 0.0, %v4679
  %v4681 = vpop.f32.mrf.mxu0
  %v4682 = vadd.f32 0.0, %v4681
  %4683 = vmatmul.bf16.gmra.mxu0 %v4196
  %v4684 = vpop.f32.mrf.mxu0
  %v4685 = vadd.f32 0.0, %v4684
  %v4686 = vpop.f32.mrf.mxu0
  %v4687 = vadd.f32 0.0, %v4686
  %4688 = vmatmul.bf16.gmra.mxu0 %v4199
  %v4689 = vpop.f32.mrf.mxu0
  %v4690 = vadd.f32 0.0, %v4689
  %v4691 = vpop.f32.mrf.mxu0
  %v4692 = vadd.f32 0.0, %v4691
  %4693 = vmatmul.bf16.gmra.mxu0 %v4202
  %v4694 = vpop.f32.mrf.mxu0
  %v4695 = vadd.f32 0.0, %v4694
  %v4696 = vpop.f32.mrf.mxu0
  %v4697 = vadd.f32 0.0, %v4696
  %4698 = vmatmul.bf16.gmra.mxu0 %v4205
  %v4699 = vpop.f32.mrf.mxu0
  %v4700 = vadd.f32 0.0, %v4699
  %v4701 = vpop.f32.mrf.mxu0
  %v4702 = vadd.f32 0.0, %v4701
  %4703 = vmatmul.bf16.gmra.mxu0 %v4208
  %v4704 = vpop.f32.mrf.mxu0
  %v4705 = vadd.f32 0.0, %v4704
  %v4706 = vpop.f32.mrf.mxu0
  %v4707 = vadd.f32 0.0, %v4706
  %4708 = vdwg.mxu0
  %v4709 = vmax.f32 %v3033, %v4220
  %v4710 = vmax.f32 %v3034, %v4222
  %v4711 = vmax.f32 %v3035, %v4225
  %v4712 = vmax.f32 %v3036, %v4227
  %v4713 = vmax.f32 %v3037, %v4230
  %v4714 = vmax.f32 %v3038, %v4232
  %v4715 = vmax.f32 %v3039, %v4235
  %v4716 = vmax.f32 %v3040, %v4237
  %v4717 = vmax.f32 %v3041, %v4240
  %v4718 = vmax.f32 %v3042, %v4242
  %v4719 = vmax.f32 %v3043, %v4245
  %v4720 = vmax.f32 %v3044, %v4247
  %v4721 = vmax.f32 %v3045, %v4250
  %v4722 = vmax.f32 %v3046, %v4252
  %v4723 = vmax.f32 %v3047, %v4255
  %v4724 = vmax.f32 %v3048, %v4257
  %v4725 = vmax.f32 %v3049, %v4260
  %v4726 = vmax.f32 %v3050, %v4262
  %v4727 = vmax.f32 %v3051, %v4265
  %v4728 = vmax.f32 %v3052, %v4267
  %v4729 = vmax.f32 %v3053, %v4270
  %v4730 = vmax.f32 %v3054, %v4272
  %v4731 = vmax.f32 %v3055, %v4275
  %v4732 = vmax.f32 %v3056, %v4277
  %v4733 = vmax.f32 %v3057, %v4280
  %v4734 = vmax.f32 %v3058, %v4282
  %v4735 = vmax.f32 %v3059, %v4285
  %v4736 = vmax.f32 %v3060, %v4287
  %v4737 = vmax.f32 %v3061, %v4290
  %v4738 = vmax.f32 %v3062, %v4292
  %v4739 = vmax.f32 %v3063, %v4295
  %v4740 = vmax.f32 %v3064, %v4297
  %v4741 = vmax.f32 %v3065, %v4300
  %v4742 = vmax.f32 %v3066, %v4302
  %v4743 = vmax.f32 %v3067, %v4305
  %v4744 = vmax.f32 %v3068, %v4307
  %v4745 = vmax.f32 %v3069, %v4310
  %v4746 = vmax.f32 %v3070, %v4312
  %v4747 = vmax.f32 %v3071, %v4315
  %v4748 = vmax.f32 %v3072, %v4317
  %v4749 = vmax.f32 %v3073, %v4320
  %v4750 = vmax.f32 %v3074, %v4322
  %v4751 = vmax.f32 %v3075, %v4325
  %v4752 = vmax.f32 %v3076, %v4327
  %v4753 = vmax.f32 %v3077, %v4330
  %v4754 = vmax.f32 %v3078, %v4332
  %v4755 = vmax.f32 %v3079, %v4335
  %v4756 = vmax.f32 %v3080, %v4337
  %v4757 = vmax.f32 %v3081, %v4340
  %v4758 = vmax.f32 %v3082, %v4342
  %v4759 = vmax.f32 %v3083, %v4345
  %v4760 = vmax.f32 %v3084, %v4347
  %v4761 = vmax.f32 %v3085, %v4350
  %v4762 = vmax.f32 %v3086, %v4352
  %v4763 = vmax.f32 %v3087, %v4355
  %v4764 = vmax.f32 %v3088, %v4357
  %v4765 = vmax.f32 %v3089, %v4360
  %v4766 = vmax.f32 %v3090, %v4362
  %v4767 = vmax.f32 %v3091, %v4365
  %v4768 = vmax.f32 %v3092, %v4367
  %v4769 = vmax.f32 %v3093, %v4370
  %v4770 = vmax.f32 %v3094, %v4372
  %v4771 = vmax.f32 %v3095, %v4375
  %v4772 = vmax.f32 %v3096, %v4377
  %v4773 = vmax.f32 %v3097, %v4380
  %v4774 = vmax.f32 %v3098, %v4382
  %v4775 = vmax.f32 %v3099, %v4385
  %v4776 = vmax.f32 %v3100, %v4387
  %v4777 = vmax.f32 %v3101, %v4390
  %v4778 = vmax.f32 %v3102, %v4392
  %v4779 = vmax.f32 %v3103, %v4395
  %v4780 = vmax.f32 %v3104, %v4397
  %v4781 = vmax.f32 %v3105, %v4400
  %v4782 = vmax.f32 %v3106, %v4402
  %v4783 = vmax.f32 %v3107, %v4405
  %v4784 = vmax.f32 %v3108, %v4407
  %v4785 = vmax.f32 %v3109, %v4410
  %v4786 = vmax.f32 %v3110, %v4412
  %v4787 = vmax.f32 %v3111, %v4415
  %v4788 = vmax.f32 %v3112, %v4417
  %v4789 = vmax.f32 %v3113, %v4420
  %v4790 = vmax.f32 %v3114, %v4422
  %v4791 = vmax.f32 %v3115, %v4425
  %v4792 = vmax.f32 %v3116, %v4427
  %v4793 = vmax.f32 %v3117, %v4430
  %v4794 = vmax.f32 %v3118, %v4432
  %v4795 = vmax.f32 %v3119, %v4435
  %v4796 = vmax.f32 %v3120, %v4437
  %v4797 = vmax.f32 %v3121, %v4440
  %v4798 = vmax.f32 %v3122, %v4442
  %v4799 = vmax.f32 %v3123, %v4445
  %v4800 = vmax.f32 %v3124, %v4447
  %v4801 = vmax.f32 %v3125, %v4450
  %v4802 = vmax.f32 %v3126, %v4452
  %v4803 = vmax.f32 %v3127, %v4455
  %v4804 = vmax.f32 %v3128, %v4457
  %v4805 = vmax.f32 %v3129, %v4460
  %v4806 = vmax.f32 %v3130, %v4462
  %v4807 = vmax.f32 %v3131, %v4465
  %v4808 = vmax.f32 %v3132, %v4467
  %v4809 = vmax.f32 %v3133, %v4470
  %v4810 = vmax.f32 %v3134, %v4472
  %v4811 = vmax.f32 %v3135, %v4475
  %v4812 = vmax.f32 %v3136, %v4477
  %v4813 = vmax.f32 %v3137, %v4480
  %v4814 = vmax.f32 %v3138, %v4482
  %v4815 = vmax.f32 %v3139, %v4485
  %v4816 = vmax.f32 %v3140, %v4487
  %v4817 = vmax.f32 %v3141, %v4490
  %v4818 = vmax.f32 %v3142, %v4492
  %v4819 = vmax.f32 %v3143, %v4495
  %v4820 = vmax.f32 %v3144, %v4497
  %v4821 = vmax.f32 %v3145, %v4500
  %v4822 = vmax.f32 %v3146, %v4502
  %v4823 = vmax.f32 %v3147, %v4505
  %v4824 = vmax.f32 %v3148, %v4507
  %v4825 = vmax.f32 %v3149, %v4510
  %v4826 = vmax.f32 %v3150, %v4512
  %v4827 = vmax.f32 %v3151, %v4515
  %v4828 = vmax.f32 %v3152, %v4517
  %v4829 = vmax.f32 %v3153, %v4520
  %v4830 = vmax.f32 %v3154, %v4522
  %v4831 = vmax.f32 %v3155, %v4525
  %v4832 = vmax.f32 %v3156, %v4527
  %v4833 = vmax.f32 %v3157, %v4530
  %v4834 = vmax.f32 %v3158, %v4532
  %v4835 = vmax.f32 %v3159, %v4535
  %v4836 = vmax.f32 %v3160, %v4537
  %v4837 = vmax.f32 %v3161, %v4540
  %v4838 = vmax.f32 %v3162, %v4542
  %v4839 = vmax.f32 %v3163, %v4545
  %v4840 = vmax.f32 %v3164, %v4547
  %v4841 = vmax.f32 %v3165, %v4550
  %v4842 = vmax.f32 %v3166, %v4552
  %v4843 = vmax.f32 %v3167, %v4555
  %v4844 = vmax.f32 %v3168, %v4557
  %v4845 = vmax.f32 %v3169, %v4560
  %v4846 = vmax.f32 %v3170, %v4562
  %v4847 = vmax.f32 %v3171, %v4565
  %v4848 = vmax.f32 %v3172, %v4567
  %v4849 = vmax.f32 %v3173, %v4570
  %v4850 = vmax.f32 %v3174, %v4572
  %v4851 = vmax.f32 %v3175, %v4575
  %v4852 = vmax.f32 %v3176, %v4577
  %v4853 = vmax.f32 %v3177, %v4580
  %v4854 = vmax.f32 %v3178, %v4582
  %v4855 = vmax.f32 %v3179, %v4585
  %v4856 = vmax.f32 %v3180, %v4587
  %v4857 = vmax.f32 %v3181, %v4590
  %v4858 = vmax.f32 %v3182, %v4592
  %v4859 = vmax.f32 %v3183, %v4595
  %v4860 = vmax.f32 %v3184, %v4597
  %v4861 = vmax.f32 %v3185, %v4600
  %v4862 = vmax.f32 %v3186, %v4602
  %v4863 = vmax.f32 %v3187, %v4605
  %v4864 = vmax.f32 %v3188, %v4607
  %v4865 = vmax.f32 %v3189, %v4610
  %v4866 = vmax.f32 %v3190, %v4612
  %v4867 = vmax.f32 %v3191, %v4615
  %v4868 = vmax.f32 %v3192, %v4617
  %v4869 = vmax.f32 %v3193, %v4620
  %v4870 = vmax.f32 %v3194, %v4622
  %v4871 = vmax.f32 %v3195, %v4625
  %v4872 = vmax.f32 %v3196, %v4627
  %v4873 = vmax.f32 %v3197, %v4630
  %v4874 = vmax.f32 %v3198, %v4632
  %v4875 = vmax.f32 %v3199, %v4635
  %v4876 = vmax.f32 %v3200, %v4637
  %v4877 = vmax.f32 %v3201, %v4640
  %v4878 = vmax.f32 %v3202, %v4642
  %v4879 = vmax.f32 %v3203, %v4645
  %v4880 = vmax.f32 %v3204, %v4647
  %v4881 = vmax.f32 %v3205, %v4650
  %v4882 = vmax.f32 %v3206, %v4652
  %v4883 = vmax.f32 %v3207, %v4655
  %v4884 = vmax.f32 %v3208, %v4657
  %v4885 = vmax.f32 %v3209, %v4660
  %v4886 = vmax.f32 %v3210, %v4662
  %v4887 = vmax.f32 %v3211, %v4665
  %v4888 = vmax.f32 %v3212, %v4667
  %v4889 = vmax.f32 %v3213, %v4670
  %v4890 = vmax.f32 %v3214, %v4672
  %v4891 = vmax.f32 %v3215, %v4675
  %v4892 = vmax.f32 %v3216, %v4677
  %v4893 = vmax.f32 %v3217, %v4680
  %v4894 = vmax.f32 %v3218, %v4682
  %v4895 = vmax.f32 %v3219, %v4685
  %v4896 = vmax.f32 %v3220, %v4687
  %v4897 = vmax.f32 %v3221, %v4690
  %v4898 = vmax.f32 %v3222, %v4692
  %v4899 = vmax.f32 %v3223, %v4695
  %v4900 = vmax.f32 %v3224, %v4697
  %v4901 = vmax.f32 %v3225, %v4700
  %v4902 = vmax.f32 %v3226, %v4702
  %v4903 = vmax.f32 %v3227, %v4705
  %v4904 = vmax.f32 %v3228, %v4707
  %s4905 = scalar_lea.vmem %s0, 2352
  %v4906 = vld [vmem:[%s4905] sm:$0xf]
  %v4907 = vld [vmem:[%s4905 + $0x4] sm:$0xf]
  %v4908 = vld [vmem:[%s4905 + $0x8] sm:$0xf]
  %v4909 = vld [vmem:[%s4905 + $0xc] sm:$0xf]
  %v4910 = vld [vmem:[%s4905 + $0x10] sm:$0xf]
  %v4911 = vld [vmem:[%s4905 + $0x14] sm:$0xf]
  %v4912 = vld [vmem:[%s4905 + $0x18] sm:$0xf]
  %v4913 = vld [vmem:[%s4905 + $0x1c] sm:$0xf]
  %v4914 = vld [vmem:[%s4905 + $0x20] sm:$0xf]
  %v4915 = vld [vmem:[%s4905 + $0x24] sm:$0xf]
  %v4916 = vld [vmem:[%s4905 + $0x28] sm:$0xf]
  %v4917 = vld [vmem:[%s4905 + $0x2c] sm:$0xf]
  %v4918 = vld [vmem:[%s4905 + $0x30] sm:$0xf]
  %v4919 = vld [vmem:[%s4905 + $0x34] sm:$0xf]
  %v4920 = vld [vmem:[%s4905 + $0x38] sm:$0xf]
  %v4921 = vld [vmem:[%s4905 + $0x3c] sm:$0xf]
  %v4922 = vld [vmem:[%s4905 + $0x40] sm:$0xf]
  %v4923 = vld [vmem:[%s4905 + $0x44] sm:$0xf]
  %v4924 = vld [vmem:[%s4905 + $0x48] sm:$0xf]
  %v4925 = vld [vmem:[%s4905 + $0x4c] sm:$0xf]
  %v4926 = vld [vmem:[%s4905 + $0x50] sm:$0xf]
  %v4927 = vld [vmem:[%s4905 + $0x54] sm:$0xf]
  %v4928 = vld [vmem:[%s4905 + $0x58] sm:$0xf]
  %v4929 = vld [vmem:[%s4905 + $0x5c] sm:$0xf]
  %v4930 = vld [vmem:[%s4905 + $0x60] sm:$0xf]
  %v4931 = vld [vmem:[%s4905 + $0x64] sm:$0xf]
  %v4932 = vld [vmem:[%s4905 + $0x68] sm:$0xf]
  %v4933 = vld [vmem:[%s4905 + $0x6c] sm:$0xf]
  %v4934 = vld [vmem:[%s4905 + $0x70] sm:$0xf]
  %v4935 = vld [vmem:[%s4905 + $0x74] sm:$0xf]
  %v4936 = vld [vmem:[%s4905 + $0x78] sm:$0xf]
  %v4937 = vld [vmem:[%s4905 + $0x7c] sm:$0xf]
  %v4938 = vld [vmem:[%s4905 + $0x80] sm:$0xf]
  %v4939 = vld [vmem:[%s4905 + $0x84] sm:$0xf]
  %v4940 = vld [vmem:[%s4905 + $0x88] sm:$0xf]
  %v4941 = vld [vmem:[%s4905 + $0x8c] sm:$0xf]
  %v4942 = vld [vmem:[%s4905 + $0x90] sm:$0xf]
  %v4943 = vld [vmem:[%s4905 + $0x94] sm:$0xf]
  %v4944 = vld [vmem:[%s4905 + $0x98] sm:$0xf]
  %v4945 = vld [vmem:[%s4905 + $0x9c] sm:$0xf]
  %v4946 = vld [vmem:[%s4905 + $0xa0] sm:$0xf]
  %v4947 = vld [vmem:[%s4905 + $0xa4] sm:$0xf]
  %v4948 = vld [vmem:[%s4905 + $0xa8] sm:$0xf]
  %v4949 = vld [vmem:[%s4905 + $0xac] sm:$0xf]
  %v4950 = vld [vmem:[%s4905 + $0xb0] sm:$0xf]
  %v4951 = vld [vmem:[%s4905 + $0xb4] sm:$0xf]
  %v4952 = vld [vmem:[%s4905 + $0xb8] sm:$0xf]
  %v4953 = vld [vmem:[%s4905 + $0xbc] sm:$0xf]
  %v4954 = vld [vmem:[%s4905 + $0xc0] sm:$0xf]
  %v4955 = vld [vmem:[%s4905 + $0xc4] sm:$0xf]
  %v4956 = vld [vmem:[%s4905 + $0xc8] sm:$0xf]
  %v4957 = vld [vmem:[%s4905 + $0xcc] sm:$0xf]
  %v4958 = vld [vmem:[%s4905 + $0xd0] sm:$0xf]
  %v4959 = vld [vmem:[%s4905 + $0xd4] sm:$0xf]
  %v4960 = vld [vmem:[%s4905 + $0xd8] sm:$0xf]
  %v4961 = vld [vmem:[%s4905 + $0xdc] sm:$0xf]
  %v4962 = vld [vmem:[%s4905 + $0xe0] sm:$0xf]
  %v4963 = vld [vmem:[%s4905 + $0xe4] sm:$0xf]
  %v4964 = vld [vmem:[%s4905 + $0xe8] sm:$0xf]
  %v4965 = vld [vmem:[%s4905 + $0xec] sm:$0xf]
  %v4966 = vld [vmem:[%s4905 + $0xf0] sm:$0xf]
  %v4967 = vld [vmem:[%s4905 + $0xf4] sm:$0xf]
  %v4968 = vld [vmem:[%s4905 + $0xf8] sm:$0xf]
  %v4969 = vld [vmem:[%s4905 + $0xfc] sm:$0xf]
  %v4970 = vld [vmem:[%s4905 + $0x100] sm:$0xf]
  %v4971 = vld [vmem:[%s4905 + $0x104] sm:$0xf]
  %v4972 = vld [vmem:[%s4905 + $0x108] sm:$0xf]
  %v4973 = vld [vmem:[%s4905 + $0x10c] sm:$0xf]
  %v4974 = vld [vmem:[%s4905 + $0x110] sm:$0xf]
  %v4975 = vld [vmem:[%s4905 + $0x114] sm:$0xf]
  %v4976 = vld [vmem:[%s4905 + $0x118] sm:$0xf]
  %v4977 = vld [vmem:[%s4905 + $0x11c] sm:$0xf]
  %v4978 = vld [vmem:[%s4905 + $0x120] sm:$0xf]
  %v4979 = vld [vmem:[%s4905 + $0x124] sm:$0xf]
  %v4980 = vld [vmem:[%s4905 + $0x128] sm:$0xf]
  %v4981 = vld [vmem:[%s4905 + $0x12c] sm:$0xf]
  %v4982 = vld [vmem:[%s4905 + $0x130] sm:$0xf]
  %v4983 = vld [vmem:[%s4905 + $0x134] sm:$0xf]
  %v4984 = vld [vmem:[%s4905 + $0x138] sm:$0xf]
  %v4985 = vld [vmem:[%s4905 + $0x13c] sm:$0xf]
  %v4986 = vld [vmem:[%s4905 + $0x140] sm:$0xf]
  %v4987 = vld [vmem:[%s4905 + $0x144] sm:$0xf]
  %v4988 = vld [vmem:[%s4905 + $0x148] sm:$0xf]
  %v4989 = vld [vmem:[%s4905 + $0x14c] sm:$0xf]
  %v4990 = vld [vmem:[%s4905 + $0x150] sm:$0xf]
  %v4991 = vld [vmem:[%s4905 + $0x154] sm:$0xf]
  %v4992 = vld [vmem:[%s4905 + $0x158] sm:$0xf]
  %v4993 = vld [vmem:[%s4905 + $0x15c] sm:$0xf]
  %v4994 = vld [vmem:[%s4905 + $0x160] sm:$0xf]
  %v4995 = vld [vmem:[%s4905 + $0x164] sm:$0xf]
  %v4996 = vld [vmem:[%s4905 + $0x168] sm:$0xf]
  %v4997 = vld [vmem:[%s4905 + $0x16c] sm:$0xf]
  %v4998 = vld [vmem:[%s4905 + $0x170] sm:$0xf]
  %v4999 = vld [vmem:[%s4905 + $0x174] sm:$0xf]
  %v5000 = vld [vmem:[%s4905 + $0x178] sm:$0xf]
  %v5001 = vld [vmem:[%s4905 + $0x17c] sm:$0xf]
  %v5002 = vld [vmem:[%s4905 + $0x180] sm:$0xf]
  %v5003 = vld [vmem:[%s4905 + $0x184] sm:$0xf]
  %v5004 = vld [vmem:[%s4905 + $0x188] sm:$0xf]
  %v5005 = vld [vmem:[%s4905 + $0x18c] sm:$0xf]
  %v5006 = vld [vmem:[%s4905 + $0x190] sm:$0xf]
  %v5007 = vld [vmem:[%s4905 + $0x194] sm:$0xf]
  %v5008 = vld [vmem:[%s4905 + $0x198] sm:$0xf]
  %v5009 = vld [vmem:[%s4905 + $0x19c] sm:$0xf]
  %v5010 = vld [vmem:[%s4905 + $0x1a0] sm:$0xf]
  %v5011 = vld [vmem:[%s4905 + $0x1a4] sm:$0xf]
  %v5012 = vld [vmem:[%s4905 + $0x1a8] sm:$0xf]
  %v5013 = vld [vmem:[%s4905 + $0x1ac] sm:$0xf]
  %v5014 = vld [vmem:[%s4905 + $0x1b0] sm:$0xf]
  %v5015 = vld [vmem:[%s4905 + $0x1b4] sm:$0xf]
  %v5016 = vld [vmem:[%s4905 + $0x1b8] sm:$0xf]
  %v5017 = vld [vmem:[%s4905 + $0x1bc] sm:$0xf]
  %v5018 = vld [vmem:[%s4905 + $0x1c0] sm:$0xf]
  %v5019 = vld [vmem:[%s4905 + $0x1c4] sm:$0xf]
  %v5020 = vld [vmem:[%s4905 + $0x1c8] sm:$0xf]
  %v5021 = vld [vmem:[%s4905 + $0x1cc] sm:$0xf]
  %v5022 = vld [vmem:[%s4905 + $0x1d0] sm:$0xf]
  %v5023 = vld [vmem:[%s4905 + $0x1d4] sm:$0xf]
  %v5024 = vld [vmem:[%s4905 + $0x1d8] sm:$0xf]
  %v5025 = vld [vmem:[%s4905 + $0x1dc] sm:$0xf]
  %v5026 = vld [vmem:[%s4905 + $0x1e0] sm:$0xf]
  %v5027 = vld [vmem:[%s4905 + $0x1e4] sm:$0xf]
  %v5028 = vld [vmem:[%s4905 + $0x1e8] sm:$0xf]
  %v5029 = vld [vmem:[%s4905 + $0x1ec] sm:$0xf]
  %v5030 = vld [vmem:[%s4905 + $0x1f0] sm:$0xf]
  %v5031 = vld [vmem:[%s4905 + $0x1f4] sm:$0xf]
  %v5032 = vld [vmem:[%s4905 + $0x1f8] sm:$0xf]
  %v5033 = vld [vmem:[%s4905 + $0x1fc] sm:$0xf]
  %v5034 = vld [vmem:[%s4905 + $0x200] sm:$0xf]
  %v5035 = vld [vmem:[%s4905 + $0x204] sm:$0xf]
  %v5036 = vld [vmem:[%s4905 + $0x208] sm:$0xf]
  %v5037 = vld [vmem:[%s4905 + $0x20c] sm:$0xf]
  %v5038 = vld [vmem:[%s4905 + $0x210] sm:$0xf]
  %v5039 = vld [vmem:[%s4905 + $0x214] sm:$0xf]
  %v5040 = vld [vmem:[%s4905 + $0x218] sm:$0xf]
  %v5041 = vld [vmem:[%s4905 + $0x21c] sm:$0xf]
  %v5042 = vld [vmem:[%s4905 + $0x220] sm:$0xf]
  %v5043 = vld [vmem:[%s4905 + $0x224] sm:$0xf]
  %v5044 = vld [vmem:[%s4905 + $0x228] sm:$0xf]
  %v5045 = vld [vmem:[%s4905 + $0x22c] sm:$0xf]
  %v5046 = vld [vmem:[%s4905 + $0x230] sm:$0xf]
  %v5047 = vld [vmem:[%s4905 + $0x234] sm:$0xf]
  %v5048 = vld [vmem:[%s4905 + $0x238] sm:$0xf]
  %v5049 = vld [vmem:[%s4905 + $0x23c] sm:$0xf]
  %v5050 = vld [vmem:[%s4905 + $0x240] sm:$0xf]
  %v5051 = vld [vmem:[%s4905 + $0x244] sm:$0xf]
  %v5052 = vld [vmem:[%s4905 + $0x248] sm:$0xf]
  %v5053 = vld [vmem:[%s4905 + $0x24c] sm:$0xf]
  %v5054 = vld [vmem:[%s4905 + $0x250] sm:$0xf]
  %v5055 = vld [vmem:[%s4905 + $0x254] sm:$0xf]
  %v5056 = vld [vmem:[%s4905 + $0x258] sm:$0xf]
  %v5057 = vld [vmem:[%s4905 + $0x25c] sm:$0xf]
  %v5058 = vld [vmem:[%s4905 + $0x260] sm:$0xf]
  %v5059 = vld [vmem:[%s4905 + $0x264] sm:$0xf]
  %v5060 = vld [vmem:[%s4905 + $0x268] sm:$0xf]
  %v5061 = vld [vmem:[%s4905 + $0x26c] sm:$0xf]
  %v5062 = vld [vmem:[%s4905 + $0x270] sm:$0xf]
  %v5063 = vld [vmem:[%s4905 + $0x274] sm:$0xf]
  %v5064 = vld [vmem:[%s4905 + $0x278] sm:$0xf]
  %v5065 = vld [vmem:[%s4905 + $0x27c] sm:$0xf]
  %v5066 = vld [vmem:[%s4905 + $0x280] sm:$0xf]
  %v5067 = vld [vmem:[%s4905 + $0x284] sm:$0xf]
  %v5068 = vld [vmem:[%s4905 + $0x288] sm:$0xf]
  %v5069 = vld [vmem:[%s4905 + $0x28c] sm:$0xf]
  %v5070 = vld [vmem:[%s4905 + $0x290] sm:$0xf]
  %v5071 = vld [vmem:[%s4905 + $0x294] sm:$0xf]
  %v5072 = vld [vmem:[%s4905 + $0x298] sm:$0xf]
  %v5073 = vld [vmem:[%s4905 + $0x29c] sm:$0xf]
  %v5074 = vld [vmem:[%s4905 + $0x2a0] sm:$0xf]
  %v5075 = vld [vmem:[%s4905 + $0x2a4] sm:$0xf]
  %v5076 = vld [vmem:[%s4905 + $0x2a8] sm:$0xf]
  %v5077 = vld [vmem:[%s4905 + $0x2ac] sm:$0xf]
  %v5078 = vld [vmem:[%s4905 + $0x2b0] sm:$0xf]
  %v5079 = vld [vmem:[%s4905 + $0x2b4] sm:$0xf]
  %v5080 = vld [vmem:[%s4905 + $0x2b8] sm:$0xf]
  %v5081 = vld [vmem:[%s4905 + $0x2bc] sm:$0xf]
  %v5082 = vld [vmem:[%s4905 + $0x2c0] sm:$0xf]
  %v5083 = vld [vmem:[%s4905 + $0x2c4] sm:$0xf]
  %v5084 = vld [vmem:[%s4905 + $0x2c8] sm:$0xf]
  %v5085 = vld [vmem:[%s4905 + $0x2cc] sm:$0xf]
  %v5086 = vld [vmem:[%s4905 + $0x2d0] sm:$0xf]
  %v5087 = vld [vmem:[%s4905 + $0x2d4] sm:$0xf]
  %v5088 = vld [vmem:[%s4905 + $0x2d8] sm:$0xf]
  %v5089 = vld [vmem:[%s4905 + $0x2dc] sm:$0xf]
  %v5090 = vld [vmem:[%s4905 + $0x2e0] sm:$0xf]
  %v5091 = vld [vmem:[%s4905 + $0x2e4] sm:$0xf]
  %v5092 = vld [vmem:[%s4905 + $0x2e8] sm:$0xf]
  %v5093 = vld [vmem:[%s4905 + $0x2ec] sm:$0xf]
  %v5094 = vld [vmem:[%s4905 + $0x2f0] sm:$0xf]
  %v5095 = vld [vmem:[%s4905 + $0x2f4] sm:$0xf]
  %v5096 = vld [vmem:[%s4905 + $0x2f8] sm:$0xf]
  %v5097 = vld [vmem:[%s4905 + $0x2fc] sm:$0xf]
  %v5098 = vld [vmem:[%s4905 + $0x300] sm:$0xf]
  %v5099 = vld [vmem:[%s4905 + $0x304] sm:$0xf]
  %v5100 = vld [vmem:[%s4905 + $0x308] sm:$0xf]
  %v5101 = vld [vmem:[%s4905 + $0x30c] sm:$0xf]
  %v5298 = vunpack.c.l.b16 %v4906
  %v5299 = vunpack.c.l.b16 %v4907
  %v5300 = vunpack.c.l.b16 %v4908
  %v5301 = vunpack.c.l.b16 %v4909
  %v5302 = vunpack.c.l.b16 %v4910
  %v5303 = vunpack.c.l.b16 %v4911
  %v5304 = vunpack.c.l.b16 %v4912
  %v5305 = vunpack.c.l.b16 %v4913
  %v5306 = vunpack.c.l.b16 %v4914
  %v5307 = vunpack.c.l.b16 %v4915
  %v5308 = vunpack.c.l.b16 %v4916
  %v5309 = vunpack.c.l.b16 %v4917
  %v5310 = vunpack.c.l.b16 %v4918
  %v5311 = vunpack.c.l.b16 %v4919
  %v5312 = vunpack.c.l.b16 %v4920
  %v5313 = vunpack.c.l.b16 %v4921
  %v5314 = vunpack.c.l.b16 %v4922
  %v5315 = vunpack.c.l.b16 %v4923
  %v5316 = vunpack.c.l.b16 %v4924
  %v5317 = vunpack.c.l.b16 %v4925
  %v5318 = vunpack.c.l.b16 %v4926
  %v5319 = vunpack.c.l.b16 %v4927
  %v5320 = vunpack.c.l.b16 %v4928
  %v5321 = vunpack.c.l.b16 %v4929
  %v5322 = vunpack.c.l.b16 %v4930
  %v5323 = vunpack.c.l.b16 %v4931
  %v5324 = vunpack.c.l.b16 %v4932
  %v5325 = vunpack.c.l.b16 %v4933
  %v5326 = vunpack.c.l.b16 %v4934
  %v5327 = vunpack.c.l.b16 %v4935
  %v5328 = vunpack.c.l.b16 %v4936
  %v5329 = vunpack.c.l.b16 %v4937
  %v5330 = vunpack.c.l.b16 %v4938
  %v5331 = vunpack.c.l.b16 %v4939
  %v5332 = vunpack.c.l.b16 %v4940
  %v5333 = vunpack.c.l.b16 %v4941
  %v5334 = vunpack.c.l.b16 %v4942
  %v5335 = vunpack.c.l.b16 %v4943
  %v5336 = vunpack.c.l.b16 %v4944
  %v5337 = vunpack.c.l.b16 %v4945
  %v5338 = vunpack.c.l.b16 %v4946
  %v5339 = vunpack.c.l.b16 %v4947
  %v5340 = vunpack.c.l.b16 %v4948
  %v5341 = vunpack.c.l.b16 %v4949
  %v5342 = vunpack.c.l.b16 %v4950
  %v5343 = vunpack.c.l.b16 %v4951
  %v5344 = vunpack.c.l.b16 %v4952
  %v5345 = vunpack.c.l.b16 %v4953
  %v5346 = vunpack.c.l.b16 %v4954
  %v5347 = vunpack.c.l.b16 %v4955
  %v5348 = vunpack.c.l.b16 %v4956
  %v5349 = vunpack.c.l.b16 %v4957
  %v5350 = vunpack.c.l.b16 %v4958
  %v5351 = vunpack.c.l.b16 %v4959
  %v5352 = vunpack.c.l.b16 %v4960
  %v5353 = vunpack.c.l.b16 %v4961
  %v5354 = vunpack.c.l.b16 %v4962
  %v5355 = vunpack.c.l.b16 %v4963
  %v5356 = vunpack.c.l.b16 %v4964
  %v5357 = vunpack.c.l.b16 %v4965
  %v5358 = vunpack.c.l.b16 %v4966
  %v5359 = vunpack.c.l.b16 %v4967
  %v5360 = vunpack.c.l.b16 %v4968
  %v5361 = vunpack.c.l.b16 %v4969
  %v5362 = vunpack.c.l.b16 %v4970
  %v5363 = vunpack.c.l.b16 %v4971
  %v5364 = vunpack.c.l.b16 %v4972
  %v5365 = vunpack.c.l.b16 %v4973
  %v5366 = vunpack.c.l.b16 %v4974
  %v5367 = vunpack.c.l.b16 %v4975
  %v5368 = vunpack.c.l.b16 %v4976
  %v5369 = vunpack.c.l.b16 %v4977
  %v5370 = vunpack.c.l.b16 %v4978
  %v5371 = vunpack.c.l.b16 %v4979
  %v5372 = vunpack.c.l.b16 %v4980
  %v5373 = vunpack.c.l.b16 %v4981
  %v5374 = vunpack.c.l.b16 %v4982
  %v5375 = vunpack.c.l.b16 %v4983
  %v5376 = vunpack.c.l.b16 %v4984
  %v5377 = vunpack.c.l.b16 %v4985
  %v5378 = vunpack.c.l.b16 %v4986
  %v5379 = vunpack.c.l.b16 %v4987
  %v5380 = vunpack.c.l.b16 %v4988
  %v5381 = vunpack.c.l.b16 %v4989
  %v5382 = vunpack.c.l.b16 %v4990
  %v5383 = vunpack.c.l.b16 %v4991
  %v5384 = vunpack.c.l.b16 %v4992
  %v5385 = vunpack.c.l.b16 %v4993
  %v5386 = vunpack.c.l.b16 %v4994
  %v5387 = vunpack.c.l.b16 %v4995
  %v5388 = vunpack.c.l.b16 %v4996
  %v5389 = vunpack.c.l.b16 %v4997
  %v5390 = vunpack.c.l.b16 %v4998
  %v5391 = vunpack.c.l.b16 %v4999
  %v5392 = vunpack.c.l.b16 %v5000
  %v5393 = vunpack.c.l.b16 %v5001
  %v5394 = vunpack.c.l.b16 %v5002
  %v5395 = vunpack.c.l.b16 %v5003
  %v5396 = vunpack.c.l.b16 %v5004
  %v5397 = vunpack.c.l.b16 %v5005
  %v5398 = vunpack.c.l.b16 %v5006
  %v5399 = vunpack.c.l.b16 %v5007
  %v5400 = vunpack.c.l.b16 %v5008
  %v5401 = vunpack.c.l.b16 %v5009
  %v5402 = vunpack.c.l.b16 %v5010
  %v5403 = vunpack.c.l.b16 %v5011
  %v5404 = vunpack.c.l.b16 %v5012
  %v5405 = vunpack.c.l.b16 %v5013
  %v5406 = vunpack.c.l.b16 %v5014
  %v5407 = vunpack.c.l.b16 %v5015
  %v5408 = vunpack.c.l.b16 %v5016
  %v5409 = vunpack.c.l.b16 %v5017
  %v5410 = vunpack.c.l.b16 %v5018
  %v5411 = vunpack.c.l.b16 %v5019
  %v5412 = vunpack.c.l.b16 %v5020
  %v5413 = vunpack.c.l.b16 %v5021
  %v5414 = vunpack.c.l.b16 %v5022
  %v5415 = vunpack.c.l.b16 %v5023
  %v5416 = vunpack.c.l.b16 %v5024
  %v5417 = vunpack.c.l.b16 %v5025
  %v5418 = vunpack.c.l.b16 %v5026
  %v5419 = vunpack.c.l.b16 %v5027
  %v5420 = vunpack.c.l.b16 %v5028
  %v5421 = vunpack.c.l.b16 %v5029
  %v5422 = vunpack.c.l.b16 %v5030
  %v5423 = vunpack.c.l.b16 %v5031
  %v5424 = vunpack.c.l.b16 %v5032
  %v5425 = vunpack.c.l.b16 %v5033
  %v5426 = vunpack.c.l.b16 %v5034
  %v5427 = vunpack.c.l.b16 %v5035
  %v5428 = vunpack.c.l.b16 %v5036
  %v5429 = vunpack.c.l.b16 %v5037
  %v5430 = vunpack.c.l.b16 %v5038
  %v5431 = vunpack.c.l.b16 %v5039
  %v5432 = vunpack.c.l.b16 %v5040
  %v5433 = vunpack.c.l.b16 %v5041
  %v5434 = vunpack.c.l.b16 %v5042
  %v5435 = vunpack.c.l.b16 %v5043
  %v5436 = vunpack.c.l.b16 %v5044
  %v5437 = vunpack.c.l.b16 %v5045
  %v5438 = vunpack.c.l.b16 %v5046
  %v5439 = vunpack.c.l.b16 %v5047
  %v5440 = vunpack.c.l.b16 %v5048
  %v5441 = vunpack.c.l.b16 %v5049
  %v5442 = vunpack.c.l.b16 %v5050
  %v5443 = vunpack.c.l.b16 %v5051
  %v5444 = vunpack.c.l.b16 %v5052
  %v5445 = vunpack.c.l.b16 %v5053
  %v5446 = vunpack.c.l.b16 %v5054
  %v5447 = vunpack.c.l.b16 %v5055
  %v5448 = vunpack.c.l.b16 %v5056
  %v5449 = vunpack.c.l.b16 %v5057
  %v5450 = vunpack.c.l.b16 %v5058
  %v5451 = vunpack.c.l.b16 %v5059
  %v5452 = vunpack.c.l.b16 %v5060
  %v5453 = vunpack.c.l.b16 %v5061
  %v5454 = vunpack.c.l.b16 %v5062
  %v5455 = vunpack.c.l.b16 %v5063
  %v5456 = vunpack.c.l.b16 %v5064
  %v5457 = vunpack.c.l.b16 %v5065
  %v5458 = vunpack.c.l.b16 %v5066
  %v5459 = vunpack.c.l.b16 %v5067
  %v5460 = vunpack.c.l.b16 %v5068
  %v5461 = vunpack.c.l.b16 %v5069
  %v5462 = vunpack.c.l.b16 %v5070
  %v5463 = vunpack.c.l.b16 %v5071
  %v5464 = vunpack.c.l.b16 %v5072
  %v5465 = vunpack.c.l.b16 %v5073
  %v5466 = vunpack.c.l.b16 %v5074
  %v5467 = vunpack.c.l.b16 %v5075
  %v5468 = vunpack.c.l.b16 %v5076
  %v5469 = vunpack.c.l.b16 %v5077
  %v5470 = vunpack.c.l.b16 %v5078
  %v5471 = vunpack.c.l.b16 %v5079
  %v5472 = vunpack.c.l.b16 %v5080
  %v5473 = vunpack.c.l.b16 %v5081
  %v5474 = vunpack.c.l.b16 %v5082
  %v5475 = vunpack.c.l.b16 %v5083
  %v5476 = vunpack.c.l.b16 %v5084
  %v5477 = vunpack.c.l.b16 %v5085
  %v5478 = vunpack.c.l.b16 %v5086
  %v5479 = vunpack.c.l.b16 %v5087
  %v5480 = vunpack.c.l.b16 %v5088
  %v5481 = vunpack.c.l.b16 %v5089
  %v5482 = vunpack.c.l.b16 %v5090
  %v5483 = vunpack.c.l.b16 %v5091
  %v5484 = vunpack.c.l.b16 %v5092
  %v5485 = vunpack.c.l.b16 %v5093
  %v5486 = vunpack.c.l.b16 %v5094
  %v5487 = vunpack.c.l.b16 %v5095
  %v5488 = vunpack.c.l.b16 %v5096
  %v5489 = vunpack.c.l.b16 %v5097
  %v5490 = vunpack.c.l.b16 %v5098
  %v5491 = vunpack.c.l.b16 %v5099
  %v5492 = vunpack.c.l.b16 %v5100
  %v5493 = vunpack.c.l.b16 %v5101
  %v5494 = vpack.c.b16 %v5299, %v5298
  %v5495 = vpack.c.b16 %v5301, %v5300
  %v5496 = vpack.c.b16 %v5303, %v5302
  %v5497 = vpack.c.b16 %v5305, %v5304
  %v5498 = vpack.c.b16 %v5307, %v5306
  %v5499 = vpack.c.b16 %v5309, %v5308
  %v5500 = vpack.c.b16 %v5311, %v5310
  %v5501 = vpack.c.b16 %v5313, %v5312
  %v5502 = vpack.c.b16 %v5315, %v5314
  %v5503 = vpack.c.b16 %v5317, %v5316
  %v5504 = vpack.c.b16 %v5319, %v5318
  %v5505 = vpack.c.b16 %v5321, %v5320
  %v5506 = vpack.c.b16 %v5323, %v5322
  %v5507 = vpack.c.b16 %v5325, %v5324
  %v5508 = vpack.c.b16 %v5327, %v5326
  %v5509 = vpack.c.b16 %v5329, %v5328
  %v5510 = vpack.c.b16 %v5331, %v5330
  %v5511 = vpack.c.b16 %v5333, %v5332
  %v5512 = vpack.c.b16 %v5335, %v5334
  %v5513 = vpack.c.b16 %v5337, %v5336
  %v5514 = vpack.c.b16 %v5339, %v5338
  %v5515 = vpack.c.b16 %v5341, %v5340
  %v5516 = vpack.c.b16 %v5343, %v5342
  %v5517 = vpack.c.b16 %v5345, %v5344
  %v5518 = vpack.c.b16 %v5347, %v5346
  %v5519 = vpack.c.b16 %v5349, %v5348
  %v5520 = vpack.c.b16 %v5351, %v5350
  %v5521 = vpack.c.b16 %v5353, %v5352
  %v5522 = vpack.c.b16 %v5355, %v5354
  %v5523 = vpack.c.b16 %v5357, %v5356
  %v5524 = vpack.c.b16 %v5359, %v5358
  %v5525 = vpack.c.b16 %v5361, %v5360
  %v5526 = vpack.c.b16 %v5363, %v5362
  %v5527 = vpack.c.b16 %v5365, %v5364
  %v5528 = vpack.c.b16 %v5367, %v5366
  %v5529 = vpack.c.b16 %v5369, %v5368
  %v5530 = vpack.c.b16 %v5371, %v5370
  %v5531 = vpack.c.b16 %v5373, %v5372
  %v5532 = vpack.c.b16 %v5375, %v5374
  %v5533 = vpack.c.b16 %v5377, %v5376
  %v5534 = vpack.c.b16 %v5379, %v5378
  %v5535 = vpack.c.b16 %v5381, %v5380
  %v5536 = vpack.c.b16 %v5383, %v5382
  %v5537 = vpack.c.b16 %v5385, %v5384
  %v5538 = vpack.c.b16 %v5387, %v5386
  %v5539 = vpack.c.b16 %v5389, %v5388
  %v5540 = vpack.c.b16 %v5391, %v5390
  %v5541 = vpack.c.b16 %v5393, %v5392
  %v5542 = vpack.c.b16 %v5395, %v5394
  %v5543 = vpack.c.b16 %v5397, %v5396
  %v5544 = vpack.c.b16 %v5399, %v5398
  %v5545 = vpack.c.b16 %v5401, %v5400
  %v5546 = vpack.c.b16 %v5403, %v5402
  %v5547 = vpack.c.b16 %v5405, %v5404
  %v5548 = vpack.c.b16 %v5407, %v5406
  %v5549 = vpack.c.b16 %v5409, %v5408
  %v5550 = vpack.c.b16 %v5411, %v5410
  %v5551 = vpack.c.b16 %v5413, %v5412
  %v5552 = vpack.c.b16 %v5415, %v5414
  %v5553 = vpack.c.b16 %v5417, %v5416
  %v5554 = vpack.c.b16 %v5419, %v5418
  %v5555 = vpack.c.b16 %v5421, %v5420
  %v5556 = vpack.c.b16 %v5423, %v5422
  %v5557 = vpack.c.b16 %v5425, %v5424
  %v5558 = vpack.c.b16 %v5427, %v5426
  %v5559 = vpack.c.b16 %v5429, %v5428
  %v5560 = vpack.c.b16 %v5431, %v5430
  %v5561 = vpack.c.b16 %v5433, %v5432
  %v5562 = vpack.c.b16 %v5435, %v5434
  %v5563 = vpack.c.b16 %v5437, %v5436
  %v5564 = vpack.c.b16 %v5439, %v5438
  %v5565 = vpack.c.b16 %v5441, %v5440
  %v5566 = vpack.c.b16 %v5443, %v5442
  %v5567 = vpack.c.b16 %v5445, %v5444
  %v5568 = vpack.c.b16 %v5447, %v5446
  %v5569 = vpack.c.b16 %v5449, %v5448
  %v5570 = vpack.c.b16 %v5451, %v5450
  %v5571 = vpack.c.b16 %v5453, %v5452
  %v5572 = vpack.c.b16 %v5455, %v5454
  %v5573 = vpack.c.b16 %v5457, %v5456
  %v5574 = vpack.c.b16 %v5459, %v5458
  %v5575 = vpack.c.b16 %v5461, %v5460
  %v5576 = vpack.c.b16 %v5463, %v5462
  %v5577 = vpack.c.b16 %v5465, %v5464
  %v5578 = vpack.c.b16 %v5467, %v5466
  %v5579 = vpack.c.b16 %v5469, %v5468
  %v5580 = vpack.c.b16 %v5471, %v5470
  %v5581 = vpack.c.b16 %v5473, %v5472
  %v5582 = vpack.c.b16 %v5475, %v5474
  %v5583 = vpack.c.b16 %v5477, %v5476
  %v5584 = vpack.c.b16 %v5479, %v5478
  %v5585 = vpack.c.b16 %v5481, %v5480
  %v5586 = vpack.c.b16 %v5483, %v5482
  %v5587 = vpack.c.b16 %v5485, %v5484
  %v5588 = vpack.c.b16 %v5487, %v5486
  %v5589 = vpack.c.b16 %v5489, %v5488
  %v5590 = vpack.c.b16 %v5491, %v5490
  %v5591 = vpack.c.b16 %v5493, %v5492
  %v5593 = vsel %vm752, %v5494, 0
  %v5596 = vsel %vm752, %v5495, 0
  %v5599 = vsel %vm752, %v5496, 0
  %v5602 = vsel %vm752, %v5497, 0
  %v5605 = vsel %vm752, %v5498, 0
  %v5608 = vsel %vm752, %v5499, 0
  %v5611 = vsel %vm752, %v5500, 0
  %v5614 = vsel %vm752, %v5501, 0
  %v5617 = vsel %vm752, %v5502, 0
  %v5620 = vsel %vm752, %v5503, 0
  %v5623 = vsel %vm752, %v5504, 0
  %v5626 = vsel %vm752, %v5505, 0
  %v5629 = vsel %vm752, %v5506, 0
  %v5632 = vsel %vm752, %v5507, 0
  %v5635 = vsel %vm752, %v5508, 0
  %v5638 = vsel %vm752, %v5509, 0
  %v5641 = vsel %vm752, %v5510, 0
  %v5644 = vsel %vm752, %v5511, 0
  %v5647 = vsel %vm752, %v5512, 0
  %v5650 = vsel %vm752, %v5513, 0
  %v5653 = vsel %vm752, %v5514, 0
  %v5656 = vsel %vm752, %v5515, 0
  %v5659 = vsel %vm752, %v5516, 0
  %v5662 = vsel %vm752, %v5517, 0
  %v5665 = vsel %vm752, %v5518, 0
  %v5668 = vsel %vm752, %v5519, 0
  %v5671 = vsel %vm752, %v5520, 0
  %v5674 = vsel %vm752, %v5521, 0
  %v5677 = vsel %vm752, %v5522, 0
  %v5680 = vsel %vm752, %v5523, 0
  %v5683 = vsel %vm752, %v5524, 0
  %v5686 = vsel %vm752, %v5525, 0
  %v5689 = vsel %vm752, %v5526, 0
  %v5692 = vsel %vm752, %v5527, 0
  %v5695 = vsel %vm752, %v5528, 0
  %v5698 = vsel %vm752, %v5529, 0
  %v5701 = vsel %vm752, %v5530, 0
  %v5704 = vsel %vm752, %v5531, 0
  %v5707 = vsel %vm752, %v5532, 0
  %v5710 = vsel %vm752, %v5533, 0
  %v5713 = vsel %vm752, %v5534, 0
  %v5716 = vsel %vm752, %v5535, 0
  %v5719 = vsel %vm752, %v5536, 0
  %v5722 = vsel %vm752, %v5537, 0
  %v5725 = vsel %vm752, %v5538, 0
  %v5728 = vsel %vm752, %v5539, 0
  %v5731 = vsel %vm752, %v5540, 0
  %v5734 = vsel %vm752, %v5541, 0
  %v5737 = vsel %vm752, %v5542, 0
  %v5740 = vsel %vm752, %v5543, 0
  %v5743 = vsel %vm752, %v5544, 0
  %v5746 = vsel %vm752, %v5545, 0
  %v5749 = vsel %vm752, %v5546, 0
  %v5752 = vsel %vm752, %v5547, 0
  %v5755 = vsel %vm752, %v5548, 0
  %v5758 = vsel %vm752, %v5549, 0
  %v5761 = vsel %vm752, %v5550, 0
  %v5764 = vsel %vm752, %v5551, 0
  %v5767 = vsel %vm752, %v5552, 0
  %v5770 = vsel %vm752, %v5553, 0
  %v5773 = vsel %vm752, %v5554, 0
  %v5776 = vsel %vm752, %v5555, 0
  %v5779 = vsel %vm752, %v5556, 0
  %v5782 = vsel %vm752, %v5557, 0
  %v5785 = vsel %vm752, %v5558, 0
  %v5788 = vsel %vm752, %v5559, 0
  %v5791 = vsel %vm752, %v5560, 0
  %v5794 = vsel %vm752, %v5561, 0
  %v5797 = vsel %vm752, %v5562, 0
  %v5800 = vsel %vm752, %v5563, 0
  %v5803 = vsel %vm752, %v5564, 0
  %v5806 = vsel %vm752, %v5565, 0
  %v5809 = vsel %vm752, %v5566, 0
  %v5812 = vsel %vm752, %v5567, 0
  %v5815 = vsel %vm752, %v5568, 0
  %v5818 = vsel %vm752, %v5569, 0
  %v5821 = vsel %vm752, %v5570, 0
  %v5824 = vsel %vm752, %v5571, 0
  %v5827 = vsel %vm752, %v5572, 0
  %v5830 = vsel %vm752, %v5573, 0
  %v5833 = vsel %vm752, %v5574, 0
  %v5836 = vsel %vm752, %v5575, 0
  %v5839 = vsel %vm752, %v5576, 0
  %v5842 = vsel %vm752, %v5577, 0
  %v5845 = vsel %vm752, %v5578, 0
  %v5848 = vsel %vm752, %v5579, 0
  %v5851 = vsel %vm752, %v5580, 0
  %v5854 = vsel %vm752, %v5581, 0
  %v5857 = vsel %vm752, %v5582, 0
  %v5860 = vsel %vm752, %v5583, 0
  %v5863 = vsel %vm752, %v5584, 0
  %v5866 = vsel %vm752, %v5585, 0
  %v5869 = vsel %vm752, %v5586, 0
  %v5872 = vsel %vm752, %v5587, 0
  %v5875 = vsel %vm752, %v5588, 0
  %v5878 = vsel %vm752, %v5589, 0
  %v5881 = vsel %vm752, %v5590, 0
  %v5884 = vsel %vm752, %v5591, 0
  %5886 = vmatpush.bf16.msra.mxu0 0
  %5887 = vmatpush.bf16.msra.mxu0 0
  %5888 = vmatpush.bf16.msra.mxu0 0
  %5889 = vmatpush.bf16.msra.mxu0 %v1052
  %5890 = vmatpush.bf16.msra.mxu0 %v746
  %5891 = vmatpush.bf16.msra.mxu0 %v745
  %5892 = vmatpush.bf16.msra.mxu0 %v744
  %5893 = vmatpush.bf16.msra.mxu0 %v743
  %5894 = vmatmul.bf16.gmra.mxu0 %v5593
  %v5895 = vpop.f32.mrf.mxu0
  %v5896 = vadd.f32 0.0, %v5895
  %v5897 = vpop.f32.mrf.mxu0
  %v5898 = vadd.f32 0.0, %v5897
  %5899 = vmatmul.bf16.gmra.mxu0 %v5596
  %v5900 = vpop.f32.mrf.mxu0
  %v5901 = vadd.f32 0.0, %v5900
  %v5902 = vpop.f32.mrf.mxu0
  %v5903 = vadd.f32 0.0, %v5902
  %5904 = vmatmul.bf16.gmra.mxu0 %v5599
  %v5905 = vpop.f32.mrf.mxu0
  %v5906 = vadd.f32 0.0, %v5905
  %v5907 = vpop.f32.mrf.mxu0
  %v5908 = vadd.f32 0.0, %v5907
  %5909 = vmatmul.bf16.gmra.mxu0 %v5602
  %v5910 = vpop.f32.mrf.mxu0
  %v5911 = vadd.f32 0.0, %v5910
  %v5912 = vpop.f32.mrf.mxu0
  %v5913 = vadd.f32 0.0, %v5912
  %5914 = vmatmul.bf16.gmra.mxu0 %v5605
  %v5915 = vpop.f32.mrf.mxu0
  %v5916 = vadd.f32 0.0, %v5915
  %v5917 = vpop.f32.mrf.mxu0
  %v5918 = vadd.f32 0.0, %v5917
  %5919 = vmatmul.bf16.gmra.mxu0 %v5608
  %v5920 = vpop.f32.mrf.mxu0
  %v5921 = vadd.f32 0.0, %v5920
  %v5922 = vpop.f32.mrf.mxu0
  %v5923 = vadd.f32 0.0, %v5922
  %5924 = vmatmul.bf16.gmra.mxu0 %v5611
  %v5925 = vpop.f32.mrf.mxu0
  %v5926 = vadd.f32 0.0, %v5925
  %v5927 = vpop.f32.mrf.mxu0
  %v5928 = vadd.f32 0.0, %v5927
  %5929 = vmatmul.bf16.gmra.mxu0 %v5614
  %v5930 = vpop.f32.mrf.mxu0
  %v5931 = vadd.f32 0.0, %v5930
  %v5932 = vpop.f32.mrf.mxu0
  %v5933 = vadd.f32 0.0, %v5932
  %5934 = vmatmul.bf16.gmra.mxu0 %v5617
  %v5935 = vpop.f32.mrf.mxu0
  %v5936 = vadd.f32 0.0, %v5935
  %v5937 = vpop.f32.mrf.mxu0
  %v5938 = vadd.f32 0.0, %v5937
  %5939 = vmatmul.bf16.gmra.mxu0 %v5620
  %v5940 = vpop.f32.mrf.mxu0
  %v5941 = vadd.f32 0.0, %v5940
  %v5942 = vpop.f32.mrf.mxu0
  %v5943 = vadd.f32 0.0, %v5942
  %5944 = vmatmul.bf16.gmra.mxu0 %v5623
  %v5945 = vpop.f32.mrf.mxu0
  %v5946 = vadd.f32 0.0, %v5945
  %v5947 = vpop.f32.mrf.mxu0
  %v5948 = vadd.f32 0.0, %v5947
  %5949 = vmatmul.bf16.gmra.mxu0 %v5626
  %v5950 = vpop.f32.mrf.mxu0
  %v5951 = vadd.f32 0.0, %v5950
  %v5952 = vpop.f32.mrf.mxu0
  %v5953 = vadd.f32 0.0, %v5952
  %5954 = vmatmul.bf16.gmra.mxu0 %v5629
  %v5955 = vpop.f32.mrf.mxu0
  %v5956 = vadd.f32 0.0, %v5955
  %v5957 = vpop.f32.mrf.mxu0
  %v5958 = vadd.f32 0.0, %v5957
  %5959 = vmatmul.bf16.gmra.mxu0 %v5632
  %v5960 = vpop.f32.mrf.mxu0
  %v5961 = vadd.f32 0.0, %v5960
  %v5962 = vpop.f32.mrf.mxu0
  %v5963 = vadd.f32 0.0, %v5962
  %5964 = vmatmul.bf16.gmra.mxu0 %v5635
  %v5965 = vpop.f32.mrf.mxu0
  %v5966 = vadd.f32 0.0, %v5965
  %v5967 = vpop.f32.mrf.mxu0
  %v5968 = vadd.f32 0.0, %v5967
  %5969 = vmatmul.bf16.gmra.mxu0 %v5638
  %v5970 = vpop.f32.mrf.mxu0
  %v5971 = vadd.f32 0.0, %v5970
  %v5972 = vpop.f32.mrf.mxu0
  %v5973 = vadd.f32 0.0, %v5972
  %5974 = vmatmul.bf16.gmra.mxu0 %v5641
  %v5975 = vpop.f32.mrf.mxu0
  %v5976 = vadd.f32 0.0, %v5975
  %v5977 = vpop.f32.mrf.mxu0
  %v5978 = vadd.f32 0.0, %v5977
  %5979 = vmatmul.bf16.gmra.mxu0 %v5644
  %v5980 = vpop.f32.mrf.mxu0
  %v5981 = vadd.f32 0.0, %v5980
  %v5982 = vpop.f32.mrf.mxu0
  %v5983 = vadd.f32 0.0, %v5982
  %5984 = vmatmul.bf16.gmra.mxu0 %v5647
  %v5985 = vpop.f32.mrf.mxu0
  %v5986 = vadd.f32 0.0, %v5985
  %v5987 = vpop.f32.mrf.mxu0
  %v5988 = vadd.f32 0.0, %v5987
  %5989 = vmatmul.bf16.gmra.mxu0 %v5650
  %v5990 = vpop.f32.mrf.mxu0
  %v5991 = vadd.f32 0.0, %v5990
  %v5992 = vpop.f32.mrf.mxu0
  %v5993 = vadd.f32 0.0, %v5992
  %5994 = vmatmul.bf16.gmra.mxu0 %v5653
  %v5995 = vpop.f32.mrf.mxu0
  %v5996 = vadd.f32 0.0, %v5995
  %v5997 = vpop.f32.mrf.mxu0
  %v5998 = vadd.f32 0.0, %v5997
  %5999 = vmatmul.bf16.gmra.mxu0 %v5656
  %v6000 = vpop.f32.mrf.mxu0
  %v6001 = vadd.f32 0.0, %v6000
  %v6002 = vpop.f32.mrf.mxu0
  %v6003 = vadd.f32 0.0, %v6002
  %6004 = vmatmul.bf16.gmra.mxu0 %v5659
  %v6005 = vpop.f32.mrf.mxu0
  %v6006 = vadd.f32 0.0, %v6005
  %v6007 = vpop.f32.mrf.mxu0
  %v6008 = vadd.f32 0.0, %v6007
  %6009 = vmatmul.bf16.gmra.mxu0 %v5662
  %v6010 = vpop.f32.mrf.mxu0
  %v6011 = vadd.f32 0.0, %v6010
  %v6012 = vpop.f32.mrf.mxu0
  %v6013 = vadd.f32 0.0, %v6012
  %6014 = vmatmul.bf16.gmra.mxu0 %v5665
  %v6015 = vpop.f32.mrf.mxu0
  %v6016 = vadd.f32 0.0, %v6015
  %v6017 = vpop.f32.mrf.mxu0
  %v6018 = vadd.f32 0.0, %v6017
  %6019 = vmatmul.bf16.gmra.mxu0 %v5668
  %v6020 = vpop.f32.mrf.mxu0
  %v6021 = vadd.f32 0.0, %v6020
  %v6022 = vpop.f32.mrf.mxu0
  %v6023 = vadd.f32 0.0, %v6022
  %6024 = vmatmul.bf16.gmra.mxu0 %v5671
  %v6025 = vpop.f32.mrf.mxu0
  %v6026 = vadd.f32 0.0, %v6025
  %v6027 = vpop.f32.mrf.mxu0
  %v6028 = vadd.f32 0.0, %v6027
  %6029 = vmatmul.bf16.gmra.mxu0 %v5674
  %v6030 = vpop.f32.mrf.mxu0
  %v6031 = vadd.f32 0.0, %v6030
  %v6032 = vpop.f32.mrf.mxu0
  %v6033 = vadd.f32 0.0, %v6032
  %6034 = vmatmul.bf16.gmra.mxu0 %v5677
  %v6035 = vpop.f32.mrf.mxu0
  %v6036 = vadd.f32 0.0, %v6035
  %v6037 = vpop.f32.mrf.mxu0
  %v6038 = vadd.f32 0.0, %v6037
  %6039 = vmatmul.bf16.gmra.mxu0 %v5680
  %v6040 = vpop.f32.mrf.mxu0
  %v6041 = vadd.f32 0.0, %v6040
  %v6042 = vpop.f32.mrf.mxu0
  %v6043 = vadd.f32 0.0, %v6042
  %6044 = vmatmul.bf16.gmra.mxu0 %v5683
  %v6045 = vpop.f32.mrf.mxu0
  %v6046 = vadd.f32 0.0, %v6045
  %v6047 = vpop.f32.mrf.mxu0
  %v6048 = vadd.f32 0.0, %v6047
  %6049 = vmatmul.bf16.gmra.mxu0 %v5686
  %v6050 = vpop.f32.mrf.mxu0
  %v6051 = vadd.f32 0.0, %v6050
  %v6052 = vpop.f32.mrf.mxu0
  %v6053 = vadd.f32 0.0, %v6052
  %6054 = vmatmul.bf16.gmra.mxu0 %v5689
  %v6055 = vpop.f32.mrf.mxu0
  %v6056 = vadd.f32 0.0, %v6055
  %v6057 = vpop.f32.mrf.mxu0
  %v6058 = vadd.f32 0.0, %v6057
  %6059 = vmatmul.bf16.gmra.mxu0 %v5692
  %v6060 = vpop.f32.mrf.mxu0
  %v6061 = vadd.f32 0.0, %v6060
  %v6062 = vpop.f32.mrf.mxu0
  %v6063 = vadd.f32 0.0, %v6062
  %6064 = vmatmul.bf16.gmra.mxu0 %v5695
  %v6065 = vpop.f32.mrf.mxu0
  %v6066 = vadd.f32 0.0, %v6065
  %v6067 = vpop.f32.mrf.mxu0
  %v6068 = vadd.f32 0.0, %v6067
  %6069 = vmatmul.bf16.gmra.mxu0 %v5698
  %v6070 = vpop.f32.mrf.mxu0
  %v6071 = vadd.f32 0.0, %v6070
  %v6072 = vpop.f32.mrf.mxu0
  %v6073 = vadd.f32 0.0, %v6072
  %6074 = vmatmul.bf16.gmra.mxu0 %v5701
  %v6075 = vpop.f32.mrf.mxu0
  %v6076 = vadd.f32 0.0, %v6075
  %v6077 = vpop.f32.mrf.mxu0
  %v6078 = vadd.f32 0.0, %v6077
  %6079 = vmatmul.bf16.gmra.mxu0 %v5704
  %v6080 = vpop.f32.mrf.mxu0
  %v6081 = vadd.f32 0.0, %v6080
  %v6082 = vpop.f32.mrf.mxu0
  %v6083 = vadd.f32 0.0, %v6082
  %6084 = vmatmul.bf16.gmra.mxu0 %v5707
  %v6085 = vpop.f32.mrf.mxu0
  %v6086 = vadd.f32 0.0, %v6085
  %v6087 = vpop.f32.mrf.mxu0
  %v6088 = vadd.f32 0.0, %v6087
  %6089 = vmatmul.bf16.gmra.mxu0 %v5710
  %v6090 = vpop.f32.mrf.mxu0
  %v6091 = vadd.f32 0.0, %v6090
  %v6092 = vpop.f32.mrf.mxu0
  %v6093 = vadd.f32 0.0, %v6092
  %6094 = vmatmul.bf16.gmra.mxu0 %v5713
  %v6095 = vpop.f32.mrf.mxu0
  %v6096 = vadd.f32 0.0, %v6095
  %v6097 = vpop.f32.mrf.mxu0
  %v6098 = vadd.f32 0.0, %v6097
  %6099 = vmatmul.bf16.gmra.mxu0 %v5716
  %v6100 = vpop.f32.mrf.mxu0
  %v6101 = vadd.f32 0.0, %v6100
  %v6102 = vpop.f32.mrf.mxu0
  %v6103 = vadd.f32 0.0, %v6102
  %6104 = vmatmul.bf16.gmra.mxu0 %v5719
  %v6105 = vpop.f32.mrf.mxu0
  %v6106 = vadd.f32 0.0, %v6105
  %v6107 = vpop.f32.mrf.mxu0
  %v6108 = vadd.f32 0.0, %v6107
  %6109 = vmatmul.bf16.gmra.mxu0 %v5722
  %v6110 = vpop.f32.mrf.mxu0
  %v6111 = vadd.f32 0.0, %v6110
  %v6112 = vpop.f32.mrf.mxu0
  %v6113 = vadd.f32 0.0, %v6112
  %6114 = vmatmul.bf16.gmra.mxu0 %v5725
  %v6115 = vpop.f32.mrf.mxu0
  %v6116 = vadd.f32 0.0, %v6115
  %v6117 = vpop.f32.mrf.mxu0
  %v6118 = vadd.f32 0.0, %v6117
  %6119 = vmatmul.bf16.gmra.mxu0 %v5728
  %v6120 = vpop.f32.mrf.mxu0
  %v6121 = vadd.f32 0.0, %v6120
  %v6122 = vpop.f32.mrf.mxu0
  %v6123 = vadd.f32 0.0, %v6122
  %6124 = vmatmul.bf16.gmra.mxu0 %v5731
  %v6125 = vpop.f32.mrf.mxu0
  %v6126 = vadd.f32 0.0, %v6125
  %v6127 = vpop.f32.mrf.mxu0
  %v6128 = vadd.f32 0.0, %v6127
  %6129 = vmatmul.bf16.gmra.mxu0 %v5734
  %v6130 = vpop.f32.mrf.mxu0
  %v6131 = vadd.f32 0.0, %v6130
  %v6132 = vpop.f32.mrf.mxu0
  %v6133 = vadd.f32 0.0, %v6132
  %6134 = vmatmul.bf16.gmra.mxu0 %v5737
  %v6135 = vpop.f32.mrf.mxu0
  %v6136 = vadd.f32 0.0, %v6135
  %v6137 = vpop.f32.mrf.mxu0
  %v6138 = vadd.f32 0.0, %v6137
  %6139 = vmatmul.bf16.gmra.mxu0 %v5740
  %v6140 = vpop.f32.mrf.mxu0
  %v6141 = vadd.f32 0.0, %v6140
  %v6142 = vpop.f32.mrf.mxu0
  %v6143 = vadd.f32 0.0, %v6142
  %6144 = vmatmul.bf16.gmra.mxu0 %v5743
  %v6145 = vpop.f32.mrf.mxu0
  %v6146 = vadd.f32 0.0, %v6145
  %v6147 = vpop.f32.mrf.mxu0
  %v6148 = vadd.f32 0.0, %v6147
  %6149 = vmatmul.bf16.gmra.mxu0 %v5746
  %v6150 = vpop.f32.mrf.mxu0
  %v6151 = vadd.f32 0.0, %v6150
  %v6152 = vpop.f32.mrf.mxu0
  %v6153 = vadd.f32 0.0, %v6152
  %6154 = vmatmul.bf16.gmra.mxu0 %v5749
  %v6155 = vpop.f32.mrf.mxu0
  %v6156 = vadd.f32 0.0, %v6155
  %v6157 = vpop.f32.mrf.mxu0
  %v6158 = vadd.f32 0.0, %v6157
  %6159 = vmatmul.bf16.gmra.mxu0 %v5752
  %v6160 = vpop.f32.mrf.mxu0
  %v6161 = vadd.f32 0.0, %v6160
  %v6162 = vpop.f32.mrf.mxu0
  %v6163 = vadd.f32 0.0, %v6162
  %6164 = vmatmul.bf16.gmra.mxu0 %v5755
  %v6165 = vpop.f32.mrf.mxu0
  %v6166 = vadd.f32 0.0, %v6165
  %v6167 = vpop.f32.mrf.mxu0
  %v6168 = vadd.f32 0.0, %v6167
  %6169 = vmatmul.bf16.gmra.mxu0 %v5758
  %v6170 = vpop.f32.mrf.mxu0
  %v6171 = vadd.f32 0.0, %v6170
  %v6172 = vpop.f32.mrf.mxu0
  %v6173 = vadd.f32 0.0, %v6172
  %6174 = vmatmul.bf16.gmra.mxu0 %v5761
  %v6175 = vpop.f32.mrf.mxu0
  %v6176 = vadd.f32 0.0, %v6175
  %v6177 = vpop.f32.mrf.mxu0
  %v6178 = vadd.f32 0.0, %v6177
  %6179 = vmatmul.bf16.gmra.mxu0 %v5764
  %v6180 = vpop.f32.mrf.mxu0
  %v6181 = vadd.f32 0.0, %v6180
  %v6182 = vpop.f32.mrf.mxu0
  %v6183 = vadd.f32 0.0, %v6182
  %6184 = vmatmul.bf16.gmra.mxu0 %v5767
  %v6185 = vpop.f32.mrf.mxu0
  %v6186 = vadd.f32 0.0, %v6185
  %v6187 = vpop.f32.mrf.mxu0
  %v6188 = vadd.f32 0.0, %v6187
  %6189 = vmatmul.bf16.gmra.mxu0 %v5770
  %v6190 = vpop.f32.mrf.mxu0
  %v6191 = vadd.f32 0.0, %v6190
  %v6192 = vpop.f32.mrf.mxu0
  %v6193 = vadd.f32 0.0, %v6192
  %6194 = vmatmul.bf16.gmra.mxu0 %v5773
  %v6195 = vpop.f32.mrf.mxu0
  %v6196 = vadd.f32 0.0, %v6195
  %v6197 = vpop.f32.mrf.mxu0
  %v6198 = vadd.f32 0.0, %v6197
  %6199 = vmatmul.bf16.gmra.mxu0 %v5776
  %v6200 = vpop.f32.mrf.mxu0
  %v6201 = vadd.f32 0.0, %v6200
  %v6202 = vpop.f32.mrf.mxu0
  %v6203 = vadd.f32 0.0, %v6202
  %6204 = vmatmul.bf16.gmra.mxu0 %v5779
  %v6205 = vpop.f32.mrf.mxu0
  %v6206 = vadd.f32 0.0, %v6205
  %v6207 = vpop.f32.mrf.mxu0
  %v6208 = vadd.f32 0.0, %v6207
  %6209 = vmatmul.bf16.gmra.mxu0 %v5782
  %v6210 = vpop.f32.mrf.mxu0
  %v6211 = vadd.f32 0.0, %v6210
  %v6212 = vpop.f32.mrf.mxu0
  %v6213 = vadd.f32 0.0, %v6212
  %6214 = vmatmul.bf16.gmra.mxu0 %v5785
  %v6215 = vpop.f32.mrf.mxu0
  %v6216 = vadd.f32 0.0, %v6215
  %v6217 = vpop.f32.mrf.mxu0
  %v6218 = vadd.f32 0.0, %v6217
  %6219 = vmatmul.bf16.gmra.mxu0 %v5788
  %v6220 = vpop.f32.mrf.mxu0
  %v6221 = vadd.f32 0.0, %v6220
  %v6222 = vpop.f32.mrf.mxu0
  %v6223 = vadd.f32 0.0, %v6222
  %6224 = vmatmul.bf16.gmra.mxu0 %v5791
  %v6225 = vpop.f32.mrf.mxu0
  %v6226 = vadd.f32 0.0, %v6225
  %v6227 = vpop.f32.mrf.mxu0
  %v6228 = vadd.f32 0.0, %v6227
  %6229 = vmatmul.bf16.gmra.mxu0 %v5794
  %v6230 = vpop.f32.mrf.mxu0
  %v6231 = vadd.f32 0.0, %v6230
  %v6232 = vpop.f32.mrf.mxu0
  %v6233 = vadd.f32 0.0, %v6232
  %6234 = vmatmul.bf16.gmra.mxu0 %v5797
  %v6235 = vpop.f32.mrf.mxu0
  %v6236 = vadd.f32 0.0, %v6235
  %v6237 = vpop.f32.mrf.mxu0
  %v6238 = vadd.f32 0.0, %v6237
  %6239 = vmatmul.bf16.gmra.mxu0 %v5800
  %v6240 = vpop.f32.mrf.mxu0
  %v6241 = vadd.f32 0.0, %v6240
  %v6242 = vpop.f32.mrf.mxu0
  %v6243 = vadd.f32 0.0, %v6242
  %6244 = vmatmul.bf16.gmra.mxu0 %v5803
  %v6245 = vpop.f32.mrf.mxu0
  %v6246 = vadd.f32 0.0, %v6245
  %v6247 = vpop.f32.mrf.mxu0
  %v6248 = vadd.f32 0.0, %v6247
  %6249 = vmatmul.bf16.gmra.mxu0 %v5806
  %v6250 = vpop.f32.mrf.mxu0
  %v6251 = vadd.f32 0.0, %v6250
  %v6252 = vpop.f32.mrf.mxu0
  %v6253 = vadd.f32 0.0, %v6252
  %6254 = vmatmul.bf16.gmra.mxu0 %v5809
  %v6255 = vpop.f32.mrf.mxu0
  %v6256 = vadd.f32 0.0, %v6255
  %v6257 = vpop.f32.mrf.mxu0
  %v6258 = vadd.f32 0.0, %v6257
  %6259 = vmatmul.bf16.gmra.mxu0 %v5812
  %v6260 = vpop.f32.mrf.mxu0
  %v6261 = vadd.f32 0.0, %v6260
  %v6262 = vpop.f32.mrf.mxu0
  %v6263 = vadd.f32 0.0, %v6262
  %6264 = vmatmul.bf16.gmra.mxu0 %v5815
  %v6265 = vpop.f32.mrf.mxu0
  %v6266 = vadd.f32 0.0, %v6265
  %v6267 = vpop.f32.mrf.mxu0
  %v6268 = vadd.f32 0.0, %v6267
  %6269 = vmatmul.bf16.gmra.mxu0 %v5818
  %v6270 = vpop.f32.mrf.mxu0
  %v6271 = vadd.f32 0.0, %v6270
  %v6272 = vpop.f32.mrf.mxu0
  %v6273 = vadd.f32 0.0, %v6272
  %6274 = vmatmul.bf16.gmra.mxu0 %v5821
  %v6275 = vpop.f32.mrf.mxu0
  %v6276 = vadd.f32 0.0, %v6275
  %v6277 = vpop.f32.mrf.mxu0
  %v6278 = vadd.f32 0.0, %v6277
  %6279 = vmatmul.bf16.gmra.mxu0 %v5824
  %v6280 = vpop.f32.mrf.mxu0
  %v6281 = vadd.f32 0.0, %v6280
  %v6282 = vpop.f32.mrf.mxu0
  %v6283 = vadd.f32 0.0, %v6282
  %6284 = vmatmul.bf16.gmra.mxu0 %v5827
  %v6285 = vpop.f32.mrf.mxu0
  %v6286 = vadd.f32 0.0, %v6285
  %v6287 = vpop.f32.mrf.mxu0
  %v6288 = vadd.f32 0.0, %v6287
  %6289 = vmatmul.bf16.gmra.mxu0 %v5830
  %v6290 = vpop.f32.mrf.mxu0
  %v6291 = vadd.f32 0.0, %v6290
  %v6292 = vpop.f32.mrf.mxu0
  %v6293 = vadd.f32 0.0, %v6292
  %6294 = vmatmul.bf16.gmra.mxu0 %v5833
  %v6295 = vpop.f32.mrf.mxu0
  %v6296 = vadd.f32 0.0, %v6295
  %v6297 = vpop.f32.mrf.mxu0
  %v6298 = vadd.f32 0.0, %v6297
  %6299 = vmatmul.bf16.gmra.mxu0 %v5836
  %v6300 = vpop.f32.mrf.mxu0
  %v6301 = vadd.f32 0.0, %v6300
  %v6302 = vpop.f32.mrf.mxu0
  %v6303 = vadd.f32 0.0, %v6302
  %6304 = vmatmul.bf16.gmra.mxu0 %v5839
  %v6305 = vpop.f32.mrf.mxu0
  %v6306 = vadd.f32 0.0, %v6305
  %v6307 = vpop.f32.mrf.mxu0
  %v6308 = vadd.f32 0.0, %v6307
  %6309 = vmatmul.bf16.gmra.mxu0 %v5842
  %v6310 = vpop.f32.mrf.mxu0
  %v6311 = vadd.f32 0.0, %v6310
  %v6312 = vpop.f32.mrf.mxu0
  %v6313 = vadd.f32 0.0, %v6312
  %6314 = vmatmul.bf16.gmra.mxu0 %v5845
  %v6315 = vpop.f32.mrf.mxu0
  %v6316 = vadd.f32 0.0, %v6315
  %v6317 = vpop.f32.mrf.mxu0
  %v6318 = vadd.f32 0.0, %v6317
  %6319 = vmatmul.bf16.gmra.mxu0 %v5848
  %v6320 = vpop.f32.mrf.mxu0
  %v6321 = vadd.f32 0.0, %v6320
  %v6322 = vpop.f32.mrf.mxu0
  %v6323 = vadd.f32 0.0, %v6322
  %6324 = vmatmul.bf16.gmra.mxu0 %v5851
  %v6325 = vpop.f32.mrf.mxu0
  %v6326 = vadd.f32 0.0, %v6325
  %v6327 = vpop.f32.mrf.mxu0
  %v6328 = vadd.f32 0.0, %v6327
  %6329 = vmatmul.bf16.gmra.mxu0 %v5854
  %v6330 = vpop.f32.mrf.mxu0
  %v6331 = vadd.f32 0.0, %v6330
  %v6332 = vpop.f32.mrf.mxu0
  %v6333 = vadd.f32 0.0, %v6332
  %6334 = vmatmul.bf16.gmra.mxu0 %v5857
  %v6335 = vpop.f32.mrf.mxu0
  %v6336 = vadd.f32 0.0, %v6335
  %v6337 = vpop.f32.mrf.mxu0
  %v6338 = vadd.f32 0.0, %v6337
  %6339 = vmatmul.bf16.gmra.mxu0 %v5860
  %v6340 = vpop.f32.mrf.mxu0
  %v6341 = vadd.f32 0.0, %v6340
  %v6342 = vpop.f32.mrf.mxu0
  %v6343 = vadd.f32 0.0, %v6342
  %6344 = vmatmul.bf16.gmra.mxu0 %v5863
  %v6345 = vpop.f32.mrf.mxu0
  %v6346 = vadd.f32 0.0, %v6345
  %v6347 = vpop.f32.mrf.mxu0
  %v6348 = vadd.f32 0.0, %v6347
  %6349 = vmatmul.bf16.gmra.mxu0 %v5866
  %v6350 = vpop.f32.mrf.mxu0
  %v6351 = vadd.f32 0.0, %v6350
  %v6352 = vpop.f32.mrf.mxu0
  %v6353 = vadd.f32 0.0, %v6352
  %6354 = vmatmul.bf16.gmra.mxu0 %v5869
  %v6355 = vpop.f32.mrf.mxu0
  %v6356 = vadd.f32 0.0, %v6355
  %v6357 = vpop.f32.mrf.mxu0
  %v6358 = vadd.f32 0.0, %v6357
  %6359 = vmatmul.bf16.gmra.mxu0 %v5872
  %v6360 = vpop.f32.mrf.mxu0
  %v6361 = vadd.f32 0.0, %v6360
  %v6362 = vpop.f32.mrf.mxu0
  %v6363 = vadd.f32 0.0, %v6362
  %6364 = vmatmul.bf16.gmra.mxu0 %v5875
  %v6365 = vpop.f32.mrf.mxu0
  %v6366 = vadd.f32 0.0, %v6365
  %v6367 = vpop.f32.mrf.mxu0
  %v6368 = vadd.f32 0.0, %v6367
  %6369 = vmatmul.bf16.gmra.mxu0 %v5878
  %v6370 = vpop.f32.mrf.mxu0
  %v6371 = vadd.f32 0.0, %v6370
  %v6372 = vpop.f32.mrf.mxu0
  %v6373 = vadd.f32 0.0, %v6372
  %6374 = vmatmul.bf16.gmra.mxu0 %v5881
  %v6375 = vpop.f32.mrf.mxu0
  %v6376 = vadd.f32 0.0, %v6375
  %v6377 = vpop.f32.mrf.mxu0
  %v6378 = vadd.f32 0.0, %v6377
  %6379 = vmatmul.bf16.gmra.mxu0 %v5884
  %v6380 = vpop.f32.mrf.mxu0
  %v6381 = vadd.f32 0.0, %v6380
  %v6382 = vpop.f32.mrf.mxu0
  %v6383 = vadd.f32 0.0, %v6382
  %6384 = vdwg.mxu0
  %v6385 = vmax.f32 %v4709, %v5896
  %v6386 = vmax.f32 %v4710, %v5898
  %v6387 = vmax.f32 %v4711, %v5901
  %v6388 = vmax.f32 %v4712, %v5903
  %v6389 = vmax.f32 %v4713, %v5906
  %v6390 = vmax.f32 %v4714, %v5908
  %v6391 = vmax.f32 %v4715, %v5911
  %v6392 = vmax.f32 %v4716, %v5913
  %v6393 = vmax.f32 %v4717, %v5916
  %v6394 = vmax.f32 %v4718, %v5918
  %v6395 = vmax.f32 %v4719, %v5921
  %v6396 = vmax.f32 %v4720, %v5923
  %v6397 = vmax.f32 %v4721, %v5926
  %v6398 = vmax.f32 %v4722, %v5928
  %v6399 = vmax.f32 %v4723, %v5931
  %v6400 = vmax.f32 %v4724, %v5933
  %v6401 = vmax.f32 %v4725, %v5936
  %v6402 = vmax.f32 %v4726, %v5938
  %v6403 = vmax.f32 %v4727, %v5941
  %v6404 = vmax.f32 %v4728, %v5943
  %v6405 = vmax.f32 %v4729, %v5946
  %v6406 = vmax.f32 %v4730, %v5948
  %v6407 = vmax.f32 %v4731, %v5951
  %v6408 = vmax.f32 %v4732, %v5953
  %v6409 = vmax.f32 %v4733, %v5956
  %v6410 = vmax.f32 %v4734, %v5958
  %v6411 = vmax.f32 %v4735, %v5961
  %v6412 = vmax.f32 %v4736, %v5963
  %v6413 = vmax.f32 %v4737, %v5966
  %v6414 = vmax.f32 %v4738, %v5968
  %v6415 = vmax.f32 %v4739, %v5971
  %v6416 = vmax.f32 %v4740, %v5973
  %v6417 = vmax.f32 %v4741, %v5976
  %v6418 = vmax.f32 %v4742, %v5978
  %v6419 = vmax.f32 %v4743, %v5981
  %v6420 = vmax.f32 %v4744, %v5983
  %v6421 = vmax.f32 %v4745, %v5986
  %v6422 = vmax.f32 %v4746, %v5988
  %v6423 = vmax.f32 %v4747, %v5991
  %v6424 = vmax.f32 %v4748, %v5993
  %v6425 = vmax.f32 %v4749, %v5996
  %v6426 = vmax.f32 %v4750, %v5998
  %v6427 = vmax.f32 %v4751, %v6001
  %v6428 = vmax.f32 %v4752, %v6003
  %v6429 = vmax.f32 %v4753, %v6006
  %v6430 = vmax.f32 %v4754, %v6008
  %v6431 = vmax.f32 %v4755, %v6011
  %v6432 = vmax.f32 %v4756, %v6013
  %v6433 = vmax.f32 %v4757, %v6016
  %v6434 = vmax.f32 %v4758, %v6018
  %v6435 = vmax.f32 %v4759, %v6021
  %v6436 = vmax.f32 %v4760, %v6023
  %v6437 = vmax.f32 %v4761, %v6026
  %v6438 = vmax.f32 %v4762, %v6028
  %v6439 = vmax.f32 %v4763, %v6031
  %v6440 = vmax.f32 %v4764, %v6033
  %v6441 = vmax.f32 %v4765, %v6036
  %v6442 = vmax.f32 %v4766, %v6038
  %v6443 = vmax.f32 %v4767, %v6041
  %v6444 = vmax.f32 %v4768, %v6043
  %v6445 = vmax.f32 %v4769, %v6046
  %v6446 = vmax.f32 %v4770, %v6048
  %v6447 = vmax.f32 %v4771, %v6051
  %v6448 = vmax.f32 %v4772, %v6053
  %v6449 = vmax.f32 %v4773, %v6056
  %v6450 = vmax.f32 %v4774, %v6058
  %v6451 = vmax.f32 %v4775, %v6061
  %v6452 = vmax.f32 %v4776, %v6063
  %v6453 = vmax.f32 %v4777, %v6066
  %v6454 = vmax.f32 %v4778, %v6068
  %v6455 = vmax.f32 %v4779, %v6071
  %v6456 = vmax.f32 %v4780, %v6073
  %v6457 = vmax.f32 %v4781, %v6076
  %v6458 = vmax.f32 %v4782, %v6078
  %v6459 = vmax.f32 %v4783, %v6081
  %v6460 = vmax.f32 %v4784, %v6083
  %v6461 = vmax.f32 %v4785, %v6086
  %v6462 = vmax.f32 %v4786, %v6088
  %v6463 = vmax.f32 %v4787, %v6091
  %v6464 = vmax.f32 %v4788, %v6093
  %v6465 = vmax.f32 %v4789, %v6096
  %v6466 = vmax.f32 %v4790, %v6098
  %v6467 = vmax.f32 %v4791, %v6101
  %v6468 = vmax.f32 %v4792, %v6103
  %v6469 = vmax.f32 %v4793, %v6106
  %v6470 = vmax.f32 %v4794, %v6108
  %v6471 = vmax.f32 %v4795, %v6111
  %v6472 = vmax.f32 %v4796, %v6113
  %v6473 = vmax.f32 %v4797, %v6116
  %v6474 = vmax.f32 %v4798, %v6118
  %v6475 = vmax.f32 %v4799, %v6121
  %v6476 = vmax.f32 %v4800, %v6123
  %v6477 = vmax.f32 %v4801, %v6126
  %v6478 = vmax.f32 %v4802, %v6128
  %v6479 = vmax.f32 %v4803, %v6131
  %v6480 = vmax.f32 %v4804, %v6133
  %v6481 = vmax.f32 %v4805, %v6136
  %v6482 = vmax.f32 %v4806, %v6138
  %v6483 = vmax.f32 %v4807, %v6141
  %v6484 = vmax.f32 %v4808, %v6143
  %v6485 = vmax.f32 %v4809, %v6146
  %v6486 = vmax.f32 %v4810, %v6148
  %v6487 = vmax.f32 %v4811, %v6151
  %v6488 = vmax.f32 %v4812, %v6153
  %v6489 = vmax.f32 %v4813, %v6156
  %v6490 = vmax.f32 %v4814, %v6158
  %v6491 = vmax.f32 %v4815, %v6161
  %v6492 = vmax.f32 %v4816, %v6163
  %v6493 = vmax.f32 %v4817, %v6166
  %v6494 = vmax.f32 %v4818, %v6168
  %v6495 = vmax.f32 %v4819, %v6171
  %v6496 = vmax.f32 %v4820, %v6173
  %v6497 = vmax.f32 %v4821, %v6176
  %v6498 = vmax.f32 %v4822, %v6178
  %v6499 = vmax.f32 %v4823, %v6181
  %v6500 = vmax.f32 %v4824, %v6183
  %v6501 = vmax.f32 %v4825, %v6186
  %v6502 = vmax.f32 %v4826, %v6188
  %v6503 = vmax.f32 %v4827, %v6191
  %v6504 = vmax.f32 %v4828, %v6193
  %v6505 = vmax.f32 %v4829, %v6196
  %v6506 = vmax.f32 %v4830, %v6198
  %v6507 = vmax.f32 %v4831, %v6201
  %v6508 = vmax.f32 %v4832, %v6203
  %v6509 = vmax.f32 %v4833, %v6206
  %v6510 = vmax.f32 %v4834, %v6208
  %v6511 = vmax.f32 %v4835, %v6211
  %v6512 = vmax.f32 %v4836, %v6213
  %v6513 = vmax.f32 %v4837, %v6216
  %v6514 = vmax.f32 %v4838, %v6218
  %v6515 = vmax.f32 %v4839, %v6221
  %v6516 = vmax.f32 %v4840, %v6223
  %v6517 = vmax.f32 %v4841, %v6226
  %v6518 = vmax.f32 %v4842, %v6228
  %v6519 = vmax.f32 %v4843, %v6231
  %v6520 = vmax.f32 %v4844, %v6233
  %v6521 = vmax.f32 %v4845, %v6236
  %v6522 = vmax.f32 %v4846, %v6238
  %v6523 = vmax.f32 %v4847, %v6241
  %v6524 = vmax.f32 %v4848, %v6243
  %v6525 = vmax.f32 %v4849, %v6246
  %v6526 = vmax.f32 %v4850, %v6248
  %v6527 = vmax.f32 %v4851, %v6251
  %v6528 = vmax.f32 %v4852, %v6253
  %v6529 = vmax.f32 %v4853, %v6256
  %v6530 = vmax.f32 %v4854, %v6258
  %v6531 = vmax.f32 %v4855, %v6261
  %v6532 = vmax.f32 %v4856, %v6263
  %v6533 = vmax.f32 %v4857, %v6266
  %v6534 = vmax.f32 %v4858, %v6268
  %v6535 = vmax.f32 %v4859, %v6271
  %v6536 = vmax.f32 %v4860, %v6273
  %v6537 = vmax.f32 %v4861, %v6276
  %v6538 = vmax.f32 %v4862, %v6278
  %v6539 = vmax.f32 %v4863, %v6281
  %v6540 = vmax.f32 %v4864, %v6283
  %v6541 = vmax.f32 %v4865, %v6286
  %v6542 = vmax.f32 %v4866, %v6288
  %v6543 = vmax.f32 %v4867, %v6291
  %v6544 = vmax.f32 %v4868, %v6293
  %v6545 = vmax.f32 %v4869, %v6296
  %v6546 = vmax.f32 %v4870, %v6298
  %v6547 = vmax.f32 %v4871, %v6301
  %v6548 = vmax.f32 %v4872, %v6303
  %v6549 = vmax.f32 %v4873, %v6306
  %v6550 = vmax.f32 %v4874, %v6308
  %v6551 = vmax.f32 %v4875, %v6311
  %v6552 = vmax.f32 %v4876, %v6313
  %v6553 = vmax.f32 %v4877, %v6316
  %v6554 = vmax.f32 %v4878, %v6318
  %v6555 = vmax.f32 %v4879, %v6321
  %v6556 = vmax.f32 %v4880, %v6323
  %v6557 = vmax.f32 %v4881, %v6326
  %v6558 = vmax.f32 %v4882, %v6328
  %v6559 = vmax.f32 %v4883, %v6331
  %v6560 = vmax.f32 %v4884, %v6333
  %v6561 = vmax.f32 %v4885, %v6336
  %v6562 = vmax.f32 %v4886, %v6338
  %v6563 = vmax.f32 %v4887, %v6341
  %v6564 = vmax.f32 %v4888, %v6343
  %v6565 = vmax.f32 %v4889, %v6346
  %v6566 = vmax.f32 %v4890, %v6348
  %v6567 = vmax.f32 %v4891, %v6351
  %v6568 = vmax.f32 %v4892, %v6353
  %v6569 = vmax.f32 %v4893, %v6356
  %v6570 = vmax.f32 %v4894, %v6358
  %v6571 = vmax.f32 %v4895, %v6361
  %v6572 = vmax.f32 %v4896, %v6363
  %v6573 = vmax.f32 %v4897, %v6366
  %v6574 = vmax.f32 %v4898, %v6368
  %v6575 = vmax.f32 %v4899, %v6371
  %v6576 = vmax.f32 %v4900, %v6373
  %v6577 = vmax.f32 %v4901, %v6376
  %v6578 = vmax.f32 %v4902, %v6378
  %v6579 = vmax.f32 %v4903, %v6381
  %v6580 = vmax.f32 %v4904, %v6383
  %v6581 = vld [vmem:[%s2] sm:$0x1]
  %v6583 = vperm.slane %v6581, 0
  %v6585 = vadd.f32 %v6385, %v6583
  %v6586 = vadd.f32 %v6386, %v6583
  %v6587 = vadd.f32 %v6387, %v6583
  %v6588 = vadd.f32 %v6388, %v6583
  %v6589 = vadd.f32 %v6389, %v6583
  %v6590 = vadd.f32 %v6390, %v6583
  %v6591 = vadd.f32 %v6391, %v6583
  %v6592 = vadd.f32 %v6392, %v6583
  %v6593 = vadd.f32 %v6393, %v6583
  %v6594 = vadd.f32 %v6394, %v6583
  %v6595 = vadd.f32 %v6395, %v6583
  %v6596 = vadd.f32 %v6396, %v6583
  %v6597 = vadd.f32 %v6397, %v6583
  %v6598 = vadd.f32 %v6398, %v6583
  %v6599 = vadd.f32 %v6399, %v6583
  %v6600 = vadd.f32 %v6400, %v6583
  %v6601 = vadd.f32 %v6401, %v6583
  %v6602 = vadd.f32 %v6402, %v6583
  %v6603 = vadd.f32 %v6403, %v6583
  %v6604 = vadd.f32 %v6404, %v6583
  %v6605 = vadd.f32 %v6405, %v6583
  %v6606 = vadd.f32 %v6406, %v6583
  %v6607 = vadd.f32 %v6407, %v6583
  %v6608 = vadd.f32 %v6408, %v6583
  %v6609 = vadd.f32 %v6409, %v6583
  %v6610 = vadd.f32 %v6410, %v6583
  %v6611 = vadd.f32 %v6411, %v6583
  %v6612 = vadd.f32 %v6412, %v6583
  %v6613 = vadd.f32 %v6413, %v6583
  %v6614 = vadd.f32 %v6414, %v6583
  %v6615 = vadd.f32 %v6415, %v6583
  %v6616 = vadd.f32 %v6416, %v6583
  %v6617 = vadd.f32 %v6417, %v6583
  %v6618 = vadd.f32 %v6418, %v6583
  %v6619 = vadd.f32 %v6419, %v6583
  %v6620 = vadd.f32 %v6420, %v6583
  %v6621 = vadd.f32 %v6421, %v6583
  %v6622 = vadd.f32 %v6422, %v6583
  %v6623 = vadd.f32 %v6423, %v6583
  %v6624 = vadd.f32 %v6424, %v6583
  %v6625 = vadd.f32 %v6425, %v6583
  %v6626 = vadd.f32 %v6426, %v6583
  %v6627 = vadd.f32 %v6427, %v6583
  %v6628 = vadd.f32 %v6428, %v6583
  %v6629 = vadd.f32 %v6429, %v6583
  %v6630 = vadd.f32 %v6430, %v6583
  %v6631 = vadd.f32 %v6431, %v6583
  %v6632 = vadd.f32 %v6432, %v6583
  %v6633 = vadd.f32 %v6433, %v6583
  %v6634 = vadd.f32 %v6434, %v6583
  %v6635 = vadd.f32 %v6435, %v6583
  %v6636 = vadd.f32 %v6436, %v6583
  %v6637 = vadd.f32 %v6437, %v6583
  %v6638 = vadd.f32 %v6438, %v6583
  %v6639 = vadd.f32 %v6439, %v6583
  %v6640 = vadd.f32 %v6440, %v6583
  %v6641 = vadd.f32 %v6441, %v6583
  %v6642 = vadd.f32 %v6442, %v6583
  %v6643 = vadd.f32 %v6443, %v6583
  %v6644 = vadd.f32 %v6444, %v6583
  %v6645 = vadd.f32 %v6445, %v6583
  %v6646 = vadd.f32 %v6446, %v6583
  %v6647 = vadd.f32 %v6447, %v6583
  %v6648 = vadd.f32 %v6448, %v6583
  %v6649 = vadd.f32 %v6449, %v6583
  %v6650 = vadd.f32 %v6450, %v6583
  %v6651 = vadd.f32 %v6451, %v6583
  %v6652 = vadd.f32 %v6452, %v6583
  %v6653 = vadd.f32 %v6453, %v6583
  %v6654 = vadd.f32 %v6454, %v6583
  %v6655 = vadd.f32 %v6455, %v6583
  %v6656 = vadd.f32 %v6456, %v6583
  %v6657 = vadd.f32 %v6457, %v6583
  %v6658 = vadd.f32 %v6458, %v6583
  %v6659 = vadd.f32 %v6459, %v6583
  %v6660 = vadd.f32 %v6460, %v6583
  %v6661 = vadd.f32 %v6461, %v6583
  %v6662 = vadd.f32 %v6462, %v6583
  %v6663 = vadd.f32 %v6463, %v6583
  %v6664 = vadd.f32 %v6464, %v6583
  %v6665 = vadd.f32 %v6465, %v6583
  %v6666 = vadd.f32 %v6466, %v6583
  %v6667 = vadd.f32 %v6467, %v6583
  %v6668 = vadd.f32 %v6468, %v6583
  %v6669 = vadd.f32 %v6469, %v6583
  %v6670 = vadd.f32 %v6470, %v6583
  %v6671 = vadd.f32 %v6471, %v6583
  %v6672 = vadd.f32 %v6472, %v6583
  %v6673 = vadd.f32 %v6473, %v6583
  %v6674 = vadd.f32 %v6474, %v6583
  %v6675 = vadd.f32 %v6475, %v6583
  %v6676 = vadd.f32 %v6476, %v6583
  %v6677 = vadd.f32 %v6477, %v6583
  %v6678 = vadd.f32 %v6478, %v6583
  %v6679 = vadd.f32 %v6479, %v6583
  %v6680 = vadd.f32 %v6480, %v6583
  %v6681 = vadd.f32 %v6481, %v6583
  %v6682 = vadd.f32 %v6482, %v6583
  %v6683 = vadd.f32 %v6483, %v6583
  %v6684 = vadd.f32 %v6484, %v6583
  %v6685 = vadd.f32 %v6485, %v6583
  %v6686 = vadd.f32 %v6486, %v6583
  %v6687 = vadd.f32 %v6487, %v6583
  %v6688 = vadd.f32 %v6488, %v6583
  %v6689 = vadd.f32 %v6489, %v6583
  %v6690 = vadd.f32 %v6490, %v6583
  %v6691 = vadd.f32 %v6491, %v6583
  %v6692 = vadd.f32 %v6492, %v6583
  %v6693 = vadd.f32 %v6493, %v6583
  %v6694 = vadd.f32 %v6494, %v6583
  %v6695 = vadd.f32 %v6495, %v6583
  %v6696 = vadd.f32 %v6496, %v6583
  %v6697 = vadd.f32 %v6497, %v6583
  %v6698 = vadd.f32 %v6498, %v6583
  %v6699 = vadd.f32 %v6499, %v6583
  %v6700 = vadd.f32 %v6500, %v6583
  %v6701 = vadd.f32 %v6501, %v6583
  %v6702 = vadd.f32 %v6502, %v6583
  %v6703 = vadd.f32 %v6503, %v6583
  %v6704 = vadd.f32 %v6504, %v6583
  %v6705 = vadd.f32 %v6505, %v6583
  %v6706 = vadd.f32 %v6506, %v6583
  %v6707 = vadd.f32 %v6507, %v6583
  %v6708 = vadd.f32 %v6508, %v6583
  %v6709 = vadd.f32 %v6509, %v6583
  %v6710 = vadd.f32 %v6510, %v6583
  %v6711 = vadd.f32 %v6511, %v6583
  %v6712 = vadd.f32 %v6512, %v6583
  %v6713 = vadd.f32 %v6513, %v6583
  %v6714 = vadd.f32 %v6514, %v6583
  %v6715 = vadd.f32 %v6515, %v6583
  %v6716 = vadd.f32 %v6516, %v6583
  %v6717 = vadd.f32 %v6517, %v6583
  %v6718 = vadd.f32 %v6518, %v6583
  %v6719 = vadd.f32 %v6519, %v6583
  %v6720 = vadd.f32 %v6520, %v6583
  %v6721 = vadd.f32 %v6521, %v6583
  %v6722 = vadd.f32 %v6522, %v6583
  %v6723 = vadd.f32 %v6523, %v6583
  %v6724 = vadd.f32 %v6524, %v6583
  %v6725 = vadd.f32 %v6525, %v6583
  %v6726 = vadd.f32 %v6526, %v6583
  %v6727 = vadd.f32 %v6527, %v6583
  %v6728 = vadd.f32 %v6528, %v6583
  %v6729 = vadd.f32 %v6529, %v6583
  %v6730 = vadd.f32 %v6530, %v6583
  %v6731 = vadd.f32 %v6531, %v6583
  %v6732 = vadd.f32 %v6532, %v6583
  %v6733 = vadd.f32 %v6533, %v6583
  %v6734 = vadd.f32 %v6534, %v6583
  %v6735 = vadd.f32 %v6535, %v6583
  %v6736 = vadd.f32 %v6536, %v6583
  %v6737 = vadd.f32 %v6537, %v6583
  %v6738 = vadd.f32 %v6538, %v6583
  %v6739 = vadd.f32 %v6539, %v6583
  %v6740 = vadd.f32 %v6540, %v6583
  %v6741 = vadd.f32 %v6541, %v6583
  %v6742 = vadd.f32 %v6542, %v6583
  %v6743 = vadd.f32 %v6543, %v6583
  %v6744 = vadd.f32 %v6544, %v6583
  %v6745 = vadd.f32 %v6545, %v6583
  %v6746 = vadd.f32 %v6546, %v6583
  %v6747 = vadd.f32 %v6547, %v6583
  %v6748 = vadd.f32 %v6548, %v6583
  %v6749 = vadd.f32 %v6549, %v6583
  %v6750 = vadd.f32 %v6550, %v6583
  %v6751 = vadd.f32 %v6551, %v6583
  %v6752 = vadd.f32 %v6552, %v6583
  %v6753 = vadd.f32 %v6553, %v6583
  %v6754 = vadd.f32 %v6554, %v6583
  %v6755 = vadd.f32 %v6555, %v6583
  %v6756 = vadd.f32 %v6556, %v6583
  %v6757 = vadd.f32 %v6557, %v6583
  %v6758 = vadd.f32 %v6558, %v6583
  %v6759 = vadd.f32 %v6559, %v6583
  %v6760 = vadd.f32 %v6560, %v6583
  %v6761 = vadd.f32 %v6561, %v6583
  %v6762 = vadd.f32 %v6562, %v6583
  %v6763 = vadd.f32 %v6563, %v6583
  %v6764 = vadd.f32 %v6564, %v6583
  %v6765 = vadd.f32 %v6565, %v6583
  %v6766 = vadd.f32 %v6566, %v6583
  %v6767 = vadd.f32 %v6567, %v6583
  %v6768 = vadd.f32 %v6568, %v6583
  %v6769 = vadd.f32 %v6569, %v6583
  %v6770 = vadd.f32 %v6570, %v6583
  %v6771 = vadd.f32 %v6571, %v6583
  %v6772 = vadd.f32 %v6572, %v6583
  %v6773 = vadd.f32 %v6573, %v6583
  %v6774 = vadd.f32 %v6574, %v6583
  %v6775 = vadd.f32 %v6575, %v6583
  %v6776 = vadd.f32 %v6576, %v6583
  %v6777 = vadd.f32 %v6577, %v6583
  %v6778 = vadd.f32 %v6578, %v6583
  %v6779 = vadd.f32 %v6579, %v6583
  %v6780 = vadd.f32 %v6580, %v6583
  %v6781 = vmax.f32 %v6585, 0.0
  %v6782 = vmax.f32 %v6586, 0.0
  %v6783 = vmax.f32 %v6587, 0.0
  %v6784 = vmax.f32 %v6588, 0.0
  %v6785 = vmax.f32 %v6589, 0.0
  %v6786 = vmax.f32 %v6590, 0.0
  %v6787 = vmax.f32 %v6591, 0.0
  %v6788 = vmax.f32 %v6592, 0.0
  %v6789 = vmax.f32 %v6593, 0.0
  %v6790 = vmax.f32 %v6594, 0.0
  %v6791 = vmax.f32 %v6595, 0.0
  %v6792 = vmax.f32 %v6596, 0.0
  %v6793 = vmax.f32 %v6597, 0.0
  %v6794 = vmax.f32 %v6598, 0.0
  %v6795 = vmax.f32 %v6599, 0.0
  %v6796 = vmax.f32 %v6600, 0.0
  %v6797 = vmax.f32 %v6601, 0.0
  %v6798 = vmax.f32 %v6602, 0.0
  %v6799 = vmax.f32 %v6603, 0.0
  %v6800 = vmax.f32 %v6604, 0.0
  %v6801 = vmax.f32 %v6605, 0.0
  %v6802 = vmax.f32 %v6606, 0.0
  %v6803 = vmax.f32 %v6607, 0.0
  %v6804 = vmax.f32 %v6608, 0.0
  %v6805 = vmax.f32 %v6609, 0.0
  %v6806 = vmax.f32 %v6610, 0.0
  %v6807 = vmax.f32 %v6611, 0.0
  %v6808 = vmax.f32 %v6612, 0.0
  %v6809 = vmax.f32 %v6613, 0.0
  %v6810 = vmax.f32 %v6614, 0.0
  %v6811 = vmax.f32 %v6615, 0.0
  %v6812 = vmax.f32 %v6616, 0.0
  %v6813 = vmax.f32 %v6617, 0.0
  %v6814 = vmax.f32 %v6618, 0.0
  %v6815 = vmax.f32 %v6619, 0.0
  %v6816 = vmax.f32 %v6620, 0.0
  %v6817 = vmax.f32 %v6621, 0.0
  %v6818 = vmax.f32 %v6622, 0.0
  %v6819 = vmax.f32 %v6623, 0.0
  %v6820 = vmax.f32 %v6624, 0.0
  %v6821 = vmax.f32 %v6625, 0.0
  %v6822 = vmax.f32 %v6626, 0.0
  %v6823 = vmax.f32 %v6627, 0.0
  %v6824 = vmax.f32 %v6628, 0.0
  %v6825 = vmax.f32 %v6629, 0.0
  %v6826 = vmax.f32 %v6630, 0.0
  %v6827 = vmax.f32 %v6631, 0.0
  %v6828 = vmax.f32 %v6632, 0.0
  %v6829 = vmax.f32 %v6633, 0.0
  %v6830 = vmax.f32 %v6634, 0.0
  %v6831 = vmax.f32 %v6635, 0.0
  %v6832 = vmax.f32 %v6636, 0.0
  %v6833 = vmax.f32 %v6637, 0.0
  %v6834 = vmax.f32 %v6638, 0.0
  %v6835 = vmax.f32 %v6639, 0.0
  %v6836 = vmax.f32 %v6640, 0.0
  %v6837 = vmax.f32 %v6641, 0.0
  %v6838 = vmax.f32 %v6642, 0.0
  %v6839 = vmax.f32 %v6643, 0.0
  %v6840 = vmax.f32 %v6644, 0.0
  %v6841 = vmax.f32 %v6645, 0.0
  %v6842 = vmax.f32 %v6646, 0.0
  %v6843 = vmax.f32 %v6647, 0.0
  %v6844 = vmax.f32 %v6648, 0.0
  %v6845 = vmax.f32 %v6649, 0.0
  %v6846 = vmax.f32 %v6650, 0.0
  %v6847 = vmax.f32 %v6651, 0.0
  %v6848 = vmax.f32 %v6652, 0.0
  %v6849 = vmax.f32 %v6653, 0.0
  %v6850 = vmax.f32 %v6654, 0.0
  %v6851 = vmax.f32 %v6655, 0.0
  %v6852 = vmax.f32 %v6656, 0.0
  %v6853 = vmax.f32 %v6657, 0.0
  %v6854 = vmax.f32 %v6658, 0.0
  %v6855 = vmax.f32 %v6659, 0.0
  %v6856 = vmax.f32 %v6660, 0.0
  %v6857 = vmax.f32 %v6661, 0.0
  %v6858 = vmax.f32 %v6662, 0.0
  %v6859 = vmax.f32 %v6663, 0.0
  %v6860 = vmax.f32 %v6664, 0.0
  %v6861 = vmax.f32 %v6665, 0.0
  %v6862 = vmax.f32 %v6666, 0.0
  %v6863 = vmax.f32 %v6667, 0.0
  %v6864 = vmax.f32 %v6668, 0.0
  %v6865 = vmax.f32 %v6669, 0.0
  %v6866 = vmax.f32 %v6670, 0.0
  %v6867 = vmax.f32 %v6671, 0.0
  %v6868 = vmax.f32 %v6672, 0.0
  %v6869 = vmax.f32 %v6673, 0.0
  %v6870 = vmax.f32 %v6674, 0.0
  %v6871 = vmax.f32 %v6675, 0.0
  %v6872 = vmax.f32 %v6676, 0.0
  %v6873 = vmax.f32 %v6677, 0.0
  %v6874 = vmax.f32 %v6678, 0.0
  %v6875 = vmax.f32 %v6679, 0.0
  %v6876 = vmax.f32 %v6680, 0.0
  %v6877 = vmax.f32 %v6681, 0.0
  %v6878 = vmax.f32 %v6682, 0.0
  %v6879 = vmax.f32 %v6683, 0.0
  %v6880 = vmax.f32 %v6684, 0.0
  %v6881 = vmax.f32 %v6685, 0.0
  %v6882 = vmax.f32 %v6686, 0.0
  %v6883 = vmax.f32 %v6687, 0.0
  %v6884 = vmax.f32 %v6688, 0.0
  %v6885 = vmax.f32 %v6689, 0.0
  %v6886 = vmax.f32 %v6690, 0.0
  %v6887 = vmax.f32 %v6691, 0.0
  %v6888 = vmax.f32 %v6692, 0.0
  %v6889 = vmax.f32 %v6693, 0.0
  %v6890 = vmax.f32 %v6694, 0.0
  %v6891 = vmax.f32 %v6695, 0.0
  %v6892 = vmax.f32 %v6696, 0.0
  %v6893 = vmax.f32 %v6697, 0.0
  %v6894 = vmax.f32 %v6698, 0.0
  %v6895 = vmax.f32 %v6699, 0.0
  %v6896 = vmax.f32 %v6700, 0.0
  %v6897 = vmax.f32 %v6701, 0.0
  %v6898 = vmax.f32 %v6702, 0.0
  %v6899 = vmax.f32 %v6703, 0.0
  %v6900 = vmax.f32 %v6704, 0.0
  %v6901 = vmax.f32 %v6705, 0.0
  %v6902 = vmax.f32 %v6706, 0.0
  %v6903 = vmax.f32 %v6707, 0.0
  %v6904 = vmax.f32 %v6708, 0.0
  %v6905 = vmax.f32 %v6709, 0.0
  %v6906 = vmax.f32 %v6710, 0.0
  %v6907 = vmax.f32 %v6711, 0.0
  %v6908 = vmax.f32 %v6712, 0.0
  %v6909 = vmax.f32 %v6713, 0.0
  %v6910 = vmax.f32 %v6714, 0.0
  %v6911 = vmax.f32 %v6715, 0.0
  %v6912 = vmax.f32 %v6716, 0.0
  %v6913 = vmax.f32 %v6717, 0.0
  %v6914 = vmax.f32 %v6718, 0.0
  %v6915 = vmax.f32 %v6719, 0.0
  %v6916 = vmax.f32 %v6720, 0.0
  %v6917 = vmax.f32 %v6721, 0.0
  %v6918 = vmax.f32 %v6722, 0.0
  %v6919 = vmax.f32 %v6723, 0.0
  %v6920 = vmax.f32 %v6724, 0.0
  %v6921 = vmax.f32 %v6725, 0.0
  %v6922 = vmax.f32 %v6726, 0.0
  %v6923 = vmax.f32 %v6727, 0.0
  %v6924 = vmax.f32 %v6728, 0.0
  %v6925 = vmax.f32 %v6729, 0.0
  %v6926 = vmax.f32 %v6730, 0.0
  %v6927 = vmax.f32 %v6731, 0.0
  %v6928 = vmax.f32 %v6732, 0.0
  %v6929 = vmax.f32 %v6733, 0.0
  %v6930 = vmax.f32 %v6734, 0.0
  %v6931 = vmax.f32 %v6735, 0.0
  %v6932 = vmax.f32 %v6736, 0.0
  %v6933 = vmax.f32 %v6737, 0.0
  %v6934 = vmax.f32 %v6738, 0.0
  %v6935 = vmax.f32 %v6739, 0.0
  %v6936 = vmax.f32 %v6740, 0.0
  %v6937 = vmax.f32 %v6741, 0.0
  %v6938 = vmax.f32 %v6742, 0.0
  %v6939 = vmax.f32 %v6743, 0.0
  %v6940 = vmax.f32 %v6744, 0.0
  %v6941 = vmax.f32 %v6745, 0.0
  %v6942 = vmax.f32 %v6746, 0.0
  %v6943 = vmax.f32 %v6747, 0.0
  %v6944 = vmax.f32 %v6748, 0.0
  %v6945 = vmax.f32 %v6749, 0.0
  %v6946 = vmax.f32 %v6750, 0.0
  %v6947 = vmax.f32 %v6751, 0.0
  %v6948 = vmax.f32 %v6752, 0.0
  %v6949 = vmax.f32 %v6753, 0.0
  %v6950 = vmax.f32 %v6754, 0.0
  %v6951 = vmax.f32 %v6755, 0.0
  %v6952 = vmax.f32 %v6756, 0.0
  %v6953 = vmax.f32 %v6757, 0.0
  %v6954 = vmax.f32 %v6758, 0.0
  %v6955 = vmax.f32 %v6759, 0.0
  %v6956 = vmax.f32 %v6760, 0.0
  %v6957 = vmax.f32 %v6761, 0.0
  %v6958 = vmax.f32 %v6762, 0.0
  %v6959 = vmax.f32 %v6763, 0.0
  %v6960 = vmax.f32 %v6764, 0.0
  %v6961 = vmax.f32 %v6765, 0.0
  %v6962 = vmax.f32 %v6766, 0.0
  %v6963 = vmax.f32 %v6767, 0.0
  %v6964 = vmax.f32 %v6768, 0.0
  %v6965 = vmax.f32 %v6769, 0.0
  %v6966 = vmax.f32 %v6770, 0.0
  %v6967 = vmax.f32 %v6771, 0.0
  %v6968 = vmax.f32 %v6772, 0.0
  %v6969 = vmax.f32 %v6773, 0.0
  %v6970 = vmax.f32 %v6774, 0.0
  %v6971 = vmax.f32 %v6775, 0.0
  %v6972 = vmax.f32 %v6776, 0.0
  %v6973 = vmax.f32 %v6777, 0.0
  %v6974 = vmax.f32 %v6778, 0.0
  %v6975 = vmax.f32 %v6779, 0.0
  %v6976 = vmax.f32 %v6780, 0.0
  %v6977 = vld [vmem:[%s3] sm:$0xff]
  %v6978 = vld [vmem:[%s3 + $0x8] sm:$0xff]
  %v6979 = vld [vmem:[%s3 + $0x10] sm:$0xff]
  %v6980 = vld [vmem:[%s3 + $0x18] sm:$0xff]
  %v6981 = vld [vmem:[%s3 + $0x20] sm:$0xff]
  %v6982 = vld [vmem:[%s3 + $0x28] sm:$0xff]
  %v6983 = vld [vmem:[%s3 + $0x30] sm:$0xff]
  %v6984 = vld [vmem:[%s3 + $0x38] sm:$0xff]
  %v6985 = vld [vmem:[%s3 + $0x40] sm:$0xff]
  %v6986 = vld [vmem:[%s3 + $0x48] sm:$0xff]
  %v6987 = vld [vmem:[%s3 + $0x50] sm:$0xff]
  %v6988 = vld [vmem:[%s3 + $0x58] sm:$0xff]
  %v6989 = vld [vmem:[%s3 + $0x60] sm:$0xff]
  %v6990 = vld [vmem:[%s3 + $0x68] sm:$0xff]
  %v6991 = vld [vmem:[%s3 + $0x70] sm:$0xff]
  %v6992 = vld [vmem:[%s3 + $0x78] sm:$0xff]
  %v6993 = vld [vmem:[%s3 + $0x80] sm:$0xff]
  %v6994 = vld [vmem:[%s3 + $0x88] sm:$0xff]
  %v6995 = vld [vmem:[%s3 + $0x90] sm:$0xff]
  %v6996 = vld [vmem:[%s3 + $0x98] sm:$0xff]
  %v6997 = vld [vmem:[%s3 + $0xa0] sm:$0xff]
  %v6998 = vld [vmem:[%s3 + $0xa8] sm:$0xff]
  %v6999 = vld [vmem:[%s3 + $0xb0] sm:$0xff]
  %v7000 = vld [vmem:[%s3 + $0xb8] sm:$0xff]
  %v7001 = vld [vmem:[%s3 + $0xc0] sm:$0xff]
  %v7002 = vld [vmem:[%s3 + $0xc8] sm:$0xff]
  %v7003 = vld [vmem:[%s3 + $0xd0] sm:$0xff]
  %v7004 = vld [vmem:[%s3 + $0xd8] sm:$0xff]
  %v7005 = vld [vmem:[%s3 + $0xe0] sm:$0xff]
  %v7006 = vld [vmem:[%s3 + $0xe8] sm:$0xff]
  %v7007 = vld [vmem:[%s3 + $0xf0] sm:$0xff]
  %v7008 = vld [vmem:[%s3 + $0xf8] sm:$0xff]
  %v7009 = vld [vmem:[%s3 + $0x100] sm:$0xff]
  %v7010 = vld [vmem:[%s3 + $0x108] sm:$0xff]
  %v7011 = vld [vmem:[%s3 + $0x110] sm:$0xff]
  %v7012 = vld [vmem:[%s3 + $0x118] sm:$0xff]
  %v7013 = vld [vmem:[%s3 + $0x120] sm:$0xff]
  %v7014 = vld [vmem:[%s3 + $0x128] sm:$0xff]
  %v7015 = vld [vmem:[%s3 + $0x130] sm:$0xff]
  %v7016 = vld [vmem:[%s3 + $0x138] sm:$0xff]
  %v7017 = vld [vmem:[%s3 + $0x140] sm:$0xff]
  %v7018 = vld [vmem:[%s3 + $0x148] sm:$0xff]
  %v7019 = vld [vmem:[%s3 + $0x150] sm:$0xff]
  %v7020 = vld [vmem:[%s3 + $0x158] sm:$0xff]
  %v7021 = vld [vmem:[%s3 + $0x160] sm:$0xff]
  %v7022 = vld [vmem:[%s3 + $0x168] sm:$0xff]
  %v7023 = vld [vmem:[%s3 + $0x170] sm:$0xff]
  %v7024 = vld [vmem:[%s3 + $0x178] sm:$0xff]
  %v7025 = vld [vmem:[%s3 + $0x180] sm:$0xff]
  %v7026 = vld [vmem:[%s3 + $0x188] sm:$0xff]
  %v7027 = vld [vmem:[%s3 + $0x190] sm:$0xff]
  %v7028 = vld [vmem:[%s3 + $0x198] sm:$0xff]
  %v7029 = vld [vmem:[%s3 + $0x1a0] sm:$0xff]
  %v7030 = vld [vmem:[%s3 + $0x1a8] sm:$0xff]
  %v7031 = vld [vmem:[%s3 + $0x1b0] sm:$0xff]
  %v7032 = vld [vmem:[%s3 + $0x1b8] sm:$0xff]
  %v7033 = vld [vmem:[%s3 + $0x1c0] sm:$0xff]
  %v7034 = vld [vmem:[%s3 + $0x1c8] sm:$0xff]
  %v7035 = vld [vmem:[%s3 + $0x1d0] sm:$0xff]
  %v7036 = vld [vmem:[%s3 + $0x1d8] sm:$0xff]
  %v7037 = vld [vmem:[%s3 + $0x1e0] sm:$0xff]
  %v7038 = vld [vmem:[%s3 + $0x1e8] sm:$0xff]
  %v7039 = vld [vmem:[%s3 + $0x1f0] sm:$0xff]
  %v7040 = vld [vmem:[%s3 + $0x1f8] sm:$0xff]
  %v7041 = vld [vmem:[%s3 + $0x200] sm:$0xff]
  %v7042 = vld [vmem:[%s3 + $0x208] sm:$0xff]
  %v7043 = vld [vmem:[%s3 + $0x210] sm:$0xff]
  %v7044 = vld [vmem:[%s3 + $0x218] sm:$0xff]
  %v7045 = vld [vmem:[%s3 + $0x220] sm:$0xff]
  %v7046 = vld [vmem:[%s3 + $0x228] sm:$0xff]
  %v7047 = vld [vmem:[%s3 + $0x230] sm:$0xff]
  %v7048 = vld [vmem:[%s3 + $0x238] sm:$0xff]
  %v7049 = vld [vmem:[%s3 + $0x240] sm:$0xff]
  %v7050 = vld [vmem:[%s3 + $0x248] sm:$0xff]
  %v7051 = vld [vmem:[%s3 + $0x250] sm:$0xff]
  %v7052 = vld [vmem:[%s3 + $0x258] sm:$0xff]
  %v7053 = vld [vmem:[%s3 + $0x260] sm:$0xff]
  %v7054 = vld [vmem:[%s3 + $0x268] sm:$0xff]
  %v7055 = vld [vmem:[%s3 + $0x270] sm:$0xff]
  %v7056 = vld [vmem:[%s3 + $0x278] sm:$0xff]
  %v7057 = vld [vmem:[%s3 + $0x280] sm:$0xff]
  %v7058 = vld [vmem:[%s3 + $0x288] sm:$0xff]
  %v7059 = vld [vmem:[%s3 + $0x290] sm:$0xff]
  %v7060 = vld [vmem:[%s3 + $0x298] sm:$0xff]
  %v7061 = vld [vmem:[%s3 + $0x2a0] sm:$0xff]
  %v7062 = vld [vmem:[%s3 + $0x2a8] sm:$0xff]
  %v7063 = vld [vmem:[%s3 + $0x2b0] sm:$0xff]
  %v7064 = vld [vmem:[%s3 + $0x2b8] sm:$0xff]
  %v7065 = vld [vmem:[%s3 + $0x2c0] sm:$0xff]
  %v7066 = vld [vmem:[%s3 + $0x2c8] sm:$0xff]
  %v7067 = vld [vmem:[%s3 + $0x2d0] sm:$0xff]
  %v7068 = vld [vmem:[%s3 + $0x2d8] sm:$0xff]
  %v7069 = vld [vmem:[%s3 + $0x2e0] sm:$0xff]
  %v7070 = vld [vmem:[%s3 + $0x2e8] sm:$0xff]
  %v7071 = vld [vmem:[%s3 + $0x2f0] sm:$0xff]
  %v7072 = vld [vmem:[%s3 + $0x2f8] sm:$0xff]
  %v7073 = vld [vmem:[%s3 + $0x300] sm:$0xff]
  %v7074 = vld [vmem:[%s3 + $0x308] sm:$0xff]
  %v7075 = vld [vmem:[%s3 + $0x310] sm:$0xff]
  %v7076 = vld [vmem:[%s3 + $0x318] sm:$0xff]
  %v7077 = vld [vmem:[%s3 + $0x320] sm:$0xff]
  %v7078 = vld [vmem:[%s3 + $0x328] sm:$0xff]
  %v7079 = vld [vmem:[%s3 + $0x330] sm:$0xff]
  %v7080 = vld [vmem:[%s3 + $0x338] sm:$0xff]
  %v7081 = vld [vmem:[%s3 + $0x340] sm:$0xff]
  %v7082 = vld [vmem:[%s3 + $0x348] sm:$0xff]
  %v7083 = vld [vmem:[%s3 + $0x350] sm:$0xff]
  %v7084 = vld [vmem:[%s3 + $0x358] sm:$0xff]
  %v7085 = vld [vmem:[%s3 + $0x360] sm:$0xff]
  %v7086 = vld [vmem:[%s3 + $0x368] sm:$0xff]
  %v7087 = vld [vmem:[%s3 + $0x370] sm:$0xff]
  %v7088 = vld [vmem:[%s3 + $0x378] sm:$0xff]
  %v7089 = vld [vmem:[%s3 + $0x380] sm:$0xff]
  %v7090 = vld [vmem:[%s3 + $0x388] sm:$0xff]
  %v7091 = vld [vmem:[%s3 + $0x390] sm:$0xff]
  %v7092 = vld [vmem:[%s3 + $0x398] sm:$0xff]
  %v7093 = vld [vmem:[%s3 + $0x3a0] sm:$0xff]
  %v7094 = vld [vmem:[%s3 + $0x3a8] sm:$0xff]
  %v7095 = vld [vmem:[%s3 + $0x3b0] sm:$0xff]
  %v7096 = vld [vmem:[%s3 + $0x3b8] sm:$0xff]
  %v7097 = vld [vmem:[%s3 + $0x3c0] sm:$0xff]
  %v7098 = vld [vmem:[%s3 + $0x3c8] sm:$0xff]
  %v7099 = vld [vmem:[%s3 + $0x3d0] sm:$0xff]
  %v7100 = vld [vmem:[%s3 + $0x3d8] sm:$0xff]
  %v7101 = vld [vmem:[%s3 + $0x3e0] sm:$0xff]
  %v7102 = vld [vmem:[%s3 + $0x3e8] sm:$0xff]
  %v7103 = vld [vmem:[%s3 + $0x3f0] sm:$0xff]
  %v7104 = vld [vmem:[%s3 + $0x3f8] sm:$0xff]
  %v7105 = vld [vmem:[%s3 + $0x400] sm:$0xff]
  %v7106 = vld [vmem:[%s3 + $0x408] sm:$0xff]
  %v7107 = vld [vmem:[%s3 + $0x410] sm:$0xff]
  %v7108 = vld [vmem:[%s3 + $0x418] sm:$0xff]
  %v7109 = vld [vmem:[%s3 + $0x420] sm:$0xff]
  %v7110 = vld [vmem:[%s3 + $0x428] sm:$0xff]
  %v7111 = vld [vmem:[%s3 + $0x430] sm:$0xff]
  %v7112 = vld [vmem:[%s3 + $0x438] sm:$0xff]
  %v7113 = vld [vmem:[%s3 + $0x440] sm:$0xff]
  %v7114 = vld [vmem:[%s3 + $0x448] sm:$0xff]
  %v7115 = vld [vmem:[%s3 + $0x450] sm:$0xff]
  %v7116 = vld [vmem:[%s3 + $0x458] sm:$0xff]
  %v7117 = vld [vmem:[%s3 + $0x460] sm:$0xff]
  %v7118 = vld [vmem:[%s3 + $0x468] sm:$0xff]
  %v7119 = vld [vmem:[%s3 + $0x470] sm:$0xff]
  %v7120 = vld [vmem:[%s3 + $0x478] sm:$0xff]
  %v7121 = vld [vmem:[%s3 + $0x480] sm:$0xff]
  %v7122 = vld [vmem:[%s3 + $0x488] sm:$0xff]
  %v7123 = vld [vmem:[%s3 + $0x490] sm:$0xff]
  %v7124 = vld [vmem:[%s3 + $0x498] sm:$0xff]
  %v7125 = vld [vmem:[%s3 + $0x4a0] sm:$0xff]
  %v7126 = vld [vmem:[%s3 + $0x4a8] sm:$0xff]
  %v7127 = vld [vmem:[%s3 + $0x4b0] sm:$0xff]
  %v7128 = vld [vmem:[%s3 + $0x4b8] sm:$0xff]
  %v7129 = vld [vmem:[%s3 + $0x4c0] sm:$0xff]
  %v7130 = vld [vmem:[%s3 + $0x4c8] sm:$0xff]
  %v7131 = vld [vmem:[%s3 + $0x4d0] sm:$0xff]
  %v7132 = vld [vmem:[%s3 + $0x4d8] sm:$0xff]
  %v7133 = vld [vmem:[%s3 + $0x4e0] sm:$0xff]
  %v7134 = vld [vmem:[%s3 + $0x4e8] sm:$0xff]
  %v7135 = vld [vmem:[%s3 + $0x4f0] sm:$0xff]
  %v7136 = vld [vmem:[%s3 + $0x4f8] sm:$0xff]
  %v7137 = vld [vmem:[%s3 + $0x500] sm:$0xff]
  %v7138 = vld [vmem:[%s3 + $0x508] sm:$0xff]
  %v7139 = vld [vmem:[%s3 + $0x510] sm:$0xff]
  %v7140 = vld [vmem:[%s3 + $0x518] sm:$0xff]
  %v7141 = vld [vmem:[%s3 + $0x520] sm:$0xff]
  %v7142 = vld [vmem:[%s3 + $0x528] sm:$0xff]
  %v7143 = vld [vmem:[%s3 + $0x530] sm:$0xff]
  %v7144 = vld [vmem:[%s3 + $0x538] sm:$0xff]
  %v7145 = vld [vmem:[%s3 + $0x540] sm:$0xff]
  %v7146 = vld [vmem:[%s3 + $0x548] sm:$0xff]
  %v7147 = vld [vmem:[%s3 + $0x550] sm:$0xff]
  %v7148 = vld [vmem:[%s3 + $0x558] sm:$0xff]
  %v7149 = vld [vmem:[%s3 + $0x560] sm:$0xff]
  %v7150 = vld [vmem:[%s3 + $0x568] sm:$0xff]
  %v7151 = vld [vmem:[%s3 + $0x570] sm:$0xff]
  %v7152 = vld [vmem:[%s3 + $0x578] sm:$0xff]
  %v7153 = vld [vmem:[%s3 + $0x580] sm:$0xff]
  %v7154 = vld [vmem:[%s3 + $0x588] sm:$0xff]
  %v7155 = vld [vmem:[%s3 + $0x590] sm:$0xff]
  %v7156 = vld [vmem:[%s3 + $0x598] sm:$0xff]
  %v7157 = vld [vmem:[%s3 + $0x5a0] sm:$0xff]
  %v7158 = vld [vmem:[%s3 + $0x5a8] sm:$0xff]
  %v7159 = vld [vmem:[%s3 + $0x5b0] sm:$0xff]
  %v7160 = vld [vmem:[%s3 + $0x5b8] sm:$0xff]
  %v7161 = vld [vmem:[%s3 + $0x5c0] sm:$0xff]
  %v7162 = vld [vmem:[%s3 + $0x5c8] sm:$0xff]
  %v7163 = vld [vmem:[%s3 + $0x5d0] sm:$0xff]
  %v7164 = vld [vmem:[%s3 + $0x5d8] sm:$0xff]
  %v7165 = vld [vmem:[%s3 + $0x5e0] sm:$0xff]
  %v7166 = vld [vmem:[%s3 + $0x5e8] sm:$0xff]
  %v7167 = vld [vmem:[%s3 + $0x5f0] sm:$0xff]
  %v7168 = vld [vmem:[%s3 + $0x5f8] sm:$0xff]
  %v7169 = vld [vmem:[%s3 + $0x600] sm:$0xff]
  %v7170 = vld [vmem:[%s3 + $0x608] sm:$0xff]
  %v7171 = vld [vmem:[%s3 + $0x610] sm:$0xff]
  %v7172 = vld [vmem:[%s3 + $0x618] sm:$0xff]
  %v7173 = vmul.f32 %v6781, %v6977
  %v7174 = vmul.f32 %v6782, %v6978
  %v7175 = vmul.f32 %v6783, %v6979
  %v7176 = vmul.f32 %v6784, %v6980
  %v7177 = vmul.f32 %v6785, %v6981
  %v7178 = vmul.f32 %v6786, %v6982
  %v7179 = vmul.f32 %v6787, %v6983
  %v7180 = vmul.f32 %v6788, %v6984
  %v7181 = vmul.f32 %v6789, %v6985
  %v7182 = vmul.f32 %v6790, %v6986
  %v7183 = vmul.f32 %v6791, %v6987
  %v7184 = vmul.f32 %v6792, %v6988
  %v7185 = vmul.f32 %v6793, %v6989
  %v7186 = vmul.f32 %v6794, %v6990
  %v7187 = vmul.f32 %v6795, %v6991
  %v7188 = vmul.f32 %v6796, %v6992
  %v7189 = vmul.f32 %v6797, %v6993
  %v7190 = vmul.f32 %v6798, %v6994
  %v7191 = vmul.f32 %v6799, %v6995
  %v7192 = vmul.f32 %v6800, %v6996
  %v7193 = vmul.f32 %v6801, %v6997
  %v7194 = vmul.f32 %v6802, %v6998
  %v7195 = vmul.f32 %v6803, %v6999
  %v7196 = vmul.f32 %v6804, %v7000
  %v7197 = vmul.f32 %v6805, %v7001
  %v7198 = vmul.f32 %v6806, %v7002
  %v7199 = vmul.f32 %v6807, %v7003
  %v7200 = vmul.f32 %v6808, %v7004
  %v7201 = vmul.f32 %v6809, %v7005
  %v7202 = vmul.f32 %v6810, %v7006
  %v7203 = vmul.f32 %v6811, %v7007
  %v7204 = vmul.f32 %v6812, %v7008
  %v7205 = vmul.f32 %v6813, %v7009
  %v7206 = vmul.f32 %v6814, %v7010
  %v7207 = vmul.f32 %v6815, %v7011
  %v7208 = vmul.f32 %v6816, %v7012
  %v7209 = vmul.f32 %v6817, %v7013
  %v7210 = vmul.f32 %v6818, %v7014
  %v7211 = vmul.f32 %v6819, %v7015
  %v7212 = vmul.f32 %v6820, %v7016
  %v7213 = vmul.f32 %v6821, %v7017
  %v7214 = vmul.f32 %v6822, %v7018
  %v7215 = vmul.f32 %v6823, %v7019
  %v7216 = vmul.f32 %v6824, %v7020
  %v7217 = vmul.f32 %v6825, %v7021
  %v7218 = vmul.f32 %v6826, %v7022
  %v7219 = vmul.f32 %v6827, %v7023
  %v7220 = vmul.f32 %v6828, %v7024
  %v7221 = vmul.f32 %v6829, %v7025
  %v7222 = vmul.f32 %v6830, %v7026
  %v7223 = vmul.f32 %v6831, %v7027
  %v7224 = vmul.f32 %v6832, %v7028
  %v7225 = vmul.f32 %v6833, %v7029
  %v7226 = vmul.f32 %v6834, %v7030
  %v7227 = vmul.f32 %v6835, %v7031
  %v7228 = vmul.f32 %v6836, %v7032
  %v7229 = vmul.f32 %v6837, %v7033
  %v7230 = vmul.f32 %v6838, %v7034
  %v7231 = vmul.f32 %v6839, %v7035
  %v7232 = vmul.f32 %v6840, %v7036
  %v7233 = vmul.f32 %v6841, %v7037
  %v7234 = vmul.f32 %v6842, %v7038
  %v7235 = vmul.f32 %v6843, %v7039
  %v7236 = vmul.f32 %v6844, %v7040
  %v7237 = vmul.f32 %v6845, %v7041
  %v7238 = vmul.f32 %v6846, %v7042
  %v7239 = vmul.f32 %v6847, %v7043
  %v7240 = vmul.f32 %v6848, %v7044
  %v7241 = vmul.f32 %v6849, %v7045
  %v7242 = vmul.f32 %v6850, %v7046
  %v7243 = vmul.f32 %v6851, %v7047
  %v7244 = vmul.f32 %v6852, %v7048
  %v7245 = vmul.f32 %v6853, %v7049
  %v7246 = vmul.f32 %v6854, %v7050
  %v7247 = vmul.f32 %v6855, %v7051
  %v7248 = vmul.f32 %v6856, %v7052
  %v7249 = vmul.f32 %v6857, %v7053
  %v7250 = vmul.f32 %v6858, %v7054
  %v7251 = vmul.f32 %v6859, %v7055
  %v7252 = vmul.f32 %v6860, %v7056
  %v7253 = vmul.f32 %v6861, %v7057
  %v7254 = vmul.f32 %v6862, %v7058
  %v7255 = vmul.f32 %v6863, %v7059
  %v7256 = vmul.f32 %v6864, %v7060
  %v7257 = vmul.f32 %v6865, %v7061
  %v7258 = vmul.f32 %v6866, %v7062
  %v7259 = vmul.f32 %v6867, %v7063
  %v7260 = vmul.f32 %v6868, %v7064
  %v7261 = vmul.f32 %v6869, %v7065
  %v7262 = vmul.f32 %v6870, %v7066
  %v7263 = vmul.f32 %v6871, %v7067
  %v7264 = vmul.f32 %v6872, %v7068
  %v7265 = vmul.f32 %v6873, %v7069
  %v7266 = vmul.f32 %v6874, %v7070
  %v7267 = vmul.f32 %v6875, %v7071
  %v7268 = vmul.f32 %v6876, %v7072
  %v7269 = vmul.f32 %v6877, %v7073
  %v7270 = vmul.f32 %v6878, %v7074
  %v7271 = vmul.f32 %v6879, %v7075
  %v7272 = vmul.f32 %v6880, %v7076
  %v7273 = vmul.f32 %v6881, %v7077
  %v7274 = vmul.f32 %v6882, %v7078
  %v7275 = vmul.f32 %v6883, %v7079
  %v7276 = vmul.f32 %v6884, %v7080
  %v7277 = vmul.f32 %v6885, %v7081
  %v7278 = vmul.f32 %v6886, %v7082
  %v7279 = vmul.f32 %v6887, %v7083
  %v7280 = vmul.f32 %v6888, %v7084
  %v7281 = vmul.f32 %v6889, %v7085
  %v7282 = vmul.f32 %v6890, %v7086
  %v7283 = vmul.f32 %v6891, %v7087
  %v7284 = vmul.f32 %v6892, %v7088
  %v7285 = vmul.f32 %v6893, %v7089
  %v7286 = vmul.f32 %v6894, %v7090
  %v7287 = vmul.f32 %v6895, %v7091
  %v7288 = vmul.f32 %v6896, %v7092
  %v7289 = vmul.f32 %v6897, %v7093
  %v7290 = vmul.f32 %v6898, %v7094
  %v7291 = vmul.f32 %v6899, %v7095
  %v7292 = vmul.f32 %v6900, %v7096
  %v7293 = vmul.f32 %v6901, %v7097
  %v7294 = vmul.f32 %v6902, %v7098
  %v7295 = vmul.f32 %v6903, %v7099
  %v7296 = vmul.f32 %v6904, %v7100
  %v7297 = vmul.f32 %v6905, %v7101
  %v7298 = vmul.f32 %v6906, %v7102
  %v7299 = vmul.f32 %v6907, %v7103
  %v7300 = vmul.f32 %v6908, %v7104
  %v7301 = vmul.f32 %v6909, %v7105
  %v7302 = vmul.f32 %v6910, %v7106
  %v7303 = vmul.f32 %v6911, %v7107
  %v7304 = vmul.f32 %v6912, %v7108
  %v7305 = vmul.f32 %v6913, %v7109
  %v7306 = vmul.f32 %v6914, %v7110
  %v7307 = vmul.f32 %v6915, %v7111
  %v7308 = vmul.f32 %v6916, %v7112
  %v7309 = vmul.f32 %v6917, %v7113
  %v7310 = vmul.f32 %v6918, %v7114
  %v7311 = vmul.f32 %v6919, %v7115
  %v7312 = vmul.f32 %v6920, %v7116
  %v7313 = vmul.f32 %v6921, %v7117
  %v7314 = vmul.f32 %v6922, %v7118
  %v7315 = vmul.f32 %v6923, %v7119
  %v7316 = vmul.f32 %v6924, %v7120
  %v7317 = vmul.f32 %v6925, %v7121
  %v7318 = vmul.f32 %v6926, %v7122
  %v7319 = vmul.f32 %v6927, %v7123
  %v7320 = vmul.f32 %v6928, %v7124
  %v7321 = vmul.f32 %v6929, %v7125
  %v7322 = vmul.f32 %v6930, %v7126
  %v7323 = vmul.f32 %v6931, %v7127
  %v7324 = vmul.f32 %v6932, %v7128
  %v7325 = vmul.f32 %v6933, %v7129
  %v7326 = vmul.f32 %v6934, %v7130
  %v7327 = vmul.f32 %v6935, %v7131
  %v7328 = vmul.f32 %v6936, %v7132
  %v7329 = vmul.f32 %v6937, %v7133
  %v7330 = vmul.f32 %v6938, %v7134
  %v7331 = vmul.f32 %v6939, %v7135
  %v7332 = vmul.f32 %v6940, %v7136
  %v7333 = vmul.f32 %v6941, %v7137
  %v7334 = vmul.f32 %v6942, %v7138
  %v7335 = vmul.f32 %v6943, %v7139
  %v7336 = vmul.f32 %v6944, %v7140
  %v7337 = vmul.f32 %v6945, %v7141
  %v7338 = vmul.f32 %v6946, %v7142
  %v7339 = vmul.f32 %v6947, %v7143
  %v7340 = vmul.f32 %v6948, %v7144
  %v7341 = vmul.f32 %v6949, %v7145
  %v7342 = vmul.f32 %v6950, %v7146
  %v7343 = vmul.f32 %v6951, %v7147
  %v7344 = vmul.f32 %v6952, %v7148
  %v7345 = vmul.f32 %v6953, %v7149
  %v7346 = vmul.f32 %v6954, %v7150
  %v7347 = vmul.f32 %v6955, %v7151
  %v7348 = vmul.f32 %v6956, %v7152
  %v7349 = vmul.f32 %v6957, %v7153
  %v7350 = vmul.f32 %v6958, %v7154
  %v7351 = vmul.f32 %v6959, %v7155
  %v7352 = vmul.f32 %v6960, %v7156
  %v7353 = vmul.f32 %v6961, %v7157
  %v7354 = vmul.f32 %v6962, %v7158
  %v7355 = vmul.f32 %v6963, %v7159
  %v7356 = vmul.f32 %v6964, %v7160
  %v7357 = vmul.f32 %v6965, %v7161
  %v7358 = vmul.f32 %v6966, %v7162
  %v7359 = vmul.f32 %v6967, %v7163
  %v7360 = vmul.f32 %v6968, %v7164
  %v7361 = vmul.f32 %v6969, %v7165
  %v7362 = vmul.f32 %v6970, %v7166
  %v7363 = vmul.f32 %v6971, %v7167
  %v7364 = vmul.f32 %v6972, %v7168
  %v7365 = vmul.f32 %v6973, %v7169
  %v7366 = vmul.f32 %v6974, %v7170
  %v7367 = vmul.f32 %v6975, %v7171
  %v7368 = vmul.f32 %v6976, %v7172
  %v7369 = vld [vmem:[%s4] sm:$0xff]
  %v7370 = vld [vmem:[%s4 + $0x8] sm:$0xff]
  %v7371 = vld [vmem:[%s4 + $0x10] sm:$0xff]
  %v7372 = vld [vmem:[%s4 + $0x18] sm:$0xff]
  %v7373 = vld [vmem:[%s4 + $0x20] sm:$0xff]
  %v7374 = vld [vmem:[%s4 + $0x28] sm:$0xff]
  %v7375 = vld [vmem:[%s4 + $0x30] sm:$0xff]
  %v7376 = vld [vmem:[%s4 + $0x38] sm:$0xff]
  %v7377 = vld [vmem:[%s4 + $0x40] sm:$0xff]
  %v7378 = vld [vmem:[%s4 + $0x48] sm:$0xff]
  %v7379 = vld [vmem:[%s4 + $0x50] sm:$0xff]
  %v7380 = vld [vmem:[%s4 + $0x58] sm:$0xff]
  %v7381 = vld [vmem:[%s4 + $0x60] sm:$0xff]
  %vm7382 = vcmask 261120
  %v7384 = vsel %vm7382, %v7381, 0
  %7386 = vmatpush.msra.mxu0 %v7188
  %7387 = vmatpush.msra.mxu0 %v7187
  %7388 = vmatpush.msra.mxu0 %v7186
  %7389 = vmatpush.msra.mxu0 %v7185
  %7390 = vmatpush.msra.mxu0 %v7184
  %7391 = vmatpush.msra.mxu0 %v7183
  %7392 = vmatpush.msra.mxu0 %v7182
  %7393 = vmatpush.msra.mxu0 %v7181
  %7394 = vmatpush.msra.mxu0 %v7180
  %7395 = vmatpush.msra.mxu0 %v7179
  %7396 = vmatpush.msra.mxu0 %v7178
  %7397 = vmatpush.msra.mxu0 %v7177
  %7398 = vmatpush.msra.mxu0 %v7176
  %7399 = vmatpush.msra.mxu0 %v7175
  %7400 = vmatpush.msra.mxu0 %v7174
  %7401 = vmatpush.msra.mxu0 %v7173
  %7402 = vmatmul.f32.gmra.mxu0 %v7369
  %v7403 = vpop.f32.mrf.mxu0
  %v7404 = vadd.f32 0.0, %v7403
  %7405 = vdwg.mxu0
  %7406 = vmatpush.msra.mxu0 %v7204
  %7407 = vmatpush.msra.mxu0 %v7203
  %7408 = vmatpush.msra.mxu0 %v7202
  %7409 = vmatpush.msra.mxu0 %v7201
  %7410 = vmatpush.msra.mxu0 %v7200
  %7411 = vmatpush.msra.mxu0 %v7199
  %7412 = vmatpush.msra.mxu0 %v7198
  %7413 = vmatpush.msra.mxu0 %v7197
  %7414 = vmatpush.msra.mxu0 %v7196
  %7415 = vmatpush.msra.mxu0 %v7195
  %7416 = vmatpush.msra.mxu0 %v7194
  %7417 = vmatpush.msra.mxu0 %v7193
  %7418 = vmatpush.msra.mxu0 %v7192
  %7419 = vmatpush.msra.mxu0 %v7191
  %7420 = vmatpush.msra.mxu0 %v7190
  %7421 = vmatpush.msra.mxu0 %v7189
  %7422 = vmatmul.f32.gmra.mxu0 %v7370
  %v7423 = vpop.f32.mrf.mxu0
  %v7424 = vadd.f32 %v7404, %v7423
  %7425 = vdwg.mxu0
  %7426 = vmatpush.msra.mxu0 %v7220
  %7427 = vmatpush.msra.mxu0 %v7219
  %7428 = vmatpush.msra.mxu0 %v7218
  %7429 = vmatpush.msra.mxu0 %v7217
  %7430 = vmatpush.msra.mxu0 %v7216
  %7431 = vmatpush.msra.mxu0 %v7215
  %7432 = vmatpush.msra.mxu0 %v7214
  %7433 = vmatpush.msra.mxu0 %v7213
  %7434 = vmatpush.msra.mxu0 %v7212
  %7435 = vmatpush.msra.mxu0 %v7211
  %7436 = vmatpush.msra.mxu0 %v7210
  %7437 = vmatpush.msra.mxu0 %v7209
  %7438 = vmatpush.msra.mxu0 %v7208
  %7439 = vmatpush.msra.mxu0 %v7207
  %7440 = vmatpush.msra.mxu0 %v7206
  %7441 = vmatpush.msra.mxu0 %v7205
  %7442 = vmatmul.f32.gmra.mxu0 %v7371
  %v7443 = vpop.f32.mrf.mxu0
  %v7444 = vadd.f32 %v7424, %v7443
  %7445 = vdwg.mxu0
  %7446 = vmatpush.msra.mxu0 %v7236
  %7447 = vmatpush.msra.mxu0 %v7235
  %7448 = vmatpush.msra.mxu0 %v7234
  %7449 = vmatpush.msra.mxu0 %v7233
  %7450 = vmatpush.msra.mxu0 %v7232
  %7451 = vmatpush.msra.mxu0 %v7231
  %7452 = vmatpush.msra.mxu0 %v7230
  %7453 = vmatpush.msra.mxu0 %v7229
  %7454 = vmatpush.msra.mxu0 %v7228
  %7455 = vmatpush.msra.mxu0 %v7227
  %7456 = vmatpush.msra.mxu0 %v7226
  %7457 = vmatpush.msra.mxu0 %v7225
  %7458 = vmatpush.msra.mxu0 %v7224
  %7459 = vmatpush.msra.mxu0 %v7223
  %7460 = vmatpush.msra.mxu0 %v7222
  %7461 = vmatpush.msra.mxu0 %v7221
  %7462 = vmatmul.f32.gmra.mxu0 %v7372
  %v7463 = vpop.f32.mrf.mxu0
  %v7464 = vadd.f32 %v7444, %v7463
  %7465 = vdwg.mxu0
  %7466 = vmatpush.msra.mxu0 %v7252
  %7467 = vmatpush.msra.mxu0 %v7251
  %7468 = vmatpush.msra.mxu0 %v7250
  %7469 = vmatpush.msra.mxu0 %v7249
  %7470 = vmatpush.msra.mxu0 %v7248
  %7471 = vmatpush.msra.mxu0 %v7247
  %7472 = vmatpush.msra.mxu0 %v7246
  %7473 = vmatpush.msra.mxu0 %v7245
  %7474 = vmatpush.msra.mxu0 %v7244
  %7475 = vmatpush.msra.mxu0 %v7243
  %7476 = vmatpush.msra.mxu0 %v7242
  %7477 = vmatpush.msra.mxu0 %v7241
  %7478 = vmatpush.msra.mxu0 %v7240
  %7479 = vmatpush.msra.mxu0 %v7239
  %7480 = vmatpush.msra.mxu0 %v7238
  %7481 = vmatpush.msra.mxu0 %v7237
  %7482 = vmatmul.f32.gmra.mxu0 %v7373
  %v7483 = vpop.f32.mrf.mxu0
  %v7484 = vadd.f32 %v7464, %v7483
  %7485 = vdwg.mxu0
  %7486 = vmatpush.msra.mxu0 %v7268
  %7487 = vmatpush.msra.mxu0 %v7267
  %7488 = vmatpush.msra.mxu0 %v7266
  %7489 = vmatpush.msra.mxu0 %v7265
  %7490 = vmatpush.msra.mxu0 %v7264
  %7491 = vmatpush.msra.mxu0 %v7263
  %7492 = vmatpush.msra.mxu0 %v7262
  %7493 = vmatpush.msra.mxu0 %v7261
  %7494 = vmatpush.msra.mxu0 %v7260
  %7495 = vmatpush.msra.mxu0 %v7259
  %7496 = vmatpush.msra.mxu0 %v7258
  %7497 = vmatpush.msra.mxu0 %v7257
  %7498 = vmatpush.msra.mxu0 %v7256
  %7499 = vmatpush.msra.mxu0 %v7255
  %7500 = vmatpush.msra.mxu0 %v7254
  %7501 = vmatpush.msra.mxu0 %v7253
  %7502 = vmatmul.f32.gmra.mxu0 %v7374
  %v7503 = vpop.f32.mrf.mxu0
  %v7504 = vadd.f32 %v7484, %v7503
  %7505 = vdwg.mxu0
  %7506 = vmatpush.msra.mxu0 %v7284
  %7507 = vmatpush.msra.mxu0 %v7283
  %7508 = vmatpush.msra.mxu0 %v7282
  %7509 = vmatpush.msra.mxu0 %v7281
  %7510 = vmatpush.msra.mxu0 %v7280
  %7511 = vmatpush.msra.mxu0 %v7279
  %7512 = vmatpush.msra.mxu0 %v7278
  %7513 = vmatpush.msra.mxu0 %v7277
  %7514 = vmatpush.msra.mxu0 %v7276
  %7515 = vmatpush.msra.mxu0 %v7275
  %7516 = vmatpush.msra.mxu0 %v7274
  %7517 = vmatpush.msra.mxu0 %v7273
  %7518 = vmatpush.msra.mxu0 %v7272
  %7519 = vmatpush.msra.mxu0 %v7271
  %7520 = vmatpush.msra.mxu0 %v7270
  %7521 = vmatpush.msra.mxu0 %v7269
  %7522 = vmatmul.f32.gmra.mxu0 %v7375
  %v7523 = vpop.f32.mrf.mxu0
  %v7524 = vadd.f32 %v7504, %v7523
  %7525 = vdwg.mxu0
  %7526 = vmatpush.msra.mxu0 %v7300
  %7527 = vmatpush.msra.mxu0 %v7299
  %7528 = vmatpush.msra.mxu0 %v7298
  %7529 = vmatpush.msra.mxu0 %v7297
  %7530 = vmatpush.msra.mxu0 %v7296
  %7531 = vmatpush.msra.mxu0 %v7295
  %7532 = vmatpush.msra.mxu0 %v7294
  %7533 = vmatpush.msra.mxu0 %v7293
  %7534 = vmatpush.msra.mxu0 %v7292
  %7535 = vmatpush.msra.mxu0 %v7291
  %7536 = vmatpush.msra.mxu0 %v7290
  %7537 = vmatpush.msra.mxu0 %v7289
  %7538 = vmatpush.msra.mxu0 %v7288
  %7539 = vmatpush.msra.mxu0 %v7287
  %7540 = vmatpush.msra.mxu0 %v7286
  %7541 = vmatpush.msra.mxu0 %v7285
  %7542 = vmatmul.f32.gmra.mxu0 %v7376
  %v7543 = vpop.f32.mrf.mxu0
  %v7544 = vadd.f32 %v7524, %v7543
  %7545 = vdwg.mxu0
  %7546 = vmatpush.msra.mxu0 %v7316
  %7547 = vmatpush.msra.mxu0 %v7315
  %7548 = vmatpush.msra.mxu0 %v7314
  %7549 = vmatpush.msra.mxu0 %v7313
  %7550 = vmatpush.msra.mxu0 %v7312
  %7551 = vmatpush.msra.mxu0 %v7311
  %7552 = vmatpush.msra.mxu0 %v7310
  %7553 = vmatpush.msra.mxu0 %v7309
  %7554 = vmatpush.msra.mxu0 %v7308
  %7555 = vmatpush.msra.mxu0 %v7307
  %7556 = vmatpush.msra.mxu0 %v7306
  %7557 = vmatpush.msra.mxu0 %v7305
  %7558 = vmatpush.msra.mxu0 %v7304
  %7559 = vmatpush.msra.mxu0 %v7303
  %7560 = vmatpush.msra.mxu0 %v7302
  %7561 = vmatpush.msra.mxu0 %v7301
  %7562 = vmatmul.f32.gmra.mxu0 %v7377
  %v7563 = vpop.f32.mrf.mxu0
  %v7564 = vadd.f32 %v7544, %v7563
  %7565 = vdwg.mxu0
  %7566 = vmatpush.msra.mxu0 %v7332
  %7567 = vmatpush.msra.mxu0 %v7331
  %7568 = vmatpush.msra.mxu0 %v7330
  %7569 = vmatpush.msra.mxu0 %v7329
  %7570 = vmatpush.msra.mxu0 %v7328
  %7571 = vmatpush.msra.mxu0 %v7327
  %7572 = vmatpush.msra.mxu0 %v7326
  %7573 = vmatpush.msra.mxu0 %v7325
  %7574 = vmatpush.msra.mxu0 %v7324
  %7575 = vmatpush.msra.mxu0 %v7323
  %7576 = vmatpush.msra.mxu0 %v7322
  %7577 = vmatpush.msra.mxu0 %v7321
  %7578 = vmatpush.msra.mxu0 %v7320
  %7579 = vmatpush.msra.mxu0 %v7319
  %7580 = vmatpush.msra.mxu0 %v7318
  %7581 = vmatpush.msra.mxu0 %v7317
  %7582 = vmatmul.f32.gmra.mxu0 %v7378
  %v7583 = vpop.f32.mrf.mxu0
  %v7584 = vadd.f32 %v7564, %v7583
  %7585 = vdwg.mxu0
  %7586 = vmatpush.msra.mxu0 %v7348
  %7587 = vmatpush.msra.mxu0 %v7347
  %7588 = vmatpush.msra.mxu0 %v7346
  %7589 = vmatpush.msra.mxu0 %v7345
  %7590 = vmatpush.msra.mxu0 %v7344
  %7591 = vmatpush.msra.mxu0 %v7343
  %7592 = vmatpush.msra.mxu0 %v7342
  %7593 = vmatpush.msra.mxu0 %v7341
  %7594 = vmatpush.msra.mxu0 %v7340
  %7595 = vmatpush.msra.mxu0 %v7339
  %7596 = vmatpush.msra.mxu0 %v7338
  %7597 = vmatpush.msra.mxu0 %v7337
  %7598 = vmatpush.msra.mxu0 %v7336
  %7599 = vmatpush.msra.mxu0 %v7335
  %7600 = vmatpush.msra.mxu0 %v7334
  %7601 = vmatpush.msra.mxu0 %v7333
  %7602 = vmatmul.f32.gmra.mxu0 %v7379
  %v7603 = vpop.f32.mrf.mxu0
  %v7604 = vadd.f32 %v7584, %v7603
  %7605 = vdwg.mxu0
  %7606 = vmatpush.msra.mxu0 %v7364
  %7607 = vmatpush.msra.mxu0 %v7363
  %7608 = vmatpush.msra.mxu0 %v7362
  %7609 = vmatpush.msra.mxu0 %v7361
  %7610 = vmatpush.msra.mxu0 %v7360
  %7611 = vmatpush.msra.mxu0 %v7359
  %7612 = vmatpush.msra.mxu0 %v7358
  %7613 = vmatpush.msra.mxu0 %v7357
  %7614 = vmatpush.msra.mxu0 %v7356
  %7615 = vmatpush.msra.mxu0 %v7355
  %7616 = vmatpush.msra.mxu0 %v7354
  %7617 = vmatpush.msra.mxu0 %v7353
  %7618 = vmatpush.msra.mxu0 %v7352
  %7619 = vmatpush.msra.mxu0 %v7351
  %7620 = vmatpush.msra.mxu0 %v7350
  %7621 = vmatpush.msra.mxu0 %v7349
  %7622 = vmatmul.f32.gmra.mxu0 %v7380
  %v7623 = vpop.f32.mrf.mxu0
  %v7624 = vadd.f32 %v7604, %v7623
  %7625 = vdwg.mxu0
  %7626 = vmatpush.msra.mxu0 0.0
  %7627 = vmatpush.msra.mxu0 0.0
  %7628 = vmatpush.msra.mxu0 0.0
  %7629 = vmatpush.msra.mxu0 0.0
  %7630 = vmatpush.msra.mxu0 0.0
  %7631 = vmatpush.msra.mxu0 0.0
  %7632 = vmatpush.msra.mxu0 0.0
  %7633 = vmatpush.msra.mxu0 0.0
  %7634 = vmatpush.msra.mxu0 0.0
  %7635 = vmatpush.msra.mxu0 0.0
  %7636 = vmatpush.msra.mxu0 0.0
  %7637 = vmatpush.msra.mxu0 0.0
  %7638 = vmatpush.msra.mxu0 %v7368
  %7639 = vmatpush.msra.mxu0 %v7367
  %7640 = vmatpush.msra.mxu0 %v7366
  %7641 = vmatpush.msra.mxu0 %v7365
  %7642 = vmatmul.f32.gmra.mxu0 %v7384
  %v7643 = vpop.f32.mrf.mxu0
  %v7644 = vadd.f32 %v7624, %v7643
  %7645 = vdwg.mxu0
  %v7646 = vld [vmem:[%s5] sm:$0xff]
  %v7647 = vld [vmem:[%s5 + $0x8] sm:$0xff]
  %v7648 = vld [vmem:[%s5 + $0x10] sm:$0xff]
  %v7649 = vld [vmem:[%s5 + $0x18] sm:$0xff]
  %v7650 = vld [vmem:[%s5 + $0x20] sm:$0xff]
  %v7651 = vld [vmem:[%s5 + $0x28] sm:$0xff]
  %v7652 = vld [vmem:[%s5 + $0x30] sm:$0xff]
  %v7653 = vld [vmem:[%s5 + $0x38] sm:$0xff]
  %v7654 = vld [vmem:[%s5 + $0x40] sm:$0xff]
  %v7655 = vld [vmem:[%s5 + $0x48] sm:$0xff]
  %v7656 = vld [vmem:[%s5 + $0x50] sm:$0xff]
  %v7657 = vld [vmem:[%s5 + $0x58] sm:$0xff]
  %v7658 = vld [vmem:[%s5 + $0x60] sm:$0xff]
  %v7659 = vld [vmem:[%s5 + $0x68] sm:$0xff]
  %v7660 = vld [vmem:[%s5 + $0x70] sm:$0xff]
  %v7661 = vld [vmem:[%s5 + $0x78] sm:$0xff]
  %v7662 = vld [vmem:[%s6] sm:$0x1]
  %v7664 = vperm.slane %v7662, 0
  %7666 = vmatpush.msra.mxu0 %v7661
  %7667 = vmatpush.msra.mxu0 %v7660
  %7668 = vmatpush.msra.mxu0 %v7659
  %7669 = vmatpush.msra.mxu0 %v7658
  %7670 = vmatpush.msra.mxu0 %v7657
  %7671 = vmatpush.msra.mxu0 %v7656
  %7672 = vmatpush.msra.mxu0 %v7655
  %7673 = vmatpush.msra.mxu0 %v7654
  %7674 = vmatpush.msra.mxu0 %v7653
  %7675 = vmatpush.msra.mxu0 %v7652
  %7676 = vmatpush.msra.mxu0 %v7651
  %7677 = vmatpush.msra.mxu0 %v7650
  %7678 = vmatpush.msra.mxu0 %v7649
  %7679 = vmatpush.msra.mxu0 %v7648
  %7680 = vmatpush.msra.mxu0 %v7647
  %7681 = vmatpush.msra.mxu0 %v7646
  %7682 = vmatmul.f32.gmra.mxu0 %v7644
  %v7683 = vpop.f32.mrf.mxu0
  %v7684 = vadd.f32 %v7664, %v7683
  %7685 = vdwg.mxu0
  %7686 = vst [vmem:[%s7] sm:$0xff] %v7684
  // Predicated region
  $region30: #{lenet_forward.1} parent=0 // pred_check
    _
  $region31: #{lenet_forward.1} parent=0 // pred_check_branch
    %7688 = sbr.rel (0) target = $region33
  $region32: #{lenet_forward.1} parent=0 // pred_region
    _
  $region33: #{lenet_forward.1} parent=0 // pred_fallthru
    _
  // Predicated region
  $region34: #{lenet_forward.1} parent=0 // pred_check
    _
  $region35: #{lenet_forward.1} parent=0 // pred_check_branch
    %7690 = sbr.rel (0) target = $region37
  $region36: #{lenet_forward.1} parent=0 // pred_region
    _
  $region37: #{lenet_forward.1} parent=0 // pred_fallthru
    _

</llo_original>
